<compile_context>
chip_gen: v7x
topology: tpu7x:2x2x1
jax: 0.10.0
libtpu: 0.0.40
codegen_flags: <defaults>
</compile_context>

<pallas_src>
import functools
import math

import jax
import jax.numpy as jnp
from jax import lax
from jax.experimental import pallas as pl
from jax.experimental.pallas import tpu as pltpu

LANE = 128


def _round_up(x, m):
    return ((x + m - 1) // m) * m


# ----------------------------------------------------------------------------
# Fused ForkModule kernel: one grid step == one image, everything in VMEM.
# ----------------------------------------------------------------------------
def _fork_kernel(x_ref, w1_ref, b1_ref, w2_ref, b2_ref, w3_ref, b3_ref,
                 w4_ref, b4_ref, o_ref, pad_ref, res_ref, acc_ref, *, H, W):
    HW = H * W
    Cm = res_ref.shape[-1]                 # padded 6h (multiple of 128)
    f32 = jnp.float32
    bf16 = jnp.bfloat16

    # Zero the halo plane; the border is never written again, which gives the
    # "same" zero padding of the two 3x3 convs.
    pad_ref[...] = jnp.zeros_like(pad_ref)

    # ---- conv1: 1x1 -> bias -> ReLU ; result is also the residual ----------
    x = x_ref[0].astype(bf16)                                    # (HW, Cin)
    y = jnp.dot(x, w1_ref[...], preferred_element_type=f32)
    res_ref[...] = jnp.maximum(y + b1_ref[...], 0.0)             # (HW, Cm) f32

    # ---- 3x3 "same" conv as 9 shifted MXU matmuls over the padded plane ----
    # The image lives at rows [1, H+1) and sublane-aligned columns [8, 8+W)
    # of pad_ref; tap (ki, kj) reads rows [ki, ki+H), cols [7+kj, 7+kj+W),
    # i.e. input pixel (i+ki-1, j+kj-1) for output pixel (i, j).
    def conv3x3(w_ref, b_ref, src):                              # src: (HW,Cm) f32
        pad_ref[1:H + 1, 8:8 + W, :] = src.reshape(H, W, Cm)
        acc_ref[...] = jnp.zeros_like(acc_ref)
        for t in range(9):                                       # static unroll
            ki, kj = divmod(t, 3)
            patch = pad_ref[ki:ki + H, 7 + kj:7 + kj + W, :]
            patch = patch.reshape(HW, Cm).astype(bf16)
            acc_ref[...] += jnp.dot(patch, w_ref[t],
                                    preferred_element_type=f32)
        return acc_ref[...] + b_ref[...]

    # ---- conv2 -> ReLU ------------------------------------------------------
    y = jnp.maximum(conv3x3(w2_ref, b2_ref, res_ref[...]), 0.0)

    # ---- conv3 -> +residual -> ReLU -----------------------------------------
    y = jnp.maximum(conv3x3(w3_ref, b3_ref, y) + res_ref[...], 0.0)

    # ---- conv4: 1x1, no activation ------------------------------------------
    out = jnp.dot(y.astype(bf16), w4_ref[...], preferred_element_type=f32)
    o_ref[0] = (out + b4_ref[...]).astype(o_ref.dtype)           # lane-dense store


# ----------------------------------------------------------------------------
# Wrapper
# ----------------------------------------------------------------------------
def fork_forward(params, x1, x2):
    """x1, x2: (N, H, W, h) NHWC float32 -> (N, H, W, h) float32."""
    N, H, W, h = x1.shape
    assert x2.shape == x1.shape
    assert W % 8 == 0, "pad W to a multiple of 8 (sublane tile)"
    C_in = 2 * h
    Cm = params["w2"].shape[-1]            # padded 6h (multiple of 128)
    Co = params["w4"].shape[-1]            # padded h  (multiple of 128)
    HW = H * W

    # Channel concat (== torch cat on dim=1 for NCHW) + row flatten.
    x = jnp.concatenate([x1, x2], axis=-1).reshape(N, HW, C_in)

    kernel = functools.partial(_fork_kernel, H=H, W=W)
    out = pl.pallas_call(
        kernel,
        out_shape=jax.ShapeDtypeStruct((N, HW, Co), x1.dtype),
        grid_spec=pltpu.PrefetchScalarGridSpec(
            num_scalar_prefetch=0,
            grid=(N,),                                   # one image per step
            in_specs=[
                pl.BlockSpec((1, HW, C_in), lambda n: (n, 0, 0)),   # x
                pl.BlockSpec(params["w1"].shape, lambda n: (0, 0)),
                pl.BlockSpec(params["b1"].shape, lambda n: (0, 0)),
                pl.BlockSpec(params["w2"].shape, lambda n: (0, 0, 0)),
                pl.BlockSpec(params["b2"].shape, lambda n: (0, 0)),
                pl.BlockSpec(params["w3"].shape, lambda n: (0, 0, 0)),
                pl.BlockSpec(params["b3"].shape, lambda n: (0, 0)),
                pl.BlockSpec(params["w4"].shape, lambda n: (0, 0)),
                pl.BlockSpec(params["b4"].shape, lambda n: (0, 0)),
            ],
            out_specs=pl.BlockSpec((1, HW, Co), lambda n: (n, 0, 0)),
            scratch_shapes=[
                pltpu.VMEM((H + 2, W + 16, Cm), jnp.float32),  # halo plane
                pltpu.VMEM((HW, Cm), jnp.float32),             # residual
                pltpu.VMEM((HW, Cm), jnp.float32),             # accumulator
            ],
        ),
        compiler_params=pltpu.CompilerParams(
            dimension_semantics=("parallel",),     # >=2 steps feeds both v7x TCs
            vmem_limit_bytes=48 * 1024 * 1024,
        ),
    )(x, params["w1"], params["b1"], params["w2"], params["b2"],
      params["w3"], params["b3"], params["w4"], params["b4"])

    return out[:, :, :h].reshape(N, H, W, h)       # drop zero-padded channels


# ----------------------------------------------------------------------------
# Parameters (true shapes) and lane-dense packing for the kernel
# ----------------------------------------------------------------------------
def init_true_params(key, h):
    """Unpadded f32 parameters; conv weights in HWIO layout."""
    c_in, c_mid, c_out = 2 * h, 6 * h, h
    ks = jax.random.split(key, 8)

    def w(k, fan_in, shape):
        return jax.random.normal(k, shape, jnp.float32) / math.sqrt(fan_in)

    return {
        "w1": w(ks[0], c_in, (c_in, c_mid)),              # 1x1: 2h -> 6h
        "b1": w(ks[1], c_in, (c_mid,)),
        "w2": w(ks[2], 9 * c_mid, (3, 3, c_mid, c_mid)),  # 3x3: 6h -> 6h
        "b2": w(ks[3], 9 * c_mid, (c_mid,)),
        "w3": w(ks[4], 9 * c_mid, (3, 3, c_mid, c_mid)),  # 3x3: 6h -> 6h
        "b3": w(ks[5], 9 * c_mid, (c_mid,)),
        "w4": w(ks[6], c_mid, (c_mid, c_out)),            # 1x1: 6h -> h
        "b4": w(ks[7], c_mid, (c_out,)),
    }


def pack_params(tp):
    """Zero-pad channel dims to multiples of 128; weights -> bf16, biases f32."""
    c_in, c_mid = tp["w1"].shape
    c_out = tp["w4"].shape[-1]
    Cm = _round_up(c_mid, LANE)
    Co = _round_up(c_out, LANE)

    def pad_to(a, shape):
        return jnp.pad(a, [(0, s - d) for d, s in zip(a.shape, shape)])

    return {
        "w1": pad_to(tp["w1"], (c_in, Cm)).astype(jnp.bfloat16),
        "b1": pad_to(tp["b1"], (Cm,)).reshape(1, Cm),
        "w2": pad_to(tp["w2"], (3, 3, Cm, Cm)).reshape(9, Cm, Cm).astype(jnp.bfloat16),
        "b2": pad_to(tp["b2"], (Cm,)).reshape(1, Cm),
        "w3": pad_to(tp["w3"], (3, 3, Cm, Cm)).reshape(9, Cm, Cm).astype(jnp.bfloat16),
        "b3": pad_to(tp["b3"], (Cm,)).reshape(1, Cm),
        "w4": pad_to(tp["w4"], (Cm, Co)).astype(jnp.bfloat16),
        "b4": pad_to(tp["b4"], (Co,)).reshape(1, Co),
    }


# ----------------------------------------------------------------------------
# Pure-JAX f32 reference of ForkModule.forward (NHWC)
# ----------------------------------------------------------------------------
def ref_forward(tp, x1, x2):
    hi = lax.Precision.HIGHEST

    def conv1x1(v, w, b):
        return jnp.einsum("nhwc,cd->nhwd", v, w, precision=hi) + b

    def conv3x3(v, w, b):
        return lax.conv_general_dilated(
            v, w, window_strides=(1, 1), padding="SAME",
            dimension_numbers=("NHWC", "HWIO", "NHWC"), precision=hi) + b

    x = jnp.concatenate([x1, x2], axis=-1)
    y = jax.nn.relu(conv1x1(x, tp["w1"], tp["b1"]))
    res = y
    y = jax.nn.relu(conv3x3(y, tp["w2"], tp["b2"]))
    y = jax.nn.relu(conv3x3(y, tp["w3"], tp["b3"]) + res)
    return conv1x1(y, tp["w4"], tp["b4"])


if __name__ == "__main__":
    h = 4
    N, H, W = 2, 16, 16            # grid of 2 images -> both v7x TCs get work

    key = jax.random.PRNGKey(0)
    k_p, k_x1, k_x2 = jax.random.split(key, 3)
    true_params = init_true_params(k_p, h)
    params = pack_params(true_params)
    x1 = jax.random.normal(k_x1, (N, H, W, h), jnp.float32)
    x2 = jax.random.normal(k_x2, (N, H, W, h), jnp.float32)

    out = jax.jit(fork_forward)(params, x1, x2)
    out = jax.block_until_ready(out)
    assert out.shape == (N, H, W, h), out.shape

    # Correctness check vs. f32 reference (bf16 matmul inputs -> loose tol).
    ref = ref_forward(true_params, x1, x2)
    err = float(jnp.max(jnp.abs(out - ref)))
    scale = float(jnp.max(jnp.abs(ref))) + 1e-6
    assert err <= 0.05 * scale + 0.05, f"mismatch: max_abs_err={err}, scale={scale}"

    print("KERNEL_OK")
</pallas_src>

<mosaic_0001>
module attributes {stable_mosaic.version = 11 : i64} {
  func.func @_fork_kernel(%arg0: i32, %arg1: memref<1x256x8xf32, #tpu.memory_space<vmem>>, %arg2: memref<8x128xbf16, #tpu.memory_space<vmem>>, %arg3: memref<1x128xf32, #tpu.memory_space<vmem>>, %arg4: memref<9x128x128xbf16, #tpu.memory_space<vmem>>, %arg5: memref<1x128xf32, #tpu.memory_space<vmem>>, %arg6: memref<9x128x128xbf16, #tpu.memory_space<vmem>>, %arg7: memref<1x128xf32, #tpu.memory_space<vmem>>, %arg8: memref<128x128xbf16, #tpu.memory_space<vmem>>, %arg9: memref<1x128xf32, #tpu.memory_space<vmem>>, %arg10: memref<1x256x128xf32, #tpu.memory_space<vmem>>, %arg11: memref<18x32x128xf32, #tpu.memory_space<vmem>>, %arg12: memref<256x128xf32, #tpu.memory_space<vmem>>, %arg13: memref<256x128xf32, #tpu.memory_space<vmem>>) attributes {dimension_semantics = [#tpu.dimension_semantics<parallel>], iteration_bounds = array<i64: 2>, scalar_prefetch = 0 : i64, scratch_operands = 3 : i64, tpu.core_type = #tpu.core_type<tc>, window_params = [{transform_indices = @transform_0, window_bounds = array<i64: 1, 256, 8>}, {pipeline_mode = #tpu.pipeline_mode<synchronous>, transform_indices = @transform_1, window_bounds = array<i64: 8, 128>}, {pipeline_mode = #tpu.pipeline_mode<synchronous>, transform_indices = @transform_2, window_bounds = array<i64: 1, 128>}, {pipeline_mode = #tpu.pipeline_mode<synchronous>, transform_indices = @transform_3, window_bounds = array<i64: 9, 128, 128>}, {pipeline_mode = #tpu.pipeline_mode<synchronous>, transform_indices = @transform_4, window_bounds = array<i64: 1, 128>}, {pipeline_mode = #tpu.pipeline_mode<synchronous>, transform_indices = @transform_5, window_bounds = array<i64: 9, 128, 128>}, {pipeline_mode = #tpu.pipeline_mode<synchronous>, transform_indices = @transform_6, window_bounds = array<i64: 1, 128>}, {pipeline_mode = #tpu.pipeline_mode<synchronous>, transform_indices = @transform_7, window_bounds = array<i64: 128, 128>}, {pipeline_mode = #tpu.pipeline_mode<synchronous>, transform_indices = @transform_8, window_bounds = array<i64: 1, 128>}, {transform_indices = @transform_9, window_bounds = array<i64: 1, 256, 128>}]} {
    %cst = arith.constant 0.000000e+00 : f32
    %0 = vector.broadcast %cst : f32 to vector<18x32x128xf32>
    %c0 = arith.constant 0 : index
    %c0_0 = arith.constant 0 : index
    %c0_1 = arith.constant 0 : index
    %1 = vector.load %arg11[%c0, %c0_0, %c0_1] : memref<18x32x128xf32, #tpu.memory_space<vmem>>, vector<18x32x128xf32>
    tpu.vector_store %arg11[%c0, %c0_0, %c0_1], %0 {strides = array<i32>} : memref<18x32x128xf32, #tpu.memory_space<vmem>>, vector<18x32x128xf32>,
    %c0_2 = arith.constant 0 : index
    %c0_3 = arith.constant 0 : index
    %c0_4 = arith.constant 0 : index
    %2 = vector.load %arg1[%c0_2, %c0_3, %c0_4] : memref<1x256x8xf32, #tpu.memory_space<vmem>>, vector<1x256x8xf32>
    %3 = vector.shape_cast %2 : vector<1x256x8xf32> to vector<256x8xf32>
    %4 = arith.truncf %3 : vector<256x8xf32> to vector<256x8xbf16>
    %c0_5 = arith.constant 0 : index
    %c0_6 = arith.constant 0 : index
    %5 = vector.load %arg2[%c0_5, %c0_6] : memref<8x128xbf16, #tpu.memory_space<vmem>>, vector<8x128xbf16>
    %cst_7 = arith.constant dense<0.000000e+00> : vector<256x128xf32>
    %6 = tpu.matmul %4, %5, %cst_7 {dimension_numbers = #tpu.dot_dimension_numbers<[1], [0], [0], [1], [0, 0, 1, 1], [], []>} : vector<256x8xbf16>, vector<8x128xbf16>, vector<256x128xf32> -> vector<256x128xf32>
    %c0_8 = arith.constant 0 : index
    %c0_9 = arith.constant 0 : index
    %7 = vector.load %arg3[%c0_8, %c0_9] : memref<1x128xf32, #tpu.memory_space<vmem>>, vector<1x128xf32>
    %8 = vector.broadcast %7 : vector<1x128xf32> to vector<256x128xf32>
    %9 = arith.addf %6, %8 : vector<256x128xf32>
    %cst_10 = arith.constant 0.000000e+00 : f32
    %10 = vector.broadcast %cst_10 : f32 to vector<256x128xf32>
    %11 = arith.maximumf %9, %10 : vector<256x128xf32>
    %c0_11 = arith.constant 0 : index
    %c0_12 = arith.constant 0 : index
    %12 = vector.load %arg12[%c0_11, %c0_12] : memref<256x128xf32, #tpu.memory_space<vmem>>, vector<256x128xf32>
    tpu.vector_store %arg12[%c0_11, %c0_12], %11 {strides = array<i32>} : memref<256x128xf32, #tpu.memory_space<vmem>>, vector<256x128xf32>,
    %c0_13 = arith.constant 0 : index
    %c0_14 = arith.constant 0 : index
    %13 = vector.load %arg12[%c0_13, %c0_14] : memref<256x128xf32, #tpu.memory_space<vmem>>, vector<256x128xf32>
    %14 = vector.shape_cast %13 : vector<256x128xf32> to vector<16x16x128xf32>
    %c1 = arith.constant 1 : index
    %c8 = arith.constant 8 : index
    %c0_15 = arith.constant 0 : index
    %15 = vector.load %arg11[%c1, %c8, %c0_15] : memref<18x32x128xf32, #tpu.memory_space<vmem>>, vector<16x16x128xf32>
    tpu.vector_store %arg11[%c1, %c8, %c0_15], %14 {strides = array<i32>} : memref<18x32x128xf32, #tpu.memory_space<vmem>>, vector<16x16x128xf32>,
    %cst_16 = arith.constant 0.000000e+00 : f32
    %16 = vector.broadcast %cst_16 : f32 to vector<256x128xf32>
    %c0_17 = arith.constant 0 : index
    %c0_18 = arith.constant 0 : index
    %17 = vector.load %arg13[%c0_17, %c0_18] : memref<256x128xf32, #tpu.memory_space<vmem>>, vector<256x128xf32>
    tpu.vector_store %arg13[%c0_17, %c0_18], %16 {strides = array<i32>} : memref<256x128xf32, #tpu.memory_space<vmem>>, vector<256x128xf32>,
    %c0_19 = arith.constant 0 : index
    %c7 = arith.constant 7 : index
    %c0_20 = arith.constant 0 : index
    %18 = vector.load %arg11[%c0_19, %c7, %c0_20] : memref<18x32x128xf32, #tpu.memory_space<vmem>>, vector<16x16x128xf32>
    %19 = vector.shape_cast %18 : vector<16x16x128xf32> to vector<256x128xf32>
    %20 = arith.truncf %19 : vector<256x128xf32> to vector<256x128xbf16>
    %c0_21 = arith.constant 0 : index
    %c0_22 = arith.constant 0 : index
    %21 = vector.load %arg13[%c0_21, %c0_22] : memref<256x128xf32, #tpu.memory_space<vmem>>, vector<256x128xf32>
    %c0_23 = arith.constant 0 : index
    %c0_24 = arith.constant 0 : index
    %c0_25 = arith.constant 0 : index
    %22 = vector.load %arg4[%c0_23, %c0_24, %c0_25] : memref<9x128x128xbf16, #tpu.memory_space<vmem>>, vector<1x128x128xbf16>
    %23 = vector.shape_cast %22 : vector<1x128x128xbf16> to vector<128x128xbf16>
    %cst_26 = arith.constant dense<0.000000e+00> : vector<256x128xf32>
    %24 = tpu.matmul %20, %23, %cst_26 {dimension_numbers = #tpu.dot_dimension_numbers<[1], [0], [0], [1], [0, 0, 1, 1], [], []>} : vector<256x128xbf16>, vector<128x128xbf16>, vector<256x128xf32> -> vector<256x128xf32>
    %25 = arith.addf %21, %24 : vector<256x128xf32>
    %c0_27 = arith.constant 0 : index
    %c0_28 = arith.constant 0 : index
    %26 = vector.load %arg13[%c0_27, %c0_28] : memref<256x128xf32, #tpu.memory_space<vmem>>, vector<256x128xf32>
    tpu.vector_store %arg13[%c0_27, %c0_28], %25 {strides = array<i32>} : memref<256x128xf32, #tpu.memory_space<vmem>>, vector<256x128xf32>,
    %c0_29 = arith.constant 0 : index
    %c8_30 = arith.constant 8 : index
    %c0_31 = arith.constant 0 : index
    %27 = vector.load %arg11[%c0_29, %c8_30, %c0_31] : memref<18x32x128xf32, #tpu.memory_space<vmem>>, vector<16x16x128xf32>
    %28 = vector.shape_cast %27 : vector<16x16x128xf32> to vector<256x128xf32>
    %29 = arith.truncf %28 : vector<256x128xf32> to vector<256x128xbf16>
    %c0_32 = arith.constant 0 : index
    %c0_33 = arith.constant 0 : index
    %30 = vector.load %arg13[%c0_32, %c0_33] : memref<256x128xf32, #tpu.memory_space<vmem>>, vector<256x128xf32>
    %c1_34 = arith.constant 1 : index
    %c0_35 = arith.constant 0 : index
    %c0_36 = arith.constant 0 : index
    %31 = vector.load %arg4[%c1_34, %c0_35, %c0_36] : memref<9x128x128xbf16, #tpu.memory_space<vmem>>, vector<1x128x128xbf16>
    %32 = vector.shape_cast %31 : vector<1x128x128xbf16> to vector<128x128xbf16>
    %cst_37 = arith.constant dense<0.000000e+00> : vector<256x128xf32>
    %33 = tpu.matmul %29, %32, %cst_37 {dimension_numbers = #tpu.dot_dimension_numbers<[1], [0], [0], [1], [0, 0, 1, 1], [], []>} : vector<256x128xbf16>, vector<128x128xbf16>, vector<256x128xf32> -> vector<256x128xf32>
    %34 = arith.addf %30, %33 : vector<256x128xf32>
    %c0_38 = arith.constant 0 : index
    %c0_39 = arith.constant 0 : index
    %35 = vector.load %arg13[%c0_38, %c0_39] : memref<256x128xf32, #tpu.memory_space<vmem>>, vector<256x128xf32>
    tpu.vector_store %arg13[%c0_38, %c0_39], %34 {strides = array<i32>} : memref<256x128xf32, #tpu.memory_space<vmem>>, vector<256x128xf32>,
    %c0_40 = arith.constant 0 : index
    %c9 = arith.constant 9 : index
    %c0_41 = arith.constant 0 : index
    %36 = vector.load %arg11[%c0_40, %c9, %c0_41] : memref<18x32x128xf32, #tpu.memory_space<vmem>>, vector<16x16x128xf32>
    %37 = vector.shape_cast %36 : vector<16x16x128xf32> to vector<256x128xf32>
    %38 = arith.truncf %37 : vector<256x128xf32> to vector<256x128xbf16>
    %c0_42 = arith.constant 0 : index
    %c0_43 = arith.constant 0 : index
    %39 = vector.load %arg13[%c0_42, %c0_43] : memref<256x128xf32, #tpu.memory_space<vmem>>, vector<256x128xf32>
    %c2 = arith.constant 2 : index
    %c0_44 = arith.constant 0 : index
    %c0_45 = arith.constant 0 : index
    %40 = vector.load %arg4[%c2, %c0_44, %c0_45] : memref<9x128x128xbf16, #tpu.memory_space<vmem>>, vector<1x128x128xbf16>
    %41 = vector.shape_cast %40 : vector<1x128x128xbf16> to vector<128x128xbf16>
    %cst_46 = arith.constant dense<0.000000e+00> : vector<256x128xf32>
    %42 = tpu.matmul %38, %41, %cst_46 {dimension_numbers = #tpu.dot_dimension_numbers<[1], [0], [0], [1], [0, 0, 1, 1], [], []>} : vector<256x128xbf16>, vector<128x128xbf16>, vector<256x128xf32> -> vector<256x128xf32>
    %43 = arith.addf %39, %42 : vector<256x128xf32>
    %c0_47 = arith.constant 0 : index
    %c0_48 = arith.constant 0 : index
    %44 = vector.load %arg13[%c0_47, %c0_48] : memref<256x128xf32, #tpu.memory_space<vmem>>, vector<256x128xf32>
    tpu.vector_store %arg13[%c0_47, %c0_48], %43 {strides = array<i32>} : memref<256x128xf32, #tpu.memory_space<vmem>>, vector<256x128xf32>,
    %c1_49 = arith.constant 1 : index
    %c7_50 = arith.constant 7 : index
    %c0_51 = arith.constant 0 : index
    %45 = vector.load %arg11[%c1_49, %c7_50, %c0_51] : memref<18x32x128xf32, #tpu.memory_space<vmem>>, vector<16x16x128xf32>
    %46 = vector.shape_cast %45 : vector<16x16x128xf32> to vector<256x128xf32>
    %47 = arith.truncf %46 : vector<256x128xf32> to vector<256x128xbf16>
    %c0_52 = arith.constant 0 : index
    %c0_53 = arith.constant 0 : index
    %48 = vector.load %arg13[%c0_52, %c0_53] : memref<256x128xf32, #tpu.memory_space<vmem>>, vector<256x128xf32>
    %c3 = arith.constant 3 : index
    %c0_54 = arith.constant 0 : index
    %c0_55 = arith.constant 0 : index
    %49 = vector.load %arg4[%c3, %c0_54, %c0_55] : memref<9x128x128xbf16, #tpu.memory_space<vmem>>, vector<1x128x128xbf16>
    %50 = vector.shape_cast %49 : vector<1x128x128xbf16> to vector<128x128xbf16>
    %cst_56 = arith.constant dense<0.000000e+00> : vector<256x128xf32>
    %51 = tpu.matmul %47, %50, %cst_56 {dimension_numbers = #tpu.dot_dimension_numbers<[1], [0], [0], [1], [0, 0, 1, 1], [], []>} : vector<256x128xbf16>, vector<128x128xbf16>, vector<256x128xf32> -> vector<256x128xf32>
    %52 = arith.addf %48, %51 : vector<256x128xf32>
    %c0_57 = arith.constant 0 : index
    %c0_58 = arith.constant 0 : index
    %53 = vector.load %arg13[%c0_57, %c0_58] : memref<256x128xf32, #tpu.memory_space<vmem>>, vector<256x128xf32>
    tpu.vector_store %arg13[%c0_57, %c0_58], %52 {strides = array<i32>} : memref<256x128xf32, #tpu.memory_space<vmem>>, vector<256x128xf32>,
    %c1_59 = arith.constant 1 : index
    %c8_60 = arith.constant 8 : index
    %c0_61 = arith.constant 0 : index
    %54 = vector.load %arg11[%c1_59, %c8_60, %c0_61] : memref<18x32x128xf32, #tpu.memory_space<vmem>>, vector<16x16x128xf32>
    %55 = vector.shape_cast %54 : vector<16x16x128xf32> to vector<256x128xf32>
    %56 = arith.truncf %55 : vector<256x128xf32> to vector<256x128xbf16>
    %c0_62 = arith.constant 0 : index
    %c0_63 = arith.constant 0 : index
    %57 = vector.load %arg13[%c0_62, %c0_63] : memref<256x128xf32, #tpu.memory_space<vmem>>, vector<256x128xf32>
    %c4 = arith.constant 4 : index
    %c0_64 = arith.constant 0 : index
    %c0_65 = arith.constant 0 : index
    %58 = vector.load %arg4[%c4, %c0_64, %c0_65] : memref<9x128x128xbf16, #tpu.memory_space<vmem>>, vector<1x128x128xbf16>
    %59 = vector.shape_cast %58 : vector<1x128x128xbf16> to vector<128x128xbf16>
    %cst_66 = arith.constant dense<0.000000e+00> : vector<256x128xf32>
    %60 = tpu.matmul %56, %59, %cst_66 {dimension_numbers = #tpu.dot_dimension_numbers<[1], [0], [0], [1], [0, 0, 1, 1], [], []>} : vector<256x128xbf16>, vector<128x128xbf16>, vector<256x128xf32> -> vector<256x128xf32>
    %61 = arith.addf %57, %60 : vector<256x128xf32>
    %c0_67 = arith.constant 0 : index
    %c0_68 = arith.constant 0 : index
    %62 = vector.load %arg13[%c0_67, %c0_68] : memref<256x128xf32, #tpu.memory_space<vmem>>, vector<256x128xf32>
    tpu.vector_store %arg13[%c0_67, %c0_68], %61 {strides = array<i32>} : memref<256x128xf32, #tpu.memory_space<vmem>>, vector<256x128xf32>,
    %c1_69 = arith.constant 1 : index
    %c9_70 = arith.constant 9 : index
    %c0_71 = arith.constant 0 : index
    %63 = vector.load %arg11[%c1_69, %c9_70, %c0_71] : memref<18x32x128xf32, #tpu.memory_space<vmem>>, vector<16x16x128xf32>
    %64 = vector.shape_cast %63 : vector<16x16x128xf32> to vector<256x128xf32>
    %65 = arith.truncf %64 : vector<256x128xf32> to vector<256x128xbf16>
    %c0_72 = arith.constant 0 : index
    %c0_73 = arith.constant 0 : index
    %66 = vector.load %arg13[%c0_72, %c0_73] : memref<256x128xf32, #tpu.memory_space<vmem>>, vector<256x128xf32>
    %c5 = arith.constant 5 : index
    %c0_74 = arith.constant 0 : index
    %c0_75 = arith.constant 0 : index
    %67 = vector.load %arg4[%c5, %c0_74, %c0_75] : memref<9x128x128xbf16, #tpu.memory_space<vmem>>, vector<1x128x128xbf16>
    %68 = vector.shape_cast %67 : vector<1x128x128xbf16> to vector<128x128xbf16>
    %cst_76 = arith.constant dense<0.000000e+00> : vector<256x128xf32>
    %69 = tpu.matmul %65, %68, %cst_76 {dimension_numbers = #tpu.dot_dimension_numbers<[1], [0], [0], [1], [0, 0, 1, 1], [], []>} : vector<256x128xbf16>, vector<128x128xbf16>, vector<256x128xf32> -> vector<256x128xf32>
    %70 = arith.addf %66, %69 : vector<256x128xf32>
    %c0_77 = arith.constant 0 : index
    %c0_78 = arith.constant 0 : index
    %71 = vector.load %arg13[%c0_77, %c0_78] : memref<256x128xf32, #tpu.memory_space<vmem>>, vector<256x128xf32>
    tpu.vector_store %arg13[%c0_77, %c0_78], %70 {strides = array<i32>} : memref<256x128xf32, #tpu.memory_space<vmem>>, vector<256x128xf32>,
    %c2_79 = arith.constant 2 : index
    %c7_80 = arith.constant 7 : index
    %c0_81 = arith.constant 0 : index
    %72 = vector.load %arg11[%c2_79, %c7_80, %c0_81] : memref<18x32x128xf32, #tpu.memory_space<vmem>>, vector<16x16x128xf32>
    %73 = vector.shape_cast %72 : vector<16x16x128xf32> to vector<256x128xf32>
    %74 = arith.truncf %73 : vector<256x128xf32> to vector<256x128xbf16>
    %c0_82 = arith.constant 0 : index
    %c0_83 = arith.constant 0 : index
    %75 = vector.load %arg13[%c0_82, %c0_83] : memref<256x128xf32, #tpu.memory_space<vmem>>, vector<256x128xf32>
    %c6 = arith.constant 6 : index
    %c0_84 = arith.constant 0 : index
    %c0_85 = arith.constant 0 : index
    %76 = vector.load %arg4[%c6, %c0_84, %c0_85] : memref<9x128x128xbf16, #tpu.memory_space<vmem>>, vector<1x128x128xbf16>
    %77 = vector.shape_cast %76 : vector<1x128x128xbf16> to vector<128x128xbf16>
    %cst_86 = arith.constant dense<0.000000e+00> : vector<256x128xf32>
    %78 = tpu.matmul %74, %77, %cst_86 {dimension_numbers = #tpu.dot_dimension_numbers<[1], [0], [0], [1], [0, 0, 1, 1], [], []>} : vector<256x128xbf16>, vector<128x128xbf16>, vector<256x128xf32> -> vector<256x128xf32>
    %79 = arith.addf %75, %78 : vector<256x128xf32>
    %c0_87 = arith.constant 0 : index
    %c0_88 = arith.constant 0 : index
    %80 = vector.load %arg13[%c0_87, %c0_88] : memref<256x128xf32, #tpu.memory_space<vmem>>, vector<256x128xf32>
    tpu.vector_store %arg13[%c0_87, %c0_88], %79 {strides = array<i32>} : memref<256x128xf32, #tpu.memory_space<vmem>>, vector<256x128xf32>,
    %c2_89 = arith.constant 2 : index
    %c8_90 = arith.constant 8 : index
    %c0_91 = arith.constant 0 : index
    %81 = vector.load %arg11[%c2_89, %c8_90, %c0_91] : memref<18x32x128xf32, #tpu.memory_space<vmem>>, vector<16x16x128xf32>
    %82 = vector.shape_cast %81 : vector<16x16x128xf32> to vector<256x128xf32>
    %83 = arith.truncf %82 : vector<256x128xf32> to vector<256x128xbf16>
    %c0_92 = arith.constant 0 : index
    %c0_93 = arith.constant 0 : index
    %84 = vector.load %arg13[%c0_92, %c0_93] : memref<256x128xf32, #tpu.memory_space<vmem>>, vector<256x128xf32>
    %c7_94 = arith.constant 7 : index
    %c0_95 = arith.constant 0 : index
    %c0_96 = arith.constant 0 : index
    %85 = vector.load %arg4[%c7_94, %c0_95, %c0_96] : memref<9x128x128xbf16, #tpu.memory_space<vmem>>, vector<1x128x128xbf16>
    %86 = vector.shape_cast %85 : vector<1x128x128xbf16> to vector<128x128xbf16>
    %cst_97 = arith.constant dense<0.000000e+00> : vector<256x128xf32>
    %87 = tpu.matmul %83, %86, %cst_97 {dimension_numbers = #tpu.dot_dimension_numbers<[1], [0], [0], [1], [0, 0, 1, 1], [], []>} : vector<256x128xbf16>, vector<128x128xbf16>, vector<256x128xf32> -> vector<256x128xf32>
    %88 = arith.addf %84, %87 : vector<256x128xf32>
    %c0_98 = arith.constant 0 : index
    %c0_99 = arith.constant 0 : index
    %89 = vector.load %arg13[%c0_98, %c0_99] : memref<256x128xf32, #tpu.memory_space<vmem>>, vector<256x128xf32>
    tpu.vector_store %arg13[%c0_98, %c0_99], %88 {strides = array<i32>} : memref<256x128xf32, #tpu.memory_space<vmem>>, vector<256x128xf32>,
    %c2_100 = arith.constant 2 : index
    %c9_101 = arith.constant 9 : index
    %c0_102 = arith.constant 0 : index
    %90 = vector.load %arg11[%c2_100, %c9_101, %c0_102] : memref<18x32x128xf32, #tpu.memory_space<vmem>>, vector<16x16x128xf32>
    %91 = vector.shape_cast %90 : vector<16x16x128xf32> to vector<256x128xf32>
    %92 = arith.truncf %91 : vector<256x128xf32> to vector<256x128xbf16>
    %c0_103 = arith.constant 0 : index
    %c0_104 = arith.constant 0 : index
    %93 = vector.load %arg13[%c0_103, %c0_104] : memref<256x128xf32, #tpu.memory_space<vmem>>, vector<256x128xf32>
    %c8_105 = arith.constant 8 : index
    %c0_106 = arith.constant 0 : index
    %c0_107 = arith.constant 0 : index
    %94 = vector.load %arg4[%c8_105, %c0_106, %c0_107] : memref<9x128x128xbf16, #tpu.memory_space<vmem>>, vector<1x128x128xbf16>
    %95 = vector.shape_cast %94 : vector<1x128x128xbf16> to vector<128x128xbf16>
    %cst_108 = arith.constant dense<0.000000e+00> : vector<256x128xf32>
    %96 = tpu.matmul %92, %95, %cst_108 {dimension_numbers = #tpu.dot_dimension_numbers<[1], [0], [0], [1], [0, 0, 1, 1], [], []>} : vector<256x128xbf16>, vector<128x128xbf16>, vector<256x128xf32> -> vector<256x128xf32>
    %97 = arith.addf %93, %96 : vector<256x128xf32>
    %c0_109 = arith.constant 0 : index
    %c0_110 = arith.constant 0 : index
    %98 = vector.load %arg13[%c0_109, %c0_110] : memref<256x128xf32, #tpu.memory_space<vmem>>, vector<256x128xf32>
    tpu.vector_store %arg13[%c0_109, %c0_110], %97 {strides = array<i32>} : memref<256x128xf32, #tpu.memory_space<vmem>>, vector<256x128xf32>,
    %c0_111 = arith.constant 0 : index
    %c0_112 = arith.constant 0 : index
    %99 = vector.load %arg13[%c0_111, %c0_112] : memref<256x128xf32, #tpu.memory_space<vmem>>, vector<256x128xf32>
    %c0_113 = arith.constant 0 : index
    %c0_114 = arith.constant 0 : index
    %100 = vector.load %arg5[%c0_113, %c0_114] : memref<1x128xf32, #tpu.memory_space<vmem>>, vector<1x128xf32>
    %101 = vector.broadcast %100 : vector<1x128xf32> to vector<256x128xf32>
    %102 = arith.addf %99, %101 : vector<256x128xf32>
    %cst_115 = arith.constant 0.000000e+00 : f32
    %103 = vector.broadcast %cst_115 : f32 to vector<256x128xf32>
    %104 = arith.maximumf %102, %103 : vector<256x128xf32>
    %105 = vector.shape_cast %104 : vector<256x128xf32> to vector<16x16x128xf32>
    %c1_116 = arith.constant 1 : index
    %c8_117 = arith.constant 8 : index
    %c0_118 = arith.constant 0 : index
    %106 = vector.load %arg11[%c1_116, %c8_117, %c0_118] : memref<18x32x128xf32, #tpu.memory_space<vmem>>, vector<16x16x128xf32>
    tpu.vector_store %arg11[%c1_116, %c8_117, %c0_118], %105 {strides = array<i32>} : memref<18x32x128xf32, #tpu.memory_space<vmem>>, vector<16x16x128xf32>,
    %cst_119 = arith.constant 0.000000e+00 : f32
    %107 = vector.broadcast %cst_119 : f32 to vector<256x128xf32>
    %c0_120 = arith.constant 0 : index
    %c0_121 = arith.constant 0 : index
    %108 = vector.load %arg13[%c0_120, %c0_121] : memref<256x128xf32, #tpu.memory_space<vmem>>, vector<256x128xf32>
    tpu.vector_store %arg13[%c0_120, %c0_121], %107 {strides = array<i32>} : memref<256x128xf32, #tpu.memory_space<vmem>>, vector<256x128xf32>,
    %c0_122 = arith.constant 0 : index
    %c7_123 = arith.constant 7 : index
    %c0_124 = arith.constant 0 : index
    %109 = vector.load %arg11[%c0_122, %c7_123, %c0_124] : memref<18x32x128xf32, #tpu.memory_space<vmem>>, vector<16x16x128xf32>
    %110 = vector.shape_cast %109 : vector<16x16x128xf32> to vector<256x128xf32>
    %111 = arith.truncf %110 : vector<256x128xf32> to vector<256x128xbf16>
    %c0_125 = arith.constant 0 : index
    %c0_126 = arith.constant 0 : index
    %112 = vector.load %arg13[%c0_125, %c0_126] : memref<256x128xf32, #tpu.memory_space<vmem>>, vector<256x128xf32>
    %c0_127 = arith.constant 0 : index
    %c0_128 = arith.constant 0 : index
    %c0_129 = arith.constant 0 : index
    %113 = vector.load %arg6[%c0_127, %c0_128, %c0_129] : memref<9x128x128xbf16, #tpu.memory_space<vmem>>, vector<1x128x128xbf16>
    %114 = vector.shape_cast %113 : vector<1x128x128xbf16> to vector<128x128xbf16>
    %cst_130 = arith.constant dense<0.000000e+00> : vector<256x128xf32>
    %115 = tpu.matmul %111, %114, %cst_130 {dimension_numbers = #tpu.dot_dimension_numbers<[1], [0], [0], [1], [0, 0, 1, 1], [], []>} : vector<256x128xbf16>, vector<128x128xbf16>, vector<256x128xf32> -> vector<256x128xf32>
    %116 = arith.addf %112, %115 : vector<256x128xf32>
    %c0_131 = arith.constant 0 : index
    %c0_132 = arith.constant 0 : index
    %117 = vector.load %arg13[%c0_131, %c0_132] : memref<256x128xf32, #tpu.memory_space<vmem>>, vector<256x128xf32>
    tpu.vector_store %arg13[%c0_131, %c0_132], %116 {strides = array<i32>} : memref<256x128xf32, #tpu.memory_space<vmem>>, vector<256x128xf32>,
    %c0_133 = arith.constant 0 : index
    %c8_134 = arith.constant 8 : index
    %c0_135 = arith.constant 0 : index
    %118 = vector.load %arg11[%c0_133, %c8_134, %c0_135] : memref<18x32x128xf32, #tpu.memory_space<vmem>>, vector<16x16x128xf32>
    %119 = vector.shape_cast %118 : vector<16x16x128xf32> to vector<256x128xf32>
    %120 = arith.truncf %119 : vector<256x128xf32> to vector<256x128xbf16>
    %c0_136 = arith.constant 0 : index
    %c0_137 = arith.constant 0 : index
    %121 = vector.load %arg13[%c0_136, %c0_137] : memref<256x128xf32, #tpu.memory_space<vmem>>, vector<256x128xf32>
    %c1_138 = arith.constant 1 : index
    %c0_139 = arith.constant 0 : index
    %c0_140 = arith.constant 0 : index
    %122 = vector.load %arg6[%c1_138, %c0_139, %c0_140] : memref<9x128x128xbf16, #tpu.memory_space<vmem>>, vector<1x128x128xbf16>
    %123 = vector.shape_cast %122 : vector<1x128x128xbf16> to vector<128x128xbf16>
    %cst_141 = arith.constant dense<0.000000e+00> : vector<256x128xf32>
    %124 = tpu.matmul %120, %123, %cst_141 {dimension_numbers = #tpu.dot_dimension_numbers<[1], [0], [0], [1], [0, 0, 1, 1], [], []>} : vector<256x128xbf16>, vector<128x128xbf16>, vector<256x128xf32> -> vector<256x128xf32>
    %125 = arith.addf %121, %124 : vector<256x128xf32>
    %c0_142 = arith.constant 0 : index
    %c0_143 = arith.constant 0 : index
    %126 = vector.load %arg13[%c0_142, %c0_143] : memref<256x128xf32, #tpu.memory_space<vmem>>, vector<256x128xf32>
    tpu.vector_store %arg13[%c0_142, %c0_143], %125 {strides = array<i32>} : memref<256x128xf32, #tpu.memory_space<vmem>>, vector<256x128xf32>,
    %c0_144 = arith.constant 0 : index
    %c9_145 = arith.constant 9 : index
    %c0_146 = arith.constant 0 : index
    %127 = vector.load %arg11[%c0_144, %c9_145, %c0_146] : memref<18x32x128xf32, #tpu.memory_space<vmem>>, vector<16x16x128xf32>
    %128 = vector.shape_cast %127 : vector<16x16x128xf32> to vector<256x128xf32>
    %129 = arith.truncf %128 : vector<256x128xf32> to vector<256x128xbf16>
    %c0_147 = arith.constant 0 : index
    %c0_148 = arith.constant 0 : index
    %130 = vector.load %arg13[%c0_147, %c0_148] : memref<256x128xf32, #tpu.memory_space<vmem>>, vector<256x128xf32>
    %c2_149 = arith.constant 2 : index
    %c0_150 = arith.constant 0 : index
    %c0_151 = arith.constant 0 : index
    %131 = vector.load %arg6[%c2_149, %c0_150, %c0_151] : memref<9x128x128xbf16, #tpu.memory_space<vmem>>, vector<1x128x128xbf16>
    %132 = vector.shape_cast %131 : vector<1x128x128xbf16> to vector<128x128xbf16>
    %cst_152 = arith.constant dense<0.000000e+00> : vector<256x128xf32>
    %133 = tpu.matmul %129, %132, %cst_152 {dimension_numbers = #tpu.dot_dimension_numbers<[1], [0], [0], [1], [0, 0, 1, 1], [], []>} : vector<256x128xbf16>, vector<128x128xbf16>, vector<256x128xf32> -> vector<256x128xf32>
    %134 = arith.addf %130, %133 : vector<256x128xf32>
    %c0_153 = arith.constant 0 : index
    %c0_154 = arith.constant 0 : index
    %135 = vector.load %arg13[%c0_153, %c0_154] : memref<256x128xf32, #tpu.memory_space<vmem>>, vector<256x128xf32>
    tpu.vector_store %arg13[%c0_153, %c0_154], %134 {strides = array<i32>} : memref<256x128xf32, #tpu.memory_space<vmem>>, vector<256x128xf32>,
    %c1_155 = arith.constant 1 : index
    %c7_156 = arith.constant 7 : index
    %c0_157 = arith.constant 0 : index
    %136 = vector.load %arg11[%c1_155, %c7_156, %c0_157] : memref<18x32x128xf32, #tpu.memory_space<vmem>>, vector<16x16x128xf32>
    %137 = vector.shape_cast %136 : vector<16x16x128xf32> to vector<256x128xf32>
    %138 = arith.truncf %137 : vector<256x128xf32> to vector<256x128xbf16>
    %c0_158 = arith.constant 0 : index
    %c0_159 = arith.constant 0 : index
    %139 = vector.load %arg13[%c0_158, %c0_159] : memref<256x128xf32, #tpu.memory_space<vmem>>, vector<256x128xf32>
    %c3_160 = arith.constant 3 : index
    %c0_161 = arith.constant 0 : index
    %c0_162 = arith.constant 0 : index
    %140 = vector.load %arg6[%c3_160, %c0_161, %c0_162] : memref<9x128x128xbf16, #tpu.memory_space<vmem>>, vector<1x128x128xbf16>
    %141 = vector.shape_cast %140 : vector<1x128x128xbf16> to vector<128x128xbf16>
    %cst_163 = arith.constant dense<0.000000e+00> : vector<256x128xf32>
    %142 = tpu.matmul %138, %141, %cst_163 {dimension_numbers = #tpu.dot_dimension_numbers<[1], [0], [0], [1], [0, 0, 1, 1], [], []>} : vector<256x128xbf16>, vector<128x128xbf16>, vector<256x128xf32> -> vector<256x128xf32>
    %143 = arith.addf %139, %142 : vector<256x128xf32>
    %c0_164 = arith.constant 0 : index
    %c0_165 = arith.constant 0 : index
    %144 = vector.load %arg13[%c0_164, %c0_165] : memref<256x128xf32, #tpu.memory_space<vmem>>, vector<256x128xf32>
    tpu.vector_store %arg13[%c0_164, %c0_165], %143 {strides = array<i32>} : memref<256x128xf32, #tpu.memory_space<vmem>>, vector<256x128xf32>,
    %c1_166 = arith.constant 1 : index
    %c8_167 = arith.constant 8 : index
    %c0_168 = arith.constant 0 : index
    %145 = vector.load %arg11[%c1_166, %c8_167, %c0_168] : memref<18x32x128xf32, #tpu.memory_space<vmem>>, vector<16x16x128xf32>
    %146 = vector.shape_cast %145 : vector<16x16x128xf32> to vector<256x128xf32>
    %147 = arith.truncf %146 : vector<256x128xf32> to vector<256x128xbf16>
    %c0_169 = arith.constant 0 : index
    %c0_170 = arith.constant 0 : index
    %148 = vector.load %arg13[%c0_169, %c0_170] : memref<256x128xf32, #tpu.memory_space<vmem>>, vector<256x128xf32>
    %c4_171 = arith.constant 4 : index
    %c0_172 = arith.constant 0 : index
    %c0_173 = arith.constant 0 : index
    %149 = vector.load %arg6[%c4_171, %c0_172, %c0_173] : memref<9x128x128xbf16, #tpu.memory_space<vmem>>, vector<1x128x128xbf16>
    %150 = vector.shape_cast %149 : vector<1x128x128xbf16> to vector<128x128xbf16>
    %cst_174 = arith.constant dense<0.000000e+00> : vector<256x128xf32>
    %151 = tpu.matmul %147, %150, %cst_174 {dimension_numbers = #tpu.dot_dimension_numbers<[1], [0], [0], [1], [0, 0, 1, 1], [], []>} : vector<256x128xbf16>, vector<128x128xbf16>, vector<256x128xf32> -> vector<256x128xf32>
    %152 = arith.addf %148, %151 : vector<256x128xf32>
    %c0_175 = arith.constant 0 : index
    %c0_176 = arith.constant 0 : index
    %153 = vector.load %arg13[%c0_175, %c0_176] : memref<256x128xf32, #tpu.memory_space<vmem>>, vector<256x128xf32>
    tpu.vector_store %arg13[%c0_175, %c0_176], %152 {strides = array<i32>} : memref<256x128xf32, #tpu.memory_space<vmem>>, vector<256x128xf32>,
    %c1_177 = arith.constant 1 : index
    %c9_178 = arith.constant 9 : index
    %c0_179 = arith.constant 0 : index
    %154 = vector.load %arg11[%c1_177, %c9_178, %c0_179] : memref<18x32x128xf32, #tpu.memory_space<vmem>>, vector<16x16x128xf32>
    %155 = vector.shape_cast %154 : vector<16x16x128xf32> to vector<256x128xf32>
    %156 = arith.truncf %155 : vector<256x128xf32> to vector<256x128xbf16>
    %c0_180 = arith.constant 0 : index
    %c0_181 = arith.constant 0 : index
    %157 = vector.load %arg13[%c0_180, %c0_181] : memref<256x128xf32, #tpu.memory_space<vmem>>, vector<256x128xf32>
    %c5_182 = arith.constant 5 : index
    %c0_183 = arith.constant 0 : index
    %c0_184 = arith.constant 0 : index
    %158 = vector.load %arg6[%c5_182, %c0_183, %c0_184] : memref<9x128x128xbf16, #tpu.memory_space<vmem>>, vector<1x128x128xbf16>
    %159 = vector.shape_cast %158 : vector<1x128x128xbf16> to vector<128x128xbf16>
    %cst_185 = arith.constant dense<0.000000e+00> : vector<256x128xf32>
    %160 = tpu.matmul %156, %159, %cst_185 {dimension_numbers = #tpu.dot_dimension_numbers<[1], [0], [0], [1], [0, 0, 1, 1], [], []>} : vector<256x128xbf16>, vector<128x128xbf16>, vector<256x128xf32> -> vector<256x128xf32>
    %161 = arith.addf %157, %160 : vector<256x128xf32>
    %c0_186 = arith.constant 0 : index
    %c0_187 = arith.constant 0 : index
    %162 = vector.load %arg13[%c0_186, %c0_187] : memref<256x128xf32, #tpu.memory_space<vmem>>, vector<256x128xf32>
    tpu.vector_store %arg13[%c0_186, %c0_187], %161 {strides = array<i32>} : memref<256x128xf32, #tpu.memory_space<vmem>>, vector<256x128xf32>,
    %c2_188 = arith.constant 2 : index
    %c7_189 = arith.constant 7 : index
    %c0_190 = arith.constant 0 : index
    %163 = vector.load %arg11[%c2_188, %c7_189, %c0_190] : memref<18x32x128xf32, #tpu.memory_space<vmem>>, vector<16x16x128xf32>
    %164 = vector.shape_cast %163 : vector<16x16x128xf32> to vector<256x128xf32>
    %165 = arith.truncf %164 : vector<256x128xf32> to vector<256x128xbf16>
    %c0_191 = arith.constant 0 : index
    %c0_192 = arith.constant 0 : index
    %166 = vector.load %arg13[%c0_191, %c0_192] : memref<256x128xf32, #tpu.memory_space<vmem>>, vector<256x128xf32>
    %c6_193 = arith.constant 6 : index
    %c0_194 = arith.constant 0 : index
    %c0_195 = arith.constant 0 : index
    %167 = vector.load %arg6[%c6_193, %c0_194, %c0_195] : memref<9x128x128xbf16, #tpu.memory_space<vmem>>, vector<1x128x128xbf16>
    %168 = vector.shape_cast %167 : vector<1x128x128xbf16> to vector<128x128xbf16>
    %cst_196 = arith.constant dense<0.000000e+00> : vector<256x128xf32>
    %169 = tpu.matmul %165, %168, %cst_196 {dimension_numbers = #tpu.dot_dimension_numbers<[1], [0], [0], [1], [0, 0, 1, 1], [], []>} : vector<256x128xbf16>, vector<128x128xbf16>, vector<256x128xf32> -> vector<256x128xf32>
    %170 = arith.addf %166, %169 : vector<256x128xf32>
    %c0_197 = arith.constant 0 : index
    %c0_198 = arith.constant 0 : index
    %171 = vector.load %arg13[%c0_197, %c0_198] : memref<256x128xf32, #tpu.memory_space<vmem>>, vector<256x128xf32>
    tpu.vector_store %arg13[%c0_197, %c0_198], %170 {strides = array<i32>} : memref<256x128xf32, #tpu.memory_space<vmem>>, vector<256x128xf32>,
    %c2_199 = arith.constant 2 : index
    %c8_200 = arith.constant 8 : index
    %c0_201 = arith.constant 0 : index
    %172 = vector.load %arg11[%c2_199, %c8_200, %c0_201] : memref<18x32x128xf32, #tpu.memory_space<vmem>>, vector<16x16x128xf32>
    %173 = vector.shape_cast %172 : vector<16x16x128xf32> to vector<256x128xf32>
    %174 = arith.truncf %173 : vector<256x128xf32> to vector<256x128xbf16>
    %c0_202 = arith.constant 0 : index
    %c0_203 = arith.constant 0 : index
    %175 = vector.load %arg13[%c0_202, %c0_203] : memref<256x128xf32, #tpu.memory_space<vmem>>, vector<256x128xf32>
    %c7_204 = arith.constant 7 : index
    %c0_205 = arith.constant 0 : index
    %c0_206 = arith.constant 0 : index
    %176 = vector.load %arg6[%c7_204, %c0_205, %c0_206] : memref<9x128x128xbf16, #tpu.memory_space<vmem>>, vector<1x128x128xbf16>
    %177 = vector.shape_cast %176 : vector<1x128x128xbf16> to vector<128x128xbf16>
    %cst_207 = arith.constant dense<0.000000e+00> : vector<256x128xf32>
    %178 = tpu.matmul %174, %177, %cst_207 {dimension_numbers = #tpu.dot_dimension_numbers<[1], [0], [0], [1], [0, 0, 1, 1], [], []>} : vector<256x128xbf16>, vector<128x128xbf16>, vector<256x128xf32> -> vector<256x128xf32>
    %179 = arith.addf %175, %178 : vector<256x128xf32>
    %c0_208 = arith.constant 0 : index
    %c0_209 = arith.constant 0 : index
    %180 = vector.load %arg13[%c0_208, %c0_209] : memref<256x128xf32, #tpu.memory_space<vmem>>, vector<256x128xf32>
    tpu.vector_store %arg13[%c0_208, %c0_209], %179 {strides = array<i32>} : memref<256x128xf32, #tpu.memory_space<vmem>>, vector<256x128xf32>,
    %c2_210 = arith.constant 2 : index
    %c9_211 = arith.constant 9 : index
    %c0_212 = arith.constant 0 : index
    %181 = vector.load %arg11[%c2_210, %c9_211, %c0_212] : memref<18x32x128xf32, #tpu.memory_space<vmem>>, vector<16x16x128xf32>
    %182 = vector.shape_cast %181 : vector<16x16x128xf32> to vector<256x128xf32>
    %183 = arith.truncf %182 : vector<256x128xf32> to vector<256x128xbf16>
    %c0_213 = arith.constant 0 : index
    %c0_214 = arith.constant 0 : index
    %184 = vector.load %arg13[%c0_213, %c0_214] : memref<256x128xf32, #tpu.memory_space<vmem>>, vector<256x128xf32>
    %c8_215 = arith.constant 8 : index
    %c0_216 = arith.constant 0 : index
    %c0_217 = arith.constant 0 : index
    %185 = vector.load %arg6[%c8_215, %c0_216, %c0_217] : memref<9x128x128xbf16, #tpu.memory_space<vmem>>, vector<1x128x128xbf16>
    %186 = vector.shape_cast %185 : vector<1x128x128xbf16> to vector<128x128xbf16>
    %cst_218 = arith.constant dense<0.000000e+00> : vector<256x128xf32>
    %187 = tpu.matmul %183, %186, %cst_218 {dimension_numbers = #tpu.dot_dimension_numbers<[1], [0], [0], [1], [0, 0, 1, 1], [], []>} : vector<256x128xbf16>, vector<128x128xbf16>, vector<256x128xf32> -> vector<256x128xf32>
    %188 = arith.addf %184, %187 : vector<256x128xf32>
    %c0_219 = arith.constant 0 : index
    %c0_220 = arith.constant 0 : index
    %189 = vector.load %arg13[%c0_219, %c0_220] : memref<256x128xf32, #tpu.memory_space<vmem>>, vector<256x128xf32>
    tpu.vector_store %arg13[%c0_219, %c0_220], %188 {strides = array<i32>} : memref<256x128xf32, #tpu.memory_space<vmem>>, vector<256x128xf32>,
    %c0_221 = arith.constant 0 : index
    %c0_222 = arith.constant 0 : index
    %190 = vector.load %arg13[%c0_221, %c0_222] : memref<256x128xf32, #tpu.memory_space<vmem>>, vector<256x128xf32>
    %c0_223 = arith.constant 0 : index
    %c0_224 = arith.constant 0 : index
    %191 = vector.load %arg7[%c0_223, %c0_224] : memref<1x128xf32, #tpu.memory_space<vmem>>, vector<1x128xf32>
    %192 = vector.broadcast %191 : vector<1x128xf32> to vector<256x128xf32>
    %193 = arith.addf %190, %192 : vector<256x128xf32>
    %c0_225 = arith.constant 0 : index
    %c0_226 = arith.constant 0 : index
    %194 = vector.load %arg12[%c0_225, %c0_226] : memref<256x128xf32, #tpu.memory_space<vmem>>, vector<256x128xf32>
    %195 = arith.addf %193, %194 : vector<256x128xf32>
    %cst_227 = arith.constant 0.000000e+00 : f32
    %196 = vector.broadcast %cst_227 : f32 to vector<256x128xf32>
    %197 = arith.maximumf %195, %196 : vector<256x128xf32>
    %198 = arith.truncf %197 : vector<256x128xf32> to vector<256x128xbf16>
    %c0_228 = arith.constant 0 : index
    %c0_229 = arith.constant 0 : index
    %199 = vector.load %arg8[%c0_228, %c0_229] : memref<128x128xbf16, #tpu.memory_space<vmem>>, vector<128x128xbf16>
    %cst_230 = arith.constant dense<0.000000e+00> : vector<256x128xf32>
    %200 = tpu.matmul %198, %199, %cst_230 {dimension_numbers = #tpu.dot_dimension_numbers<[1], [0], [0], [1], [0, 0, 1, 1], [], []>} : vector<256x128xbf16>, vector<128x128xbf16>, vector<256x128xf32> -> vector<256x128xf32>
    %c0_231 = arith.constant 0 : index
    %c0_232 = arith.constant 0 : index
    %201 = vector.load %arg9[%c0_231, %c0_232] : memref<1x128xf32, #tpu.memory_space<vmem>>, vector<1x128xf32>
    %202 = vector.broadcast %201 : vector<1x128xf32> to vector<256x128xf32>
    %203 = arith.addf %200, %202 : vector<256x128xf32>
    %c0_233 = arith.constant 0 : index
    %c0_234 = arith.constant 0 : index
    %c0_235 = arith.constant 0 : index
    %204 = vector.load %arg10[%c0_233, %c0_234, %c0_235] : memref<1x256x128xf32, #tpu.memory_space<vmem>>, vector<1x256x128xf32>
    %205 = vector.shape_cast %204 : vector<1x256x128xf32> to vector<256x128xf32>
    %206 = vector.shape_cast %203 : vector<256x128xf32> to vector<1x256x128xf32>
    tpu.vector_store %arg10[%c0_233, %c0_234, %c0_235], %206 {strides = array<i32>} : memref<1x256x128xf32, #tpu.memory_space<vmem>>, vector<1x256x128xf32>,
    return
  }
  func.func @transform_0(%arg0: i32) -> (i32, i32, i32) {
    %c0_i32 = arith.constant 0 : i32
    %c0_i32_0 = arith.constant 0 : i32
    %c0_i32_1 = arith.constant 0 : i32
    return %arg0, %c0_i32, %c0_i32_0 : i32, i32, i32
  }
  func.func @transform_1(%arg0: i32) -> (i32, i32) {
    %c0_i32 = arith.constant 0 : i32
    %c0_i32_0 = arith.constant 0 : i32
    %c0_i32_1 = arith.constant 0 : i32
    return %c0_i32, %c0_i32_0 : i32, i32
  }
  func.func @transform_2(%arg0: i32) -> (i32, i32) {
    %c0_i32 = arith.constant 0 : i32
    %c0_i32_0 = arith.constant 0 : i32
    %c0_i32_1 = arith.constant 0 : i32
    return %c0_i32, %c0_i32_0 : i32, i32
  }
  func.func @transform_3(%arg0: i32) -> (i32, i32, i32) {
    %c0_i32 = arith.constant 0 : i32
    %c0_i32_0 = arith.constant 0 : i32
    %c0_i32_1 = arith.constant 0 : i32
    %c0_i32_2 = arith.constant 0 : i32
    return %c0_i32, %c0_i32_0, %c0_i32_1 : i32, i32, i32
  }
  func.func @transform_4(%arg0: i32) -> (i32, i32) {
    %c0_i32 = arith.constant 0 : i32
    %c0_i32_0 = arith.constant 0 : i32
    %c0_i32_1 = arith.constant 0 : i32
    return %c0_i32, %c0_i32_0 : i32, i32
  }
  func.func @transform_5(%arg0: i32) -> (i32, i32, i32) {
    %c0_i32 = arith.constant 0 : i32
    %c0_i32_0 = arith.constant 0 : i32
    %c0_i32_1 = arith.constant 0 : i32
    %c0_i32_2 = arith.constant 0 : i32
    return %c0_i32, %c0_i32_0, %c0_i32_1 : i32, i32, i32
  }
  func.func @transform_6(%arg0: i32) -> (i32, i32) {
    %c0_i32 = arith.constant 0 : i32
    %c0_i32_0 = arith.constant 0 : i32
    %c0_i32_1 = arith.constant 0 : i32
    return %c0_i32, %c0_i32_0 : i32, i32
  }
  func.func @transform_7(%arg0: i32) -> (i32, i32) {
    %c0_i32 = arith.constant 0 : i32
    %c0_i32_0 = arith.constant 0 : i32
    %c0_i32_1 = arith.constant 0 : i32
    return %c0_i32, %c0_i32_0 : i32, i32
  }
  func.func @transform_8(%arg0: i32) -> (i32, i32) {
    %c0_i32 = arith.constant 0 : i32
    %c0_i32_0 = arith.constant 0 : i32
    %c0_i32_1 = arith.constant 0 : i32
    return %c0_i32, %c0_i32_0 : i32, i32
  }
  func.func @transform_9(%arg0: i32) -> (i32, i32, i32) {
    %c0_i32 = arith.constant 0 : i32
    %c0_i32_0 = arith.constant 0 : i32
    %c0_i32_1 = arith.constant 0 : i32
    return %arg0, %c0_i32, %c0_i32_0 : i32, i32, i32
  }
}

</mosaic_0001>

<llo_original>
// kernel: fork_forward.1
$region0: #{fork_forward.1}
  #allocation0 [shape = 'u32[]', space=smem, size = 0x4, offset = 0x4, fixed_abs, tag = 'smem constant byte address 0x4 - core index']
  #allocation1 [shape = 'u32[144,128]{1,0:T(1,128)}', space=vmem, size = 0x12000, scoped, tag = 'internal scratch']
  #allocation2 [shape = 'f32[18,32,128]{2,1,0:T(8,128)}', space=vmem, size = 0x48000, scoped, tag = 'scratch operand']
  #allocation3 [shape = 'f32[256,128]{1,0:T(8,128)}', space=vmem, size = 0x20000, scoped, tag = 'scratch operand']
  #allocation4 [shape = 'f32[256,128]{1,0:T(8,128)}', space=vmem, size = 0x20000, scoped, tag = 'scratch operand']
  %s0 = inlined_call_operand.vmem [shape: f32[2,256,8], index: 0, kind: input, shape index: {}]
  %s1 = inlined_call_operand.vmem [shape: bf16[8,128], index: 1, kind: input, shape index: {}]
  %s2 = inlined_call_operand.vmem [shape: f32[1,128], index: 2, kind: input, shape index: {}]
  %s3 = inlined_call_operand.vmem [shape: bf16[9,128,128], index: 3, kind: input, shape index: {}]
  %s4 = inlined_call_operand.vmem [shape: f32[1,128], index: 4, kind: input, shape index: {}]
  %s5 = inlined_call_operand.vmem [shape: bf16[9,128,128], index: 5, kind: input, shape index: {}]
  %s6 = inlined_call_operand.vmem [shape: f32[1,128], index: 6, kind: input, shape index: {}]
  %s7 = inlined_call_operand.vmem [shape: bf16[128,128], index: 7, kind: input, shape index: {}]
  %s8 = inlined_call_operand.vmem [shape: f32[1,128], index: 8, kind: input, shape index: {}]
  %s9 = inlined_call_operand.vmem [shape: f32[2,256,128], index: 9, kind: output, shape index: {}]
  %s10 = sld [smem:[#allocation0]]
  $region69: #{fork_forward.1} parent=0
    _
  %s12 = ssub.s32 1, %s10
  %s13 = scalar_select 0, %s12, %s10
  loop: start=0, step=1, limit=4
  $region2: #{fork_forward.1} parent=0 // loop_pre_header
    _
  $region3: #{fork_forward.1} parent=0 // loop_header
    %s15 = sphi 0, %s19
    %p16 = scmp.ge.s32.totalorder %s15, 4
    %s25 = sphi 0, %s27
    %s28 = sphi 0, %s25
    %s29 = sphi 0, %s28
    %s45 = sphi 0, %s29
    %s49 = sphi 0, %s49
    %s51 = sphi 0, %s49
    %s52 = sphi 0, %s51
    %s66 = sphi 0, %s52
    %s70 = sphi 0, %s70
    %s72 = sphi 0, %s70
    %s73 = sphi 0, %s72
    %s87 = sphi 0, %s73
    %s91 = sphi 0, %s91
    %s93 = sphi 0, %s91
    %s94 = sphi 0, %s93
    %s108 = sphi 0, %s94
    %s112 = sphi 0, %s112
    %s114 = sphi 0, %s112
    %s115 = sphi 0, %s114
    %s129 = sphi 0, %s115
    %s133 = sphi 0, %s133
    %s135 = sphi 0, %s133
    %s136 = sphi 0, %s135
    %s150 = sphi 0, %s136
    %s154 = sphi 0, %s154
    %s156 = sphi 0, %s154
    %s157 = sphi 0, %s156
    %s171 = sphi 0, %s157
    %s175 = sphi 0, %s175
    %s177 = sphi 0, %s175
    %s178 = sphi 0, %s177
    %s192 = sphi 0, %s178
    %s196 = sphi 0, %s196
    %s198 = sphi 0, %s196
    %s199 = sphi 0, %s198
    %s213 = sphi 0, %s199
    %s219 = sphi 0, %s221
    %s222 = sphi 0, %s219
    %s223 = sphi 0, %s222
    %s239 = sphi 0, %s223
  $region4: #{fork_forward.1} parent=0 // loop_header_branch
    %18 = sbr.rel (%p16) target = $region8
  $region5: #{fork_forward.1} parent=0 // loop_body
    %s20 = ssub.s32 %s15, 1
    %s21 = ssub.s32 %s15, 2
    %s22 = sadd.s32 %s15, 1
    %s23 = ssub.s32 %s15, %s22
    %p24 = scmp.eq.s32.totalorder %s23, 0
    %s26 = sadd.s32 %s25, 1
    %s27 = scalar_select %p24, %s25, %s26
    %p30 = pneg %p24
    %p31 = scmp.eq.s32.totalorder %s15, 1
    %p32 = por %p30, %p31
    %p33 = scmp.ne.s32.totalorder %s25, %s28
    %p34 = scmp.eq.s32.totalorder %s15, 0
    %p35 = por %p33, %p34
    %p36 = scmp.ne.s32.totalorder %s25, %s28
    %p37 = scmp.eq.s32.totalorder %s20, 1
    %p38 = por %p36, %p37
    %p39 = scmp.ne.s32.totalorder %s28, %s29
    %p40 = scmp.eq.s32.totalorder %s20, 0
    %p41 = por %p39, %p40
    %p42 = scmp.ne.s32.totalorder %s28, %s29
    %p43 = scmp.eq.s32.totalorder %s21, 1
    %p44 = por %p42, %p43
    %p46 = scmp.ne.s32.totalorder %s29, %s45
    %p47 = scmp.eq.s32.totalorder %s21, 0
    %p48 = por %p46, %p47
    %s50 = sadd.s32 %s49, 1
    %p53 = scmp.eq.s32.totalorder %s15, 1
    %p54 = scmp.ne.s32.totalorder %s49, %s51
    %p55 = scmp.eq.s32.totalorder %s15, 0
    %p56 = por %p54, %p55
    %p57 = scmp.ne.s32.totalorder %s49, %s51
    %p58 = scmp.eq.s32.totalorder %s20, 1
    %p59 = por %p57, %p58
    %p60 = scmp.ne.s32.totalorder %s51, %s52
    %p61 = scmp.eq.s32.totalorder %s20, 0
    %p62 = por %p60, %p61
    %p63 = scmp.ne.s32.totalorder %s51, %s52
    %p64 = scmp.eq.s32.totalorder %s21, 1
    %p65 = por %p63, %p64
    %p67 = scmp.ne.s32.totalorder %s52, %s66
    %p68 = scmp.eq.s32.totalorder %s21, 0
    %p69 = por %p67, %p68
    %s71 = sadd.s32 %s70, 1
    %p74 = scmp.eq.s32.totalorder %s15, 1
    %p75 = scmp.ne.s32.totalorder %s70, %s72
    %p76 = scmp.eq.s32.totalorder %s15, 0
    %p77 = por %p75, %p76
    %p78 = scmp.ne.s32.totalorder %s70, %s72
    %p79 = scmp.eq.s32.totalorder %s20, 1
    %p80 = por %p78, %p79
    %p81 = scmp.ne.s32.totalorder %s72, %s73
    %p82 = scmp.eq.s32.totalorder %s20, 0
    %p83 = por %p81, %p82
    %p84 = scmp.ne.s32.totalorder %s72, %s73
    %p85 = scmp.eq.s32.totalorder %s21, 1
    %p86 = por %p84, %p85
    %p88 = scmp.ne.s32.totalorder %s73, %s87
    %p89 = scmp.eq.s32.totalorder %s21, 0
    %p90 = por %p88, %p89
    %s92 = sadd.s32 %s91, 1
    %p95 = scmp.eq.s32.totalorder %s15, 1
    %p96 = scmp.ne.s32.totalorder %s91, %s93
    %p97 = scmp.eq.s32.totalorder %s15, 0
    %p98 = por %p96, %p97
    %p99 = scmp.ne.s32.totalorder %s91, %s93
    %p100 = scmp.eq.s32.totalorder %s20, 1
    %p101 = por %p99, %p100
    %p102 = scmp.ne.s32.totalorder %s93, %s94
    %p103 = scmp.eq.s32.totalorder %s20, 0
    %p104 = por %p102, %p103
    %p105 = scmp.ne.s32.totalorder %s93, %s94
    %p106 = scmp.eq.s32.totalorder %s21, 1
    %p107 = por %p105, %p106
    %p109 = scmp.ne.s32.totalorder %s94, %s108
    %p110 = scmp.eq.s32.totalorder %s21, 0
    %p111 = por %p109, %p110
    %s113 = sadd.s32 %s112, 1
    %p116 = scmp.eq.s32.totalorder %s15, 1
    %p117 = scmp.ne.s32.totalorder %s112, %s114
    %p118 = scmp.eq.s32.totalorder %s15, 0
    %p119 = por %p117, %p118
    %p120 = scmp.ne.s32.totalorder %s112, %s114
    %p121 = scmp.eq.s32.totalorder %s20, 1
    %p122 = por %p120, %p121
    %p123 = scmp.ne.s32.totalorder %s114, %s115
    %p124 = scmp.eq.s32.totalorder %s20, 0
    %p125 = por %p123, %p124
    %p126 = scmp.ne.s32.totalorder %s114, %s115
    %p127 = scmp.eq.s32.totalorder %s21, 1
    %p128 = por %p126, %p127
    %p130 = scmp.ne.s32.totalorder %s115, %s129
    %p131 = scmp.eq.s32.totalorder %s21, 0
    %p132 = por %p130, %p131
    %s134 = sadd.s32 %s133, 1
    %p137 = scmp.eq.s32.totalorder %s15, 1
    %p138 = scmp.ne.s32.totalorder %s133, %s135
    %p139 = scmp.eq.s32.totalorder %s15, 0
    %p140 = por %p138, %p139
    %p141 = scmp.ne.s32.totalorder %s133, %s135
    %p142 = scmp.eq.s32.totalorder %s20, 1
    %p143 = por %p141, %p142
    %p144 = scmp.ne.s32.totalorder %s135, %s136
    %p145 = scmp.eq.s32.totalorder %s20, 0
    %p146 = por %p144, %p145
    %p147 = scmp.ne.s32.totalorder %s135, %s136
    %p148 = scmp.eq.s32.totalorder %s21, 1
    %p149 = por %p147, %p148
    %p151 = scmp.ne.s32.totalorder %s136, %s150
    %p152 = scmp.eq.s32.totalorder %s21, 0
    %p153 = por %p151, %p152
    %s155 = sadd.s32 %s154, 1
    %p158 = scmp.eq.s32.totalorder %s15, 1
    %p159 = scmp.ne.s32.totalorder %s154, %s156
    %p160 = scmp.eq.s32.totalorder %s15, 0
    %p161 = por %p159, %p160
    %p162 = scmp.ne.s32.totalorder %s154, %s156
    %p163 = scmp.eq.s32.totalorder %s20, 1
    %p164 = por %p162, %p163
    %p165 = scmp.ne.s32.totalorder %s156, %s157
    %p166 = scmp.eq.s32.totalorder %s20, 0
    %p167 = por %p165, %p166
    %p168 = scmp.ne.s32.totalorder %s156, %s157
    %p169 = scmp.eq.s32.totalorder %s21, 1
    %p170 = por %p168, %p169
    %p172 = scmp.ne.s32.totalorder %s157, %s171
    %p173 = scmp.eq.s32.totalorder %s21, 0
    %p174 = por %p172, %p173
    %s176 = sadd.s32 %s175, 1
    %p179 = scmp.eq.s32.totalorder %s15, 1
    %p180 = scmp.ne.s32.totalorder %s175, %s177
    %p181 = scmp.eq.s32.totalorder %s15, 0
    %p182 = por %p180, %p181
    %p183 = scmp.ne.s32.totalorder %s175, %s177
    %p184 = scmp.eq.s32.totalorder %s20, 1
    %p185 = por %p183, %p184
    %p186 = scmp.ne.s32.totalorder %s177, %s178
    %p187 = scmp.eq.s32.totalorder %s20, 0
    %p188 = por %p186, %p187
    %p189 = scmp.ne.s32.totalorder %s177, %s178
    %p190 = scmp.eq.s32.totalorder %s21, 1
    %p191 = por %p189, %p190
    %p193 = scmp.ne.s32.totalorder %s178, %s192
    %p194 = scmp.eq.s32.totalorder %s21, 0
    %p195 = por %p193, %p194
    %s197 = sadd.s32 %s196, 1
    %p200 = scmp.eq.s32.totalorder %s15, 1
    %p201 = scmp.ne.s32.totalorder %s196, %s198
    %p202 = scmp.eq.s32.totalorder %s15, 0
    %p203 = por %p201, %p202
    %p204 = scmp.ne.s32.totalorder %s196, %s198
    %p205 = scmp.eq.s32.totalorder %s20, 1
    %p206 = por %p204, %p205
    %p207 = scmp.ne.s32.totalorder %s198, %s199
    %p208 = scmp.eq.s32.totalorder %s20, 0
    %p209 = por %p207, %p208
    %p210 = scmp.ne.s32.totalorder %s198, %s199
    %p211 = scmp.eq.s32.totalorder %s21, 1
    %p212 = por %p210, %p211
    %p214 = scmp.ne.s32.totalorder %s199, %s213
    %p215 = scmp.eq.s32.totalorder %s21, 0
    %p216 = por %p214, %p215
    %s217 = ssub.s32 %s15, %s22
    %p218 = scmp.eq.s32.totalorder %s217, 0
    %s220 = sadd.s32 %s219, 1
    %s221 = scalar_select %p218, %s219, %s220
    %p224 = pneg %p218
    %p225 = scmp.eq.s32.totalorder %s15, 1
    %p226 = por %p224, %p225
    %p227 = scmp.ne.s32.totalorder %s219, %s222
    %p228 = scmp.eq.s32.totalorder %s15, 0
    %p229 = por %p227, %p228
    %p230 = scmp.ne.s32.totalorder %s219, %s222
    %p231 = scmp.eq.s32.totalorder %s20, 1
    %p232 = por %p230, %p231
    %p233 = scmp.ne.s32.totalorder %s222, %s223
    %p234 = scmp.eq.s32.totalorder %s20, 0
    %p235 = por %p233, %p234
    %p236 = scmp.ne.s32.totalorder %s222, %s223
    %p237 = scmp.eq.s32.totalorder %s21, 1
    %p238 = por %p236, %p237
    %p240 = scmp.ne.s32.totalorder %s223, %s239
    %p241 = scmp.eq.s32.totalorder %s21, 0
    %p242 = por %p240, %p241
    %p243 = scmp.le.s32.totalorder 1, %s15
    %p244 = scmp.lt.s32.totalorder %s15, 3
    %p245 = pnand %p243, %p244
    %p246 = pneg %p245
    // Predicated region
    $region9: #{fork_forward.1} parent=5 // pred_check
      _
    $region10: #{fork_forward.1} parent=5 // pred_check_branch
      %248 = sbr.rel (%p245) target = $region12
    $region11: #{fork_forward.1} parent=5 // pred_region
      %s249 = ssub.s32 %s15, 1
      // Predicated region
      $region13: #{fork_forward.1} parent=11 // pred_check
        %p250 = pneg %p62
      $region14: #{fork_forward.1} parent=11 // pred_check_branch
        %252 = sbr.rel (%p250) target = $region16
      $region15: #{fork_forward.1} parent=11 // pred_region
        _
      $region16: #{fork_forward.1} parent=11 // pred_fallthru
        _
      // Predicated region
      $region17: #{fork_forward.1} parent=11 // pred_check
        %p253 = pneg %p83
      $region18: #{fork_forward.1} parent=11 // pred_check_branch
        %255 = sbr.rel (%p253) target = $region20
      $region19: #{fork_forward.1} parent=11 // pred_region
        _
      $region20: #{fork_forward.1} parent=11 // pred_fallthru
        _
      // Predicated region
      $region21: #{fork_forward.1} parent=11 // pred_check
        %p256 = pneg %p104
      $region22: #{fork_forward.1} parent=11 // pred_check_branch
        %258 = sbr.rel (%p256) target = $region24
      $region23: #{fork_forward.1} parent=11 // pred_region
        _
      $region24: #{fork_forward.1} parent=11 // pred_fallthru
        _
      // Predicated region
      $region25: #{fork_forward.1} parent=11 // pred_check
        %p259 = pneg %p125
      $region26: #{fork_forward.1} parent=11 // pred_check_branch
        %261 = sbr.rel (%p259) target = $region28
      $region27: #{fork_forward.1} parent=11 // pred_region
        _
      $region28: #{fork_forward.1} parent=11 // pred_fallthru
        _
      // Predicated region
      $region29: #{fork_forward.1} parent=11 // pred_check
        %p262 = pneg %p146
      $region30: #{fork_forward.1} parent=11 // pred_check_branch
        %264 = sbr.rel (%p262) target = $region32
      $region31: #{fork_forward.1} parent=11 // pred_region
        _
      $region32: #{fork_forward.1} parent=11 // pred_fallthru
        _
      // Predicated region
      $region33: #{fork_forward.1} parent=11 // pred_check
        %p265 = pneg %p167
      $region34: #{fork_forward.1} parent=11 // pred_check_branch
        %267 = sbr.rel (%p265) target = $region36
      $region35: #{fork_forward.1} parent=11 // pred_region
        _
      $region36: #{fork_forward.1} parent=11 // pred_fallthru
        _
      // Predicated region
      $region37: #{fork_forward.1} parent=11 // pred_check
        %p268 = pneg %p188
      $region38: #{fork_forward.1} parent=11 // pred_check_branch
        %270 = sbr.rel (%p268) target = $region40
      $region39: #{fork_forward.1} parent=11 // pred_region
        _
      $region40: #{fork_forward.1} parent=11 // pred_fallthru
        _
      // Predicated region
      $region41: #{fork_forward.1} parent=11 // pred_check
        %p271 = pneg %p209
      $region42: #{fork_forward.1} parent=11 // pred_check_branch
        %273 = sbr.rel (%p271) target = $region44
      $region43: #{fork_forward.1} parent=11 // pred_region
        _
      $region44: #{fork_forward.1} parent=11 // pred_fallthru
        _
    $region12: #{fork_forward.1} parent=5 // pred_fallthru
      _
    %p274 = scmp.lt.s32.totalorder %s15, 2
    // Predicated region
    $region45: #{fork_forward.1} parent=5 // pred_check
      %p275 = pneg %p274
    $region46: #{fork_forward.1} parent=5 // pred_check_branch
      %277 = sbr.rel (%p275) target = $region48
    $region47: #{fork_forward.1} parent=5 // pred_region
      // Predicated region
      $region49: #{fork_forward.1} parent=47 // pred_check
        %p278 = pneg %p35
      $region50: #{fork_forward.1} parent=47 // pred_check_branch
        %280 = sbr.rel (%p278) target = $region52
      $region51: #{fork_forward.1} parent=47 // pred_region
        %p281 = scmp.lt.s32.totalorder %s15, 1
        %s282 = scalar_select %p281, %s15, 1
        %s283 = smul.addr %s282, 32
        %s284 = smul.addr %s283, 8
        %s285 = scalar_lea.vmem %s0, %s284
      $region52: #{fork_forward.1} parent=47 // pred_fallthru
        _
    $region48: #{fork_forward.1} parent=5 // pred_fallthru
      _
    %p286 = scmp.le.s32.totalorder 1, %s15
    %p287 = scmp.lt.s32.totalorder %s15, 3
    %p288 = pnand %p286, %p287
    %p289 = pneg %p288
    // Predicated region
    $region53: #{fork_forward.1} parent=5 // pred_check
      _
    $region54: #{fork_forward.1} parent=5 // pred_check_branch
      %291 = sbr.rel (%p288) target = $region56
    $region55: #{fork_forward.1} parent=5 // pred_region
      %s292 = ssub.s32 %s15, 1
      %p293 = scmp.lt.s32.totalorder %s20, 1
      %s294 = scalar_select %p293, %s20, 1
      %s295 = smul.addr %s294, 32
      %s296 = smul.addr %s295, 8
      %s297 = scalar_lea.vmem %s0, %s296
      %p298 = pneg %p41
      %p299 = pneg %p38
      %p300 = pneg %p62
      %p301 = pneg %p59
      %p302 = pneg %p83
      %p303 = pneg %p80
      %p304 = pneg %p104
      %p305 = pneg %p101
      %p306 = pneg %p125
      %p307 = pneg %p122
      %p308 = pneg %p146
      %p309 = pneg %p143
      %p310 = pneg %p167
      %p311 = pneg %p164
      %p312 = pneg %p188
      %p313 = pneg %p185
      %p314 = pneg %p209
      %p315 = pneg %p206
      %p316 = pneg %p235
      %p317 = pneg %p232
      %p318 = scmp.lt.s32.totalorder %s20, 1
      %s319 = scalar_select %p318, %s20, 1
      %s320 = smul.addr %s319, 32
      %s321 = smul.addr %s320, 8
      %s322 = scalar_lea.vmem %s9, %s321
      %p323 = scmp.lt.s32.totalorder %s20, 1
      %s324 = scalar_select %p323, %s20, 1
      %s325 = smul.addr %s324, 32
      %s326 = smul.addr %s325, 8
      %s327 = scalar_lea.vmem %s0, %s326
      %p328 = scmp.lt.s32.totalorder %s20, 1
      %s329 = scalar_select %p328, %s20, 1
      %s330 = smul.addr %s329, 32
      %s331 = smul.addr %s330, 8
      %s332 = scalar_lea.vmem %s9, %s331
      %334 = vst [vmem:[#allocation2] sm:$0xff] 0.0
      %335 = vst [vmem:[#allocation2 + $0x8] sm:$0xff] 0.0
      %336 = vst [vmem:[#allocation2 + $0x10] sm:$0xff] 0.0
      %337 = vst [vmem:[#allocation2 + $0x18] sm:$0xff] 0.0
      %338 = vst [vmem:[#allocation2 + $0x20] sm:$0xff] 0.0
      %339 = vst [vmem:[#allocation2 + $0x28] sm:$0xff] 0.0
      %340 = vst [vmem:[#allocation2 + $0x30] sm:$0xff] 0.0
      %341 = vst [vmem:[#allocation2 + $0x38] sm:$0xff] 0.0
      %342 = vst [vmem:[#allocation2 + $0x40] sm:$0xff] 0.0
      %343 = vst [vmem:[#allocation2 + $0x48] sm:$0xff] 0.0
      %344 = vst [vmem:[#allocation2 + $0x50] sm:$0xff] 0.0
      %345 = vst [vmem:[#allocation2 + $0x58] sm:$0xff] 0.0
      %346 = vst [vmem:[#allocation2 + $0x60] sm:$0xff] 0.0
      %347 = vst [vmem:[#allocation2 + $0x68] sm:$0xff] 0.0
      %348 = vst [vmem:[#allocation2 + $0x70] sm:$0xff] 0.0
      %349 = vst [vmem:[#allocation2 + $0x78] sm:$0xff] 0.0
      %350 = vst [vmem:[#allocation2 + $0x80] sm:$0xff] 0.0
      %351 = vst [vmem:[#allocation2 + $0x88] sm:$0xff] 0.0
      %352 = vst [vmem:[#allocation2 + $0x90] sm:$0xff] 0.0
      %353 = vst [vmem:[#allocation2 + $0x98] sm:$0xff] 0.0
      %354 = vst [vmem:[#allocation2 + $0xa0] sm:$0xff] 0.0
      %355 = vst [vmem:[#allocation2 + $0xa8] sm:$0xff] 0.0
      %356 = vst [vmem:[#allocation2 + $0xb0] sm:$0xff] 0.0
      %357 = vst [vmem:[#allocation2 + $0xb8] sm:$0xff] 0.0
      %358 = vst [vmem:[#allocation2 + $0xc0] sm:$0xff] 0.0
      %359 = vst [vmem:[#allocation2 + $0xc8] sm:$0xff] 0.0
      %360 = vst [vmem:[#allocation2 + $0xd0] sm:$0xff] 0.0
      %361 = vst [vmem:[#allocation2 + $0xd8] sm:$0xff] 0.0
      %362 = vst [vmem:[#allocation2 + $0xe0] sm:$0xff] 0.0
      %363 = vst [vmem:[#allocation2 + $0xe8] sm:$0xff] 0.0
      %364 = vst [vmem:[#allocation2 + $0xf0] sm:$0xff] 0.0
      %365 = vst [vmem:[#allocation2 + $0xf8] sm:$0xff] 0.0
      %366 = vst [vmem:[#allocation2 + $0x100] sm:$0xff] 0.0
      %367 = vst [vmem:[#allocation2 + $0x108] sm:$0xff] 0.0
      %368 = vst [vmem:[#allocation2 + $0x110] sm:$0xff] 0.0
      %369 = vst [vmem:[#allocation2 + $0x118] sm:$0xff] 0.0
      %370 = vst [vmem:[#allocation2 + $0x120] sm:$0xff] 0.0
      %371 = vst [vmem:[#allocation2 + $0x128] sm:$0xff] 0.0
      %372 = vst [vmem:[#allocation2 + $0x130] sm:$0xff] 0.0
      %373 = vst [vmem:[#allocation2 + $0x138] sm:$0xff] 0.0
      %374 = vst [vmem:[#allocation2 + $0x140] sm:$0xff] 0.0
      %375 = vst [vmem:[#allocation2 + $0x148] sm:$0xff] 0.0
      %376 = vst [vmem:[#allocation2 + $0x150] sm:$0xff] 0.0
      %377 = vst [vmem:[#allocation2 + $0x158] sm:$0xff] 0.0
      %378 = vst [vmem:[#allocation2 + $0x160] sm:$0xff] 0.0
      %379 = vst [vmem:[#allocation2 + $0x168] sm:$0xff] 0.0
      %380 = vst [vmem:[#allocation2 + $0x170] sm:$0xff] 0.0
      %381 = vst [vmem:[#allocation2 + $0x178] sm:$0xff] 0.0
      %382 = vst [vmem:[#allocation2 + $0x180] sm:$0xff] 0.0
      %383 = vst [vmem:[#allocation2 + $0x188] sm:$0xff] 0.0
      %384 = vst [vmem:[#allocation2 + $0x190] sm:$0xff] 0.0
      %385 = vst [vmem:[#allocation2 + $0x198] sm:$0xff] 0.0
      %386 = vst [vmem:[#allocation2 + $0x1a0] sm:$0xff] 0.0
      %387 = vst [vmem:[#allocation2 + $0x1a8] sm:$0xff] 0.0
      %388 = vst [vmem:[#allocation2 + $0x1b0] sm:$0xff] 0.0
      %389 = vst [vmem:[#allocation2 + $0x1b8] sm:$0xff] 0.0
      %390 = vst [vmem:[#allocation2 + $0x1c0] sm:$0xff] 0.0
      %391 = vst [vmem:[#allocation2 + $0x1c8] sm:$0xff] 0.0
      %392 = vst [vmem:[#allocation2 + $0x1d0] sm:$0xff] 0.0
      %393 = vst [vmem:[#allocation2 + $0x1d8] sm:$0xff] 0.0
      %394 = vst [vmem:[#allocation2 + $0x1e0] sm:$0xff] 0.0
      %395 = vst [vmem:[#allocation2 + $0x1e8] sm:$0xff] 0.0
      %396 = vst [vmem:[#allocation2 + $0x1f0] sm:$0xff] 0.0
      %397 = vst [vmem:[#allocation2 + $0x1f8] sm:$0xff] 0.0
      %398 = vst [vmem:[#allocation2 + $0x200] sm:$0xff] 0.0
      %399 = vst [vmem:[#allocation2 + $0x208] sm:$0xff] 0.0
      %400 = vst [vmem:[#allocation2 + $0x210] sm:$0xff] 0.0
      %401 = vst [vmem:[#allocation2 + $0x218] sm:$0xff] 0.0
      %402 = vst [vmem:[#allocation2 + $0x220] sm:$0xff] 0.0
      %403 = vst [vmem:[#allocation2 + $0x228] sm:$0xff] 0.0
      %404 = vst [vmem:[#allocation2 + $0x230] sm:$0xff] 0.0
      %405 = vst [vmem:[#allocation2 + $0x238] sm:$0xff] 0.0
      %v406 = vld [vmem:[%s327] sm:$0xff]
      %v407 = vld [vmem:[%s327 + $0x8] sm:$0xff]
      %v408 = vld [vmem:[%s327 + $0x10] sm:$0xff]
      %v409 = vld [vmem:[%s327 + $0x18] sm:$0xff]
      %v410 = vld [vmem:[%s327 + $0x20] sm:$0xff]
      %v411 = vld [vmem:[%s327 + $0x28] sm:$0xff]
      %v412 = vld [vmem:[%s327 + $0x30] sm:$0xff]
      %v413 = vld [vmem:[%s327 + $0x38] sm:$0xff]
      %v414 = vld [vmem:[%s327 + $0x40] sm:$0xff]
      %v415 = vld [vmem:[%s327 + $0x48] sm:$0xff]
      %v416 = vld [vmem:[%s327 + $0x50] sm:$0xff]
      %v417 = vld [vmem:[%s327 + $0x58] sm:$0xff]
      %v418 = vld [vmem:[%s327 + $0x60] sm:$0xff]
      %v419 = vld [vmem:[%s327 + $0x68] sm:$0xff]
      %v420 = vld [vmem:[%s327 + $0x70] sm:$0xff]
      %v421 = vld [vmem:[%s327 + $0x78] sm:$0xff]
      %v422 = vld [vmem:[%s327 + $0x80] sm:$0xff]
      %v423 = vld [vmem:[%s327 + $0x88] sm:$0xff]
      %v424 = vld [vmem:[%s327 + $0x90] sm:$0xff]
      %v425 = vld [vmem:[%s327 + $0x98] sm:$0xff]
      %v426 = vld [vmem:[%s327 + $0xa0] sm:$0xff]
      %v427 = vld [vmem:[%s327 + $0xa8] sm:$0xff]
      %v428 = vld [vmem:[%s327 + $0xb0] sm:$0xff]
      %v429 = vld [vmem:[%s327 + $0xb8] sm:$0xff]
      %v430 = vld [vmem:[%s327 + $0xc0] sm:$0xff]
      %v431 = vld [vmem:[%s327 + $0xc8] sm:$0xff]
      %v432 = vld [vmem:[%s327 + $0xd0] sm:$0xff]
      %v433 = vld [vmem:[%s327 + $0xd8] sm:$0xff]
      %v434 = vld [vmem:[%s327 + $0xe0] sm:$0xff]
      %v435 = vld [vmem:[%s327 + $0xe8] sm:$0xff]
      %v436 = vld [vmem:[%s327 + $0xf0] sm:$0xff]
      %v437 = vld [vmem:[%s327 + $0xf8] sm:$0xff]
      %v438 = vpack.c.bf16 %v407, %v406
      %v439 = vpack.c.bf16 %v409, %v408
      %v440 = vpack.c.bf16 %v411, %v410
      %v441 = vpack.c.bf16 %v413, %v412
      %v442 = vpack.c.bf16 %v415, %v414
      %v443 = vpack.c.bf16 %v417, %v416
      %v444 = vpack.c.bf16 %v419, %v418
      %v445 = vpack.c.bf16 %v421, %v420
      %v446 = vpack.c.bf16 %v423, %v422
      %v447 = vpack.c.bf16 %v425, %v424
      %v448 = vpack.c.bf16 %v427, %v426
      %v449 = vpack.c.bf16 %v429, %v428
      %v450 = vpack.c.bf16 %v431, %v430
      %v451 = vpack.c.bf16 %v433, %v432
      %v452 = vpack.c.bf16 %v435, %v434
      %v453 = vpack.c.bf16 %v437, %v436
      %v454 = vld [vmem:[%s1] sm:$0xf]
      %v455 = vld [vmem:[%s2] sm:$0x1]
      %v457 = vlaneseq
      %v458 = vshrl.u32 %v457, 7
      %v459 = vsub.s32 0, %v458
      %v460 = vrot.slane %v455, %v459
      %vm462 = vcmask 64512
      %v464 = vsel %vm462, %v438, 0
      %v467 = vsel %vm462, %v439, 0
      %v470 = vsel %vm462, %v440, 0
      %v473 = vsel %vm462, %v441, 0
      %v476 = vsel %vm462, %v442, 0
      %v479 = vsel %vm462, %v443, 0
      %v482 = vsel %vm462, %v444, 0
      %v485 = vsel %vm462, %v445, 0
      %v488 = vsel %vm462, %v446, 0
      %v491 = vsel %vm462, %v447, 0
      %v494 = vsel %vm462, %v448, 0
      %v497 = vsel %vm462, %v449, 0
      %v500 = vsel %vm462, %v450, 0
      %v503 = vsel %vm462, %v451, 0
      %v506 = vsel %vm462, %v452, 0
      %v509 = vsel %vm462, %v453, 0
      %vm511 = vcmask 1043456
      %v513 = vsel %vm511, %v454, 0
      %515 = vmatprep.subr.bf16.mxu0 0
      %516 = vmatpush1.bf16.msra.mxu0 %v513
      %517 = vmatprep.subr.bf16.mxu0 0
      %518 = vmatpush1.bf16.msra.mxu0 0
      %519 = vmatprep.subr.bf16.mxu0 0
      %520 = vmatpush1.bf16.msra.mxu0 0
      %521 = vmatprep.subr.bf16.mxu0 0
      %522 = vmatpush1.bf16.msra.mxu0 0
      %523 = vmatprep.subr.bf16.mxu0 0
      %524 = vmatpush1.bf16.msra.mxu0 0
      %525 = vmatprep.subr.bf16.mxu0 0
      %526 = vmatpush1.bf16.msra.mxu0 0
      %527 = vmatprep.subr.bf16.mxu0 0
      %528 = vmatpush1.bf16.msra.mxu0 0
      %529 = vmatprep.subr.bf16.mxu0 0
      %530 = vmatpush1.bf16.msra.mxu0 0
      %531 = vmatprep.subr.bf16.mxu0 0
      %532 = vmatpush1.bf16.msra.mxu0 0
      %533 = vmatprep.subr.bf16.mxu0 0
      %534 = vmatpush1.bf16.msra.mxu0 0
      %535 = vmatprep.subr.bf16.mxu0 0
      %536 = vmatpush1.bf16.msra.mxu0 0
      %537 = vmatprep.subr.bf16.mxu0 0
      %538 = vmatpush1.bf16.msra.mxu0 0
      %539 = vmatprep.subr.bf16.mxu0 0
      %540 = vmatpush1.bf16.msra.mxu0 0
      %541 = vmatprep.subr.bf16.mxu0 0
      %542 = vmatpush1.bf16.msra.mxu0 0
      %543 = vmatprep.subr.bf16.mxu0 0
      %544 = vmatpush1.bf16.msra.mxu0 0
      %545 = vmatprep.subr.bf16.mxu0 0
      %546 = vmatpush1.bf16.msra.mxu0 0
      %547 = vmatprep.mubr.bf16.mxu0 0
      %548 = vmatmul.mubr.bf16.gmra.mrb[0].mxu0 %v464
      %v549 = vpop.f32.mrb[0].mxu0
      %v550 = vadd.f32 %v460, %v549
      %v551 = vpop.f32.mrb[0].mxu0
      %v552 = vpop.f32.mrb[0].mxu0
      %v553 = vadd.f32 %v460, %v552
      %v554 = vpop.f32.mrb[0].mxu0
      %555 = vmatprep.mubr.bf16.mxu0 0
      %556 = vmatmul.mubr.bf16.gmra.mrb[0].mxu0 %v467
      %v557 = vpop.f32.mrb[0].mxu0
      %v558 = vadd.f32 %v460, %v557
      %v559 = vpop.f32.mrb[0].mxu0
      %v560 = vpop.f32.mrb[0].mxu0
      %v561 = vadd.f32 %v460, %v560
      %v562 = vpop.f32.mrb[0].mxu0
      %563 = vmatprep.mubr.bf16.mxu0 0
      %564 = vmatmul.mubr.bf16.gmra.mrb[0].mxu0 %v470
      %v565 = vpop.f32.mrb[0].mxu0
      %v566 = vadd.f32 %v460, %v565
      %v567 = vpop.f32.mrb[0].mxu0
      %v568 = vpop.f32.mrb[0].mxu0
      %v569 = vadd.f32 %v460, %v568
      %v570 = vpop.f32.mrb[0].mxu0
      %571 = vmatprep.mubr.bf16.mxu0 0
      %572 = vmatmul.mubr.bf16.gmra.mrb[0].mxu0 %v473
      %v573 = vpop.f32.mrb[0].mxu0
      %v574 = vadd.f32 %v460, %v573
      %v575 = vpop.f32.mrb[0].mxu0
      %v576 = vpop.f32.mrb[0].mxu0
      %v577 = vadd.f32 %v460, %v576
      %v578 = vpop.f32.mrb[0].mxu0
      %579 = vmatprep.mubr.bf16.mxu0 0
      %580 = vmatmul.mubr.bf16.gmra.mrb[0].mxu0 %v476
      %v581 = vpop.f32.mrb[0].mxu0
      %v582 = vadd.f32 %v460, %v581
      %v583 = vpop.f32.mrb[0].mxu0
      %v584 = vpop.f32.mrb[0].mxu0
      %v585 = vadd.f32 %v460, %v584
      %v586 = vpop.f32.mrb[0].mxu0
      %587 = vmatprep.mubr.bf16.mxu0 0
      %588 = vmatmul.mubr.bf16.gmra.mrb[0].mxu0 %v479
      %v589 = vpop.f32.mrb[0].mxu0
      %v590 = vadd.f32 %v460, %v589
      %v591 = vpop.f32.mrb[0].mxu0
      %v592 = vpop.f32.mrb[0].mxu0
      %v593 = vadd.f32 %v460, %v592
      %v594 = vpop.f32.mrb[0].mxu0
      %595 = vmatprep.mubr.bf16.mxu0 0
      %596 = vmatmul.mubr.bf16.gmra.mrb[0].mxu0 %v482
      %v597 = vpop.f32.mrb[0].mxu0
      %v598 = vadd.f32 %v460, %v597
      %v599 = vpop.f32.mrb[0].mxu0
      %v600 = vpop.f32.mrb[0].mxu0
      %v601 = vadd.f32 %v460, %v600
      %v602 = vpop.f32.mrb[0].mxu0
      %603 = vmatprep.mubr.bf16.mxu0 0
      %604 = vmatmul.mubr.bf16.gmra.mrb[0].mxu0 %v485
      %v605 = vpop.f32.mrb[0].mxu0
      %v606 = vadd.f32 %v460, %v605
      %v607 = vpop.f32.mrb[0].mxu0
      %v608 = vpop.f32.mrb[0].mxu0
      %v609 = vadd.f32 %v460, %v608
      %v610 = vpop.f32.mrb[0].mxu0
      %611 = vmatprep.mubr.bf16.mxu0 0
      %612 = vmatmul.mubr.bf16.gmra.mrb[0].mxu0 %v488
      %v613 = vpop.f32.mrb[0].mxu0
      %v614 = vadd.f32 %v460, %v613
      %v615 = vpop.f32.mrb[0].mxu0
      %v616 = vpop.f32.mrb[0].mxu0
      %v617 = vadd.f32 %v460, %v616
      %v618 = vpop.f32.mrb[0].mxu0
      %619 = vmatprep.mubr.bf16.mxu0 0
      %620 = vmatmul.mubr.bf16.gmra.mrb[0].mxu0 %v491
      %v621 = vpop.f32.mrb[0].mxu0
      %v622 = vadd.f32 %v460, %v621
      %v623 = vpop.f32.mrb[0].mxu0
      %v624 = vpop.f32.mrb[0].mxu0
      %v625 = vadd.f32 %v460, %v624
      %v626 = vpop.f32.mrb[0].mxu0
      %627 = vmatprep.mubr.bf16.mxu0 0
      %628 = vmatmul.mubr.bf16.gmra.mrb[0].mxu0 %v494
      %v629 = vpop.f32.mrb[0].mxu0
      %v630 = vadd.f32 %v460, %v629
      %v631 = vpop.f32.mrb[0].mxu0
      %v632 = vpop.f32.mrb[0].mxu0
      %v633 = vadd.f32 %v460, %v632
      %v634 = vpop.f32.mrb[0].mxu0
      %635 = vmatprep.mubr.bf16.mxu0 0
      %636 = vmatmul.mubr.bf16.gmra.mrb[0].mxu0 %v497
      %v637 = vpop.f32.mrb[0].mxu0
      %v638 = vadd.f32 %v460, %v637
      %v639 = vpop.f32.mrb[0].mxu0
      %v640 = vpop.f32.mrb[0].mxu0
      %v641 = vadd.f32 %v460, %v640
      %v642 = vpop.f32.mrb[0].mxu0
      %643 = vmatprep.mubr.bf16.mxu0 0
      %644 = vmatmul.mubr.bf16.gmra.mrb[0].mxu0 %v500
      %v645 = vpop.f32.mrb[0].mxu0
      %v646 = vadd.f32 %v460, %v645
      %v647 = vpop.f32.mrb[0].mxu0
      %v648 = vpop.f32.mrb[0].mxu0
      %v649 = vadd.f32 %v460, %v648
      %v650 = vpop.f32.mrb[0].mxu0
      %651 = vmatprep.mubr.bf16.mxu0 0
      %652 = vmatmul.mubr.bf16.gmra.mrb[0].mxu0 %v503
      %v653 = vpop.f32.mrb[0].mxu0
      %v654 = vadd.f32 %v460, %v653
      %v655 = vpop.f32.mrb[0].mxu0
      %v656 = vpop.f32.mrb[0].mxu0
      %v657 = vadd.f32 %v460, %v656
      %v658 = vpop.f32.mrb[0].mxu0
      %659 = vmatprep.mubr.bf16.mxu0 0
      %660 = vmatmul.mubr.bf16.gmra.mrb[0].mxu0 %v506
      %v661 = vpop.f32.mrb[0].mxu0
      %v662 = vadd.f32 %v460, %v661
      %v663 = vpop.f32.mrb[0].mxu0
      %v664 = vpop.f32.mrb[0].mxu0
      %v665 = vadd.f32 %v460, %v664
      %v666 = vpop.f32.mrb[0].mxu0
      %667 = vmatprep.mubr.bf16.mxu0 0
      %668 = vmatmul.mubr.bf16.gmra.mrb[0].mxu0 %v509
      %v669 = vpop.f32.mrb[0].mxu0
      %v670 = vadd.f32 %v460, %v669
      %v671 = vpop.f32.mrb[0].mxu0
      %v672 = vpop.f32.mrb[0].mxu0
      %v673 = vadd.f32 %v460, %v672
      %v674 = vpop.f32.mrb[0].mxu0
      %675 = vdwg.mxu0
      %v676 = vmax.f32 %v550, 0.0
      %v677 = vmax.f32 %v553, 0.0
      %v678 = vmax.f32 %v558, 0.0
      %v679 = vmax.f32 %v561, 0.0
      %v680 = vmax.f32 %v566, 0.0
      %v681 = vmax.f32 %v569, 0.0
      %v682 = vmax.f32 %v574, 0.0
      %v683 = vmax.f32 %v577, 0.0
      %v684 = vmax.f32 %v582, 0.0
      %v685 = vmax.f32 %v585, 0.0
      %v686 = vmax.f32 %v590, 0.0
      %v687 = vmax.f32 %v593, 0.0
      %v688 = vmax.f32 %v598, 0.0
      %v689 = vmax.f32 %v601, 0.0
      %v690 = vmax.f32 %v606, 0.0
      %v691 = vmax.f32 %v609, 0.0
      %v692 = vmax.f32 %v614, 0.0
      %v693 = vmax.f32 %v617, 0.0
      %v694 = vmax.f32 %v622, 0.0
      %v695 = vmax.f32 %v625, 0.0
      %v696 = vmax.f32 %v630, 0.0
      %v697 = vmax.f32 %v633, 0.0
      %v698 = vmax.f32 %v638, 0.0
      %v699 = vmax.f32 %v641, 0.0
      %v700 = vmax.f32 %v646, 0.0
      %v701 = vmax.f32 %v649, 0.0
      %v702 = vmax.f32 %v654, 0.0
      %v703 = vmax.f32 %v657, 0.0
      %v704 = vmax.f32 %v662, 0.0
      %v705 = vmax.f32 %v665, 0.0
      %v706 = vmax.f32 %v670, 0.0
      %v707 = vmax.f32 %v673, 0.0
      %708 = vst [vmem:[#allocation3] sm:$0xff] %v676
      %709 = vst [vmem:[#allocation3 + $0x8] sm:$0xff] %v677
      %710 = vst [vmem:[#allocation3 + $0x10] sm:$0xff] %v678
      %711 = vst [vmem:[#allocation3 + $0x18] sm:$0xff] %v679
      %712 = vst [vmem:[#allocation3 + $0x20] sm:$0xff] %v680
      %713 = vst [vmem:[#allocation3 + $0x28] sm:$0xff] %v681
      %714 = vst [vmem:[#allocation3 + $0x30] sm:$0xff] %v682
      %715 = vst [vmem:[#allocation3 + $0x38] sm:$0xff] %v683
      %716 = vst [vmem:[#allocation3 + $0x40] sm:$0xff] %v684
      %717 = vst [vmem:[#allocation3 + $0x48] sm:$0xff] %v685
      %718 = vst [vmem:[#allocation3 + $0x50] sm:$0xff] %v686
      %719 = vst [vmem:[#allocation3 + $0x58] sm:$0xff] %v687
      %720 = vst [vmem:[#allocation3 + $0x60] sm:$0xff] %v688
      %721 = vst [vmem:[#allocation3 + $0x68] sm:$0xff] %v689
      %722 = vst [vmem:[#allocation3 + $0x70] sm:$0xff] %v690
      %723 = vst [vmem:[#allocation3 + $0x78] sm:$0xff] %v691
      %724 = vst [vmem:[#allocation3 + $0x80] sm:$0xff] %v692
      %725 = vst [vmem:[#allocation3 + $0x88] sm:$0xff] %v693
      %726 = vst [vmem:[#allocation3 + $0x90] sm:$0xff] %v694
      %727 = vst [vmem:[#allocation3 + $0x98] sm:$0xff] %v695
      %728 = vst [vmem:[#allocation3 + $0xa0] sm:$0xff] %v696
      %729 = vst [vmem:[#allocation3 + $0xa8] sm:$0xff] %v697
      %730 = vst [vmem:[#allocation3 + $0xb0] sm:$0xff] %v698
      %731 = vst [vmem:[#allocation3 + $0xb8] sm:$0xff] %v699
      %732 = vst [vmem:[#allocation3 + $0xc0] sm:$0xff] %v700
      %733 = vst [vmem:[#allocation3 + $0xc8] sm:$0xff] %v701
      %734 = vst [vmem:[#allocation3 + $0xd0] sm:$0xff] %v702
      %735 = vst [vmem:[#allocation3 + $0xd8] sm:$0xff] %v703
      %736 = vst [vmem:[#allocation3 + $0xe0] sm:$0xff] %v704
      %737 = vst [vmem:[#allocation3 + $0xe8] sm:$0xff] %v705
      %738 = vst [vmem:[#allocation3 + $0xf0] sm:$0xff] %v706
      %739 = vst [vmem:[#allocation3 + $0xf8] sm:$0xff] %v707
      %v740 = vld [vmem:[#allocation3] sm:$0xff]
      %v741 = vld [vmem:[#allocation3 + $0x8] sm:$0xff]
      %v742 = vld [vmem:[#allocation3 + $0x10] sm:$0xff]
      %v743 = vld [vmem:[#allocation3 + $0x18] sm:$0xff]
      %v744 = vld [vmem:[#allocation3 + $0x20] sm:$0xff]
      %v745 = vld [vmem:[#allocation3 + $0x28] sm:$0xff]
      %v746 = vld [vmem:[#allocation3 + $0x30] sm:$0xff]
      %v747 = vld [vmem:[#allocation3 + $0x38] sm:$0xff]
      %v748 = vld [vmem:[#allocation3 + $0x40] sm:$0xff]
      %v749 = vld [vmem:[#allocation3 + $0x48] sm:$0xff]
      %v750 = vld [vmem:[#allocation3 + $0x50] sm:$0xff]
      %v751 = vld [vmem:[#allocation3 + $0x58] sm:$0xff]
      %v752 = vld [vmem:[#allocation3 + $0x60] sm:$0xff]
      %v753 = vld [vmem:[#allocation3 + $0x68] sm:$0xff]
      %v754 = vld [vmem:[#allocation3 + $0x70] sm:$0xff]
      %v755 = vld [vmem:[#allocation3 + $0x78] sm:$0xff]
      %v756 = vld [vmem:[#allocation3 + $0x80] sm:$0xff]
      %v757 = vld [vmem:[#allocation3 + $0x88] sm:$0xff]
      %v758 = vld [vmem:[#allocation3 + $0x90] sm:$0xff]
      %v759 = vld [vmem:[#allocation3 + $0x98] sm:$0xff]
      %v760 = vld [vmem:[#allocation3 + $0xa0] sm:$0xff]
      %v761 = vld [vmem:[#allocation3 + $0xa8] sm:$0xff]
      %v762 = vld [vmem:[#allocation3 + $0xb0] sm:$0xff]
      %v763 = vld [vmem:[#allocation3 + $0xb8] sm:$0xff]
      %v764 = vld [vmem:[#allocation3 + $0xc0] sm:$0xff]
      %v765 = vld [vmem:[#allocation3 + $0xc8] sm:$0xff]
      %v766 = vld [vmem:[#allocation3 + $0xd0] sm:$0xff]
      %v767 = vld [vmem:[#allocation3 + $0xd8] sm:$0xff]
      %v768 = vld [vmem:[#allocation3 + $0xe0] sm:$0xff]
      %v769 = vld [vmem:[#allocation3 + $0xe8] sm:$0xff]
      %v770 = vld [vmem:[#allocation3 + $0xf0] sm:$0xff]
      %v771 = vld [vmem:[#allocation3 + $0xf8] sm:$0xff]
      %s772 = scalar_lea.vmem [#allocation2], 32
      %773 = vst [vmem:[%s772 + $0x8] sm:$0xff] %v740
      %774 = vst [vmem:[%s772 + $0x10] sm:$0xff] %v741
      %775 = vst [vmem:[%s772 + $0x28] sm:$0xff] %v742
      %776 = vst [vmem:[%s772 + $0x30] sm:$0xff] %v743
      %777 = vst [vmem:[%s772 + $0x48] sm:$0xff] %v744
      %778 = vst [vmem:[%s772 + $0x50] sm:$0xff] %v745
      %779 = vst [vmem:[%s772 + $0x68] sm:$0xff] %v746
      %780 = vst [vmem:[%s772 + $0x70] sm:$0xff] %v747
      %781 = vst [vmem:[%s772 + $0x88] sm:$0xff] %v748
      %782 = vst [vmem:[%s772 + $0x90] sm:$0xff] %v749
      %783 = vst [vmem:[%s772 + $0xa8] sm:$0xff] %v750
      %784 = vst [vmem:[%s772 + $0xb0] sm:$0xff] %v751
      %785 = vst [vmem:[%s772 + $0xc8] sm:$0xff] %v752
      %786 = vst [vmem:[%s772 + $0xd0] sm:$0xff] %v753
      %787 = vst [vmem:[%s772 + $0xe8] sm:$0xff] %v754
      %788 = vst [vmem:[%s772 + $0xf0] sm:$0xff] %v755
      %789 = vst [vmem:[%s772 + $0x108] sm:$0xff] %v756
      %790 = vst [vmem:[%s772 + $0x110] sm:$0xff] %v757
      %791 = vst [vmem:[%s772 + $0x128] sm:$0xff] %v758
      %792 = vst [vmem:[%s772 + $0x130] sm:$0xff] %v759
      %793 = vst [vmem:[%s772 + $0x148] sm:$0xff] %v760
      %794 = vst [vmem:[%s772 + $0x150] sm:$0xff] %v761
      %795 = vst [vmem:[%s772 + $0x168] sm:$0xff] %v762
      %796 = vst [vmem:[%s772 + $0x170] sm:$0xff] %v763
      %797 = vst [vmem:[%s772 + $0x188] sm:$0xff] %v764
      %798 = vst [vmem:[%s772 + $0x190] sm:$0xff] %v765
      %799 = vst [vmem:[%s772 + $0x1a8] sm:$0xff] %v766
      %800 = vst [vmem:[%s772 + $0x1b0] sm:$0xff] %v767
      %801 = vst [vmem:[%s772 + $0x1c8] sm:$0xff] %v768
      %802 = vst [vmem:[%s772 + $0x1d0] sm:$0xff] %v769
      %803 = vst [vmem:[%s772 + $0x1e8] sm:$0xff] %v770
      %804 = vst [vmem:[%s772 + $0x1f0] sm:$0xff] %v771
      %805 = vst [vmem:[#allocation4] sm:$0xff] 0.0
      %806 = vst [vmem:[#allocation4 + $0x8] sm:$0xff] 0.0
      %807 = vst [vmem:[#allocation4 + $0x10] sm:$0xff] 0.0
      %808 = vst [vmem:[#allocation4 + $0x18] sm:$0xff] 0.0
      %809 = vst [vmem:[#allocation4 + $0x20] sm:$0xff] 0.0
      %810 = vst [vmem:[#allocation4 + $0x28] sm:$0xff] 0.0
      %811 = vst [vmem:[#allocation4 + $0x30] sm:$0xff] 0.0
      %812 = vst [vmem:[#allocation4 + $0x38] sm:$0xff] 0.0
      %813 = vst [vmem:[#allocation4 + $0x40] sm:$0xff] 0.0
      %814 = vst [vmem:[#allocation4 + $0x48] sm:$0xff] 0.0
      %815 = vst [vmem:[#allocation4 + $0x50] sm:$0xff] 0.0
      %816 = vst [vmem:[#allocation4 + $0x58] sm:$0xff] 0.0
      %817 = vst [vmem:[#allocation4 + $0x60] sm:$0xff] 0.0
      %818 = vst [vmem:[#allocation4 + $0x68] sm:$0xff] 0.0
      %819 = vst [vmem:[#allocation4 + $0x70] sm:$0xff] 0.0
      %820 = vst [vmem:[#allocation4 + $0x78] sm:$0xff] 0.0
      %821 = vst [vmem:[#allocation4 + $0x80] sm:$0xff] 0.0
      %822 = vst [vmem:[#allocation4 + $0x88] sm:$0xff] 0.0
      %823 = vst [vmem:[#allocation4 + $0x90] sm:$0xff] 0.0
      %824 = vst [vmem:[#allocation4 + $0x98] sm:$0xff] 0.0
      %825 = vst [vmem:[#allocation4 + $0xa0] sm:$0xff] 0.0
      %826 = vst [vmem:[#allocation4 + $0xa8] sm:$0xff] 0.0
      %827 = vst [vmem:[#allocation4 + $0xb0] sm:$0xff] 0.0
      %828 = vst [vmem:[#allocation4 + $0xb8] sm:$0xff] 0.0
      %829 = vst [vmem:[#allocation4 + $0xc0] sm:$0xff] 0.0
      %830 = vst [vmem:[#allocation4 + $0xc8] sm:$0xff] 0.0
      %831 = vst [vmem:[#allocation4 + $0xd0] sm:$0xff] 0.0
      %832 = vst [vmem:[#allocation4 + $0xd8] sm:$0xff] 0.0
      %833 = vst [vmem:[#allocation4 + $0xe0] sm:$0xff] 0.0
      %834 = vst [vmem:[#allocation4 + $0xe8] sm:$0xff] 0.0
      %835 = vst [vmem:[#allocation4 + $0xf0] sm:$0xff] 0.0
      %836 = vst [vmem:[#allocation4 + $0xf8] sm:$0xff] 0.0
      %v837 = vld [vmem:[#allocation2 + $0x7] sm:$0xff]
      %v838 = vld [vmem:[#allocation2 + $0xf] sm:$0xff]
      %v839 = vld [vmem:[#allocation2 + $0x27] sm:$0xff]
      %v840 = vld [vmem:[#allocation2 + $0x2f] sm:$0xff]
      %v841 = vld [vmem:[#allocation2 + $0x47] sm:$0xff]
      %v842 = vld [vmem:[#allocation2 + $0x4f] sm:$0xff]
      %v843 = vld [vmem:[#allocation2 + $0x67] sm:$0xff]
      %v844 = vld [vmem:[#allocation2 + $0x6f] sm:$0xff]
      %v845 = vld [vmem:[#allocation2 + $0x87] sm:$0xff]
      %v846 = vld [vmem:[#allocation2 + $0x8f] sm:$0xff]
      %v847 = vld [vmem:[#allocation2 + $0xa7] sm:$0xff]
      %v848 = vld [vmem:[#allocation2 + $0xaf] sm:$0xff]
      %v849 = vld [vmem:[#allocation2 + $0xc7] sm:$0xff]
      %v850 = vld [vmem:[#allocation2 + $0xcf] sm:$0xff]
      %v851 = vld [vmem:[#allocation2 + $0xe7] sm:$0xff]
      %v852 = vld [vmem:[#allocation2 + $0xef] sm:$0xff]
      %v853 = vld [vmem:[#allocation2 + $0x107] sm:$0xff]
      %v854 = vld [vmem:[#allocation2 + $0x10f] sm:$0xff]
      %v855 = vld [vmem:[#allocation2 + $0x127] sm:$0xff]
      %v856 = vld [vmem:[#allocation2 + $0x12f] sm:$0xff]
      %v857 = vld [vmem:[#allocation2 + $0x147] sm:$0xff]
      %v858 = vld [vmem:[#allocation2 + $0x14f] sm:$0xff]
      %v859 = vld [vmem:[#allocation2 + $0x167] sm:$0xff]
      %v860 = vld [vmem:[#allocation2 + $0x16f] sm:$0xff]
      %v861 = vld [vmem:[#allocation2 + $0x187] sm:$0xff]
      %v862 = vld [vmem:[#allocation2 + $0x18f] sm:$0xff]
      %v863 = vld [vmem:[#allocation2 + $0x1a7] sm:$0xff]
      %v864 = vld [vmem:[#allocation2 + $0x1af] sm:$0xff]
      %v865 = vld [vmem:[#allocation2 + $0x1c7] sm:$0xff]
      %v866 = vld [vmem:[#allocation2 + $0x1cf] sm:$0xff]
      %v867 = vld [vmem:[#allocation2 + $0x1e7] sm:$0xff]
      %v868 = vld [vmem:[#allocation2 + $0x1ef] sm:$0xff]
      %v869 = vpack.c.bf16 %v838, %v837
      %v870 = vpack.c.bf16 %v840, %v839
      %v871 = vpack.c.bf16 %v842, %v841
      %v872 = vpack.c.bf16 %v844, %v843
      %v873 = vpack.c.bf16 %v846, %v845
      %v874 = vpack.c.bf16 %v848, %v847
      %v875 = vpack.c.bf16 %v850, %v849
      %v876 = vpack.c.bf16 %v852, %v851
      %v877 = vpack.c.bf16 %v854, %v853
      %v878 = vpack.c.bf16 %v856, %v855
      %v879 = vpack.c.bf16 %v858, %v857
      %v880 = vpack.c.bf16 %v860, %v859
      %v881 = vpack.c.bf16 %v862, %v861
      %v882 = vpack.c.bf16 %v864, %v863
      %v883 = vpack.c.bf16 %v866, %v865
      %v884 = vpack.c.bf16 %v868, %v867
      %v885 = vld [vmem:[#allocation4] sm:$0xff]
      %v886 = vld [vmem:[#allocation4 + $0x8] sm:$0xff]
      %v887 = vld [vmem:[#allocation4 + $0x10] sm:$0xff]
      %v888 = vld [vmem:[#allocation4 + $0x18] sm:$0xff]
      %v889 = vld [vmem:[#allocation4 + $0x20] sm:$0xff]
      %v890 = vld [vmem:[#allocation4 + $0x28] sm:$0xff]
      %v891 = vld [vmem:[#allocation4 + $0x30] sm:$0xff]
      %v892 = vld [vmem:[#allocation4 + $0x38] sm:$0xff]
      %v893 = vld [vmem:[#allocation4 + $0x40] sm:$0xff]
      %v894 = vld [vmem:[#allocation4 + $0x48] sm:$0xff]
      %v895 = vld [vmem:[#allocation4 + $0x50] sm:$0xff]
      %v896 = vld [vmem:[#allocation4 + $0x58] sm:$0xff]
      %v897 = vld [vmem:[#allocation4 + $0x60] sm:$0xff]
      %v898 = vld [vmem:[#allocation4 + $0x68] sm:$0xff]
      %v899 = vld [vmem:[#allocation4 + $0x70] sm:$0xff]
      %v900 = vld [vmem:[#allocation4 + $0x78] sm:$0xff]
      %v901 = vld [vmem:[#allocation4 + $0x80] sm:$0xff]
      %v902 = vld [vmem:[#allocation4 + $0x88] sm:$0xff]
      %v903 = vld [vmem:[#allocation4 + $0x90] sm:$0xff]
      %v904 = vld [vmem:[#allocation4 + $0x98] sm:$0xff]
      %v905 = vld [vmem:[#allocation4 + $0xa0] sm:$0xff]
      %v906 = vld [vmem:[#allocation4 + $0xa8] sm:$0xff]
      %v907 = vld [vmem:[#allocation4 + $0xb0] sm:$0xff]
      %v908 = vld [vmem:[#allocation4 + $0xb8] sm:$0xff]
      %v909 = vld [vmem:[#allocation4 + $0xc0] sm:$0xff]
      %v910 = vld [vmem:[#allocation4 + $0xc8] sm:$0xff]
      %v911 = vld [vmem:[#allocation4 + $0xd0] sm:$0xff]
      %v912 = vld [vmem:[#allocation4 + $0xd8] sm:$0xff]
      %v913 = vld [vmem:[#allocation4 + $0xe0] sm:$0xff]
      %v914 = vld [vmem:[#allocation4 + $0xe8] sm:$0xff]
      %v915 = vld [vmem:[#allocation4 + $0xf0] sm:$0xff]
      %v916 = vld [vmem:[#allocation4 + $0xf8] sm:$0xff]
      %v917 = vld [vmem:[%s3] sm:$0xf]
      %v918 = vld [vmem:[%s3 + $0x4] sm:$0xf]
      %v919 = vld [vmem:[%s3 + $0x8] sm:$0xf]
      %v920 = vld [vmem:[%s3 + $0xc] sm:$0xf]
      %v921 = vld [vmem:[%s3 + $0x10] sm:$0xf]
      %v922 = vld [vmem:[%s3 + $0x14] sm:$0xf]
      %v923 = vld [vmem:[%s3 + $0x18] sm:$0xf]
      %v924 = vld [vmem:[%s3 + $0x1c] sm:$0xf]
      %v925 = vld [vmem:[%s3 + $0x20] sm:$0xf]
      %v926 = vld [vmem:[%s3 + $0x24] sm:$0xf]
      %v927 = vld [vmem:[%s3 + $0x28] sm:$0xf]
      %v928 = vld [vmem:[%s3 + $0x2c] sm:$0xf]
      %v929 = vld [vmem:[%s3 + $0x30] sm:$0xf]
      %v930 = vld [vmem:[%s3 + $0x34] sm:$0xf]
      %v931 = vld [vmem:[%s3 + $0x38] sm:$0xf]
      %v932 = vld [vmem:[%s3 + $0x3c] sm:$0xf]
      %v949 = vunpack.c.l.b16 %v917
      %v950 = vunpack.c.l.b16 %v918
      %v951 = vunpack.c.l.b16 %v919
      %v952 = vunpack.c.l.b16 %v920
      %v953 = vunpack.c.l.b16 %v921
      %v954 = vunpack.c.l.b16 %v922
      %v955 = vunpack.c.l.b16 %v923
      %v956 = vunpack.c.l.b16 %v924
      %v957 = vunpack.c.l.b16 %v925
      %v958 = vunpack.c.l.b16 %v926
      %v959 = vunpack.c.l.b16 %v927
      %v960 = vunpack.c.l.b16 %v928
      %v961 = vunpack.c.l.b16 %v929
      %v962 = vunpack.c.l.b16 %v930
      %v963 = vunpack.c.l.b16 %v931
      %v964 = vunpack.c.l.b16 %v932
      %v965 = vpack.c.b16 %v950, %v949
      %v966 = vpack.c.b16 %v952, %v951
      %v967 = vpack.c.b16 %v954, %v953
      %v968 = vpack.c.b16 %v956, %v955
      %v969 = vpack.c.b16 %v958, %v957
      %v970 = vpack.c.b16 %v960, %v959
      %v971 = vpack.c.b16 %v962, %v961
      %v972 = vpack.c.b16 %v964, %v963
      %981 = vmatprep.subr.bf16.mxu0 0
      %982 = vmatpush1.bf16.msra.mxu0 %v965
      %983 = vmatprep.subr.bf16.mxu0 0
      %984 = vmatpush1.bf16.msra.mxu0 %v966
      %985 = vmatprep.subr.bf16.mxu0 0
      %986 = vmatpush1.bf16.msra.mxu0 %v967
      %987 = vmatprep.subr.bf16.mxu0 0
      %988 = vmatpush1.bf16.msra.mxu0 %v968
      %989 = vmatprep.subr.bf16.mxu0 0
      %990 = vmatpush1.bf16.msra.mxu0 %v969
      %991 = vmatprep.subr.bf16.mxu0 0
      %992 = vmatpush1.bf16.msra.mxu0 %v970
      %993 = vmatprep.subr.bf16.mxu0 0
      %994 = vmatpush1.bf16.msra.mxu0 %v971
      %995 = vmatprep.subr.bf16.mxu0 0
      %996 = vmatpush1.bf16.msra.mxu0 %v972
      %997 = vmatprep.subr.bf16.mxu0 0
      %998 = vmatpush1.bf16.msra.mxu0 0
      %999 = vmatprep.subr.bf16.mxu0 0
      %1000 = vmatpush1.bf16.msra.mxu0 0
      %1001 = vmatprep.subr.bf16.mxu0 0
      %1002 = vmatpush1.bf16.msra.mxu0 0
      %1003 = vmatprep.subr.bf16.mxu0 0
      %1004 = vmatpush1.bf16.msra.mxu0 0
      %1005 = vmatprep.subr.bf16.mxu0 0
      %1006 = vmatpush1.bf16.msra.mxu0 0
      %1007 = vmatprep.subr.bf16.mxu0 0
      %1008 = vmatpush1.bf16.msra.mxu0 0
      %1009 = vmatprep.subr.bf16.mxu0 0
      %1010 = vmatpush1.bf16.msra.mxu0 0
      %1011 = vmatprep.subr.bf16.mxu0 0
      %1012 = vmatpush1.bf16.msra.mxu0 0
      %1013 = vmatprep.mubr.bf16.mxu0 0
      %1014 = vmatmul.mubr.bf16.gmra.mrb[0].mxu0 %v869
      %v1015 = vpop.f32.mrb[0].mxu0
      %v1016 = vadd.f32 0.0, %v1015
      %v1017 = vpop.f32.mrb[0].mxu0
      %v1018 = vpop.f32.mrb[0].mxu0
      %v1019 = vadd.f32 0.0, %v1018
      %v1020 = vpop.f32.mrb[0].mxu0
      %1021 = vmatprep.mubr.bf16.mxu0 0
      %1022 = vmatmul.mubr.bf16.gmra.mrb[0].mxu0 %v870
      %v1023 = vpop.f32.mrb[0].mxu0
      %v1024 = vadd.f32 0.0, %v1023
      %v1025 = vpop.f32.mrb[0].mxu0
      %v1026 = vpop.f32.mrb[0].mxu0
      %v1027 = vadd.f32 0.0, %v1026
      %v1028 = vpop.f32.mrb[0].mxu0
      %1029 = vmatprep.mubr.bf16.mxu0 0
      %1030 = vmatmul.mubr.bf16.gmra.mrb[0].mxu0 %v871
      %v1031 = vpop.f32.mrb[0].mxu0
      %v1032 = vadd.f32 0.0, %v1031
      %v1033 = vpop.f32.mrb[0].mxu0
      %v1034 = vpop.f32.mrb[0].mxu0
      %v1035 = vadd.f32 0.0, %v1034
      %v1036 = vpop.f32.mrb[0].mxu0
      %1037 = vmatprep.mubr.bf16.mxu0 0
      %1038 = vmatmul.mubr.bf16.gmra.mrb[0].mxu0 %v872
      %v1039 = vpop.f32.mrb[0].mxu0
      %v1040 = vadd.f32 0.0, %v1039
      %v1041 = vpop.f32.mrb[0].mxu0
      %v1042 = vpop.f32.mrb[0].mxu0
      %v1043 = vadd.f32 0.0, %v1042
      %v1044 = vpop.f32.mrb[0].mxu0
      %1045 = vmatprep.mubr.bf16.mxu0 0
      %1046 = vmatmul.mubr.bf16.gmra.mrb[0].mxu0 %v873
      %v1047 = vpop.f32.mrb[0].mxu0
      %v1048 = vadd.f32 0.0, %v1047
      %v1049 = vpop.f32.mrb[0].mxu0
      %v1050 = vpop.f32.mrb[0].mxu0
      %v1051 = vadd.f32 0.0, %v1050
      %v1052 = vpop.f32.mrb[0].mxu0
      %1053 = vmatprep.mubr.bf16.mxu0 0
      %1054 = vmatmul.mubr.bf16.gmra.mrb[0].mxu0 %v874
      %v1055 = vpop.f32.mrb[0].mxu0
      %v1056 = vadd.f32 0.0, %v1055
      %v1057 = vpop.f32.mrb[0].mxu0
      %v1058 = vpop.f32.mrb[0].mxu0
      %v1059 = vadd.f32 0.0, %v1058
      %v1060 = vpop.f32.mrb[0].mxu0
      %1061 = vmatprep.mubr.bf16.mxu0 0
      %1062 = vmatmul.mubr.bf16.gmra.mrb[0].mxu0 %v875
      %v1063 = vpop.f32.mrb[0].mxu0
      %v1064 = vadd.f32 0.0, %v1063
      %v1065 = vpop.f32.mrb[0].mxu0
      %v1066 = vpop.f32.mrb[0].mxu0
      %v1067 = vadd.f32 0.0, %v1066
      %v1068 = vpop.f32.mrb[0].mxu0
      %1069 = vmatprep.mubr.bf16.mxu0 0
      %1070 = vmatmul.mubr.bf16.gmra.mrb[0].mxu0 %v876
      %v1071 = vpop.f32.mrb[0].mxu0
      %v1072 = vadd.f32 0.0, %v1071
      %v1073 = vpop.f32.mrb[0].mxu0
      %v1074 = vpop.f32.mrb[0].mxu0
      %v1075 = vadd.f32 0.0, %v1074
      %v1076 = vpop.f32.mrb[0].mxu0
      %1077 = vmatprep.mubr.bf16.mxu0 0
      %1078 = vmatmul.mubr.bf16.gmra.mrb[0].mxu0 %v877
      %v1079 = vpop.f32.mrb[0].mxu0
      %v1080 = vadd.f32 0.0, %v1079
      %v1081 = vpop.f32.mrb[0].mxu0
      %v1082 = vpop.f32.mrb[0].mxu0
      %v1083 = vadd.f32 0.0, %v1082
      %v1084 = vpop.f32.mrb[0].mxu0
      %1085 = vmatprep.mubr.bf16.mxu0 0
      %1086 = vmatmul.mubr.bf16.gmra.mrb[0].mxu0 %v878
      %v1087 = vpop.f32.mrb[0].mxu0
      %v1088 = vadd.f32 0.0, %v1087
      %v1089 = vpop.f32.mrb[0].mxu0
      %v1090 = vpop.f32.mrb[0].mxu0
      %v1091 = vadd.f32 0.0, %v1090
      %v1092 = vpop.f32.mrb[0].mxu0
      %1093 = vmatprep.mubr.bf16.mxu0 0
      %1094 = vmatmul.mubr.bf16.gmra.mrb[0].mxu0 %v879
      %v1095 = vpop.f32.mrb[0].mxu0
      %v1096 = vadd.f32 0.0, %v1095
      %v1097 = vpop.f32.mrb[0].mxu0
      %v1098 = vpop.f32.mrb[0].mxu0
      %v1099 = vadd.f32 0.0, %v1098
      %v1100 = vpop.f32.mrb[0].mxu0
      %1101 = vmatprep.mubr.bf16.mxu0 0
      %1102 = vmatmul.mubr.bf16.gmra.mrb[0].mxu0 %v880
      %v1103 = vpop.f32.mrb[0].mxu0
      %v1104 = vadd.f32 0.0, %v1103
      %v1105 = vpop.f32.mrb[0].mxu0
      %v1106 = vpop.f32.mrb[0].mxu0
      %v1107 = vadd.f32 0.0, %v1106
      %v1108 = vpop.f32.mrb[0].mxu0
      %1109 = vmatprep.mubr.bf16.mxu0 0
      %1110 = vmatmul.mubr.bf16.gmra.mrb[0].mxu0 %v881
      %v1111 = vpop.f32.mrb[0].mxu0
      %v1112 = vadd.f32 0.0, %v1111
      %v1113 = vpop.f32.mrb[0].mxu0
      %v1114 = vpop.f32.mrb[0].mxu0
      %v1115 = vadd.f32 0.0, %v1114
      %v1116 = vpop.f32.mrb[0].mxu0
      %1117 = vmatprep.mubr.bf16.mxu0 0
      %1118 = vmatmul.mubr.bf16.gmra.mrb[0].mxu0 %v882
      %v1119 = vpop.f32.mrb[0].mxu0
      %v1120 = vadd.f32 0.0, %v1119
      %v1121 = vpop.f32.mrb[0].mxu0
      %v1122 = vpop.f32.mrb[0].mxu0
      %v1123 = vadd.f32 0.0, %v1122
      %v1124 = vpop.f32.mrb[0].mxu0
      %1125 = vmatprep.mubr.bf16.mxu0 0
      %1126 = vmatmul.mubr.bf16.gmra.mrb[0].mxu0 %v883
      %v1127 = vpop.f32.mrb[0].mxu0
      %v1128 = vadd.f32 0.0, %v1127
      %v1129 = vpop.f32.mrb[0].mxu0
      %v1130 = vpop.f32.mrb[0].mxu0
      %v1131 = vadd.f32 0.0, %v1130
      %v1132 = vpop.f32.mrb[0].mxu0
      %1133 = vmatprep.mubr.bf16.mxu0 0
      %1134 = vmatmul.mubr.bf16.gmra.mrb[0].mxu0 %v884
      %v1135 = vpop.f32.mrb[0].mxu0
      %v1136 = vadd.f32 0.0, %v1135
      %v1137 = vpop.f32.mrb[0].mxu0
      %v1138 = vpop.f32.mrb[0].mxu0
      %v1139 = vadd.f32 0.0, %v1138
      %v1140 = vpop.f32.mrb[0].mxu0
      %1141 = vdwg.mxu0
      %v1142 = vadd.f32 %v885, %v1016
      %v1143 = vadd.f32 %v886, %v1019
      %v1144 = vadd.f32 %v887, %v1024
      %v1145 = vadd.f32 %v888, %v1027
      %v1146 = vadd.f32 %v889, %v1032
      %v1147 = vadd.f32 %v890, %v1035
      %v1148 = vadd.f32 %v891, %v1040
      %v1149 = vadd.f32 %v892, %v1043
      %v1150 = vadd.f32 %v893, %v1048
      %v1151 = vadd.f32 %v894, %v1051
      %v1152 = vadd.f32 %v895, %v1056
      %v1153 = vadd.f32 %v896, %v1059
      %v1154 = vadd.f32 %v897, %v1064
      %v1155 = vadd.f32 %v898, %v1067
      %v1156 = vadd.f32 %v899, %v1072
      %v1157 = vadd.f32 %v900, %v1075
      %v1158 = vadd.f32 %v901, %v1080
      %v1159 = vadd.f32 %v902, %v1083
      %v1160 = vadd.f32 %v903, %v1088
      %v1161 = vadd.f32 %v904, %v1091
      %v1162 = vadd.f32 %v905, %v1096
      %v1163 = vadd.f32 %v906, %v1099
      %v1164 = vadd.f32 %v907, %v1104
      %v1165 = vadd.f32 %v908, %v1107
      %v1166 = vadd.f32 %v909, %v1112
      %v1167 = vadd.f32 %v910, %v1115
      %v1168 = vadd.f32 %v911, %v1120
      %v1169 = vadd.f32 %v912, %v1123
      %v1170 = vadd.f32 %v913, %v1128
      %v1171 = vadd.f32 %v914, %v1131
      %v1172 = vadd.f32 %v915, %v1136
      %v1173 = vadd.f32 %v916, %v1139
      %1174 = vst [vmem:[#allocation4] sm:$0xff] %v1142
      %1175 = vst [vmem:[#allocation4 + $0x8] sm:$0xff] %v1143
      %1176 = vst [vmem:[#allocation4 + $0x10] sm:$0xff] %v1144
      %1177 = vst [vmem:[#allocation4 + $0x18] sm:$0xff] %v1145
      %1178 = vst [vmem:[#allocation4 + $0x20] sm:$0xff] %v1146
      %1179 = vst [vmem:[#allocation4 + $0x28] sm:$0xff] %v1147
      %1180 = vst [vmem:[#allocation4 + $0x30] sm:$0xff] %v1148
      %1181 = vst [vmem:[#allocation4 + $0x38] sm:$0xff] %v1149
      %1182 = vst [vmem:[#allocation4 + $0x40] sm:$0xff] %v1150
      %1183 = vst [vmem:[#allocation4 + $0x48] sm:$0xff] %v1151
      %1184 = vst [vmem:[#allocation4 + $0x50] sm:$0xff] %v1152
      %1185 = vst [vmem:[#allocation4 + $0x58] sm:$0xff] %v1153
      %1186 = vst [vmem:[#allocation4 + $0x60] sm:$0xff] %v1154
      %1187 = vst [vmem:[#allocation4 + $0x68] sm:$0xff] %v1155
      %1188 = vst [vmem:[#allocation4 + $0x70] sm:$0xff] %v1156
      %1189 = vst [vmem:[#allocation4 + $0x78] sm:$0xff] %v1157
      %1190 = vst [vmem:[#allocation4 + $0x80] sm:$0xff] %v1158
      %1191 = vst [vmem:[#allocation4 + $0x88] sm:$0xff] %v1159
      %1192 = vst [vmem:[#allocation4 + $0x90] sm:$0xff] %v1160
      %1193 = vst [vmem:[#allocation4 + $0x98] sm:$0xff] %v1161
      %1194 = vst [vmem:[#allocation4 + $0xa0] sm:$0xff] %v1162
      %1195 = vst [vmem:[#allocation4 + $0xa8] sm:$0xff] %v1163
      %1196 = vst [vmem:[#allocation4 + $0xb0] sm:$0xff] %v1164
      %1197 = vst [vmem:[#allocation4 + $0xb8] sm:$0xff] %v1165
      %1198 = vst [vmem:[#allocation4 + $0xc0] sm:$0xff] %v1166
      %1199 = vst [vmem:[#allocation4 + $0xc8] sm:$0xff] %v1167
      %1200 = vst [vmem:[#allocation4 + $0xd0] sm:$0xff] %v1168
      %1201 = vst [vmem:[#allocation4 + $0xd8] sm:$0xff] %v1169
      %1202 = vst [vmem:[#allocation4 + $0xe0] sm:$0xff] %v1170
      %1203 = vst [vmem:[#allocation4 + $0xe8] sm:$0xff] %v1171
      %1204 = vst [vmem:[#allocation4 + $0xf0] sm:$0xff] %v1172
      %1205 = vst [vmem:[#allocation4 + $0xf8] sm:$0xff] %v1173
      %v1206 = vld [vmem:[#allocation2 + $0x8] sm:$0xff]
      %v1207 = vld [vmem:[#allocation2 + $0x10] sm:$0xff]
      %v1208 = vld [vmem:[#allocation2 + $0x28] sm:$0xff]
      %v1209 = vld [vmem:[#allocation2 + $0x30] sm:$0xff]
      %v1210 = vld [vmem:[#allocation2 + $0x48] sm:$0xff]
      %v1211 = vld [vmem:[#allocation2 + $0x50] sm:$0xff]
      %v1212 = vld [vmem:[#allocation2 + $0x68] sm:$0xff]
      %v1213 = vld [vmem:[#allocation2 + $0x70] sm:$0xff]
      %v1214 = vld [vmem:[#allocation2 + $0x88] sm:$0xff]
      %v1215 = vld [vmem:[#allocation2 + $0x90] sm:$0xff]
      %v1216 = vld [vmem:[#allocation2 + $0xa8] sm:$0xff]
      %v1217 = vld [vmem:[#allocation2 + $0xb0] sm:$0xff]
      %v1218 = vld [vmem:[#allocation2 + $0xc8] sm:$0xff]
      %v1219 = vld [vmem:[#allocation2 + $0xd0] sm:$0xff]
      %v1220 = vld [vmem:[#allocation2 + $0xe8] sm:$0xff]
      %v1221 = vld [vmem:[#allocation2 + $0xf0] sm:$0xff]
      %v1222 = vld [vmem:[#allocation2 + $0x108] sm:$0xff]
      %v1223 = vld [vmem:[#allocation2 + $0x110] sm:$0xff]
      %v1224 = vld [vmem:[#allocation2 + $0x128] sm:$0xff]
      %v1225 = vld [vmem:[#allocation2 + $0x130] sm:$0xff]
      %v1226 = vld [vmem:[#allocation2 + $0x148] sm:$0xff]
      %v1227 = vld [vmem:[#allocation2 + $0x150] sm:$0xff]
      %v1228 = vld [vmem:[#allocation2 + $0x168] sm:$0xff]
      %v1229 = vld [vmem:[#allocation2 + $0x170] sm:$0xff]
      %v1230 = vld [vmem:[#allocation2 + $0x188] sm:$0xff]
      %v1231 = vld [vmem:[#allocation2 + $0x190] sm:$0xff]
      %v1232 = vld [vmem:[#allocation2 + $0x1a8] sm:$0xff]
      %v1233 = vld [vmem:[#allocation2 + $0x1b0] sm:$0xff]
      %v1234 = vld [vmem:[#allocation2 + $0x1c8] sm:$0xff]
      %v1235 = vld [vmem:[#allocation2 + $0x1d0] sm:$0xff]
      %v1236 = vld [vmem:[#allocation2 + $0x1e8] sm:$0xff]
      %v1237 = vld [vmem:[#allocation2 + $0x1f0] sm:$0xff]
      %v1238 = vpack.c.bf16 %v1207, %v1206
      %v1239 = vpack.c.bf16 %v1209, %v1208
      %v1240 = vpack.c.bf16 %v1211, %v1210
      %v1241 = vpack.c.bf16 %v1213, %v1212
      %v1242 = vpack.c.bf16 %v1215, %v1214
      %v1243 = vpack.c.bf16 %v1217, %v1216
      %v1244 = vpack.c.bf16 %v1219, %v1218
      %v1245 = vpack.c.bf16 %v1221, %v1220
      %v1246 = vpack.c.bf16 %v1223, %v1222
      %v1247 = vpack.c.bf16 %v1225, %v1224
      %v1248 = vpack.c.bf16 %v1227, %v1226
      %v1249 = vpack.c.bf16 %v1229, %v1228
      %v1250 = vpack.c.bf16 %v1231, %v1230
      %v1251 = vpack.c.bf16 %v1233, %v1232
      %v1252 = vpack.c.bf16 %v1235, %v1234
      %v1253 = vpack.c.bf16 %v1237, %v1236
      %v1254 = vld [vmem:[#allocation4] sm:$0xff]
      %v1255 = vld [vmem:[#allocation4 + $0x8] sm:$0xff]
      %v1256 = vld [vmem:[#allocation4 + $0x10] sm:$0xff]
      %v1257 = vld [vmem:[#allocation4 + $0x18] sm:$0xff]
      %v1258 = vld [vmem:[#allocation4 + $0x20] sm:$0xff]
      %v1259 = vld [vmem:[#allocation4 + $0x28] sm:$0xff]
      %v1260 = vld [vmem:[#allocation4 + $0x30] sm:$0xff]
      %v1261 = vld [vmem:[#allocation4 + $0x38] sm:$0xff]
      %v1262 = vld [vmem:[#allocation4 + $0x40] sm:$0xff]
      %v1263 = vld [vmem:[#allocation4 + $0x48] sm:$0xff]
      %v1264 = vld [vmem:[#allocation4 + $0x50] sm:$0xff]
      %v1265 = vld [vmem:[#allocation4 + $0x58] sm:$0xff]
      %v1266 = vld [vmem:[#allocation4 + $0x60] sm:$0xff]
      %v1267 = vld [vmem:[#allocation4 + $0x68] sm:$0xff]
      %v1268 = vld [vmem:[#allocation4 + $0x70] sm:$0xff]
      %v1269 = vld [vmem:[#allocation4 + $0x78] sm:$0xff]
      %v1270 = vld [vmem:[#allocation4 + $0x80] sm:$0xff]
      %v1271 = vld [vmem:[#allocation4 + $0x88] sm:$0xff]
      %v1272 = vld [vmem:[#allocation4 + $0x90] sm:$0xff]
      %v1273 = vld [vmem:[#allocation4 + $0x98] sm:$0xff]
      %v1274 = vld [vmem:[#allocation4 + $0xa0] sm:$0xff]
      %v1275 = vld [vmem:[#allocation4 + $0xa8] sm:$0xff]
      %v1276 = vld [vmem:[#allocation4 + $0xb0] sm:$0xff]
      %v1277 = vld [vmem:[#allocation4 + $0xb8] sm:$0xff]
      %v1278 = vld [vmem:[#allocation4 + $0xc0] sm:$0xff]
      %v1279 = vld [vmem:[#allocation4 + $0xc8] sm:$0xff]
      %v1280 = vld [vmem:[#allocation4 + $0xd0] sm:$0xff]
      %v1281 = vld [vmem:[#allocation4 + $0xd8] sm:$0xff]
      %v1282 = vld [vmem:[#allocation4 + $0xe0] sm:$0xff]
      %v1283 = vld [vmem:[#allocation4 + $0xe8] sm:$0xff]
      %v1284 = vld [vmem:[#allocation4 + $0xf0] sm:$0xff]
      %v1285 = vld [vmem:[#allocation4 + $0xf8] sm:$0xff]
      %s1286 = scalar_lea.vmem %s3, 64
      %v1287 = vld [vmem:[%s1286] sm:$0xf]
      %v1288 = vld [vmem:[%s1286 + $0x4] sm:$0xf]
      %v1289 = vld [vmem:[%s1286 + $0x8] sm:$0xf]
      %v1290 = vld [vmem:[%s1286 + $0xc] sm:$0xf]
      %v1291 = vld [vmem:[%s1286 + $0x10] sm:$0xf]
      %v1292 = vld [vmem:[%s1286 + $0x14] sm:$0xf]
      %v1293 = vld [vmem:[%s1286 + $0x18] sm:$0xf]
      %v1294 = vld [vmem:[%s1286 + $0x1c] sm:$0xf]
      %v1295 = vld [vmem:[%s1286 + $0x20] sm:$0xf]
      %v1296 = vld [vmem:[%s1286 + $0x24] sm:$0xf]
      %v1297 = vld [vmem:[%s1286 + $0x28] sm:$0xf]
      %v1298 = vld [vmem:[%s1286 + $0x2c] sm:$0xf]
      %v1299 = vld [vmem:[%s1286 + $0x30] sm:$0xf]
      %v1300 = vld [vmem:[%s1286 + $0x34] sm:$0xf]
      %v1301 = vld [vmem:[%s1286 + $0x38] sm:$0xf]
      %v1302 = vld [vmem:[%s1286 + $0x3c] sm:$0xf]
      %v1319 = vunpack.c.l.b16 %v1287
      %v1320 = vunpack.c.l.b16 %v1288
      %v1321 = vunpack.c.l.b16 %v1289
      %v1322 = vunpack.c.l.b16 %v1290
      %v1323 = vunpack.c.l.b16 %v1291
      %v1324 = vunpack.c.l.b16 %v1292
      %v1325 = vunpack.c.l.b16 %v1293
      %v1326 = vunpack.c.l.b16 %v1294
      %v1327 = vunpack.c.l.b16 %v1295
      %v1328 = vunpack.c.l.b16 %v1296
      %v1329 = vunpack.c.l.b16 %v1297
      %v1330 = vunpack.c.l.b16 %v1298
      %v1331 = vunpack.c.l.b16 %v1299
      %v1332 = vunpack.c.l.b16 %v1300
      %v1333 = vunpack.c.l.b16 %v1301
      %v1334 = vunpack.c.l.b16 %v1302
      %v1335 = vpack.c.b16 %v1320, %v1319
      %v1336 = vpack.c.b16 %v1322, %v1321
      %v1337 = vpack.c.b16 %v1324, %v1323
      %v1338 = vpack.c.b16 %v1326, %v1325
      %v1339 = vpack.c.b16 %v1328, %v1327
      %v1340 = vpack.c.b16 %v1330, %v1329
      %v1341 = vpack.c.b16 %v1332, %v1331
      %v1342 = vpack.c.b16 %v1334, %v1333
      %1351 = vmatprep.subr.bf16.mxu0 0
      %1352 = vmatpush1.bf16.msra.mxu0 %v1335
      %1353 = vmatprep.subr.bf16.mxu0 0
      %1354 = vmatpush1.bf16.msra.mxu0 %v1336
      %1355 = vmatprep.subr.bf16.mxu0 0
      %1356 = vmatpush1.bf16.msra.mxu0 %v1337
      %1357 = vmatprep.subr.bf16.mxu0 0
      %1358 = vmatpush1.bf16.msra.mxu0 %v1338
      %1359 = vmatprep.subr.bf16.mxu0 0
      %1360 = vmatpush1.bf16.msra.mxu0 %v1339
      %1361 = vmatprep.subr.bf16.mxu0 0
      %1362 = vmatpush1.bf16.msra.mxu0 %v1340
      %1363 = vmatprep.subr.bf16.mxu0 0
      %1364 = vmatpush1.bf16.msra.mxu0 %v1341
      %1365 = vmatprep.subr.bf16.mxu0 0
      %1366 = vmatpush1.bf16.msra.mxu0 %v1342
      %1367 = vmatprep.subr.bf16.mxu0 0
      %1368 = vmatpush1.bf16.msra.mxu0 0
      %1369 = vmatprep.subr.bf16.mxu0 0
      %1370 = vmatpush1.bf16.msra.mxu0 0
      %1371 = vmatprep.subr.bf16.mxu0 0
      %1372 = vmatpush1.bf16.msra.mxu0 0
      %1373 = vmatprep.subr.bf16.mxu0 0
      %1374 = vmatpush1.bf16.msra.mxu0 0
      %1375 = vmatprep.subr.bf16.mxu0 0
      %1376 = vmatpush1.bf16.msra.mxu0 0
      %1377 = vmatprep.subr.bf16.mxu0 0
      %1378 = vmatpush1.bf16.msra.mxu0 0
      %1379 = vmatprep.subr.bf16.mxu0 0
      %1380 = vmatpush1.bf16.msra.mxu0 0
      %1381 = vmatprep.subr.bf16.mxu0 0
      %1382 = vmatpush1.bf16.msra.mxu0 0
      %1383 = vmatprep.mubr.bf16.mxu0 0
      %1384 = vmatmul.mubr.bf16.gmra.mrb[0].mxu0 %v1238
      %v1385 = vpop.f32.mrb[0].mxu0
      %v1386 = vadd.f32 0.0, %v1385
      %v1387 = vpop.f32.mrb[0].mxu0
      %v1388 = vpop.f32.mrb[0].mxu0
      %v1389 = vadd.f32 0.0, %v1388
      %v1390 = vpop.f32.mrb[0].mxu0
      %1391 = vmatprep.mubr.bf16.mxu0 0
      %1392 = vmatmul.mubr.bf16.gmra.mrb[0].mxu0 %v1239
      %v1393 = vpop.f32.mrb[0].mxu0
      %v1394 = vadd.f32 0.0, %v1393
      %v1395 = vpop.f32.mrb[0].mxu0
      %v1396 = vpop.f32.mrb[0].mxu0
      %v1397 = vadd.f32 0.0, %v1396
      %v1398 = vpop.f32.mrb[0].mxu0
      %1399 = vmatprep.mubr.bf16.mxu0 0
      %1400 = vmatmul.mubr.bf16.gmra.mrb[0].mxu0 %v1240
      %v1401 = vpop.f32.mrb[0].mxu0
      %v1402 = vadd.f32 0.0, %v1401
      %v1403 = vpop.f32.mrb[0].mxu0
      %v1404 = vpop.f32.mrb[0].mxu0
      %v1405 = vadd.f32 0.0, %v1404
      %v1406 = vpop.f32.mrb[0].mxu0
      %1407 = vmatprep.mubr.bf16.mxu0 0
      %1408 = vmatmul.mubr.bf16.gmra.mrb[0].mxu0 %v1241
      %v1409 = vpop.f32.mrb[0].mxu0
      %v1410 = vadd.f32 0.0, %v1409
      %v1411 = vpop.f32.mrb[0].mxu0
      %v1412 = vpop.f32.mrb[0].mxu0
      %v1413 = vadd.f32 0.0, %v1412
      %v1414 = vpop.f32.mrb[0].mxu0
      %1415 = vmatprep.mubr.bf16.mxu0 0
      %1416 = vmatmul.mubr.bf16.gmra.mrb[0].mxu0 %v1242
      %v1417 = vpop.f32.mrb[0].mxu0
      %v1418 = vadd.f32 0.0, %v1417
      %v1419 = vpop.f32.mrb[0].mxu0
      %v1420 = vpop.f32.mrb[0].mxu0
      %v1421 = vadd.f32 0.0, %v1420
      %v1422 = vpop.f32.mrb[0].mxu0
      %1423 = vmatprep.mubr.bf16.mxu0 0
      %1424 = vmatmul.mubr.bf16.gmra.mrb[0].mxu0 %v1243
      %v1425 = vpop.f32.mrb[0].mxu0
      %v1426 = vadd.f32 0.0, %v1425
      %v1427 = vpop.f32.mrb[0].mxu0
      %v1428 = vpop.f32.mrb[0].mxu0
      %v1429 = vadd.f32 0.0, %v1428
      %v1430 = vpop.f32.mrb[0].mxu0
      %1431 = vmatprep.mubr.bf16.mxu0 0
      %1432 = vmatmul.mubr.bf16.gmra.mrb[0].mxu0 %v1244
      %v1433 = vpop.f32.mrb[0].mxu0
      %v1434 = vadd.f32 0.0, %v1433
      %v1435 = vpop.f32.mrb[0].mxu0
      %v1436 = vpop.f32.mrb[0].mxu0
      %v1437 = vadd.f32 0.0, %v1436
      %v1438 = vpop.f32.mrb[0].mxu0
      %1439 = vmatprep.mubr.bf16.mxu0 0
      %1440 = vmatmul.mubr.bf16.gmra.mrb[0].mxu0 %v1245
      %v1441 = vpop.f32.mrb[0].mxu0
      %v1442 = vadd.f32 0.0, %v1441
      %v1443 = vpop.f32.mrb[0].mxu0
      %v1444 = vpop.f32.mrb[0].mxu0
      %v1445 = vadd.f32 0.0, %v1444
      %v1446 = vpop.f32.mrb[0].mxu0
      %1447 = vmatprep.mubr.bf16.mxu0 0
      %1448 = vmatmul.mubr.bf16.gmra.mrb[0].mxu0 %v1246
      %v1449 = vpop.f32.mrb[0].mxu0
      %v1450 = vadd.f32 0.0, %v1449
      %v1451 = vpop.f32.mrb[0].mxu0
      %v1452 = vpop.f32.mrb[0].mxu0
      %v1453 = vadd.f32 0.0, %v1452
      %v1454 = vpop.f32.mrb[0].mxu0
      %1455 = vmatprep.mubr.bf16.mxu0 0
      %1456 = vmatmul.mubr.bf16.gmra.mrb[0].mxu0 %v1247
      %v1457 = vpop.f32.mrb[0].mxu0
      %v1458 = vadd.f32 0.0, %v1457
      %v1459 = vpop.f32.mrb[0].mxu0
      %v1460 = vpop.f32.mrb[0].mxu0
      %v1461 = vadd.f32 0.0, %v1460
      %v1462 = vpop.f32.mrb[0].mxu0
      %1463 = vmatprep.mubr.bf16.mxu0 0
      %1464 = vmatmul.mubr.bf16.gmra.mrb[0].mxu0 %v1248
      %v1465 = vpop.f32.mrb[0].mxu0
      %v1466 = vadd.f32 0.0, %v1465
      %v1467 = vpop.f32.mrb[0].mxu0
      %v1468 = vpop.f32.mrb[0].mxu0
      %v1469 = vadd.f32 0.0, %v1468
      %v1470 = vpop.f32.mrb[0].mxu0
      %1471 = vmatprep.mubr.bf16.mxu0 0
      %1472 = vmatmul.mubr.bf16.gmra.mrb[0].mxu0 %v1249
      %v1473 = vpop.f32.mrb[0].mxu0
      %v1474 = vadd.f32 0.0, %v1473
      %v1475 = vpop.f32.mrb[0].mxu0
      %v1476 = vpop.f32.mrb[0].mxu0
      %v1477 = vadd.f32 0.0, %v1476
      %v1478 = vpop.f32.mrb[0].mxu0
      %1479 = vmatprep.mubr.bf16.mxu0 0
      %1480 = vmatmul.mubr.bf16.gmra.mrb[0].mxu0 %v1250
      %v1481 = vpop.f32.mrb[0].mxu0
      %v1482 = vadd.f32 0.0, %v1481
      %v1483 = vpop.f32.mrb[0].mxu0
      %v1484 = vpop.f32.mrb[0].mxu0
      %v1485 = vadd.f32 0.0, %v1484
      %v1486 = vpop.f32.mrb[0].mxu0
      %1487 = vmatprep.mubr.bf16.mxu0 0
      %1488 = vmatmul.mubr.bf16.gmra.mrb[0].mxu0 %v1251
      %v1489 = vpop.f32.mrb[0].mxu0
      %v1490 = vadd.f32 0.0, %v1489
      %v1491 = vpop.f32.mrb[0].mxu0
      %v1492 = vpop.f32.mrb[0].mxu0
      %v1493 = vadd.f32 0.0, %v1492
      %v1494 = vpop.f32.mrb[0].mxu0
      %1495 = vmatprep.mubr.bf16.mxu0 0
      %1496 = vmatmul.mubr.bf16.gmra.mrb[0].mxu0 %v1252
      %v1497 = vpop.f32.mrb[0].mxu0
      %v1498 = vadd.f32 0.0, %v1497
      %v1499 = vpop.f32.mrb[0].mxu0
      %v1500 = vpop.f32.mrb[0].mxu0
      %v1501 = vadd.f32 0.0, %v1500
      %v1502 = vpop.f32.mrb[0].mxu0
      %1503 = vmatprep.mubr.bf16.mxu0 0
      %1504 = vmatmul.mubr.bf16.gmra.mrb[0].mxu0 %v1253
      %v1505 = vpop.f32.mrb[0].mxu0
      %v1506 = vadd.f32 0.0, %v1505
      %v1507 = vpop.f32.mrb[0].mxu0
      %v1508 = vpop.f32.mrb[0].mxu0
      %v1509 = vadd.f32 0.0, %v1508
      %v1510 = vpop.f32.mrb[0].mxu0
      %1511 = vdwg.mxu0
      %v1512 = vadd.f32 %v1254, %v1386
      %v1513 = vadd.f32 %v1255, %v1389
      %v1514 = vadd.f32 %v1256, %v1394
      %v1515 = vadd.f32 %v1257, %v1397
      %v1516 = vadd.f32 %v1258, %v1402
      %v1517 = vadd.f32 %v1259, %v1405
      %v1518 = vadd.f32 %v1260, %v1410
      %v1519 = vadd.f32 %v1261, %v1413
      %v1520 = vadd.f32 %v1262, %v1418
      %v1521 = vadd.f32 %v1263, %v1421
      %v1522 = vadd.f32 %v1264, %v1426
      %v1523 = vadd.f32 %v1265, %v1429
      %v1524 = vadd.f32 %v1266, %v1434
      %v1525 = vadd.f32 %v1267, %v1437
      %v1526 = vadd.f32 %v1268, %v1442
      %v1527 = vadd.f32 %v1269, %v1445
      %v1528 = vadd.f32 %v1270, %v1450
      %v1529 = vadd.f32 %v1271, %v1453
      %v1530 = vadd.f32 %v1272, %v1458
      %v1531 = vadd.f32 %v1273, %v1461
      %v1532 = vadd.f32 %v1274, %v1466
      %v1533 = vadd.f32 %v1275, %v1469
      %v1534 = vadd.f32 %v1276, %v1474
      %v1535 = vadd.f32 %v1277, %v1477
      %v1536 = vadd.f32 %v1278, %v1482
      %v1537 = vadd.f32 %v1279, %v1485
      %v1538 = vadd.f32 %v1280, %v1490
      %v1539 = vadd.f32 %v1281, %v1493
      %v1540 = vadd.f32 %v1282, %v1498
      %v1541 = vadd.f32 %v1283, %v1501
      %v1542 = vadd.f32 %v1284, %v1506
      %v1543 = vadd.f32 %v1285, %v1509
      %1544 = vst [vmem:[#allocation4] sm:$0xff] %v1512
      %1545 = vst [vmem:[#allocation4 + $0x8] sm:$0xff] %v1513
      %1546 = vst [vmem:[#allocation4 + $0x10] sm:$0xff] %v1514
      %1547 = vst [vmem:[#allocation4 + $0x18] sm:$0xff] %v1515
      %1548 = vst [vmem:[#allocation4 + $0x20] sm:$0xff] %v1516
      %1549 = vst [vmem:[#allocation4 + $0x28] sm:$0xff] %v1517
      %1550 = vst [vmem:[#allocation4 + $0x30] sm:$0xff] %v1518
      %1551 = vst [vmem:[#allocation4 + $0x38] sm:$0xff] %v1519
      %1552 = vst [vmem:[#allocation4 + $0x40] sm:$0xff] %v1520
      %1553 = vst [vmem:[#allocation4 + $0x48] sm:$0xff] %v1521
      %1554 = vst [vmem:[#allocation4 + $0x50] sm:$0xff] %v1522
      %1555 = vst [vmem:[#allocation4 + $0x58] sm:$0xff] %v1523
      %1556 = vst [vmem:[#allocation4 + $0x60] sm:$0xff] %v1524
      %1557 = vst [vmem:[#allocation4 + $0x68] sm:$0xff] %v1525
      %1558 = vst [vmem:[#allocation4 + $0x70] sm:$0xff] %v1526
      %1559 = vst [vmem:[#allocation4 + $0x78] sm:$0xff] %v1527
      %1560 = vst [vmem:[#allocation4 + $0x80] sm:$0xff] %v1528
      %1561 = vst [vmem:[#allocation4 + $0x88] sm:$0xff] %v1529
      %1562 = vst [vmem:[#allocation4 + $0x90] sm:$0xff] %v1530
      %1563 = vst [vmem:[#allocation4 + $0x98] sm:$0xff] %v1531
      %1564 = vst [vmem:[#allocation4 + $0xa0] sm:$0xff] %v1532
      %1565 = vst [vmem:[#allocation4 + $0xa8] sm:$0xff] %v1533
      %1566 = vst [vmem:[#allocation4 + $0xb0] sm:$0xff] %v1534
      %1567 = vst [vmem:[#allocation4 + $0xb8] sm:$0xff] %v1535
      %1568 = vst [vmem:[#allocation4 + $0xc0] sm:$0xff] %v1536
      %1569 = vst [vmem:[#allocation4 + $0xc8] sm:$0xff] %v1537
      %1570 = vst [vmem:[#allocation4 + $0xd0] sm:$0xff] %v1538
      %1571 = vst [vmem:[#allocation4 + $0xd8] sm:$0xff] %v1539
      %1572 = vst [vmem:[#allocation4 + $0xe0] sm:$0xff] %v1540
      %1573 = vst [vmem:[#allocation4 + $0xe8] sm:$0xff] %v1541
      %1574 = vst [vmem:[#allocation4 + $0xf0] sm:$0xff] %v1542
      %1575 = vst [vmem:[#allocation4 + $0xf8] sm:$0xff] %v1543
      %v1576 = vld [vmem:[#allocation2 + $0x9] sm:$0xff]
      %v1577 = vld [vmem:[#allocation2 + $0x11] sm:$0xff]
      %v1578 = vld [vmem:[#allocation2 + $0x29] sm:$0xff]
      %v1579 = vld [vmem:[#allocation2 + $0x31] sm:$0xff]
      %v1580 = vld [vmem:[#allocation2 + $0x49] sm:$0xff]
      %v1581 = vld [vmem:[#allocation2 + $0x51] sm:$0xff]
      %v1582 = vld [vmem:[#allocation2 + $0x69] sm:$0xff]
      %v1583 = vld [vmem:[#allocation2 + $0x71] sm:$0xff]
      %v1584 = vld [vmem:[#allocation2 + $0x89] sm:$0xff]
      %v1585 = vld [vmem:[#allocation2 + $0x91] sm:$0xff]
      %v1586 = vld [vmem:[#allocation2 + $0xa9] sm:$0xff]
      %v1587 = vld [vmem:[#allocation2 + $0xb1] sm:$0xff]
      %v1588 = vld [vmem:[#allocation2 + $0xc9] sm:$0xff]
      %v1589 = vld [vmem:[#allocation2 + $0xd1] sm:$0xff]
      %v1590 = vld [vmem:[#allocation2 + $0xe9] sm:$0xff]
      %v1591 = vld [vmem:[#allocation2 + $0xf1] sm:$0xff]
      %v1592 = vld [vmem:[#allocation2 + $0x109] sm:$0xff]
      %v1593 = vld [vmem:[#allocation2 + $0x111] sm:$0xff]
      %v1594 = vld [vmem:[#allocation2 + $0x129] sm:$0xff]
      %v1595 = vld [vmem:[#allocation2 + $0x131] sm:$0xff]
      %v1596 = vld [vmem:[#allocation2 + $0x149] sm:$0xff]
      %v1597 = vld [vmem:[#allocation2 + $0x151] sm:$0xff]
      %v1598 = vld [vmem:[#allocation2 + $0x169] sm:$0xff]
      %v1599 = vld [vmem:[#allocation2 + $0x171] sm:$0xff]
      %v1600 = vld [vmem:[#allocation2 + $0x189] sm:$0xff]
      %v1601 = vld [vmem:[#allocation2 + $0x191] sm:$0xff]
      %v1602 = vld [vmem:[#allocation2 + $0x1a9] sm:$0xff]
      %v1603 = vld [vmem:[#allocation2 + $0x1b1] sm:$0xff]
      %v1604 = vld [vmem:[#allocation2 + $0x1c9] sm:$0xff]
      %v1605 = vld [vmem:[#allocation2 + $0x1d1] sm:$0xff]
      %v1606 = vld [vmem:[#allocation2 + $0x1e9] sm:$0xff]
      %v1607 = vld [vmem:[#allocation2 + $0x1f1] sm:$0xff]
      %v1608 = vpack.c.bf16 %v1577, %v1576
      %v1609 = vpack.c.bf16 %v1579, %v1578
      %v1610 = vpack.c.bf16 %v1581, %v1580
      %v1611 = vpack.c.bf16 %v1583, %v1582
      %v1612 = vpack.c.bf16 %v1585, %v1584
      %v1613 = vpack.c.bf16 %v1587, %v1586
      %v1614 = vpack.c.bf16 %v1589, %v1588
      %v1615 = vpack.c.bf16 %v1591, %v1590
      %v1616 = vpack.c.bf16 %v1593, %v1592
      %v1617 = vpack.c.bf16 %v1595, %v1594
      %v1618 = vpack.c.bf16 %v1597, %v1596
      %v1619 = vpack.c.bf16 %v1599, %v1598
      %v1620 = vpack.c.bf16 %v1601, %v1600
      %v1621 = vpack.c.bf16 %v1603, %v1602
      %v1622 = vpack.c.bf16 %v1605, %v1604
      %v1623 = vpack.c.bf16 %v1607, %v1606
      %v1624 = vld [vmem:[#allocation4] sm:$0xff]
      %v1625 = vld [vmem:[#allocation4 + $0x8] sm:$0xff]
      %v1626 = vld [vmem:[#allocation4 + $0x10] sm:$0xff]
      %v1627 = vld [vmem:[#allocation4 + $0x18] sm:$0xff]
      %v1628 = vld [vmem:[#allocation4 + $0x20] sm:$0xff]
      %v1629 = vld [vmem:[#allocation4 + $0x28] sm:$0xff]
      %v1630 = vld [vmem:[#allocation4 + $0x30] sm:$0xff]
      %v1631 = vld [vmem:[#allocation4 + $0x38] sm:$0xff]
      %v1632 = vld [vmem:[#allocation4 + $0x40] sm:$0xff]
      %v1633 = vld [vmem:[#allocation4 + $0x48] sm:$0xff]
      %v1634 = vld [vmem:[#allocation4 + $0x50] sm:$0xff]
      %v1635 = vld [vmem:[#allocation4 + $0x58] sm:$0xff]
      %v1636 = vld [vmem:[#allocation4 + $0x60] sm:$0xff]
      %v1637 = vld [vmem:[#allocation4 + $0x68] sm:$0xff]
      %v1638 = vld [vmem:[#allocation4 + $0x70] sm:$0xff]
      %v1639 = vld [vmem:[#allocation4 + $0x78] sm:$0xff]
      %v1640 = vld [vmem:[#allocation4 + $0x80] sm:$0xff]
      %v1641 = vld [vmem:[#allocation4 + $0x88] sm:$0xff]
      %v1642 = vld [vmem:[#allocation4 + $0x90] sm:$0xff]
      %v1643 = vld [vmem:[#allocation4 + $0x98] sm:$0xff]
      %v1644 = vld [vmem:[#allocation4 + $0xa0] sm:$0xff]
      %v1645 = vld [vmem:[#allocation4 + $0xa8] sm:$0xff]
      %v1646 = vld [vmem:[#allocation4 + $0xb0] sm:$0xff]
      %v1647 = vld [vmem:[#allocation4 + $0xb8] sm:$0xff]
      %v1648 = vld [vmem:[#allocation4 + $0xc0] sm:$0xff]
      %v1649 = vld [vmem:[#allocation4 + $0xc8] sm:$0xff]
      %v1650 = vld [vmem:[#allocation4 + $0xd0] sm:$0xff]
      %v1651 = vld [vmem:[#allocation4 + $0xd8] sm:$0xff]
      %v1652 = vld [vmem:[#allocation4 + $0xe0] sm:$0xff]
      %v1653 = vld [vmem:[#allocation4 + $0xe8] sm:$0xff]
      %v1654 = vld [vmem:[#allocation4 + $0xf0] sm:$0xff]
      %v1655 = vld [vmem:[#allocation4 + $0xf8] sm:$0xff]
      %s1656 = scalar_lea.vmem %s3, 128
      %v1657 = vld [vmem:[%s1656] sm:$0xf]
      %v1658 = vld [vmem:[%s1656 + $0x4] sm:$0xf]
      %v1659 = vld [vmem:[%s1656 + $0x8] sm:$0xf]
      %v1660 = vld [vmem:[%s1656 + $0xc] sm:$0xf]
      %v1661 = vld [vmem:[%s1656 + $0x10] sm:$0xf]
      %v1662 = vld [vmem:[%s1656 + $0x14] sm:$0xf]
      %v1663 = vld [vmem:[%s1656 + $0x18] sm:$0xf]
      %v1664 = vld [vmem:[%s1656 + $0x1c] sm:$0xf]
      %v1665 = vld [vmem:[%s1656 + $0x20] sm:$0xf]
      %v1666 = vld [vmem:[%s1656 + $0x24] sm:$0xf]
      %v1667 = vld [vmem:[%s1656 + $0x28] sm:$0xf]
      %v1668 = vld [vmem:[%s1656 + $0x2c] sm:$0xf]
      %v1669 = vld [vmem:[%s1656 + $0x30] sm:$0xf]
      %v1670 = vld [vmem:[%s1656 + $0x34] sm:$0xf]
      %v1671 = vld [vmem:[%s1656 + $0x38] sm:$0xf]
      %v1672 = vld [vmem:[%s1656 + $0x3c] sm:$0xf]
      %v1689 = vunpack.c.l.b16 %v1657
      %v1690 = vunpack.c.l.b16 %v1658
      %v1691 = vunpack.c.l.b16 %v1659
      %v1692 = vunpack.c.l.b16 %v1660
      %v1693 = vunpack.c.l.b16 %v1661
      %v1694 = vunpack.c.l.b16 %v1662
      %v1695 = vunpack.c.l.b16 %v1663
      %v1696 = vunpack.c.l.b16 %v1664
      %v1697 = vunpack.c.l.b16 %v1665
      %v1698 = vunpack.c.l.b16 %v1666
      %v1699 = vunpack.c.l.b16 %v1667
      %v1700 = vunpack.c.l.b16 %v1668
      %v1701 = vunpack.c.l.b16 %v1669
      %v1702 = vunpack.c.l.b16 %v1670
      %v1703 = vunpack.c.l.b16 %v1671
      %v1704 = vunpack.c.l.b16 %v1672
      %v1705 = vpack.c.b16 %v1690, %v1689
      %v1706 = vpack.c.b16 %v1692, %v1691
      %v1707 = vpack.c.b16 %v1694, %v1693
      %v1708 = vpack.c.b16 %v1696, %v1695
      %v1709 = vpack.c.b16 %v1698, %v1697
      %v1710 = vpack.c.b16 %v1700, %v1699
      %v1711 = vpack.c.b16 %v1702, %v1701
      %v1712 = vpack.c.b16 %v1704, %v1703
      %1721 = vmatprep.subr.bf16.mxu0 0
      %1722 = vmatpush1.bf16.msra.mxu0 %v1705
      %1723 = vmatprep.subr.bf16.mxu0 0
      %1724 = vmatpush1.bf16.msra.mxu0 %v1706
      %1725 = vmatprep.subr.bf16.mxu0 0
      %1726 = vmatpush1.bf16.msra.mxu0 %v1707
      %1727 = vmatprep.subr.bf16.mxu0 0
      %1728 = vmatpush1.bf16.msra.mxu0 %v1708
      %1729 = vmatprep.subr.bf16.mxu0 0
      %1730 = vmatpush1.bf16.msra.mxu0 %v1709
      %1731 = vmatprep.subr.bf16.mxu0 0
      %1732 = vmatpush1.bf16.msra.mxu0 %v1710
      %1733 = vmatprep.subr.bf16.mxu0 0
      %1734 = vmatpush1.bf16.msra.mxu0 %v1711
      %1735 = vmatprep.subr.bf16.mxu0 0
      %1736 = vmatpush1.bf16.msra.mxu0 %v1712
      %1737 = vmatprep.subr.bf16.mxu0 0
      %1738 = vmatpush1.bf16.msra.mxu0 0
      %1739 = vmatprep.subr.bf16.mxu0 0
      %1740 = vmatpush1.bf16.msra.mxu0 0
      %1741 = vmatprep.subr.bf16.mxu0 0
      %1742 = vmatpush1.bf16.msra.mxu0 0
      %1743 = vmatprep.subr.bf16.mxu0 0
      %1744 = vmatpush1.bf16.msra.mxu0 0
      %1745 = vmatprep.subr.bf16.mxu0 0
      %1746 = vmatpush1.bf16.msra.mxu0 0
      %1747 = vmatprep.subr.bf16.mxu0 0
      %1748 = vmatpush1.bf16.msra.mxu0 0
      %1749 = vmatprep.subr.bf16.mxu0 0
      %1750 = vmatpush1.bf16.msra.mxu0 0
      %1751 = vmatprep.subr.bf16.mxu0 0
      %1752 = vmatpush1.bf16.msra.mxu0 0
      %1753 = vmatprep.mubr.bf16.mxu0 0
      %1754 = vmatmul.mubr.bf16.gmra.mrb[0].mxu0 %v1608
      %v1755 = vpop.f32.mrb[0].mxu0
      %v1756 = vadd.f32 0.0, %v1755
      %v1757 = vpop.f32.mrb[0].mxu0
      %v1758 = vpop.f32.mrb[0].mxu0
      %v1759 = vadd.f32 0.0, %v1758
      %v1760 = vpop.f32.mrb[0].mxu0
      %1761 = vmatprep.mubr.bf16.mxu0 0
      %1762 = vmatmul.mubr.bf16.gmra.mrb[0].mxu0 %v1609
      %v1763 = vpop.f32.mrb[0].mxu0
      %v1764 = vadd.f32 0.0, %v1763
      %v1765 = vpop.f32.mrb[0].mxu0
      %v1766 = vpop.f32.mrb[0].mxu0
      %v1767 = vadd.f32 0.0, %v1766
      %v1768 = vpop.f32.mrb[0].mxu0
      %1769 = vmatprep.mubr.bf16.mxu0 0
      %1770 = vmatmul.mubr.bf16.gmra.mrb[0].mxu0 %v1610
      %v1771 = vpop.f32.mrb[0].mxu0
      %v1772 = vadd.f32 0.0, %v1771
      %v1773 = vpop.f32.mrb[0].mxu0
      %v1774 = vpop.f32.mrb[0].mxu0
      %v1775 = vadd.f32 0.0, %v1774
      %v1776 = vpop.f32.mrb[0].mxu0
      %1777 = vmatprep.mubr.bf16.mxu0 0
      %1778 = vmatmul.mubr.bf16.gmra.mrb[0].mxu0 %v1611
      %v1779 = vpop.f32.mrb[0].mxu0
      %v1780 = vadd.f32 0.0, %v1779
      %v1781 = vpop.f32.mrb[0].mxu0
      %v1782 = vpop.f32.mrb[0].mxu0
      %v1783 = vadd.f32 0.0, %v1782
      %v1784 = vpop.f32.mrb[0].mxu0
      %1785 = vmatprep.mubr.bf16.mxu0 0
      %1786 = vmatmul.mubr.bf16.gmra.mrb[0].mxu0 %v1612
      %v1787 = vpop.f32.mrb[0].mxu0
      %v1788 = vadd.f32 0.0, %v1787
      %v1789 = vpop.f32.mrb[0].mxu0
      %v1790 = vpop.f32.mrb[0].mxu0
      %v1791 = vadd.f32 0.0, %v1790
      %v1792 = vpop.f32.mrb[0].mxu0
      %1793 = vmatprep.mubr.bf16.mxu0 0
      %1794 = vmatmul.mubr.bf16.gmra.mrb[0].mxu0 %v1613
      %v1795 = vpop.f32.mrb[0].mxu0
      %v1796 = vadd.f32 0.0, %v1795
      %v1797 = vpop.f32.mrb[0].mxu0
      %v1798 = vpop.f32.mrb[0].mxu0
      %v1799 = vadd.f32 0.0, %v1798
      %v1800 = vpop.f32.mrb[0].mxu0
      %1801 = vmatprep.mubr.bf16.mxu0 0
      %1802 = vmatmul.mubr.bf16.gmra.mrb[0].mxu0 %v1614
      %v1803 = vpop.f32.mrb[0].mxu0
      %v1804 = vadd.f32 0.0, %v1803
      %v1805 = vpop.f32.mrb[0].mxu0
      %v1806 = vpop.f32.mrb[0].mxu0
      %v1807 = vadd.f32 0.0, %v1806
      %v1808 = vpop.f32.mrb[0].mxu0
      %1809 = vmatprep.mubr.bf16.mxu0 0
      %1810 = vmatmul.mubr.bf16.gmra.mrb[0].mxu0 %v1615
      %v1811 = vpop.f32.mrb[0].mxu0
      %v1812 = vadd.f32 0.0, %v1811
      %v1813 = vpop.f32.mrb[0].mxu0
      %v1814 = vpop.f32.mrb[0].mxu0
      %v1815 = vadd.f32 0.0, %v1814
      %v1816 = vpop.f32.mrb[0].mxu0
      %1817 = vmatprep.mubr.bf16.mxu0 0
      %1818 = vmatmul.mubr.bf16.gmra.mrb[0].mxu0 %v1616
      %v1819 = vpop.f32.mrb[0].mxu0
      %v1820 = vadd.f32 0.0, %v1819
      %v1821 = vpop.f32.mrb[0].mxu0
      %v1822 = vpop.f32.mrb[0].mxu0
      %v1823 = vadd.f32 0.0, %v1822
      %v1824 = vpop.f32.mrb[0].mxu0
      %1825 = vmatprep.mubr.bf16.mxu0 0
      %1826 = vmatmul.mubr.bf16.gmra.mrb[0].mxu0 %v1617
      %v1827 = vpop.f32.mrb[0].mxu0
      %v1828 = vadd.f32 0.0, %v1827
      %v1829 = vpop.f32.mrb[0].mxu0
      %v1830 = vpop.f32.mrb[0].mxu0
      %v1831 = vadd.f32 0.0, %v1830
      %v1832 = vpop.f32.mrb[0].mxu0
      %1833 = vmatprep.mubr.bf16.mxu0 0
      %1834 = vmatmul.mubr.bf16.gmra.mrb[0].mxu0 %v1618
      %v1835 = vpop.f32.mrb[0].mxu0
      %v1836 = vadd.f32 0.0, %v1835
      %v1837 = vpop.f32.mrb[0].mxu0
      %v1838 = vpop.f32.mrb[0].mxu0
      %v1839 = vadd.f32 0.0, %v1838
      %v1840 = vpop.f32.mrb[0].mxu0
      %1841 = vmatprep.mubr.bf16.mxu0 0
      %1842 = vmatmul.mubr.bf16.gmra.mrb[0].mxu0 %v1619
      %v1843 = vpop.f32.mrb[0].mxu0
      %v1844 = vadd.f32 0.0, %v1843
      %v1845 = vpop.f32.mrb[0].mxu0
      %v1846 = vpop.f32.mrb[0].mxu0
      %v1847 = vadd.f32 0.0, %v1846
      %v1848 = vpop.f32.mrb[0].mxu0
      %1849 = vmatprep.mubr.bf16.mxu0 0
      %1850 = vmatmul.mubr.bf16.gmra.mrb[0].mxu0 %v1620
      %v1851 = vpop.f32.mrb[0].mxu0
      %v1852 = vadd.f32 0.0, %v1851
      %v1853 = vpop.f32.mrb[0].mxu0
      %v1854 = vpop.f32.mrb[0].mxu0
      %v1855 = vadd.f32 0.0, %v1854
      %v1856 = vpop.f32.mrb[0].mxu0
      %1857 = vmatprep.mubr.bf16.mxu0 0
      %1858 = vmatmul.mubr.bf16.gmra.mrb[0].mxu0 %v1621
      %v1859 = vpop.f32.mrb[0].mxu0
      %v1860 = vadd.f32 0.0, %v1859
      %v1861 = vpop.f32.mrb[0].mxu0
      %v1862 = vpop.f32.mrb[0].mxu0
      %v1863 = vadd.f32 0.0, %v1862
      %v1864 = vpop.f32.mrb[0].mxu0
      %1865 = vmatprep.mubr.bf16.mxu0 0
      %1866 = vmatmul.mubr.bf16.gmra.mrb[0].mxu0 %v1622
      %v1867 = vpop.f32.mrb[0].mxu0
      %v1868 = vadd.f32 0.0, %v1867
      %v1869 = vpop.f32.mrb[0].mxu0
      %v1870 = vpop.f32.mrb[0].mxu0
      %v1871 = vadd.f32 0.0, %v1870
      %v1872 = vpop.f32.mrb[0].mxu0
      %1873 = vmatprep.mubr.bf16.mxu0 0
      %1874 = vmatmul.mubr.bf16.gmra.mrb[0].mxu0 %v1623
      %v1875 = vpop.f32.mrb[0].mxu0
      %v1876 = vadd.f32 0.0, %v1875
      %v1877 = vpop.f32.mrb[0].mxu0
      %v1878 = vpop.f32.mrb[0].mxu0
      %v1879 = vadd.f32 0.0, %v1878
      %v1880 = vpop.f32.mrb[0].mxu0
      %1881 = vdwg.mxu0
      %v1882 = vadd.f32 %v1624, %v1756
      %v1883 = vadd.f32 %v1625, %v1759
      %v1884 = vadd.f32 %v1626, %v1764
      %v1885 = vadd.f32 %v1627, %v1767
      %v1886 = vadd.f32 %v1628, %v1772
      %v1887 = vadd.f32 %v1629, %v1775
      %v1888 = vadd.f32 %v1630, %v1780
      %v1889 = vadd.f32 %v1631, %v1783
      %v1890 = vadd.f32 %v1632, %v1788
      %v1891 = vadd.f32 %v1633, %v1791
      %v1892 = vadd.f32 %v1634, %v1796
      %v1893 = vadd.f32 %v1635, %v1799
      %v1894 = vadd.f32 %v1636, %v1804
      %v1895 = vadd.f32 %v1637, %v1807
      %v1896 = vadd.f32 %v1638, %v1812
      %v1897 = vadd.f32 %v1639, %v1815
      %v1898 = vadd.f32 %v1640, %v1820
      %v1899 = vadd.f32 %v1641, %v1823
      %v1900 = vadd.f32 %v1642, %v1828
      %v1901 = vadd.f32 %v1643, %v1831
      %v1902 = vadd.f32 %v1644, %v1836
      %v1903 = vadd.f32 %v1645, %v1839
      %v1904 = vadd.f32 %v1646, %v1844
      %v1905 = vadd.f32 %v1647, %v1847
      %v1906 = vadd.f32 %v1648, %v1852
      %v1907 = vadd.f32 %v1649, %v1855
      %v1908 = vadd.f32 %v1650, %v1860
      %v1909 = vadd.f32 %v1651, %v1863
      %v1910 = vadd.f32 %v1652, %v1868
      %v1911 = vadd.f32 %v1653, %v1871
      %v1912 = vadd.f32 %v1654, %v1876
      %v1913 = vadd.f32 %v1655, %v1879
      %1914 = vst [vmem:[#allocation4] sm:$0xff] %v1882
      %1915 = vst [vmem:[#allocation4 + $0x8] sm:$0xff] %v1883
      %1916 = vst [vmem:[#allocation4 + $0x10] sm:$0xff] %v1884
      %1917 = vst [vmem:[#allocation4 + $0x18] sm:$0xff] %v1885
      %1918 = vst [vmem:[#allocation4 + $0x20] sm:$0xff] %v1886
      %1919 = vst [vmem:[#allocation4 + $0x28] sm:$0xff] %v1887
      %1920 = vst [vmem:[#allocation4 + $0x30] sm:$0xff] %v1888
      %1921 = vst [vmem:[#allocation4 + $0x38] sm:$0xff] %v1889
      %1922 = vst [vmem:[#allocation4 + $0x40] sm:$0xff] %v1890
      %1923 = vst [vmem:[#allocation4 + $0x48] sm:$0xff] %v1891
      %1924 = vst [vmem:[#allocation4 + $0x50] sm:$0xff] %v1892
      %1925 = vst [vmem:[#allocation4 + $0x58] sm:$0xff] %v1893
      %1926 = vst [vmem:[#allocation4 + $0x60] sm:$0xff] %v1894
      %1927 = vst [vmem:[#allocation4 + $0x68] sm:$0xff] %v1895
      %1928 = vst [vmem:[#allocation4 + $0x70] sm:$0xff] %v1896
      %1929 = vst [vmem:[#allocation4 + $0x78] sm:$0xff] %v1897
      %1930 = vst [vmem:[#allocation4 + $0x80] sm:$0xff] %v1898
      %1931 = vst [vmem:[#allocation4 + $0x88] sm:$0xff] %v1899
      %1932 = vst [vmem:[#allocation4 + $0x90] sm:$0xff] %v1900
      %1933 = vst [vmem:[#allocation4 + $0x98] sm:$0xff] %v1901
      %1934 = vst [vmem:[#allocation4 + $0xa0] sm:$0xff] %v1902
      %1935 = vst [vmem:[#allocation4 + $0xa8] sm:$0xff] %v1903
      %1936 = vst [vmem:[#allocation4 + $0xb0] sm:$0xff] %v1904
      %1937 = vst [vmem:[#allocation4 + $0xb8] sm:$0xff] %v1905
      %1938 = vst [vmem:[#allocation4 + $0xc0] sm:$0xff] %v1906
      %1939 = vst [vmem:[#allocation4 + $0xc8] sm:$0xff] %v1907
      %1940 = vst [vmem:[#allocation4 + $0xd0] sm:$0xff] %v1908
      %1941 = vst [vmem:[#allocation4 + $0xd8] sm:$0xff] %v1909
      %1942 = vst [vmem:[#allocation4 + $0xe0] sm:$0xff] %v1910
      %1943 = vst [vmem:[#allocation4 + $0xe8] sm:$0xff] %v1911
      %1944 = vst [vmem:[#allocation4 + $0xf0] sm:$0xff] %v1912
      %1945 = vst [vmem:[#allocation4 + $0xf8] sm:$0xff] %v1913
      %v1946 = vld [vmem:[%s772 + $0x7] sm:$0xff]
      %v1947 = vld [vmem:[%s772 + $0xf] sm:$0xff]
      %v1948 = vld [vmem:[%s772 + $0x27] sm:$0xff]
      %v1949 = vld [vmem:[%s772 + $0x2f] sm:$0xff]
      %v1950 = vld [vmem:[%s772 + $0x47] sm:$0xff]
      %v1951 = vld [vmem:[%s772 + $0x4f] sm:$0xff]
      %v1952 = vld [vmem:[%s772 + $0x67] sm:$0xff]
      %v1953 = vld [vmem:[%s772 + $0x6f] sm:$0xff]
      %v1954 = vld [vmem:[%s772 + $0x87] sm:$0xff]
      %v1955 = vld [vmem:[%s772 + $0x8f] sm:$0xff]
      %v1956 = vld [vmem:[%s772 + $0xa7] sm:$0xff]
      %v1957 = vld [vmem:[%s772 + $0xaf] sm:$0xff]
      %v1958 = vld [vmem:[%s772 + $0xc7] sm:$0xff]
      %v1959 = vld [vmem:[%s772 + $0xcf] sm:$0xff]
      %v1960 = vld [vmem:[%s772 + $0xe7] sm:$0xff]
      %v1961 = vld [vmem:[%s772 + $0xef] sm:$0xff]
      %v1962 = vld [vmem:[%s772 + $0x107] sm:$0xff]
      %v1963 = vld [vmem:[%s772 + $0x10f] sm:$0xff]
      %v1964 = vld [vmem:[%s772 + $0x127] sm:$0xff]
      %v1965 = vld [vmem:[%s772 + $0x12f] sm:$0xff]
      %v1966 = vld [vmem:[%s772 + $0x147] sm:$0xff]
      %v1967 = vld [vmem:[%s772 + $0x14f] sm:$0xff]
      %v1968 = vld [vmem:[%s772 + $0x167] sm:$0xff]
      %v1969 = vld [vmem:[%s772 + $0x16f] sm:$0xff]
      %v1970 = vld [vmem:[%s772 + $0x187] sm:$0xff]
      %v1971 = vld [vmem:[%s772 + $0x18f] sm:$0xff]
      %v1972 = vld [vmem:[%s772 + $0x1a7] sm:$0xff]
      %v1973 = vld [vmem:[%s772 + $0x1af] sm:$0xff]
      %v1974 = vld [vmem:[%s772 + $0x1c7] sm:$0xff]
      %v1975 = vld [vmem:[%s772 + $0x1cf] sm:$0xff]
      %v1976 = vld [vmem:[%s772 + $0x1e7] sm:$0xff]
      %v1977 = vld [vmem:[%s772 + $0x1ef] sm:$0xff]
      %v1978 = vpack.c.bf16 %v1947, %v1946
      %v1979 = vpack.c.bf16 %v1949, %v1948
      %v1980 = vpack.c.bf16 %v1951, %v1950
      %v1981 = vpack.c.bf16 %v1953, %v1952
      %v1982 = vpack.c.bf16 %v1955, %v1954
      %v1983 = vpack.c.bf16 %v1957, %v1956
      %v1984 = vpack.c.bf16 %v1959, %v1958
      %v1985 = vpack.c.bf16 %v1961, %v1960
      %v1986 = vpack.c.bf16 %v1963, %v1962
      %v1987 = vpack.c.bf16 %v1965, %v1964
      %v1988 = vpack.c.bf16 %v1967, %v1966
      %v1989 = vpack.c.bf16 %v1969, %v1968
      %v1990 = vpack.c.bf16 %v1971, %v1970
      %v1991 = vpack.c.bf16 %v1973, %v1972
      %v1992 = vpack.c.bf16 %v1975, %v1974
      %v1993 = vpack.c.bf16 %v1977, %v1976
      %v1994 = vld [vmem:[#allocation4] sm:$0xff]
      %v1995 = vld [vmem:[#allocation4 + $0x8] sm:$0xff]
      %v1996 = vld [vmem:[#allocation4 + $0x10] sm:$0xff]
      %v1997 = vld [vmem:[#allocation4 + $0x18] sm:$0xff]
      %v1998 = vld [vmem:[#allocation4 + $0x20] sm:$0xff]
      %v1999 = vld [vmem:[#allocation4 + $0x28] sm:$0xff]
      %v2000 = vld [vmem:[#allocation4 + $0x30] sm:$0xff]
      %v2001 = vld [vmem:[#allocation4 + $0x38] sm:$0xff]
      %v2002 = vld [vmem:[#allocation4 + $0x40] sm:$0xff]
      %v2003 = vld [vmem:[#allocation4 + $0x48] sm:$0xff]
      %v2004 = vld [vmem:[#allocation4 + $0x50] sm:$0xff]
      %v2005 = vld [vmem:[#allocation4 + $0x58] sm:$0xff]
      %v2006 = vld [vmem:[#allocation4 + $0x60] sm:$0xff]
      %v2007 = vld [vmem:[#allocation4 + $0x68] sm:$0xff]
      %v2008 = vld [vmem:[#allocation4 + $0x70] sm:$0xff]
      %v2009 = vld [vmem:[#allocation4 + $0x78] sm:$0xff]
      %v2010 = vld [vmem:[#allocation4 + $0x80] sm:$0xff]
      %v2011 = vld [vmem:[#allocation4 + $0x88] sm:$0xff]
      %v2012 = vld [vmem:[#allocation4 + $0x90] sm:$0xff]
      %v2013 = vld [vmem:[#allocation4 + $0x98] sm:$0xff]
      %v2014 = vld [vmem:[#allocation4 + $0xa0] sm:$0xff]
      %v2015 = vld [vmem:[#allocation4 + $0xa8] sm:$0xff]
      %v2016 = vld [vmem:[#allocation4 + $0xb0] sm:$0xff]
      %v2017 = vld [vmem:[#allocation4 + $0xb8] sm:$0xff]
      %v2018 = vld [vmem:[#allocation4 + $0xc0] sm:$0xff]
      %v2019 = vld [vmem:[#allocation4 + $0xc8] sm:$0xff]
      %v2020 = vld [vmem:[#allocation4 + $0xd0] sm:$0xff]
      %v2021 = vld [vmem:[#allocation4 + $0xd8] sm:$0xff]
      %v2022 = vld [vmem:[#allocation4 + $0xe0] sm:$0xff]
      %v2023 = vld [vmem:[#allocation4 + $0xe8] sm:$0xff]
      %v2024 = vld [vmem:[#allocation4 + $0xf0] sm:$0xff]
      %v2025 = vld [vmem:[#allocation4 + $0xf8] sm:$0xff]
      %s2026 = scalar_lea.vmem %s3, 192
      %v2027 = vld [vmem:[%s2026] sm:$0xf]
      %v2028 = vld [vmem:[%s2026 + $0x4] sm:$0xf]
      %v2029 = vld [vmem:[%s2026 + $0x8] sm:$0xf]
      %v2030 = vld [vmem:[%s2026 + $0xc] sm:$0xf]
      %v2031 = vld [vmem:[%s2026 + $0x10] sm:$0xf]
      %v2032 = vld [vmem:[%s2026 + $0x14] sm:$0xf]
      %v2033 = vld [vmem:[%s2026 + $0x18] sm:$0xf]
      %v2034 = vld [vmem:[%s2026 + $0x1c] sm:$0xf]
      %v2035 = vld [vmem:[%s2026 + $0x20] sm:$0xf]
      %v2036 = vld [vmem:[%s2026 + $0x24] sm:$0xf]
      %v2037 = vld [vmem:[%s2026 + $0x28] sm:$0xf]
      %v2038 = vld [vmem:[%s2026 + $0x2c] sm:$0xf]
      %v2039 = vld [vmem:[%s2026 + $0x30] sm:$0xf]
      %v2040 = vld [vmem:[%s2026 + $0x34] sm:$0xf]
      %v2041 = vld [vmem:[%s2026 + $0x38] sm:$0xf]
      %v2042 = vld [vmem:[%s2026 + $0x3c] sm:$0xf]
      %v2059 = vunpack.c.l.b16 %v2027
      %v2060 = vunpack.c.l.b16 %v2028
      %v2061 = vunpack.c.l.b16 %v2029
      %v2062 = vunpack.c.l.b16 %v2030
      %v2063 = vunpack.c.l.b16 %v2031
      %v2064 = vunpack.c.l.b16 %v2032
      %v2065 = vunpack.c.l.b16 %v2033
      %v2066 = vunpack.c.l.b16 %v2034
      %v2067 = vunpack.c.l.b16 %v2035
      %v2068 = vunpack.c.l.b16 %v2036
      %v2069 = vunpack.c.l.b16 %v2037
      %v2070 = vunpack.c.l.b16 %v2038
      %v2071 = vunpack.c.l.b16 %v2039
      %v2072 = vunpack.c.l.b16 %v2040
      %v2073 = vunpack.c.l.b16 %v2041
      %v2074 = vunpack.c.l.b16 %v2042
      %v2075 = vpack.c.b16 %v2060, %v2059
      %v2076 = vpack.c.b16 %v2062, %v2061
      %v2077 = vpack.c.b16 %v2064, %v2063
      %v2078 = vpack.c.b16 %v2066, %v2065
      %v2079 = vpack.c.b16 %v2068, %v2067
      %v2080 = vpack.c.b16 %v2070, %v2069
      %v2081 = vpack.c.b16 %v2072, %v2071
      %v2082 = vpack.c.b16 %v2074, %v2073
      %2091 = vmatprep.subr.bf16.mxu0 0
      %2092 = vmatpush1.bf16.msra.mxu0 %v2075
      %2093 = vmatprep.subr.bf16.mxu0 0
      %2094 = vmatpush1.bf16.msra.mxu0 %v2076
      %2095 = vmatprep.subr.bf16.mxu0 0
      %2096 = vmatpush1.bf16.msra.mxu0 %v2077
      %2097 = vmatprep.subr.bf16.mxu0 0
      %2098 = vmatpush1.bf16.msra.mxu0 %v2078
      %2099 = vmatprep.subr.bf16.mxu0 0
      %2100 = vmatpush1.bf16.msra.mxu0 %v2079
      %2101 = vmatprep.subr.bf16.mxu0 0
      %2102 = vmatpush1.bf16.msra.mxu0 %v2080
      %2103 = vmatprep.subr.bf16.mxu0 0
      %2104 = vmatpush1.bf16.msra.mxu0 %v2081
      %2105 = vmatprep.subr.bf16.mxu0 0
      %2106 = vmatpush1.bf16.msra.mxu0 %v2082
      %2107 = vmatprep.subr.bf16.mxu0 0
      %2108 = vmatpush1.bf16.msra.mxu0 0
      %2109 = vmatprep.subr.bf16.mxu0 0
      %2110 = vmatpush1.bf16.msra.mxu0 0
      %2111 = vmatprep.subr.bf16.mxu0 0
      %2112 = vmatpush1.bf16.msra.mxu0 0
      %2113 = vmatprep.subr.bf16.mxu0 0
      %2114 = vmatpush1.bf16.msra.mxu0 0
      %2115 = vmatprep.subr.bf16.mxu0 0
      %2116 = vmatpush1.bf16.msra.mxu0 0
      %2117 = vmatprep.subr.bf16.mxu0 0
      %2118 = vmatpush1.bf16.msra.mxu0 0
      %2119 = vmatprep.subr.bf16.mxu0 0
      %2120 = vmatpush1.bf16.msra.mxu0 0
      %2121 = vmatprep.subr.bf16.mxu0 0
      %2122 = vmatpush1.bf16.msra.mxu0 0
      %2123 = vmatprep.mubr.bf16.mxu0 0
      %2124 = vmatmul.mubr.bf16.gmra.mrb[0].mxu0 %v1978
      %v2125 = vpop.f32.mrb[0].mxu0
      %v2126 = vadd.f32 0.0, %v2125
      %v2127 = vpop.f32.mrb[0].mxu0
      %v2128 = vpop.f32.mrb[0].mxu0
      %v2129 = vadd.f32 0.0, %v2128
      %v2130 = vpop.f32.mrb[0].mxu0
      %2131 = vmatprep.mubr.bf16.mxu0 0
      %2132 = vmatmul.mubr.bf16.gmra.mrb[0].mxu0 %v1979
      %v2133 = vpop.f32.mrb[0].mxu0
      %v2134 = vadd.f32 0.0, %v2133
      %v2135 = vpop.f32.mrb[0].mxu0
      %v2136 = vpop.f32.mrb[0].mxu0
      %v2137 = vadd.f32 0.0, %v2136
      %v2138 = vpop.f32.mrb[0].mxu0
      %2139 = vmatprep.mubr.bf16.mxu0 0
      %2140 = vmatmul.mubr.bf16.gmra.mrb[0].mxu0 %v1980
      %v2141 = vpop.f32.mrb[0].mxu0
      %v2142 = vadd.f32 0.0, %v2141
      %v2143 = vpop.f32.mrb[0].mxu0
      %v2144 = vpop.f32.mrb[0].mxu0
      %v2145 = vadd.f32 0.0, %v2144
      %v2146 = vpop.f32.mrb[0].mxu0
      %2147 = vmatprep.mubr.bf16.mxu0 0
      %2148 = vmatmul.mubr.bf16.gmra.mrb[0].mxu0 %v1981
      %v2149 = vpop.f32.mrb[0].mxu0
      %v2150 = vadd.f32 0.0, %v2149
      %v2151 = vpop.f32.mrb[0].mxu0
      %v2152 = vpop.f32.mrb[0].mxu0
      %v2153 = vadd.f32 0.0, %v2152
      %v2154 = vpop.f32.mrb[0].mxu0
      %2155 = vmatprep.mubr.bf16.mxu0 0
      %2156 = vmatmul.mubr.bf16.gmra.mrb[0].mxu0 %v1982
      %v2157 = vpop.f32.mrb[0].mxu0
      %v2158 = vadd.f32 0.0, %v2157
      %v2159 = vpop.f32.mrb[0].mxu0
      %v2160 = vpop.f32.mrb[0].mxu0
      %v2161 = vadd.f32 0.0, %v2160
      %v2162 = vpop.f32.mrb[0].mxu0
      %2163 = vmatprep.mubr.bf16.mxu0 0
      %2164 = vmatmul.mubr.bf16.gmra.mrb[0].mxu0 %v1983
      %v2165 = vpop.f32.mrb[0].mxu0
      %v2166 = vadd.f32 0.0, %v2165
      %v2167 = vpop.f32.mrb[0].mxu0
      %v2168 = vpop.f32.mrb[0].mxu0
      %v2169 = vadd.f32 0.0, %v2168
      %v2170 = vpop.f32.mrb[0].mxu0
      %2171 = vmatprep.mubr.bf16.mxu0 0
      %2172 = vmatmul.mubr.bf16.gmra.mrb[0].mxu0 %v1984
      %v2173 = vpop.f32.mrb[0].mxu0
      %v2174 = vadd.f32 0.0, %v2173
      %v2175 = vpop.f32.mrb[0].mxu0
      %v2176 = vpop.f32.mrb[0].mxu0
      %v2177 = vadd.f32 0.0, %v2176
      %v2178 = vpop.f32.mrb[0].mxu0
      %2179 = vmatprep.mubr.bf16.mxu0 0
      %2180 = vmatmul.mubr.bf16.gmra.mrb[0].mxu0 %v1985
      %v2181 = vpop.f32.mrb[0].mxu0
      %v2182 = vadd.f32 0.0, %v2181
      %v2183 = vpop.f32.mrb[0].mxu0
      %v2184 = vpop.f32.mrb[0].mxu0
      %v2185 = vadd.f32 0.0, %v2184
      %v2186 = vpop.f32.mrb[0].mxu0
      %2187 = vmatprep.mubr.bf16.mxu0 0
      %2188 = vmatmul.mubr.bf16.gmra.mrb[0].mxu0 %v1986
      %v2189 = vpop.f32.mrb[0].mxu0
      %v2190 = vadd.f32 0.0, %v2189
      %v2191 = vpop.f32.mrb[0].mxu0
      %v2192 = vpop.f32.mrb[0].mxu0
      %v2193 = vadd.f32 0.0, %v2192
      %v2194 = vpop.f32.mrb[0].mxu0
      %2195 = vmatprep.mubr.bf16.mxu0 0
      %2196 = vmatmul.mubr.bf16.gmra.mrb[0].mxu0 %v1987
      %v2197 = vpop.f32.mrb[0].mxu0
      %v2198 = vadd.f32 0.0, %v2197
      %v2199 = vpop.f32.mrb[0].mxu0
      %v2200 = vpop.f32.mrb[0].mxu0
      %v2201 = vadd.f32 0.0, %v2200
      %v2202 = vpop.f32.mrb[0].mxu0
      %2203 = vmatprep.mubr.bf16.mxu0 0
      %2204 = vmatmul.mubr.bf16.gmra.mrb[0].mxu0 %v1988
      %v2205 = vpop.f32.mrb[0].mxu0
      %v2206 = vadd.f32 0.0, %v2205
      %v2207 = vpop.f32.mrb[0].mxu0
      %v2208 = vpop.f32.mrb[0].mxu0
      %v2209 = vadd.f32 0.0, %v2208
      %v2210 = vpop.f32.mrb[0].mxu0
      %2211 = vmatprep.mubr.bf16.mxu0 0
      %2212 = vmatmul.mubr.bf16.gmra.mrb[0].mxu0 %v1989
      %v2213 = vpop.f32.mrb[0].mxu0
      %v2214 = vadd.f32 0.0, %v2213
      %v2215 = vpop.f32.mrb[0].mxu0
      %v2216 = vpop.f32.mrb[0].mxu0
      %v2217 = vadd.f32 0.0, %v2216
      %v2218 = vpop.f32.mrb[0].mxu0
      %2219 = vmatprep.mubr.bf16.mxu0 0
      %2220 = vmatmul.mubr.bf16.gmra.mrb[0].mxu0 %v1990
      %v2221 = vpop.f32.mrb[0].mxu0
      %v2222 = vadd.f32 0.0, %v2221
      %v2223 = vpop.f32.mrb[0].mxu0
      %v2224 = vpop.f32.mrb[0].mxu0
      %v2225 = vadd.f32 0.0, %v2224
      %v2226 = vpop.f32.mrb[0].mxu0
      %2227 = vmatprep.mubr.bf16.mxu0 0
      %2228 = vmatmul.mubr.bf16.gmra.mrb[0].mxu0 %v1991
      %v2229 = vpop.f32.mrb[0].mxu0
      %v2230 = vadd.f32 0.0, %v2229
      %v2231 = vpop.f32.mrb[0].mxu0
      %v2232 = vpop.f32.mrb[0].mxu0
      %v2233 = vadd.f32 0.0, %v2232
      %v2234 = vpop.f32.mrb[0].mxu0
      %2235 = vmatprep.mubr.bf16.mxu0 0
      %2236 = vmatmul.mubr.bf16.gmra.mrb[0].mxu0 %v1992
      %v2237 = vpop.f32.mrb[0].mxu0
      %v2238 = vadd.f32 0.0, %v2237
      %v2239 = vpop.f32.mrb[0].mxu0
      %v2240 = vpop.f32.mrb[0].mxu0
      %v2241 = vadd.f32 0.0, %v2240
      %v2242 = vpop.f32.mrb[0].mxu0
      %2243 = vmatprep.mubr.bf16.mxu0 0
      %2244 = vmatmul.mubr.bf16.gmra.mrb[0].mxu0 %v1993
      %v2245 = vpop.f32.mrb[0].mxu0
      %v2246 = vadd.f32 0.0, %v2245
      %v2247 = vpop.f32.mrb[0].mxu0
      %v2248 = vpop.f32.mrb[0].mxu0
      %v2249 = vadd.f32 0.0, %v2248
      %v2250 = vpop.f32.mrb[0].mxu0
      %2251 = vdwg.mxu0
      %v2252 = vadd.f32 %v1994, %v2126
      %v2253 = vadd.f32 %v1995, %v2129
      %v2254 = vadd.f32 %v1996, %v2134
      %v2255 = vadd.f32 %v1997, %v2137
      %v2256 = vadd.f32 %v1998, %v2142
      %v2257 = vadd.f32 %v1999, %v2145
      %v2258 = vadd.f32 %v2000, %v2150
      %v2259 = vadd.f32 %v2001, %v2153
      %v2260 = vadd.f32 %v2002, %v2158
      %v2261 = vadd.f32 %v2003, %v2161
      %v2262 = vadd.f32 %v2004, %v2166
      %v2263 = vadd.f32 %v2005, %v2169
      %v2264 = vadd.f32 %v2006, %v2174
      %v2265 = vadd.f32 %v2007, %v2177
      %v2266 = vadd.f32 %v2008, %v2182
      %v2267 = vadd.f32 %v2009, %v2185
      %v2268 = vadd.f32 %v2010, %v2190
      %v2269 = vadd.f32 %v2011, %v2193
      %v2270 = vadd.f32 %v2012, %v2198
      %v2271 = vadd.f32 %v2013, %v2201
      %v2272 = vadd.f32 %v2014, %v2206
      %v2273 = vadd.f32 %v2015, %v2209
      %v2274 = vadd.f32 %v2016, %v2214
      %v2275 = vadd.f32 %v2017, %v2217
      %v2276 = vadd.f32 %v2018, %v2222
      %v2277 = vadd.f32 %v2019, %v2225
      %v2278 = vadd.f32 %v2020, %v2230
      %v2279 = vadd.f32 %v2021, %v2233
      %v2280 = vadd.f32 %v2022, %v2238
      %v2281 = vadd.f32 %v2023, %v2241
      %v2282 = vadd.f32 %v2024, %v2246
      %v2283 = vadd.f32 %v2025, %v2249
      %2284 = vst [vmem:[#allocation4] sm:$0xff] %v2252
      %2285 = vst [vmem:[#allocation4 + $0x8] sm:$0xff] %v2253
      %2286 = vst [vmem:[#allocation4 + $0x10] sm:$0xff] %v2254
      %2287 = vst [vmem:[#allocation4 + $0x18] sm:$0xff] %v2255
      %2288 = vst [vmem:[#allocation4 + $0x20] sm:$0xff] %v2256
      %2289 = vst [vmem:[#allocation4 + $0x28] sm:$0xff] %v2257
      %2290 = vst [vmem:[#allocation4 + $0x30] sm:$0xff] %v2258
      %2291 = vst [vmem:[#allocation4 + $0x38] sm:$0xff] %v2259
      %2292 = vst [vmem:[#allocation4 + $0x40] sm:$0xff] %v2260
      %2293 = vst [vmem:[#allocation4 + $0x48] sm:$0xff] %v2261
      %2294 = vst [vmem:[#allocation4 + $0x50] sm:$0xff] %v2262
      %2295 = vst [vmem:[#allocation4 + $0x58] sm:$0xff] %v2263
      %2296 = vst [vmem:[#allocation4 + $0x60] sm:$0xff] %v2264
      %2297 = vst [vmem:[#allocation4 + $0x68] sm:$0xff] %v2265
      %2298 = vst [vmem:[#allocation4 + $0x70] sm:$0xff] %v2266
      %2299 = vst [vmem:[#allocation4 + $0x78] sm:$0xff] %v2267
      %2300 = vst [vmem:[#allocation4 + $0x80] sm:$0xff] %v2268
      %2301 = vst [vmem:[#allocation4 + $0x88] sm:$0xff] %v2269
      %2302 = vst [vmem:[#allocation4 + $0x90] sm:$0xff] %v2270
      %2303 = vst [vmem:[#allocation4 + $0x98] sm:$0xff] %v2271
      %2304 = vst [vmem:[#allocation4 + $0xa0] sm:$0xff] %v2272
      %2305 = vst [vmem:[#allocation4 + $0xa8] sm:$0xff] %v2273
      %2306 = vst [vmem:[#allocation4 + $0xb0] sm:$0xff] %v2274
      %2307 = vst [vmem:[#allocation4 + $0xb8] sm:$0xff] %v2275
      %2308 = vst [vmem:[#allocation4 + $0xc0] sm:$0xff] %v2276
      %2309 = vst [vmem:[#allocation4 + $0xc8] sm:$0xff] %v2277
      %2310 = vst [vmem:[#allocation4 + $0xd0] sm:$0xff] %v2278
      %2311 = vst [vmem:[#allocation4 + $0xd8] sm:$0xff] %v2279
      %2312 = vst [vmem:[#allocation4 + $0xe0] sm:$0xff] %v2280
      %2313 = vst [vmem:[#allocation4 + $0xe8] sm:$0xff] %v2281
      %2314 = vst [vmem:[#allocation4 + $0xf0] sm:$0xff] %v2282
      %2315 = vst [vmem:[#allocation4 + $0xf8] sm:$0xff] %v2283
      %v2316 = vld [vmem:[%s772 + $0x8] sm:$0xff]
      %v2317 = vld [vmem:[%s772 + $0x10] sm:$0xff]
      %v2318 = vld [vmem:[%s772 + $0x28] sm:$0xff]
      %v2319 = vld [vmem:[%s772 + $0x30] sm:$0xff]
      %v2320 = vld [vmem:[%s772 + $0x48] sm:$0xff]
      %v2321 = vld [vmem:[%s772 + $0x50] sm:$0xff]
      %v2322 = vld [vmem:[%s772 + $0x68] sm:$0xff]
      %v2323 = vld [vmem:[%s772 + $0x70] sm:$0xff]
      %v2324 = vld [vmem:[%s772 + $0x88] sm:$0xff]
      %v2325 = vld [vmem:[%s772 + $0x90] sm:$0xff]
      %v2326 = vld [vmem:[%s772 + $0xa8] sm:$0xff]
      %v2327 = vld [vmem:[%s772 + $0xb0] sm:$0xff]
      %v2328 = vld [vmem:[%s772 + $0xc8] sm:$0xff]
      %v2329 = vld [vmem:[%s772 + $0xd0] sm:$0xff]
      %v2330 = vld [vmem:[%s772 + $0xe8] sm:$0xff]
      %v2331 = vld [vmem:[%s772 + $0xf0] sm:$0xff]
      %v2332 = vld [vmem:[%s772 + $0x108] sm:$0xff]
      %v2333 = vld [vmem:[%s772 + $0x110] sm:$0xff]
      %v2334 = vld [vmem:[%s772 + $0x128] sm:$0xff]
      %v2335 = vld [vmem:[%s772 + $0x130] sm:$0xff]
      %v2336 = vld [vmem:[%s772 + $0x148] sm:$0xff]
      %v2337 = vld [vmem:[%s772 + $0x150] sm:$0xff]
      %v2338 = vld [vmem:[%s772 + $0x168] sm:$0xff]
      %v2339 = vld [vmem:[%s772 + $0x170] sm:$0xff]
      %v2340 = vld [vmem:[%s772 + $0x188] sm:$0xff]
      %v2341 = vld [vmem:[%s772 + $0x190] sm:$0xff]
      %v2342 = vld [vmem:[%s772 + $0x1a8] sm:$0xff]
      %v2343 = vld [vmem:[%s772 + $0x1b0] sm:$0xff]
      %v2344 = vld [vmem:[%s772 + $0x1c8] sm:$0xff]
      %v2345 = vld [vmem:[%s772 + $0x1d0] sm:$0xff]
      %v2346 = vld [vmem:[%s772 + $0x1e8] sm:$0xff]
      %v2347 = vld [vmem:[%s772 + $0x1f0] sm:$0xff]
      %v2348 = vpack.c.bf16 %v2317, %v2316
      %v2349 = vpack.c.bf16 %v2319, %v2318
      %v2350 = vpack.c.bf16 %v2321, %v2320
      %v2351 = vpack.c.bf16 %v2323, %v2322
      %v2352 = vpack.c.bf16 %v2325, %v2324
      %v2353 = vpack.c.bf16 %v2327, %v2326
      %v2354 = vpack.c.bf16 %v2329, %v2328
      %v2355 = vpack.c.bf16 %v2331, %v2330
      %v2356 = vpack.c.bf16 %v2333, %v2332
      %v2357 = vpack.c.bf16 %v2335, %v2334
      %v2358 = vpack.c.bf16 %v2337, %v2336
      %v2359 = vpack.c.bf16 %v2339, %v2338
      %v2360 = vpack.c.bf16 %v2341, %v2340
      %v2361 = vpack.c.bf16 %v2343, %v2342
      %v2362 = vpack.c.bf16 %v2345, %v2344
      %v2363 = vpack.c.bf16 %v2347, %v2346
      %v2364 = vld [vmem:[#allocation4] sm:$0xff]
      %v2365 = vld [vmem:[#allocation4 + $0x8] sm:$0xff]
      %v2366 = vld [vmem:[#allocation4 + $0x10] sm:$0xff]
      %v2367 = vld [vmem:[#allocation4 + $0x18] sm:$0xff]
      %v2368 = vld [vmem:[#allocation4 + $0x20] sm:$0xff]
      %v2369 = vld [vmem:[#allocation4 + $0x28] sm:$0xff]
      %v2370 = vld [vmem:[#allocation4 + $0x30] sm:$0xff]
      %v2371 = vld [vmem:[#allocation4 + $0x38] sm:$0xff]
      %v2372 = vld [vmem:[#allocation4 + $0x40] sm:$0xff]
      %v2373 = vld [vmem:[#allocation4 + $0x48] sm:$0xff]
      %v2374 = vld [vmem:[#allocation4 + $0x50] sm:$0xff]
      %v2375 = vld [vmem:[#allocation4 + $0x58] sm:$0xff]
      %v2376 = vld [vmem:[#allocation4 + $0x60] sm:$0xff]
      %v2377 = vld [vmem:[#allocation4 + $0x68] sm:$0xff]
      %v2378 = vld [vmem:[#allocation4 + $0x70] sm:$0xff]
      %v2379 = vld [vmem:[#allocation4 + $0x78] sm:$0xff]
      %v2380 = vld [vmem:[#allocation4 + $0x80] sm:$0xff]
      %v2381 = vld [vmem:[#allocation4 + $0x88] sm:$0xff]
      %v2382 = vld [vmem:[#allocation4 + $0x90] sm:$0xff]
      %v2383 = vld [vmem:[#allocation4 + $0x98] sm:$0xff]
      %v2384 = vld [vmem:[#allocation4 + $0xa0] sm:$0xff]
      %v2385 = vld [vmem:[#allocation4 + $0xa8] sm:$0xff]
      %v2386 = vld [vmem:[#allocation4 + $0xb0] sm:$0xff]
      %v2387 = vld [vmem:[#allocation4 + $0xb8] sm:$0xff]
      %v2388 = vld [vmem:[#allocation4 + $0xc0] sm:$0xff]
      %v2389 = vld [vmem:[#allocation4 + $0xc8] sm:$0xff]
      %v2390 = vld [vmem:[#allocation4 + $0xd0] sm:$0xff]
      %v2391 = vld [vmem:[#allocation4 + $0xd8] sm:$0xff]
      %v2392 = vld [vmem:[#allocation4 + $0xe0] sm:$0xff]
      %v2393 = vld [vmem:[#allocation4 + $0xe8] sm:$0xff]
      %v2394 = vld [vmem:[#allocation4 + $0xf0] sm:$0xff]
      %v2395 = vld [vmem:[#allocation4 + $0xf8] sm:$0xff]
      %s2396 = scalar_lea.vmem %s3, 256
      %v2397 = vld [vmem:[%s2396] sm:$0xf]
      %v2398 = vld [vmem:[%s2396 + $0x4] sm:$0xf]
      %v2399 = vld [vmem:[%s2396 + $0x8] sm:$0xf]
      %v2400 = vld [vmem:[%s2396 + $0xc] sm:$0xf]
      %v2401 = vld [vmem:[%s2396 + $0x10] sm:$0xf]
      %v2402 = vld [vmem:[%s2396 + $0x14] sm:$0xf]
      %v2403 = vld [vmem:[%s2396 + $0x18] sm:$0xf]
      %v2404 = vld [vmem:[%s2396 + $0x1c] sm:$0xf]
      %v2405 = vld [vmem:[%s2396 + $0x20] sm:$0xf]
      %v2406 = vld [vmem:[%s2396 + $0x24] sm:$0xf]
      %v2407 = vld [vmem:[%s2396 + $0x28] sm:$0xf]
      %v2408 = vld [vmem:[%s2396 + $0x2c] sm:$0xf]
      %v2409 = vld [vmem:[%s2396 + $0x30] sm:$0xf]
      %v2410 = vld [vmem:[%s2396 + $0x34] sm:$0xf]
      %v2411 = vld [vmem:[%s2396 + $0x38] sm:$0xf]
      %v2412 = vld [vmem:[%s2396 + $0x3c] sm:$0xf]
      %v2429 = vunpack.c.l.b16 %v2397
      %v2430 = vunpack.c.l.b16 %v2398
      %v2431 = vunpack.c.l.b16 %v2399
      %v2432 = vunpack.c.l.b16 %v2400
      %v2433 = vunpack.c.l.b16 %v2401
      %v2434 = vunpack.c.l.b16 %v2402
      %v2435 = vunpack.c.l.b16 %v2403
      %v2436 = vunpack.c.l.b16 %v2404
      %v2437 = vunpack.c.l.b16 %v2405
      %v2438 = vunpack.c.l.b16 %v2406
      %v2439 = vunpack.c.l.b16 %v2407
      %v2440 = vunpack.c.l.b16 %v2408
      %v2441 = vunpack.c.l.b16 %v2409
      %v2442 = vunpack.c.l.b16 %v2410
      %v2443 = vunpack.c.l.b16 %v2411
      %v2444 = vunpack.c.l.b16 %v2412
      %v2445 = vpack.c.b16 %v2430, %v2429
      %v2446 = vpack.c.b16 %v2432, %v2431
      %v2447 = vpack.c.b16 %v2434, %v2433
      %v2448 = vpack.c.b16 %v2436, %v2435
      %v2449 = vpack.c.b16 %v2438, %v2437
      %v2450 = vpack.c.b16 %v2440, %v2439
      %v2451 = vpack.c.b16 %v2442, %v2441
      %v2452 = vpack.c.b16 %v2444, %v2443
      %2461 = vmatprep.subr.bf16.mxu0 0
      %2462 = vmatpush1.bf16.msra.mxu0 %v2445
      %2463 = vmatprep.subr.bf16.mxu0 0
      %2464 = vmatpush1.bf16.msra.mxu0 %v2446
      %2465 = vmatprep.subr.bf16.mxu0 0
      %2466 = vmatpush1.bf16.msra.mxu0 %v2447
      %2467 = vmatprep.subr.bf16.mxu0 0
      %2468 = vmatpush1.bf16.msra.mxu0 %v2448
      %2469 = vmatprep.subr.bf16.mxu0 0
      %2470 = vmatpush1.bf16.msra.mxu0 %v2449
      %2471 = vmatprep.subr.bf16.mxu0 0
      %2472 = vmatpush1.bf16.msra.mxu0 %v2450
      %2473 = vmatprep.subr.bf16.mxu0 0
      %2474 = vmatpush1.bf16.msra.mxu0 %v2451
      %2475 = vmatprep.subr.bf16.mxu0 0
      %2476 = vmatpush1.bf16.msra.mxu0 %v2452
      %2477 = vmatprep.subr.bf16.mxu0 0
      %2478 = vmatpush1.bf16.msra.mxu0 0
      %2479 = vmatprep.subr.bf16.mxu0 0
      %2480 = vmatpush1.bf16.msra.mxu0 0
      %2481 = vmatprep.subr.bf16.mxu0 0
      %2482 = vmatpush1.bf16.msra.mxu0 0
      %2483 = vmatprep.subr.bf16.mxu0 0
      %2484 = vmatpush1.bf16.msra.mxu0 0
      %2485 = vmatprep.subr.bf16.mxu0 0
      %2486 = vmatpush1.bf16.msra.mxu0 0
      %2487 = vmatprep.subr.bf16.mxu0 0
      %2488 = vmatpush1.bf16.msra.mxu0 0
      %2489 = vmatprep.subr.bf16.mxu0 0
      %2490 = vmatpush1.bf16.msra.mxu0 0
      %2491 = vmatprep.subr.bf16.mxu0 0
      %2492 = vmatpush1.bf16.msra.mxu0 0
      %2493 = vmatprep.mubr.bf16.mxu0 0
      %2494 = vmatmul.mubr.bf16.gmra.mrb[0].mxu0 %v2348
      %v2495 = vpop.f32.mrb[0].mxu0
      %v2496 = vadd.f32 0.0, %v2495
      %v2497 = vpop.f32.mrb[0].mxu0
      %v2498 = vpop.f32.mrb[0].mxu0
      %v2499 = vadd.f32 0.0, %v2498
      %v2500 = vpop.f32.mrb[0].mxu0
      %2501 = vmatprep.mubr.bf16.mxu0 0
      %2502 = vmatmul.mubr.bf16.gmra.mrb[0].mxu0 %v2349
      %v2503 = vpop.f32.mrb[0].mxu0
      %v2504 = vadd.f32 0.0, %v2503
      %v2505 = vpop.f32.mrb[0].mxu0
      %v2506 = vpop.f32.mrb[0].mxu0
      %v2507 = vadd.f32 0.0, %v2506
      %v2508 = vpop.f32.mrb[0].mxu0
      %2509 = vmatprep.mubr.bf16.mxu0 0
      %2510 = vmatmul.mubr.bf16.gmra.mrb[0].mxu0 %v2350
      %v2511 = vpop.f32.mrb[0].mxu0
      %v2512 = vadd.f32 0.0, %v2511
      %v2513 = vpop.f32.mrb[0].mxu0
      %v2514 = vpop.f32.mrb[0].mxu0
      %v2515 = vadd.f32 0.0, %v2514
      %v2516 = vpop.f32.mrb[0].mxu0
      %2517 = vmatprep.mubr.bf16.mxu0 0
      %2518 = vmatmul.mubr.bf16.gmra.mrb[0].mxu0 %v2351
      %v2519 = vpop.f32.mrb[0].mxu0
      %v2520 = vadd.f32 0.0, %v2519
      %v2521 = vpop.f32.mrb[0].mxu0
      %v2522 = vpop.f32.mrb[0].mxu0
      %v2523 = vadd.f32 0.0, %v2522
      %v2524 = vpop.f32.mrb[0].mxu0
      %2525 = vmatprep.mubr.bf16.mxu0 0
      %2526 = vmatmul.mubr.bf16.gmra.mrb[0].mxu0 %v2352
      %v2527 = vpop.f32.mrb[0].mxu0
      %v2528 = vadd.f32 0.0, %v2527
      %v2529 = vpop.f32.mrb[0].mxu0
      %v2530 = vpop.f32.mrb[0].mxu0
      %v2531 = vadd.f32 0.0, %v2530
      %v2532 = vpop.f32.mrb[0].mxu0
      %2533 = vmatprep.mubr.bf16.mxu0 0
      %2534 = vmatmul.mubr.bf16.gmra.mrb[0].mxu0 %v2353
      %v2535 = vpop.f32.mrb[0].mxu0
      %v2536 = vadd.f32 0.0, %v2535
      %v2537 = vpop.f32.mrb[0].mxu0
      %v2538 = vpop.f32.mrb[0].mxu0
      %v2539 = vadd.f32 0.0, %v2538
      %v2540 = vpop.f32.mrb[0].mxu0
      %2541 = vmatprep.mubr.bf16.mxu0 0
      %2542 = vmatmul.mubr.bf16.gmra.mrb[0].mxu0 %v2354
      %v2543 = vpop.f32.mrb[0].mxu0
      %v2544 = vadd.f32 0.0, %v2543
      %v2545 = vpop.f32.mrb[0].mxu0
      %v2546 = vpop.f32.mrb[0].mxu0
      %v2547 = vadd.f32 0.0, %v2546
      %v2548 = vpop.f32.mrb[0].mxu0
      %2549 = vmatprep.mubr.bf16.mxu0 0
      %2550 = vmatmul.mubr.bf16.gmra.mrb[0].mxu0 %v2355
      %v2551 = vpop.f32.mrb[0].mxu0
      %v2552 = vadd.f32 0.0, %v2551
      %v2553 = vpop.f32.mrb[0].mxu0
      %v2554 = vpop.f32.mrb[0].mxu0
      %v2555 = vadd.f32 0.0, %v2554
      %v2556 = vpop.f32.mrb[0].mxu0
      %2557 = vmatprep.mubr.bf16.mxu0 0
      %2558 = vmatmul.mubr.bf16.gmra.mrb[0].mxu0 %v2356
      %v2559 = vpop.f32.mrb[0].mxu0
      %v2560 = vadd.f32 0.0, %v2559
      %v2561 = vpop.f32.mrb[0].mxu0
      %v2562 = vpop.f32.mrb[0].mxu0
      %v2563 = vadd.f32 0.0, %v2562
      %v2564 = vpop.f32.mrb[0].mxu0
      %2565 = vmatprep.mubr.bf16.mxu0 0
      %2566 = vmatmul.mubr.bf16.gmra.mrb[0].mxu0 %v2357
      %v2567 = vpop.f32.mrb[0].mxu0
      %v2568 = vadd.f32 0.0, %v2567
      %v2569 = vpop.f32.mrb[0].mxu0
      %v2570 = vpop.f32.mrb[0].mxu0
      %v2571 = vadd.f32 0.0, %v2570
      %v2572 = vpop.f32.mrb[0].mxu0
      %2573 = vmatprep.mubr.bf16.mxu0 0
      %2574 = vmatmul.mubr.bf16.gmra.mrb[0].mxu0 %v2358
      %v2575 = vpop.f32.mrb[0].mxu0
      %v2576 = vadd.f32 0.0, %v2575
      %v2577 = vpop.f32.mrb[0].mxu0
      %v2578 = vpop.f32.mrb[0].mxu0
      %v2579 = vadd.f32 0.0, %v2578
      %v2580 = vpop.f32.mrb[0].mxu0
      %2581 = vmatprep.mubr.bf16.mxu0 0
      %2582 = vmatmul.mubr.bf16.gmra.mrb[0].mxu0 %v2359
      %v2583 = vpop.f32.mrb[0].mxu0
      %v2584 = vadd.f32 0.0, %v2583
      %v2585 = vpop.f32.mrb[0].mxu0
      %v2586 = vpop.f32.mrb[0].mxu0
      %v2587 = vadd.f32 0.0, %v2586
      %v2588 = vpop.f32.mrb[0].mxu0
      %2589 = vmatprep.mubr.bf16.mxu0 0
      %2590 = vmatmul.mubr.bf16.gmra.mrb[0].mxu0 %v2360
      %v2591 = vpop.f32.mrb[0].mxu0
      %v2592 = vadd.f32 0.0, %v2591
      %v2593 = vpop.f32.mrb[0].mxu0
      %v2594 = vpop.f32.mrb[0].mxu0
      %v2595 = vadd.f32 0.0, %v2594
      %v2596 = vpop.f32.mrb[0].mxu0
      %2597 = vmatprep.mubr.bf16.mxu0 0
      %2598 = vmatmul.mubr.bf16.gmra.mrb[0].mxu0 %v2361
      %v2599 = vpop.f32.mrb[0].mxu0
      %v2600 = vadd.f32 0.0, %v2599
      %v2601 = vpop.f32.mrb[0].mxu0
      %v2602 = vpop.f32.mrb[0].mxu0
      %v2603 = vadd.f32 0.0, %v2602
      %v2604 = vpop.f32.mrb[0].mxu0
      %2605 = vmatprep.mubr.bf16.mxu0 0
      %2606 = vmatmul.mubr.bf16.gmra.mrb[0].mxu0 %v2362
      %v2607 = vpop.f32.mrb[0].mxu0
      %v2608 = vadd.f32 0.0, %v2607
      %v2609 = vpop.f32.mrb[0].mxu0
      %v2610 = vpop.f32.mrb[0].mxu0
      %v2611 = vadd.f32 0.0, %v2610
      %v2612 = vpop.f32.mrb[0].mxu0
      %2613 = vmatprep.mubr.bf16.mxu0 0
      %2614 = vmatmul.mubr.bf16.gmra.mrb[0].mxu0 %v2363
      %v2615 = vpop.f32.mrb[0].mxu0
      %v2616 = vadd.f32 0.0, %v2615
      %v2617 = vpop.f32.mrb[0].mxu0
      %v2618 = vpop.f32.mrb[0].mxu0
      %v2619 = vadd.f32 0.0, %v2618
      %v2620 = vpop.f32.mrb[0].mxu0
      %2621 = vdwg.mxu0
      %v2622 = vadd.f32 %v2364, %v2496
      %v2623 = vadd.f32 %v2365, %v2499
      %v2624 = vadd.f32 %v2366, %v2504
      %v2625 = vadd.f32 %v2367, %v2507
      %v2626 = vadd.f32 %v2368, %v2512
      %v2627 = vadd.f32 %v2369, %v2515
      %v2628 = vadd.f32 %v2370, %v2520
      %v2629 = vadd.f32 %v2371, %v2523
      %v2630 = vadd.f32 %v2372, %v2528
      %v2631 = vadd.f32 %v2373, %v2531
      %v2632 = vadd.f32 %v2374, %v2536
      %v2633 = vadd.f32 %v2375, %v2539
      %v2634 = vadd.f32 %v2376, %v2544
      %v2635 = vadd.f32 %v2377, %v2547
      %v2636 = vadd.f32 %v2378, %v2552
      %v2637 = vadd.f32 %v2379, %v2555
      %v2638 = vadd.f32 %v2380, %v2560
      %v2639 = vadd.f32 %v2381, %v2563
      %v2640 = vadd.f32 %v2382, %v2568
      %v2641 = vadd.f32 %v2383, %v2571
      %v2642 = vadd.f32 %v2384, %v2576
      %v2643 = vadd.f32 %v2385, %v2579
      %v2644 = vadd.f32 %v2386, %v2584
      %v2645 = vadd.f32 %v2387, %v2587
      %v2646 = vadd.f32 %v2388, %v2592
      %v2647 = vadd.f32 %v2389, %v2595
      %v2648 = vadd.f32 %v2390, %v2600
      %v2649 = vadd.f32 %v2391, %v2603
      %v2650 = vadd.f32 %v2392, %v2608
      %v2651 = vadd.f32 %v2393, %v2611
      %v2652 = vadd.f32 %v2394, %v2616
      %v2653 = vadd.f32 %v2395, %v2619
      %2654 = vst [vmem:[#allocation4] sm:$0xff] %v2622
      %2655 = vst [vmem:[#allocation4 + $0x8] sm:$0xff] %v2623
      %2656 = vst [vmem:[#allocation4 + $0x10] sm:$0xff] %v2624
      %2657 = vst [vmem:[#allocation4 + $0x18] sm:$0xff] %v2625
      %2658 = vst [vmem:[#allocation4 + $0x20] sm:$0xff] %v2626
      %2659 = vst [vmem:[#allocation4 + $0x28] sm:$0xff] %v2627
      %2660 = vst [vmem:[#allocation4 + $0x30] sm:$0xff] %v2628
      %2661 = vst [vmem:[#allocation4 + $0x38] sm:$0xff] %v2629
      %2662 = vst [vmem:[#allocation4 + $0x40] sm:$0xff] %v2630
      %2663 = vst [vmem:[#allocation4 + $0x48] sm:$0xff] %v2631
      %2664 = vst [vmem:[#allocation4 + $0x50] sm:$0xff] %v2632
      %2665 = vst [vmem:[#allocation4 + $0x58] sm:$0xff] %v2633
      %2666 = vst [vmem:[#allocation4 + $0x60] sm:$0xff] %v2634
      %2667 = vst [vmem:[#allocation4 + $0x68] sm:$0xff] %v2635
      %2668 = vst [vmem:[#allocation4 + $0x70] sm:$0xff] %v2636
      %2669 = vst [vmem:[#allocation4 + $0x78] sm:$0xff] %v2637
      %2670 = vst [vmem:[#allocation4 + $0x80] sm:$0xff] %v2638
      %2671 = vst [vmem:[#allocation4 + $0x88] sm:$0xff] %v2639
      %2672 = vst [vmem:[#allocation4 + $0x90] sm:$0xff] %v2640
      %2673 = vst [vmem:[#allocation4 + $0x98] sm:$0xff] %v2641
      %2674 = vst [vmem:[#allocation4 + $0xa0] sm:$0xff] %v2642
      %2675 = vst [vmem:[#allocation4 + $0xa8] sm:$0xff] %v2643
      %2676 = vst [vmem:[#allocation4 + $0xb0] sm:$0xff] %v2644
      %2677 = vst [vmem:[#allocation4 + $0xb8] sm:$0xff] %v2645
      %2678 = vst [vmem:[#allocation4 + $0xc0] sm:$0xff] %v2646
      %2679 = vst [vmem:[#allocation4 + $0xc8] sm:$0xff] %v2647
      %2680 = vst [vmem:[#allocation4 + $0xd0] sm:$0xff] %v2648
      %2681 = vst [vmem:[#allocation4 + $0xd8] sm:$0xff] %v2649
      %2682 = vst [vmem:[#allocation4 + $0xe0] sm:$0xff] %v2650
      %2683 = vst [vmem:[#allocation4 + $0xe8] sm:$0xff] %v2651
      %2684 = vst [vmem:[#allocation4 + $0xf0] sm:$0xff] %v2652
      %2685 = vst [vmem:[#allocation4 + $0xf8] sm:$0xff] %v2653
      %v2686 = vld [vmem:[%s772 + $0x9] sm:$0xff]
      %v2687 = vld [vmem:[%s772 + $0x11] sm:$0xff]
      %v2688 = vld [vmem:[%s772 + $0x29] sm:$0xff]
      %v2689 = vld [vmem:[%s772 + $0x31] sm:$0xff]
      %v2690 = vld [vmem:[%s772 + $0x49] sm:$0xff]
      %v2691 = vld [vmem:[%s772 + $0x51] sm:$0xff]
      %v2692 = vld [vmem:[%s772 + $0x69] sm:$0xff]
      %v2693 = vld [vmem:[%s772 + $0x71] sm:$0xff]
      %v2694 = vld [vmem:[%s772 + $0x89] sm:$0xff]
      %v2695 = vld [vmem:[%s772 + $0x91] sm:$0xff]
      %v2696 = vld [vmem:[%s772 + $0xa9] sm:$0xff]
      %v2697 = vld [vmem:[%s772 + $0xb1] sm:$0xff]
      %v2698 = vld [vmem:[%s772 + $0xc9] sm:$0xff]
      %v2699 = vld [vmem:[%s772 + $0xd1] sm:$0xff]
      %v2700 = vld [vmem:[%s772 + $0xe9] sm:$0xff]
      %v2701 = vld [vmem:[%s772 + $0xf1] sm:$0xff]
      %v2702 = vld [vmem:[%s772 + $0x109] sm:$0xff]
      %v2703 = vld [vmem:[%s772 + $0x111] sm:$0xff]
      %v2704 = vld [vmem:[%s772 + $0x129] sm:$0xff]
      %v2705 = vld [vmem:[%s772 + $0x131] sm:$0xff]
      %v2706 = vld [vmem:[%s772 + $0x149] sm:$0xff]
      %v2707 = vld [vmem:[%s772 + $0x151] sm:$0xff]
      %v2708 = vld [vmem:[%s772 + $0x169] sm:$0xff]
      %v2709 = vld [vmem:[%s772 + $0x171] sm:$0xff]
      %v2710 = vld [vmem:[%s772 + $0x189] sm:$0xff]
      %v2711 = vld [vmem:[%s772 + $0x191] sm:$0xff]
      %v2712 = vld [vmem:[%s772 + $0x1a9] sm:$0xff]
      %v2713 = vld [vmem:[%s772 + $0x1b1] sm:$0xff]
      %v2714 = vld [vmem:[%s772 + $0x1c9] sm:$0xff]
      %v2715 = vld [vmem:[%s772 + $0x1d1] sm:$0xff]
      %v2716 = vld [vmem:[%s772 + $0x1e9] sm:$0xff]
      %v2717 = vld [vmem:[%s772 + $0x1f1] sm:$0xff]
      %v2718 = vpack.c.bf16 %v2687, %v2686
      %v2719 = vpack.c.bf16 %v2689, %v2688
      %v2720 = vpack.c.bf16 %v2691, %v2690
      %v2721 = vpack.c.bf16 %v2693, %v2692
      %v2722 = vpack.c.bf16 %v2695, %v2694
      %v2723 = vpack.c.bf16 %v2697, %v2696
      %v2724 = vpack.c.bf16 %v2699, %v2698
      %v2725 = vpack.c.bf16 %v2701, %v2700
      %v2726 = vpack.c.bf16 %v2703, %v2702
      %v2727 = vpack.c.bf16 %v2705, %v2704
      %v2728 = vpack.c.bf16 %v2707, %v2706
      %v2729 = vpack.c.bf16 %v2709, %v2708
      %v2730 = vpack.c.bf16 %v2711, %v2710
      %v2731 = vpack.c.bf16 %v2713, %v2712
      %v2732 = vpack.c.bf16 %v2715, %v2714
      %v2733 = vpack.c.bf16 %v2717, %v2716
      %v2734 = vld [vmem:[#allocation4] sm:$0xff]
      %v2735 = vld [vmem:[#allocation4 + $0x8] sm:$0xff]
      %v2736 = vld [vmem:[#allocation4 + $0x10] sm:$0xff]
      %v2737 = vld [vmem:[#allocation4 + $0x18] sm:$0xff]
      %v2738 = vld [vmem:[#allocation4 + $0x20] sm:$0xff]
      %v2739 = vld [vmem:[#allocation4 + $0x28] sm:$0xff]
      %v2740 = vld [vmem:[#allocation4 + $0x30] sm:$0xff]
      %v2741 = vld [vmem:[#allocation4 + $0x38] sm:$0xff]
      %v2742 = vld [vmem:[#allocation4 + $0x40] sm:$0xff]
      %v2743 = vld [vmem:[#allocation4 + $0x48] sm:$0xff]
      %v2744 = vld [vmem:[#allocation4 + $0x50] sm:$0xff]
      %v2745 = vld [vmem:[#allocation4 + $0x58] sm:$0xff]
      %v2746 = vld [vmem:[#allocation4 + $0x60] sm:$0xff]
      %v2747 = vld [vmem:[#allocation4 + $0x68] sm:$0xff]
      %v2748 = vld [vmem:[#allocation4 + $0x70] sm:$0xff]
      %v2749 = vld [vmem:[#allocation4 + $0x78] sm:$0xff]
      %v2750 = vld [vmem:[#allocation4 + $0x80] sm:$0xff]
      %v2751 = vld [vmem:[#allocation4 + $0x88] sm:$0xff]
      %v2752 = vld [vmem:[#allocation4 + $0x90] sm:$0xff]
      %v2753 = vld [vmem:[#allocation4 + $0x98] sm:$0xff]
      %v2754 = vld [vmem:[#allocation4 + $0xa0] sm:$0xff]
      %v2755 = vld [vmem:[#allocation4 + $0xa8] sm:$0xff]
      %v2756 = vld [vmem:[#allocation4 + $0xb0] sm:$0xff]
      %v2757 = vld [vmem:[#allocation4 + $0xb8] sm:$0xff]
      %v2758 = vld [vmem:[#allocation4 + $0xc0] sm:$0xff]
      %v2759 = vld [vmem:[#allocation4 + $0xc8] sm:$0xff]
      %v2760 = vld [vmem:[#allocation4 + $0xd0] sm:$0xff]
      %v2761 = vld [vmem:[#allocation4 + $0xd8] sm:$0xff]
      %v2762 = vld [vmem:[#allocation4 + $0xe0] sm:$0xff]
      %v2763 = vld [vmem:[#allocation4 + $0xe8] sm:$0xff]
      %v2764 = vld [vmem:[#allocation4 + $0xf0] sm:$0xff]
      %v2765 = vld [vmem:[#allocation4 + $0xf8] sm:$0xff]
      %s2766 = scalar_lea.vmem %s3, 320
      %v2767 = vld [vmem:[%s2766] sm:$0xf]
      %v2768 = vld [vmem:[%s2766 + $0x4] sm:$0xf]
      %v2769 = vld [vmem:[%s2766 + $0x8] sm:$0xf]
      %v2770 = vld [vmem:[%s2766 + $0xc] sm:$0xf]
      %v2771 = vld [vmem:[%s2766 + $0x10] sm:$0xf]
      %v2772 = vld [vmem:[%s2766 + $0x14] sm:$0xf]
      %v2773 = vld [vmem:[%s2766 + $0x18] sm:$0xf]
      %v2774 = vld [vmem:[%s2766 + $0x1c] sm:$0xf]
      %v2775 = vld [vmem:[%s2766 + $0x20] sm:$0xf]
      %v2776 = vld [vmem:[%s2766 + $0x24] sm:$0xf]
      %v2777 = vld [vmem:[%s2766 + $0x28] sm:$0xf]
      %v2778 = vld [vmem:[%s2766 + $0x2c] sm:$0xf]
      %v2779 = vld [vmem:[%s2766 + $0x30] sm:$0xf]
      %v2780 = vld [vmem:[%s2766 + $0x34] sm:$0xf]
      %v2781 = vld [vmem:[%s2766 + $0x38] sm:$0xf]
      %v2782 = vld [vmem:[%s2766 + $0x3c] sm:$0xf]
      %v2799 = vunpack.c.l.b16 %v2767
      %v2800 = vunpack.c.l.b16 %v2768
      %v2801 = vunpack.c.l.b16 %v2769
      %v2802 = vunpack.c.l.b16 %v2770
      %v2803 = vunpack.c.l.b16 %v2771
      %v2804 = vunpack.c.l.b16 %v2772
      %v2805 = vunpack.c.l.b16 %v2773
      %v2806 = vunpack.c.l.b16 %v2774
      %v2807 = vunpack.c.l.b16 %v2775
      %v2808 = vunpack.c.l.b16 %v2776
      %v2809 = vunpack.c.l.b16 %v2777
      %v2810 = vunpack.c.l.b16 %v2778
      %v2811 = vunpack.c.l.b16 %v2779
      %v2812 = vunpack.c.l.b16 %v2780
      %v2813 = vunpack.c.l.b16 %v2781
      %v2814 = vunpack.c.l.b16 %v2782
      %v2815 = vpack.c.b16 %v2800, %v2799
      %v2816 = vpack.c.b16 %v2802, %v2801
      %v2817 = vpack.c.b16 %v2804, %v2803
      %v2818 = vpack.c.b16 %v2806, %v2805
      %v2819 = vpack.c.b16 %v2808, %v2807
      %v2820 = vpack.c.b16 %v2810, %v2809
      %v2821 = vpack.c.b16 %v2812, %v2811
      %v2822 = vpack.c.b16 %v2814, %v2813
      %2831 = vmatprep.subr.bf16.mxu0 0
      %2832 = vmatpush1.bf16.msra.mxu0 %v2815
      %2833 = vmatprep.subr.bf16.mxu0 0
      %2834 = vmatpush1.bf16.msra.mxu0 %v2816
      %2835 = vmatprep.subr.bf16.mxu0 0
      %2836 = vmatpush1.bf16.msra.mxu0 %v2817
      %2837 = vmatprep.subr.bf16.mxu0 0
      %2838 = vmatpush1.bf16.msra.mxu0 %v2818
      %2839 = vmatprep.subr.bf16.mxu0 0
      %2840 = vmatpush1.bf16.msra.mxu0 %v2819
      %2841 = vmatprep.subr.bf16.mxu0 0
      %2842 = vmatpush1.bf16.msra.mxu0 %v2820
      %2843 = vmatprep.subr.bf16.mxu0 0
      %2844 = vmatpush1.bf16.msra.mxu0 %v2821
      %2845 = vmatprep.subr.bf16.mxu0 0
      %2846 = vmatpush1.bf16.msra.mxu0 %v2822
      %2847 = vmatprep.subr.bf16.mxu0 0
      %2848 = vmatpush1.bf16.msra.mxu0 0
      %2849 = vmatprep.subr.bf16.mxu0 0
      %2850 = vmatpush1.bf16.msra.mxu0 0
      %2851 = vmatprep.subr.bf16.mxu0 0
      %2852 = vmatpush1.bf16.msra.mxu0 0
      %2853 = vmatprep.subr.bf16.mxu0 0
      %2854 = vmatpush1.bf16.msra.mxu0 0
      %2855 = vmatprep.subr.bf16.mxu0 0
      %2856 = vmatpush1.bf16.msra.mxu0 0
      %2857 = vmatprep.subr.bf16.mxu0 0
      %2858 = vmatpush1.bf16.msra.mxu0 0
      %2859 = vmatprep.subr.bf16.mxu0 0
      %2860 = vmatpush1.bf16.msra.mxu0 0
      %2861 = vmatprep.subr.bf16.mxu0 0
      %2862 = vmatpush1.bf16.msra.mxu0 0
      %2863 = vmatprep.mubr.bf16.mxu0 0
      %2864 = vmatmul.mubr.bf16.gmra.mrb[0].mxu0 %v2718
      %v2865 = vpop.f32.mrb[0].mxu0
      %v2866 = vadd.f32 0.0, %v2865
      %v2867 = vpop.f32.mrb[0].mxu0
      %v2868 = vpop.f32.mrb[0].mxu0
      %v2869 = vadd.f32 0.0, %v2868
      %v2870 = vpop.f32.mrb[0].mxu0
      %2871 = vmatprep.mubr.bf16.mxu0 0
      %2872 = vmatmul.mubr.bf16.gmra.mrb[0].mxu0 %v2719
      %v2873 = vpop.f32.mrb[0].mxu0
      %v2874 = vadd.f32 0.0, %v2873
      %v2875 = vpop.f32.mrb[0].mxu0
      %v2876 = vpop.f32.mrb[0].mxu0
      %v2877 = vadd.f32 0.0, %v2876
      %v2878 = vpop.f32.mrb[0].mxu0
      %2879 = vmatprep.mubr.bf16.mxu0 0
      %2880 = vmatmul.mubr.bf16.gmra.mrb[0].mxu0 %v2720
      %v2881 = vpop.f32.mrb[0].mxu0
      %v2882 = vadd.f32 0.0, %v2881
      %v2883 = vpop.f32.mrb[0].mxu0
      %v2884 = vpop.f32.mrb[0].mxu0
      %v2885 = vadd.f32 0.0, %v2884
      %v2886 = vpop.f32.mrb[0].mxu0
      %2887 = vmatprep.mubr.bf16.mxu0 0
      %2888 = vmatmul.mubr.bf16.gmra.mrb[0].mxu0 %v2721
      %v2889 = vpop.f32.mrb[0].mxu0
      %v2890 = vadd.f32 0.0, %v2889
      %v2891 = vpop.f32.mrb[0].mxu0
      %v2892 = vpop.f32.mrb[0].mxu0
      %v2893 = vadd.f32 0.0, %v2892
      %v2894 = vpop.f32.mrb[0].mxu0
      %2895 = vmatprep.mubr.bf16.mxu0 0
      %2896 = vmatmul.mubr.bf16.gmra.mrb[0].mxu0 %v2722
      %v2897 = vpop.f32.mrb[0].mxu0
      %v2898 = vadd.f32 0.0, %v2897
      %v2899 = vpop.f32.mrb[0].mxu0
      %v2900 = vpop.f32.mrb[0].mxu0
      %v2901 = vadd.f32 0.0, %v2900
      %v2902 = vpop.f32.mrb[0].mxu0
      %2903 = vmatprep.mubr.bf16.mxu0 0
      %2904 = vmatmul.mubr.bf16.gmra.mrb[0].mxu0 %v2723
      %v2905 = vpop.f32.mrb[0].mxu0
      %v2906 = vadd.f32 0.0, %v2905
      %v2907 = vpop.f32.mrb[0].mxu0
      %v2908 = vpop.f32.mrb[0].mxu0
      %v2909 = vadd.f32 0.0, %v2908
      %v2910 = vpop.f32.mrb[0].mxu0
      %2911 = vmatprep.mubr.bf16.mxu0 0
      %2912 = vmatmul.mubr.bf16.gmra.mrb[0].mxu0 %v2724
      %v2913 = vpop.f32.mrb[0].mxu0
      %v2914 = vadd.f32 0.0, %v2913
      %v2915 = vpop.f32.mrb[0].mxu0
      %v2916 = vpop.f32.mrb[0].mxu0
      %v2917 = vadd.f32 0.0, %v2916
      %v2918 = vpop.f32.mrb[0].mxu0
      %2919 = vmatprep.mubr.bf16.mxu0 0
      %2920 = vmatmul.mubr.bf16.gmra.mrb[0].mxu0 %v2725
      %v2921 = vpop.f32.mrb[0].mxu0
      %v2922 = vadd.f32 0.0, %v2921
      %v2923 = vpop.f32.mrb[0].mxu0
      %v2924 = vpop.f32.mrb[0].mxu0
      %v2925 = vadd.f32 0.0, %v2924
      %v2926 = vpop.f32.mrb[0].mxu0
      %2927 = vmatprep.mubr.bf16.mxu0 0
      %2928 = vmatmul.mubr.bf16.gmra.mrb[0].mxu0 %v2726
      %v2929 = vpop.f32.mrb[0].mxu0
      %v2930 = vadd.f32 0.0, %v2929
      %v2931 = vpop.f32.mrb[0].mxu0
      %v2932 = vpop.f32.mrb[0].mxu0
      %v2933 = vadd.f32 0.0, %v2932
      %v2934 = vpop.f32.mrb[0].mxu0
      %2935 = vmatprep.mubr.bf16.mxu0 0
      %2936 = vmatmul.mubr.bf16.gmra.mrb[0].mxu0 %v2727
      %v2937 = vpop.f32.mrb[0].mxu0
      %v2938 = vadd.f32 0.0, %v2937
      %v2939 = vpop.f32.mrb[0].mxu0
      %v2940 = vpop.f32.mrb[0].mxu0
      %v2941 = vadd.f32 0.0, %v2940
      %v2942 = vpop.f32.mrb[0].mxu0
      %2943 = vmatprep.mubr.bf16.mxu0 0
      %2944 = vmatmul.mubr.bf16.gmra.mrb[0].mxu0 %v2728
      %v2945 = vpop.f32.mrb[0].mxu0
      %v2946 = vadd.f32 0.0, %v2945
      %v2947 = vpop.f32.mrb[0].mxu0
      %v2948 = vpop.f32.mrb[0].mxu0
      %v2949 = vadd.f32 0.0, %v2948
      %v2950 = vpop.f32.mrb[0].mxu0
      %2951 = vmatprep.mubr.bf16.mxu0 0
      %2952 = vmatmul.mubr.bf16.gmra.mrb[0].mxu0 %v2729
      %v2953 = vpop.f32.mrb[0].mxu0
      %v2954 = vadd.f32 0.0, %v2953
      %v2955 = vpop.f32.mrb[0].mxu0
      %v2956 = vpop.f32.mrb[0].mxu0
      %v2957 = vadd.f32 0.0, %v2956
      %v2958 = vpop.f32.mrb[0].mxu0
      %2959 = vmatprep.mubr.bf16.mxu0 0
      %2960 = vmatmul.mubr.bf16.gmra.mrb[0].mxu0 %v2730
      %v2961 = vpop.f32.mrb[0].mxu0
      %v2962 = vadd.f32 0.0, %v2961
      %v2963 = vpop.f32.mrb[0].mxu0
      %v2964 = vpop.f32.mrb[0].mxu0
      %v2965 = vadd.f32 0.0, %v2964
      %v2966 = vpop.f32.mrb[0].mxu0
      %2967 = vmatprep.mubr.bf16.mxu0 0
      %2968 = vmatmul.mubr.bf16.gmra.mrb[0].mxu0 %v2731
      %v2969 = vpop.f32.mrb[0].mxu0
      %v2970 = vadd.f32 0.0, %v2969
      %v2971 = vpop.f32.mrb[0].mxu0
      %v2972 = vpop.f32.mrb[0].mxu0
      %v2973 = vadd.f32 0.0, %v2972
      %v2974 = vpop.f32.mrb[0].mxu0
      %2975 = vmatprep.mubr.bf16.mxu0 0
      %2976 = vmatmul.mubr.bf16.gmra.mrb[0].mxu0 %v2732
      %v2977 = vpop.f32.mrb[0].mxu0
      %v2978 = vadd.f32 0.0, %v2977
      %v2979 = vpop.f32.mrb[0].mxu0
      %v2980 = vpop.f32.mrb[0].mxu0
      %v2981 = vadd.f32 0.0, %v2980
      %v2982 = vpop.f32.mrb[0].mxu0
      %2983 = vmatprep.mubr.bf16.mxu0 0
      %2984 = vmatmul.mubr.bf16.gmra.mrb[0].mxu0 %v2733
      %v2985 = vpop.f32.mrb[0].mxu0
      %v2986 = vadd.f32 0.0, %v2985
      %v2987 = vpop.f32.mrb[0].mxu0
      %v2988 = vpop.f32.mrb[0].mxu0
      %v2989 = vadd.f32 0.0, %v2988
      %v2990 = vpop.f32.mrb[0].mxu0
      %2991 = vdwg.mxu0
      %v2992 = vadd.f32 %v2734, %v2866
      %v2993 = vadd.f32 %v2735, %v2869
      %v2994 = vadd.f32 %v2736, %v2874
      %v2995 = vadd.f32 %v2737, %v2877
      %v2996 = vadd.f32 %v2738, %v2882
      %v2997 = vadd.f32 %v2739, %v2885
      %v2998 = vadd.f32 %v2740, %v2890
      %v2999 = vadd.f32 %v2741, %v2893
      %v3000 = vadd.f32 %v2742, %v2898
      %v3001 = vadd.f32 %v2743, %v2901
      %v3002 = vadd.f32 %v2744, %v2906
      %v3003 = vadd.f32 %v2745, %v2909
      %v3004 = vadd.f32 %v2746, %v2914
      %v3005 = vadd.f32 %v2747, %v2917
      %v3006 = vadd.f32 %v2748, %v2922
      %v3007 = vadd.f32 %v2749, %v2925
      %v3008 = vadd.f32 %v2750, %v2930
      %v3009 = vadd.f32 %v2751, %v2933
      %v3010 = vadd.f32 %v2752, %v2938
      %v3011 = vadd.f32 %v2753, %v2941
      %v3012 = vadd.f32 %v2754, %v2946
      %v3013 = vadd.f32 %v2755, %v2949
      %v3014 = vadd.f32 %v2756, %v2954
      %v3015 = vadd.f32 %v2757, %v2957
      %v3016 = vadd.f32 %v2758, %v2962
      %v3017 = vadd.f32 %v2759, %v2965
      %v3018 = vadd.f32 %v2760, %v2970
      %v3019 = vadd.f32 %v2761, %v2973
      %v3020 = vadd.f32 %v2762, %v2978
      %v3021 = vadd.f32 %v2763, %v2981
      %v3022 = vadd.f32 %v2764, %v2986
      %v3023 = vadd.f32 %v2765, %v2989
      %3024 = vst [vmem:[#allocation4] sm:$0xff] %v2992
      %3025 = vst [vmem:[#allocation4 + $0x8] sm:$0xff] %v2993
      %3026 = vst [vmem:[#allocation4 + $0x10] sm:$0xff] %v2994
      %3027 = vst [vmem:[#allocation4 + $0x18] sm:$0xff] %v2995
      %3028 = vst [vmem:[#allocation4 + $0x20] sm:$0xff] %v2996
      %3029 = vst [vmem:[#allocation4 + $0x28] sm:$0xff] %v2997
      %3030 = vst [vmem:[#allocation4 + $0x30] sm:$0xff] %v2998
      %3031 = vst [vmem:[#allocation4 + $0x38] sm:$0xff] %v2999
      %3032 = vst [vmem:[#allocation4 + $0x40] sm:$0xff] %v3000
      %3033 = vst [vmem:[#allocation4 + $0x48] sm:$0xff] %v3001
      %3034 = vst [vmem:[#allocation4 + $0x50] sm:$0xff] %v3002
      %3035 = vst [vmem:[#allocation4 + $0x58] sm:$0xff] %v3003
      %3036 = vst [vmem:[#allocation4 + $0x60] sm:$0xff] %v3004
      %3037 = vst [vmem:[#allocation4 + $0x68] sm:$0xff] %v3005
      %3038 = vst [vmem:[#allocation4 + $0x70] sm:$0xff] %v3006
      %3039 = vst [vmem:[#allocation4 + $0x78] sm:$0xff] %v3007
      %3040 = vst [vmem:[#allocation4 + $0x80] sm:$0xff] %v3008
      %3041 = vst [vmem:[#allocation4 + $0x88] sm:$0xff] %v3009
      %3042 = vst [vmem:[#allocation4 + $0x90] sm:$0xff] %v3010
      %3043 = vst [vmem:[#allocation4 + $0x98] sm:$0xff] %v3011
      %3044 = vst [vmem:[#allocation4 + $0xa0] sm:$0xff] %v3012
      %3045 = vst [vmem:[#allocation4 + $0xa8] sm:$0xff] %v3013
      %3046 = vst [vmem:[#allocation4 + $0xb0] sm:$0xff] %v3014
      %3047 = vst [vmem:[#allocation4 + $0xb8] sm:$0xff] %v3015
      %3048 = vst [vmem:[#allocation4 + $0xc0] sm:$0xff] %v3016
      %3049 = vst [vmem:[#allocation4 + $0xc8] sm:$0xff] %v3017
      %3050 = vst [vmem:[#allocation4 + $0xd0] sm:$0xff] %v3018
      %3051 = vst [vmem:[#allocation4 + $0xd8] sm:$0xff] %v3019
      %3052 = vst [vmem:[#allocation4 + $0xe0] sm:$0xff] %v3020
      %3053 = vst [vmem:[#allocation4 + $0xe8] sm:$0xff] %v3021
      %3054 = vst [vmem:[#allocation4 + $0xf0] sm:$0xff] %v3022
      %3055 = vst [vmem:[#allocation4 + $0xf8] sm:$0xff] %v3023
      %s3056 = scalar_lea.vmem [#allocation2], 64
      %v3057 = vld [vmem:[%s3056 + $0x7] sm:$0xff]
      %v3058 = vld [vmem:[%s3056 + $0xf] sm:$0xff]
      %v3059 = vld [vmem:[%s3056 + $0x27] sm:$0xff]
      %v3060 = vld [vmem:[%s3056 + $0x2f] sm:$0xff]
      %v3061 = vld [vmem:[%s3056 + $0x47] sm:$0xff]
      %v3062 = vld [vmem:[%s3056 + $0x4f] sm:$0xff]
      %v3063 = vld [vmem:[%s3056 + $0x67] sm:$0xff]
      %v3064 = vld [vmem:[%s3056 + $0x6f] sm:$0xff]
      %v3065 = vld [vmem:[%s3056 + $0x87] sm:$0xff]
      %v3066 = vld [vmem:[%s3056 + $0x8f] sm:$0xff]
      %v3067 = vld [vmem:[%s3056 + $0xa7] sm:$0xff]
      %v3068 = vld [vmem:[%s3056 + $0xaf] sm:$0xff]
      %v3069 = vld [vmem:[%s3056 + $0xc7] sm:$0xff]
      %v3070 = vld [vmem:[%s3056 + $0xcf] sm:$0xff]
      %v3071 = vld [vmem:[%s3056 + $0xe7] sm:$0xff]
      %v3072 = vld [vmem:[%s3056 + $0xef] sm:$0xff]
      %v3073 = vld [vmem:[%s3056 + $0x107] sm:$0xff]
      %v3074 = vld [vmem:[%s3056 + $0x10f] sm:$0xff]
      %v3075 = vld [vmem:[%s3056 + $0x127] sm:$0xff]
      %v3076 = vld [vmem:[%s3056 + $0x12f] sm:$0xff]
      %v3077 = vld [vmem:[%s3056 + $0x147] sm:$0xff]
      %v3078 = vld [vmem:[%s3056 + $0x14f] sm:$0xff]
      %v3079 = vld [vmem:[%s3056 + $0x167] sm:$0xff]
      %v3080 = vld [vmem:[%s3056 + $0x16f] sm:$0xff]
      %v3081 = vld [vmem:[%s3056 + $0x187] sm:$0xff]
      %v3082 = vld [vmem:[%s3056 + $0x18f] sm:$0xff]
      %v3083 = vld [vmem:[%s3056 + $0x1a7] sm:$0xff]
      %v3084 = vld [vmem:[%s3056 + $0x1af] sm:$0xff]
      %v3085 = vld [vmem:[%s3056 + $0x1c7] sm:$0xff]
      %v3086 = vld [vmem:[%s3056 + $0x1cf] sm:$0xff]
      %v3087 = vld [vmem:[%s3056 + $0x1e7] sm:$0xff]
      %v3088 = vld [vmem:[%s3056 + $0x1ef] sm:$0xff]
      %v3089 = vpack.c.bf16 %v3058, %v3057
      %v3090 = vpack.c.bf16 %v3060, %v3059
      %v3091 = vpack.c.bf16 %v3062, %v3061
      %v3092 = vpack.c.bf16 %v3064, %v3063
      %v3093 = vpack.c.bf16 %v3066, %v3065
      %v3094 = vpack.c.bf16 %v3068, %v3067
      %v3095 = vpack.c.bf16 %v3070, %v3069
      %v3096 = vpack.c.bf16 %v3072, %v3071
      %v3097 = vpack.c.bf16 %v3074, %v3073
      %v3098 = vpack.c.bf16 %v3076, %v3075
      %v3099 = vpack.c.bf16 %v3078, %v3077
      %v3100 = vpack.c.bf16 %v3080, %v3079
      %v3101 = vpack.c.bf16 %v3082, %v3081
      %v3102 = vpack.c.bf16 %v3084, %v3083
      %v3103 = vpack.c.bf16 %v3086, %v3085
      %v3104 = vpack.c.bf16 %v3088, %v3087
      %v3105 = vld [vmem:[#allocation4] sm:$0xff]
      %v3106 = vld [vmem:[#allocation4 + $0x8] sm:$0xff]
      %v3107 = vld [vmem:[#allocation4 + $0x10] sm:$0xff]
      %v3108 = vld [vmem:[#allocation4 + $0x18] sm:$0xff]
      %v3109 = vld [vmem:[#allocation4 + $0x20] sm:$0xff]
      %v3110 = vld [vmem:[#allocation4 + $0x28] sm:$0xff]
      %v3111 = vld [vmem:[#allocation4 + $0x30] sm:$0xff]
      %v3112 = vld [vmem:[#allocation4 + $0x38] sm:$0xff]
      %v3113 = vld [vmem:[#allocation4 + $0x40] sm:$0xff]
      %v3114 = vld [vmem:[#allocation4 + $0x48] sm:$0xff]
      %v3115 = vld [vmem:[#allocation4 + $0x50] sm:$0xff]
      %v3116 = vld [vmem:[#allocation4 + $0x58] sm:$0xff]
      %v3117 = vld [vmem:[#allocation4 + $0x60] sm:$0xff]
      %v3118 = vld [vmem:[#allocation4 + $0x68] sm:$0xff]
      %v3119 = vld [vmem:[#allocation4 + $0x70] sm:$0xff]
      %v3120 = vld [vmem:[#allocation4 + $0x78] sm:$0xff]
      %v3121 = vld [vmem:[#allocation4 + $0x80] sm:$0xff]
      %v3122 = vld [vmem:[#allocation4 + $0x88] sm:$0xff]
      %v3123 = vld [vmem:[#allocation4 + $0x90] sm:$0xff]
      %v3124 = vld [vmem:[#allocation4 + $0x98] sm:$0xff]
      %v3125 = vld [vmem:[#allocation4 + $0xa0] sm:$0xff]
      %v3126 = vld [vmem:[#allocation4 + $0xa8] sm:$0xff]
      %v3127 = vld [vmem:[#allocation4 + $0xb0] sm:$0xff]
      %v3128 = vld [vmem:[#allocation4 + $0xb8] sm:$0xff]
      %v3129 = vld [vmem:[#allocation4 + $0xc0] sm:$0xff]
      %v3130 = vld [vmem:[#allocation4 + $0xc8] sm:$0xff]
      %v3131 = vld [vmem:[#allocation4 + $0xd0] sm:$0xff]
      %v3132 = vld [vmem:[#allocation4 + $0xd8] sm:$0xff]
      %v3133 = vld [vmem:[#allocation4 + $0xe0] sm:$0xff]
      %v3134 = vld [vmem:[#allocation4 + $0xe8] sm:$0xff]
      %v3135 = vld [vmem:[#allocation4 + $0xf0] sm:$0xff]
      %v3136 = vld [vmem:[#allocation4 + $0xf8] sm:$0xff]
      %s3137 = scalar_lea.vmem %s3, 384
      %v3138 = vld [vmem:[%s3137] sm:$0xf]
      %v3139 = vld [vmem:[%s3137 + $0x4] sm:$0xf]
      %v3140 = vld [vmem:[%s3137 + $0x8] sm:$0xf]
      %v3141 = vld [vmem:[%s3137 + $0xc] sm:$0xf]
      %v3142 = vld [vmem:[%s3137 + $0x10] sm:$0xf]
      %v3143 = vld [vmem:[%s3137 + $0x14] sm:$0xf]
      %v3144 = vld [vmem:[%s3137 + $0x18] sm:$0xf]
      %v3145 = vld [vmem:[%s3137 + $0x1c] sm:$0xf]
      %v3146 = vld [vmem:[%s3137 + $0x20] sm:$0xf]
      %v3147 = vld [vmem:[%s3137 + $0x24] sm:$0xf]
      %v3148 = vld [vmem:[%s3137 + $0x28] sm:$0xf]
      %v3149 = vld [vmem:[%s3137 + $0x2c] sm:$0xf]
      %v3150 = vld [vmem:[%s3137 + $0x30] sm:$0xf]
      %v3151 = vld [vmem:[%s3137 + $0x34] sm:$0xf]
      %v3152 = vld [vmem:[%s3137 + $0x38] sm:$0xf]
      %v3153 = vld [vmem:[%s3137 + $0x3c] sm:$0xf]
      %v3170 = vunpack.c.l.b16 %v3138
      %v3171 = vunpack.c.l.b16 %v3139
      %v3172 = vunpack.c.l.b16 %v3140
      %v3173 = vunpack.c.l.b16 %v3141
      %v3174 = vunpack.c.l.b16 %v3142
      %v3175 = vunpack.c.l.b16 %v3143
      %v3176 = vunpack.c.l.b16 %v3144
      %v3177 = vunpack.c.l.b16 %v3145
      %v3178 = vunpack.c.l.b16 %v3146
      %v3179 = vunpack.c.l.b16 %v3147
      %v3180 = vunpack.c.l.b16 %v3148
      %v3181 = vunpack.c.l.b16 %v3149
      %v3182 = vunpack.c.l.b16 %v3150
      %v3183 = vunpack.c.l.b16 %v3151
      %v3184 = vunpack.c.l.b16 %v3152
      %v3185 = vunpack.c.l.b16 %v3153
      %v3186 = vpack.c.b16 %v3171, %v3170
      %v3187 = vpack.c.b16 %v3173, %v3172
      %v3188 = vpack.c.b16 %v3175, %v3174
      %v3189 = vpack.c.b16 %v3177, %v3176
      %v3190 = vpack.c.b16 %v3179, %v3178
      %v3191 = vpack.c.b16 %v3181, %v3180
      %v3192 = vpack.c.b16 %v3183, %v3182
      %v3193 = vpack.c.b16 %v3185, %v3184
      %3202 = vmatprep.subr.bf16.mxu0 0
      %3203 = vmatpush1.bf16.msra.mxu0 %v3186
      %3204 = vmatprep.subr.bf16.mxu0 0
      %3205 = vmatpush1.bf16.msra.mxu0 %v3187
      %3206 = vmatprep.subr.bf16.mxu0 0
      %3207 = vmatpush1.bf16.msra.mxu0 %v3188
      %3208 = vmatprep.subr.bf16.mxu0 0
      %3209 = vmatpush1.bf16.msra.mxu0 %v3189
      %3210 = vmatprep.subr.bf16.mxu0 0
      %3211 = vmatpush1.bf16.msra.mxu0 %v3190
      %3212 = vmatprep.subr.bf16.mxu0 0
      %3213 = vmatpush1.bf16.msra.mxu0 %v3191
      %3214 = vmatprep.subr.bf16.mxu0 0
      %3215 = vmatpush1.bf16.msra.mxu0 %v3192
      %3216 = vmatprep.subr.bf16.mxu0 0
      %3217 = vmatpush1.bf16.msra.mxu0 %v3193
      %3218 = vmatprep.subr.bf16.mxu0 0
      %3219 = vmatpush1.bf16.msra.mxu0 0
      %3220 = vmatprep.subr.bf16.mxu0 0
      %3221 = vmatpush1.bf16.msra.mxu0 0
      %3222 = vmatprep.subr.bf16.mxu0 0
      %3223 = vmatpush1.bf16.msra.mxu0 0
      %3224 = vmatprep.subr.bf16.mxu0 0
      %3225 = vmatpush1.bf16.msra.mxu0 0
      %3226 = vmatprep.subr.bf16.mxu0 0
      %3227 = vmatpush1.bf16.msra.mxu0 0
      %3228 = vmatprep.subr.bf16.mxu0 0
      %3229 = vmatpush1.bf16.msra.mxu0 0
      %3230 = vmatprep.subr.bf16.mxu0 0
      %3231 = vmatpush1.bf16.msra.mxu0 0
      %3232 = vmatprep.subr.bf16.mxu0 0
      %3233 = vmatpush1.bf16.msra.mxu0 0
      %3234 = vmatprep.mubr.bf16.mxu0 0
      %3235 = vmatmul.mubr.bf16.gmra.mrb[0].mxu0 %v3089
      %v3236 = vpop.f32.mrb[0].mxu0
      %v3237 = vadd.f32 0.0, %v3236
      %v3238 = vpop.f32.mrb[0].mxu0
      %v3239 = vpop.f32.mrb[0].mxu0
      %v3240 = vadd.f32 0.0, %v3239
      %v3241 = vpop.f32.mrb[0].mxu0
      %3242 = vmatprep.mubr.bf16.mxu0 0
      %3243 = vmatmul.mubr.bf16.gmra.mrb[0].mxu0 %v3090
      %v3244 = vpop.f32.mrb[0].mxu0
      %v3245 = vadd.f32 0.0, %v3244
      %v3246 = vpop.f32.mrb[0].mxu0
      %v3247 = vpop.f32.mrb[0].mxu0
      %v3248 = vadd.f32 0.0, %v3247
      %v3249 = vpop.f32.mrb[0].mxu0
      %3250 = vmatprep.mubr.bf16.mxu0 0
      %3251 = vmatmul.mubr.bf16.gmra.mrb[0].mxu0 %v3091
      %v3252 = vpop.f32.mrb[0].mxu0
      %v3253 = vadd.f32 0.0, %v3252
      %v3254 = vpop.f32.mrb[0].mxu0
      %v3255 = vpop.f32.mrb[0].mxu0
      %v3256 = vadd.f32 0.0, %v3255
      %v3257 = vpop.f32.mrb[0].mxu0
      %3258 = vmatprep.mubr.bf16.mxu0 0
      %3259 = vmatmul.mubr.bf16.gmra.mrb[0].mxu0 %v3092
      %v3260 = vpop.f32.mrb[0].mxu0
      %v3261 = vadd.f32 0.0, %v3260
      %v3262 = vpop.f32.mrb[0].mxu0
      %v3263 = vpop.f32.mrb[0].mxu0
      %v3264 = vadd.f32 0.0, %v3263
      %v3265 = vpop.f32.mrb[0].mxu0
      %3266 = vmatprep.mubr.bf16.mxu0 0
      %3267 = vmatmul.mubr.bf16.gmra.mrb[0].mxu0 %v3093
      %v3268 = vpop.f32.mrb[0].mxu0
      %v3269 = vadd.f32 0.0, %v3268
      %v3270 = vpop.f32.mrb[0].mxu0
      %v3271 = vpop.f32.mrb[0].mxu0
      %v3272 = vadd.f32 0.0, %v3271
      %v3273 = vpop.f32.mrb[0].mxu0
      %3274 = vmatprep.mubr.bf16.mxu0 0
      %3275 = vmatmul.mubr.bf16.gmra.mrb[0].mxu0 %v3094
      %v3276 = vpop.f32.mrb[0].mxu0
      %v3277 = vadd.f32 0.0, %v3276
      %v3278 = vpop.f32.mrb[0].mxu0
      %v3279 = vpop.f32.mrb[0].mxu0
      %v3280 = vadd.f32 0.0, %v3279
      %v3281 = vpop.f32.mrb[0].mxu0
      %3282 = vmatprep.mubr.bf16.mxu0 0
      %3283 = vmatmul.mubr.bf16.gmra.mrb[0].mxu0 %v3095
      %v3284 = vpop.f32.mrb[0].mxu0
      %v3285 = vadd.f32 0.0, %v3284
      %v3286 = vpop.f32.mrb[0].mxu0
      %v3287 = vpop.f32.mrb[0].mxu0
      %v3288 = vadd.f32 0.0, %v3287
      %v3289 = vpop.f32.mrb[0].mxu0
      %3290 = vmatprep.mubr.bf16.mxu0 0
      %3291 = vmatmul.mubr.bf16.gmra.mrb[0].mxu0 %v3096
      %v3292 = vpop.f32.mrb[0].mxu0
      %v3293 = vadd.f32 0.0, %v3292
      %v3294 = vpop.f32.mrb[0].mxu0
      %v3295 = vpop.f32.mrb[0].mxu0
      %v3296 = vadd.f32 0.0, %v3295
      %v3297 = vpop.f32.mrb[0].mxu0
      %3298 = vmatprep.mubr.bf16.mxu0 0
      %3299 = vmatmul.mubr.bf16.gmra.mrb[0].mxu0 %v3097
      %v3300 = vpop.f32.mrb[0].mxu0
      %v3301 = vadd.f32 0.0, %v3300
      %v3302 = vpop.f32.mrb[0].mxu0
      %v3303 = vpop.f32.mrb[0].mxu0
      %v3304 = vadd.f32 0.0, %v3303
      %v3305 = vpop.f32.mrb[0].mxu0
      %3306 = vmatprep.mubr.bf16.mxu0 0
      %3307 = vmatmul.mubr.bf16.gmra.mrb[0].mxu0 %v3098
      %v3308 = vpop.f32.mrb[0].mxu0
      %v3309 = vadd.f32 0.0, %v3308
      %v3310 = vpop.f32.mrb[0].mxu0
      %v3311 = vpop.f32.mrb[0].mxu0
      %v3312 = vadd.f32 0.0, %v3311
      %v3313 = vpop.f32.mrb[0].mxu0
      %3314 = vmatprep.mubr.bf16.mxu0 0
      %3315 = vmatmul.mubr.bf16.gmra.mrb[0].mxu0 %v3099
      %v3316 = vpop.f32.mrb[0].mxu0
      %v3317 = vadd.f32 0.0, %v3316
      %v3318 = vpop.f32.mrb[0].mxu0
      %v3319 = vpop.f32.mrb[0].mxu0
      %v3320 = vadd.f32 0.0, %v3319
      %v3321 = vpop.f32.mrb[0].mxu0
      %3322 = vmatprep.mubr.bf16.mxu0 0
      %3323 = vmatmul.mubr.bf16.gmra.mrb[0].mxu0 %v3100
      %v3324 = vpop.f32.mrb[0].mxu0
      %v3325 = vadd.f32 0.0, %v3324
      %v3326 = vpop.f32.mrb[0].mxu0
      %v3327 = vpop.f32.mrb[0].mxu0
      %v3328 = vadd.f32 0.0, %v3327
      %v3329 = vpop.f32.mrb[0].mxu0
      %3330 = vmatprep.mubr.bf16.mxu0 0
      %3331 = vmatmul.mubr.bf16.gmra.mrb[0].mxu0 %v3101
      %v3332 = vpop.f32.mrb[0].mxu0
      %v3333 = vadd.f32 0.0, %v3332
      %v3334 = vpop.f32.mrb[0].mxu0
      %v3335 = vpop.f32.mrb[0].mxu0
      %v3336 = vadd.f32 0.0, %v3335
      %v3337 = vpop.f32.mrb[0].mxu0
      %3338 = vmatprep.mubr.bf16.mxu0 0
      %3339 = vmatmul.mubr.bf16.gmra.mrb[0].mxu0 %v3102
      %v3340 = vpop.f32.mrb[0].mxu0
      %v3341 = vadd.f32 0.0, %v3340
      %v3342 = vpop.f32.mrb[0].mxu0
      %v3343 = vpop.f32.mrb[0].mxu0
      %v3344 = vadd.f32 0.0, %v3343
      %v3345 = vpop.f32.mrb[0].mxu0
      %3346 = vmatprep.mubr.bf16.mxu0 0
      %3347 = vmatmul.mubr.bf16.gmra.mrb[0].mxu0 %v3103
      %v3348 = vpop.f32.mrb[0].mxu0
      %v3349 = vadd.f32 0.0, %v3348
      %v3350 = vpop.f32.mrb[0].mxu0
      %v3351 = vpop.f32.mrb[0].mxu0
      %v3352 = vadd.f32 0.0, %v3351
      %v3353 = vpop.f32.mrb[0].mxu0
      %3354 = vmatprep.mubr.bf16.mxu0 0
      %3355 = vmatmul.mubr.bf16.gmra.mrb[0].mxu0 %v3104
      %v3356 = vpop.f32.mrb[0].mxu0
      %v3357 = vadd.f32 0.0, %v3356
      %v3358 = vpop.f32.mrb[0].mxu0
      %v3359 = vpop.f32.mrb[0].mxu0
      %v3360 = vadd.f32 0.0, %v3359
      %v3361 = vpop.f32.mrb[0].mxu0
      %3362 = vdwg.mxu0
      %v3363 = vadd.f32 %v3105, %v3237
      %v3364 = vadd.f32 %v3106, %v3240
      %v3365 = vadd.f32 %v3107, %v3245
      %v3366 = vadd.f32 %v3108, %v3248
      %v3367 = vadd.f32 %v3109, %v3253
      %v3368 = vadd.f32 %v3110, %v3256
      %v3369 = vadd.f32 %v3111, %v3261
      %v3370 = vadd.f32 %v3112, %v3264
      %v3371 = vadd.f32 %v3113, %v3269
      %v3372 = vadd.f32 %v3114, %v3272
      %v3373 = vadd.f32 %v3115, %v3277
      %v3374 = vadd.f32 %v3116, %v3280
      %v3375 = vadd.f32 %v3117, %v3285
      %v3376 = vadd.f32 %v3118, %v3288
      %v3377 = vadd.f32 %v3119, %v3293
      %v3378 = vadd.f32 %v3120, %v3296
      %v3379 = vadd.f32 %v3121, %v3301
      %v3380 = vadd.f32 %v3122, %v3304
      %v3381 = vadd.f32 %v3123, %v3309
      %v3382 = vadd.f32 %v3124, %v3312
      %v3383 = vadd.f32 %v3125, %v3317
      %v3384 = vadd.f32 %v3126, %v3320
      %v3385 = vadd.f32 %v3127, %v3325
      %v3386 = vadd.f32 %v3128, %v3328
      %v3387 = vadd.f32 %v3129, %v3333
      %v3388 = vadd.f32 %v3130, %v3336
      %v3389 = vadd.f32 %v3131, %v3341
      %v3390 = vadd.f32 %v3132, %v3344
      %v3391 = vadd.f32 %v3133, %v3349
      %v3392 = vadd.f32 %v3134, %v3352
      %v3393 = vadd.f32 %v3135, %v3357
      %v3394 = vadd.f32 %v3136, %v3360
      %3395 = vst [vmem:[#allocation4] sm:$0xff] %v3363
      %3396 = vst [vmem:[#allocation4 + $0x8] sm:$0xff] %v3364
      %3397 = vst [vmem:[#allocation4 + $0x10] sm:$0xff] %v3365
      %3398 = vst [vmem:[#allocation4 + $0x18] sm:$0xff] %v3366
      %3399 = vst [vmem:[#allocation4 + $0x20] sm:$0xff] %v3367
      %3400 = vst [vmem:[#allocation4 + $0x28] sm:$0xff] %v3368
      %3401 = vst [vmem:[#allocation4 + $0x30] sm:$0xff] %v3369
      %3402 = vst [vmem:[#allocation4 + $0x38] sm:$0xff] %v3370
      %3403 = vst [vmem:[#allocation4 + $0x40] sm:$0xff] %v3371
      %3404 = vst [vmem:[#allocation4 + $0x48] sm:$0xff] %v3372
      %3405 = vst [vmem:[#allocation4 + $0x50] sm:$0xff] %v3373
      %3406 = vst [vmem:[#allocation4 + $0x58] sm:$0xff] %v3374
      %3407 = vst [vmem:[#allocation4 + $0x60] sm:$0xff] %v3375
      %3408 = vst [vmem:[#allocation4 + $0x68] sm:$0xff] %v3376
      %3409 = vst [vmem:[#allocation4 + $0x70] sm:$0xff] %v3377
      %3410 = vst [vmem:[#allocation4 + $0x78] sm:$0xff] %v3378
      %3411 = vst [vmem:[#allocation4 + $0x80] sm:$0xff] %v3379
      %3412 = vst [vmem:[#allocation4 + $0x88] sm:$0xff] %v3380
      %3413 = vst [vmem:[#allocation4 + $0x90] sm:$0xff] %v3381
      %3414 = vst [vmem:[#allocation4 + $0x98] sm:$0xff] %v3382
      %3415 = vst [vmem:[#allocation4 + $0xa0] sm:$0xff] %v3383
      %3416 = vst [vmem:[#allocation4 + $0xa8] sm:$0xff] %v3384
      %3417 = vst [vmem:[#allocation4 + $0xb0] sm:$0xff] %v3385
      %3418 = vst [vmem:[#allocation4 + $0xb8] sm:$0xff] %v3386
      %3419 = vst [vmem:[#allocation4 + $0xc0] sm:$0xff] %v3387
      %3420 = vst [vmem:[#allocation4 + $0xc8] sm:$0xff] %v3388
      %3421 = vst [vmem:[#allocation4 + $0xd0] sm:$0xff] %v3389
      %3422 = vst [vmem:[#allocation4 + $0xd8] sm:$0xff] %v3390
      %3423 = vst [vmem:[#allocation4 + $0xe0] sm:$0xff] %v3391
      %3424 = vst [vmem:[#allocation4 + $0xe8] sm:$0xff] %v3392
      %3425 = vst [vmem:[#allocation4 + $0xf0] sm:$0xff] %v3393
      %3426 = vst [vmem:[#allocation4 + $0xf8] sm:$0xff] %v3394
      %v3427 = vld [vmem:[%s3056 + $0x8] sm:$0xff]
      %v3428 = vld [vmem:[%s3056 + $0x10] sm:$0xff]
      %v3429 = vld [vmem:[%s3056 + $0x28] sm:$0xff]
      %v3430 = vld [vmem:[%s3056 + $0x30] sm:$0xff]
      %v3431 = vld [vmem:[%s3056 + $0x48] sm:$0xff]
      %v3432 = vld [vmem:[%s3056 + $0x50] sm:$0xff]
      %v3433 = vld [vmem:[%s3056 + $0x68] sm:$0xff]
      %v3434 = vld [vmem:[%s3056 + $0x70] sm:$0xff]
      %v3435 = vld [vmem:[%s3056 + $0x88] sm:$0xff]
      %v3436 = vld [vmem:[%s3056 + $0x90] sm:$0xff]
      %v3437 = vld [vmem:[%s3056 + $0xa8] sm:$0xff]
      %v3438 = vld [vmem:[%s3056 + $0xb0] sm:$0xff]
      %v3439 = vld [vmem:[%s3056 + $0xc8] sm:$0xff]
      %v3440 = vld [vmem:[%s3056 + $0xd0] sm:$0xff]
      %v3441 = vld [vmem:[%s3056 + $0xe8] sm:$0xff]
      %v3442 = vld [vmem:[%s3056 + $0xf0] sm:$0xff]
      %v3443 = vld [vmem:[%s3056 + $0x108] sm:$0xff]
      %v3444 = vld [vmem:[%s3056 + $0x110] sm:$0xff]
      %v3445 = vld [vmem:[%s3056 + $0x128] sm:$0xff]
      %v3446 = vld [vmem:[%s3056 + $0x130] sm:$0xff]
      %v3447 = vld [vmem:[%s3056 + $0x148] sm:$0xff]
      %v3448 = vld [vmem:[%s3056 + $0x150] sm:$0xff]
      %v3449 = vld [vmem:[%s3056 + $0x168] sm:$0xff]
      %v3450 = vld [vmem:[%s3056 + $0x170] sm:$0xff]
      %v3451 = vld [vmem:[%s3056 + $0x188] sm:$0xff]
      %v3452 = vld [vmem:[%s3056 + $0x190] sm:$0xff]
      %v3453 = vld [vmem:[%s3056 + $0x1a8] sm:$0xff]
      %v3454 = vld [vmem:[%s3056 + $0x1b0] sm:$0xff]
      %v3455 = vld [vmem:[%s3056 + $0x1c8] sm:$0xff]
      %v3456 = vld [vmem:[%s3056 + $0x1d0] sm:$0xff]
      %v3457 = vld [vmem:[%s3056 + $0x1e8] sm:$0xff]
      %v3458 = vld [vmem:[%s3056 + $0x1f0] sm:$0xff]
      %v3459 = vpack.c.bf16 %v3428, %v3427
      %v3460 = vpack.c.bf16 %v3430, %v3429
      %v3461 = vpack.c.bf16 %v3432, %v3431
      %v3462 = vpack.c.bf16 %v3434, %v3433
      %v3463 = vpack.c.bf16 %v3436, %v3435
      %v3464 = vpack.c.bf16 %v3438, %v3437
      %v3465 = vpack.c.bf16 %v3440, %v3439
      %v3466 = vpack.c.bf16 %v3442, %v3441
      %v3467 = vpack.c.bf16 %v3444, %v3443
      %v3468 = vpack.c.bf16 %v3446, %v3445
      %v3469 = vpack.c.bf16 %v3448, %v3447
      %v3470 = vpack.c.bf16 %v3450, %v3449
      %v3471 = vpack.c.bf16 %v3452, %v3451
      %v3472 = vpack.c.bf16 %v3454, %v3453
      %v3473 = vpack.c.bf16 %v3456, %v3455
      %v3474 = vpack.c.bf16 %v3458, %v3457
      %v3475 = vld [vmem:[#allocation4] sm:$0xff]
      %v3476 = vld [vmem:[#allocation4 + $0x8] sm:$0xff]
      %v3477 = vld [vmem:[#allocation4 + $0x10] sm:$0xff]
      %v3478 = vld [vmem:[#allocation4 + $0x18] sm:$0xff]
      %v3479 = vld [vmem:[#allocation4 + $0x20] sm:$0xff]
      %v3480 = vld [vmem:[#allocation4 + $0x28] sm:$0xff]
      %v3481 = vld [vmem:[#allocation4 + $0x30] sm:$0xff]
      %v3482 = vld [vmem:[#allocation4 + $0x38] sm:$0xff]
      %v3483 = vld [vmem:[#allocation4 + $0x40] sm:$0xff]
      %v3484 = vld [vmem:[#allocation4 + $0x48] sm:$0xff]
      %v3485 = vld [vmem:[#allocation4 + $0x50] sm:$0xff]
      %v3486 = vld [vmem:[#allocation4 + $0x58] sm:$0xff]
      %v3487 = vld [vmem:[#allocation4 + $0x60] sm:$0xff]
      %v3488 = vld [vmem:[#allocation4 + $0x68] sm:$0xff]
      %v3489 = vld [vmem:[#allocation4 + $0x70] sm:$0xff]
      %v3490 = vld [vmem:[#allocation4 + $0x78] sm:$0xff]
      %v3491 = vld [vmem:[#allocation4 + $0x80] sm:$0xff]
      %v3492 = vld [vmem:[#allocation4 + $0x88] sm:$0xff]
      %v3493 = vld [vmem:[#allocation4 + $0x90] sm:$0xff]
      %v3494 = vld [vmem:[#allocation4 + $0x98] sm:$0xff]
      %v3495 = vld [vmem:[#allocation4 + $0xa0] sm:$0xff]
      %v3496 = vld [vmem:[#allocation4 + $0xa8] sm:$0xff]
      %v3497 = vld [vmem:[#allocation4 + $0xb0] sm:$0xff]
      %v3498 = vld [vmem:[#allocation4 + $0xb8] sm:$0xff]
      %v3499 = vld [vmem:[#allocation4 + $0xc0] sm:$0xff]
      %v3500 = vld [vmem:[#allocation4 + $0xc8] sm:$0xff]
      %v3501 = vld [vmem:[#allocation4 + $0xd0] sm:$0xff]
      %v3502 = vld [vmem:[#allocation4 + $0xd8] sm:$0xff]
      %v3503 = vld [vmem:[#allocation4 + $0xe0] sm:$0xff]
      %v3504 = vld [vmem:[#allocation4 + $0xe8] sm:$0xff]
      %v3505 = vld [vmem:[#allocation4 + $0xf0] sm:$0xff]
      %v3506 = vld [vmem:[#allocation4 + $0xf8] sm:$0xff]
      %s3507 = scalar_lea.vmem %s3, 448
      %v3508 = vld [vmem:[%s3507] sm:$0xf]
      %v3509 = vld [vmem:[%s3507 + $0x4] sm:$0xf]
      %v3510 = vld [vmem:[%s3507 + $0x8] sm:$0xf]
      %v3511 = vld [vmem:[%s3507 + $0xc] sm:$0xf]
      %v3512 = vld [vmem:[%s3507 + $0x10] sm:$0xf]
      %v3513 = vld [vmem:[%s3507 + $0x14] sm:$0xf]
      %v3514 = vld [vmem:[%s3507 + $0x18] sm:$0xf]
      %v3515 = vld [vmem:[%s3507 + $0x1c] sm:$0xf]
      %v3516 = vld [vmem:[%s3507 + $0x20] sm:$0xf]
      %v3517 = vld [vmem:[%s3507 + $0x24] sm:$0xf]
      %v3518 = vld [vmem:[%s3507 + $0x28] sm:$0xf]
      %v3519 = vld [vmem:[%s3507 + $0x2c] sm:$0xf]
      %v3520 = vld [vmem:[%s3507 + $0x30] sm:$0xf]
      %v3521 = vld [vmem:[%s3507 + $0x34] sm:$0xf]
      %v3522 = vld [vmem:[%s3507 + $0x38] sm:$0xf]
      %v3523 = vld [vmem:[%s3507 + $0x3c] sm:$0xf]
      %v3540 = vunpack.c.l.b16 %v3508
      %v3541 = vunpack.c.l.b16 %v3509
      %v3542 = vunpack.c.l.b16 %v3510
      %v3543 = vunpack.c.l.b16 %v3511
      %v3544 = vunpack.c.l.b16 %v3512
      %v3545 = vunpack.c.l.b16 %v3513
      %v3546 = vunpack.c.l.b16 %v3514
      %v3547 = vunpack.c.l.b16 %v3515
      %v3548 = vunpack.c.l.b16 %v3516
      %v3549 = vunpack.c.l.b16 %v3517
      %v3550 = vunpack.c.l.b16 %v3518
      %v3551 = vunpack.c.l.b16 %v3519
      %v3552 = vunpack.c.l.b16 %v3520
      %v3553 = vunpack.c.l.b16 %v3521
      %v3554 = vunpack.c.l.b16 %v3522
      %v3555 = vunpack.c.l.b16 %v3523
      %v3556 = vpack.c.b16 %v3541, %v3540
      %v3557 = vpack.c.b16 %v3543, %v3542
      %v3558 = vpack.c.b16 %v3545, %v3544
      %v3559 = vpack.c.b16 %v3547, %v3546
      %v3560 = vpack.c.b16 %v3549, %v3548
      %v3561 = vpack.c.b16 %v3551, %v3550
      %v3562 = vpack.c.b16 %v3553, %v3552
      %v3563 = vpack.c.b16 %v3555, %v3554
      %3572 = vmatprep.subr.bf16.mxu0 0
      %3573 = vmatpush1.bf16.msra.mxu0 %v3556
      %3574 = vmatprep.subr.bf16.mxu0 0
      %3575 = vmatpush1.bf16.msra.mxu0 %v3557
      %3576 = vmatprep.subr.bf16.mxu0 0
      %3577 = vmatpush1.bf16.msra.mxu0 %v3558
      %3578 = vmatprep.subr.bf16.mxu0 0
      %3579 = vmatpush1.bf16.msra.mxu0 %v3559
      %3580 = vmatprep.subr.bf16.mxu0 0
      %3581 = vmatpush1.bf16.msra.mxu0 %v3560
      %3582 = vmatprep.subr.bf16.mxu0 0
      %3583 = vmatpush1.bf16.msra.mxu0 %v3561
      %3584 = vmatprep.subr.bf16.mxu0 0
      %3585 = vmatpush1.bf16.msra.mxu0 %v3562
      %3586 = vmatprep.subr.bf16.mxu0 0
      %3587 = vmatpush1.bf16.msra.mxu0 %v3563
      %3588 = vmatprep.subr.bf16.mxu0 0
      %3589 = vmatpush1.bf16.msra.mxu0 0
      %3590 = vmatprep.subr.bf16.mxu0 0
      %3591 = vmatpush1.bf16.msra.mxu0 0
      %3592 = vmatprep.subr.bf16.mxu0 0
      %3593 = vmatpush1.bf16.msra.mxu0 0
      %3594 = vmatprep.subr.bf16.mxu0 0
      %3595 = vmatpush1.bf16.msra.mxu0 0
      %3596 = vmatprep.subr.bf16.mxu0 0
      %3597 = vmatpush1.bf16.msra.mxu0 0
      %3598 = vmatprep.subr.bf16.mxu0 0
      %3599 = vmatpush1.bf16.msra.mxu0 0
      %3600 = vmatprep.subr.bf16.mxu0 0
      %3601 = vmatpush1.bf16.msra.mxu0 0
      %3602 = vmatprep.subr.bf16.mxu0 0
      %3603 = vmatpush1.bf16.msra.mxu0 0
      %3604 = vmatprep.mubr.bf16.mxu0 0
      %3605 = vmatmul.mubr.bf16.gmra.mrb[0].mxu0 %v3459
      %v3606 = vpop.f32.mrb[0].mxu0
      %v3607 = vadd.f32 0.0, %v3606
      %v3608 = vpop.f32.mrb[0].mxu0
      %v3609 = vpop.f32.mrb[0].mxu0
      %v3610 = vadd.f32 0.0, %v3609
      %v3611 = vpop.f32.mrb[0].mxu0
      %3612 = vmatprep.mubr.bf16.mxu0 0
      %3613 = vmatmul.mubr.bf16.gmra.mrb[0].mxu0 %v3460
      %v3614 = vpop.f32.mrb[0].mxu0
      %v3615 = vadd.f32 0.0, %v3614
      %v3616 = vpop.f32.mrb[0].mxu0
      %v3617 = vpop.f32.mrb[0].mxu0
      %v3618 = vadd.f32 0.0, %v3617
      %v3619 = vpop.f32.mrb[0].mxu0
      %3620 = vmatprep.mubr.bf16.mxu0 0
      %3621 = vmatmul.mubr.bf16.gmra.mrb[0].mxu0 %v3461
      %v3622 = vpop.f32.mrb[0].mxu0
      %v3623 = vadd.f32 0.0, %v3622
      %v3624 = vpop.f32.mrb[0].mxu0
      %v3625 = vpop.f32.mrb[0].mxu0
      %v3626 = vadd.f32 0.0, %v3625
      %v3627 = vpop.f32.mrb[0].mxu0
      %3628 = vmatprep.mubr.bf16.mxu0 0
      %3629 = vmatmul.mubr.bf16.gmra.mrb[0].mxu0 %v3462
      %v3630 = vpop.f32.mrb[0].mxu0
      %v3631 = vadd.f32 0.0, %v3630
      %v3632 = vpop.f32.mrb[0].mxu0
      %v3633 = vpop.f32.mrb[0].mxu0
      %v3634 = vadd.f32 0.0, %v3633
      %v3635 = vpop.f32.mrb[0].mxu0
      %3636 = vmatprep.mubr.bf16.mxu0 0
      %3637 = vmatmul.mubr.bf16.gmra.mrb[0].mxu0 %v3463
      %v3638 = vpop.f32.mrb[0].mxu0
      %v3639 = vadd.f32 0.0, %v3638
      %v3640 = vpop.f32.mrb[0].mxu0
      %v3641 = vpop.f32.mrb[0].mxu0
      %v3642 = vadd.f32 0.0, %v3641
      %v3643 = vpop.f32.mrb[0].mxu0
      %3644 = vmatprep.mubr.bf16.mxu0 0
      %3645 = vmatmul.mubr.bf16.gmra.mrb[0].mxu0 %v3464
      %v3646 = vpop.f32.mrb[0].mxu0
      %v3647 = vadd.f32 0.0, %v3646
      %v3648 = vpop.f32.mrb[0].mxu0
      %v3649 = vpop.f32.mrb[0].mxu0
      %v3650 = vadd.f32 0.0, %v3649
      %v3651 = vpop.f32.mrb[0].mxu0
      %3652 = vmatprep.mubr.bf16.mxu0 0
      %3653 = vmatmul.mubr.bf16.gmra.mrb[0].mxu0 %v3465
      %v3654 = vpop.f32.mrb[0].mxu0
      %v3655 = vadd.f32 0.0, %v3654
      %v3656 = vpop.f32.mrb[0].mxu0
      %v3657 = vpop.f32.mrb[0].mxu0
      %v3658 = vadd.f32 0.0, %v3657
      %v3659 = vpop.f32.mrb[0].mxu0
      %3660 = vmatprep.mubr.bf16.mxu0 0
      %3661 = vmatmul.mubr.bf16.gmra.mrb[0].mxu0 %v3466
      %v3662 = vpop.f32.mrb[0].mxu0
      %v3663 = vadd.f32 0.0, %v3662
      %v3664 = vpop.f32.mrb[0].mxu0
      %v3665 = vpop.f32.mrb[0].mxu0
      %v3666 = vadd.f32 0.0, %v3665
      %v3667 = vpop.f32.mrb[0].mxu0
      %3668 = vmatprep.mubr.bf16.mxu0 0
      %3669 = vmatmul.mubr.bf16.gmra.mrb[0].mxu0 %v3467
      %v3670 = vpop.f32.mrb[0].mxu0
      %v3671 = vadd.f32 0.0, %v3670
      %v3672 = vpop.f32.mrb[0].mxu0
      %v3673 = vpop.f32.mrb[0].mxu0
      %v3674 = vadd.f32 0.0, %v3673
      %v3675 = vpop.f32.mrb[0].mxu0
      %3676 = vmatprep.mubr.bf16.mxu0 0
      %3677 = vmatmul.mubr.bf16.gmra.mrb[0].mxu0 %v3468
      %v3678 = vpop.f32.mrb[0].mxu0
      %v3679 = vadd.f32 0.0, %v3678
      %v3680 = vpop.f32.mrb[0].mxu0
      %v3681 = vpop.f32.mrb[0].mxu0
      %v3682 = vadd.f32 0.0, %v3681
      %v3683 = vpop.f32.mrb[0].mxu0
      %3684 = vmatprep.mubr.bf16.mxu0 0
      %3685 = vmatmul.mubr.bf16.gmra.mrb[0].mxu0 %v3469
      %v3686 = vpop.f32.mrb[0].mxu0
      %v3687 = vadd.f32 0.0, %v3686
      %v3688 = vpop.f32.mrb[0].mxu0
      %v3689 = vpop.f32.mrb[0].mxu0
      %v3690 = vadd.f32 0.0, %v3689
      %v3691 = vpop.f32.mrb[0].mxu0
      %3692 = vmatprep.mubr.bf16.mxu0 0
      %3693 = vmatmul.mubr.bf16.gmra.mrb[0].mxu0 %v3470
      %v3694 = vpop.f32.mrb[0].mxu0
      %v3695 = vadd.f32 0.0, %v3694
      %v3696 = vpop.f32.mrb[0].mxu0
      %v3697 = vpop.f32.mrb[0].mxu0
      %v3698 = vadd.f32 0.0, %v3697
      %v3699 = vpop.f32.mrb[0].mxu0
      %3700 = vmatprep.mubr.bf16.mxu0 0
      %3701 = vmatmul.mubr.bf16.gmra.mrb[0].mxu0 %v3471
      %v3702 = vpop.f32.mrb[0].mxu0
      %v3703 = vadd.f32 0.0, %v3702
      %v3704 = vpop.f32.mrb[0].mxu0
      %v3705 = vpop.f32.mrb[0].mxu0
      %v3706 = vadd.f32 0.0, %v3705
      %v3707 = vpop.f32.mrb[0].mxu0
      %3708 = vmatprep.mubr.bf16.mxu0 0
      %3709 = vmatmul.mubr.bf16.gmra.mrb[0].mxu0 %v3472
      %v3710 = vpop.f32.mrb[0].mxu0
      %v3711 = vadd.f32 0.0, %v3710
      %v3712 = vpop.f32.mrb[0].mxu0
      %v3713 = vpop.f32.mrb[0].mxu0
      %v3714 = vadd.f32 0.0, %v3713
      %v3715 = vpop.f32.mrb[0].mxu0
      %3716 = vmatprep.mubr.bf16.mxu0 0
      %3717 = vmatmul.mubr.bf16.gmra.mrb[0].mxu0 %v3473
      %v3718 = vpop.f32.mrb[0].mxu0
      %v3719 = vadd.f32 0.0, %v3718
      %v3720 = vpop.f32.mrb[0].mxu0
      %v3721 = vpop.f32.mrb[0].mxu0
      %v3722 = vadd.f32 0.0, %v3721
      %v3723 = vpop.f32.mrb[0].mxu0
      %3724 = vmatprep.mubr.bf16.mxu0 0
      %3725 = vmatmul.mubr.bf16.gmra.mrb[0].mxu0 %v3474
      %v3726 = vpop.f32.mrb[0].mxu0
      %v3727 = vadd.f32 0.0, %v3726
      %v3728 = vpop.f32.mrb[0].mxu0
      %v3729 = vpop.f32.mrb[0].mxu0
      %v3730 = vadd.f32 0.0, %v3729
      %v3731 = vpop.f32.mrb[0].mxu0
      %3732 = vdwg.mxu0
      %v3733 = vadd.f32 %v3475, %v3607
      %v3734 = vadd.f32 %v3476, %v3610
      %v3735 = vadd.f32 %v3477, %v3615
      %v3736 = vadd.f32 %v3478, %v3618
      %v3737 = vadd.f32 %v3479, %v3623
      %v3738 = vadd.f32 %v3480, %v3626
      %v3739 = vadd.f32 %v3481, %v3631
      %v3740 = vadd.f32 %v3482, %v3634
      %v3741 = vadd.f32 %v3483, %v3639
      %v3742 = vadd.f32 %v3484, %v3642
      %v3743 = vadd.f32 %v3485, %v3647
      %v3744 = vadd.f32 %v3486, %v3650
      %v3745 = vadd.f32 %v3487, %v3655
      %v3746 = vadd.f32 %v3488, %v3658
      %v3747 = vadd.f32 %v3489, %v3663
      %v3748 = vadd.f32 %v3490, %v3666
      %v3749 = vadd.f32 %v3491, %v3671
      %v3750 = vadd.f32 %v3492, %v3674
      %v3751 = vadd.f32 %v3493, %v3679
      %v3752 = vadd.f32 %v3494, %v3682
      %v3753 = vadd.f32 %v3495, %v3687
      %v3754 = vadd.f32 %v3496, %v3690
      %v3755 = vadd.f32 %v3497, %v3695
      %v3756 = vadd.f32 %v3498, %v3698
      %v3757 = vadd.f32 %v3499, %v3703
      %v3758 = vadd.f32 %v3500, %v3706
      %v3759 = vadd.f32 %v3501, %v3711
      %v3760 = vadd.f32 %v3502, %v3714
      %v3761 = vadd.f32 %v3503, %v3719
      %v3762 = vadd.f32 %v3504, %v3722
      %v3763 = vadd.f32 %v3505, %v3727
      %v3764 = vadd.f32 %v3506, %v3730
      %3765 = vst [vmem:[#allocation4] sm:$0xff] %v3733
      %3766 = vst [vmem:[#allocation4 + $0x8] sm:$0xff] %v3734
      %3767 = vst [vmem:[#allocation4 + $0x10] sm:$0xff] %v3735
      %3768 = vst [vmem:[#allocation4 + $0x18] sm:$0xff] %v3736
      %3769 = vst [vmem:[#allocation4 + $0x20] sm:$0xff] %v3737
      %3770 = vst [vmem:[#allocation4 + $0x28] sm:$0xff] %v3738
      %3771 = vst [vmem:[#allocation4 + $0x30] sm:$0xff] %v3739
      %3772 = vst [vmem:[#allocation4 + $0x38] sm:$0xff] %v3740
      %3773 = vst [vmem:[#allocation4 + $0x40] sm:$0xff] %v3741
      %3774 = vst [vmem:[#allocation4 + $0x48] sm:$0xff] %v3742
      %3775 = vst [vmem:[#allocation4 + $0x50] sm:$0xff] %v3743
      %3776 = vst [vmem:[#allocation4 + $0x58] sm:$0xff] %v3744
      %3777 = vst [vmem:[#allocation4 + $0x60] sm:$0xff] %v3745
      %3778 = vst [vmem:[#allocation4 + $0x68] sm:$0xff] %v3746
      %3779 = vst [vmem:[#allocation4 + $0x70] sm:$0xff] %v3747
      %3780 = vst [vmem:[#allocation4 + $0x78] sm:$0xff] %v3748
      %3781 = vst [vmem:[#allocation4 + $0x80] sm:$0xff] %v3749
      %3782 = vst [vmem:[#allocation4 + $0x88] sm:$0xff] %v3750
      %3783 = vst [vmem:[#allocation4 + $0x90] sm:$0xff] %v3751
      %3784 = vst [vmem:[#allocation4 + $0x98] sm:$0xff] %v3752
      %3785 = vst [vmem:[#allocation4 + $0xa0] sm:$0xff] %v3753
      %3786 = vst [vmem:[#allocation4 + $0xa8] sm:$0xff] %v3754
      %3787 = vst [vmem:[#allocation4 + $0xb0] sm:$0xff] %v3755
      %3788 = vst [vmem:[#allocation4 + $0xb8] sm:$0xff] %v3756
      %3789 = vst [vmem:[#allocation4 + $0xc0] sm:$0xff] %v3757
      %3790 = vst [vmem:[#allocation4 + $0xc8] sm:$0xff] %v3758
      %3791 = vst [vmem:[#allocation4 + $0xd0] sm:$0xff] %v3759
      %3792 = vst [vmem:[#allocation4 + $0xd8] sm:$0xff] %v3760
      %3793 = vst [vmem:[#allocation4 + $0xe0] sm:$0xff] %v3761
      %3794 = vst [vmem:[#allocation4 + $0xe8] sm:$0xff] %v3762
      %3795 = vst [vmem:[#allocation4 + $0xf0] sm:$0xff] %v3763
      %3796 = vst [vmem:[#allocation4 + $0xf8] sm:$0xff] %v3764
      %v3797 = vld [vmem:[%s3056 + $0x9] sm:$0xff]
      %v3798 = vld [vmem:[%s3056 + $0x11] sm:$0xff]
      %v3799 = vld [vmem:[%s3056 + $0x29] sm:$0xff]
      %v3800 = vld [vmem:[%s3056 + $0x31] sm:$0xff]
      %v3801 = vld [vmem:[%s3056 + $0x49] sm:$0xff]
      %v3802 = vld [vmem:[%s3056 + $0x51] sm:$0xff]
      %v3803 = vld [vmem:[%s3056 + $0x69] sm:$0xff]
      %v3804 = vld [vmem:[%s3056 + $0x71] sm:$0xff]
      %v3805 = vld [vmem:[%s3056 + $0x89] sm:$0xff]
      %v3806 = vld [vmem:[%s3056 + $0x91] sm:$0xff]
      %v3807 = vld [vmem:[%s3056 + $0xa9] sm:$0xff]
      %v3808 = vld [vmem:[%s3056 + $0xb1] sm:$0xff]
      %v3809 = vld [vmem:[%s3056 + $0xc9] sm:$0xff]
      %v3810 = vld [vmem:[%s3056 + $0xd1] sm:$0xff]
      %v3811 = vld [vmem:[%s3056 + $0xe9] sm:$0xff]
      %v3812 = vld [vmem:[%s3056 + $0xf1] sm:$0xff]
      %v3813 = vld [vmem:[%s3056 + $0x109] sm:$0xff]
      %v3814 = vld [vmem:[%s3056 + $0x111] sm:$0xff]
      %v3815 = vld [vmem:[%s3056 + $0x129] sm:$0xff]
      %v3816 = vld [vmem:[%s3056 + $0x131] sm:$0xff]
      %v3817 = vld [vmem:[%s3056 + $0x149] sm:$0xff]
      %v3818 = vld [vmem:[%s3056 + $0x151] sm:$0xff]
      %v3819 = vld [vmem:[%s3056 + $0x169] sm:$0xff]
      %v3820 = vld [vmem:[%s3056 + $0x171] sm:$0xff]
      %v3821 = vld [vmem:[%s3056 + $0x189] sm:$0xff]
      %v3822 = vld [vmem:[%s3056 + $0x191] sm:$0xff]
      %v3823 = vld [vmem:[%s3056 + $0x1a9] sm:$0xff]
      %v3824 = vld [vmem:[%s3056 + $0x1b1] sm:$0xff]
      %v3825 = vld [vmem:[%s3056 + $0x1c9] sm:$0xff]
      %v3826 = vld [vmem:[%s3056 + $0x1d1] sm:$0xff]
      %v3827 = vld [vmem:[%s3056 + $0x1e9] sm:$0xff]
      %v3828 = vld [vmem:[%s3056 + $0x1f1] sm:$0xff]
      %v3829 = vpack.c.bf16 %v3798, %v3797
      %v3830 = vpack.c.bf16 %v3800, %v3799
      %v3831 = vpack.c.bf16 %v3802, %v3801
      %v3832 = vpack.c.bf16 %v3804, %v3803
      %v3833 = vpack.c.bf16 %v3806, %v3805
      %v3834 = vpack.c.bf16 %v3808, %v3807
      %v3835 = vpack.c.bf16 %v3810, %v3809
      %v3836 = vpack.c.bf16 %v3812, %v3811
      %v3837 = vpack.c.bf16 %v3814, %v3813
      %v3838 = vpack.c.bf16 %v3816, %v3815
      %v3839 = vpack.c.bf16 %v3818, %v3817
      %v3840 = vpack.c.bf16 %v3820, %v3819
      %v3841 = vpack.c.bf16 %v3822, %v3821
      %v3842 = vpack.c.bf16 %v3824, %v3823
      %v3843 = vpack.c.bf16 %v3826, %v3825
      %v3844 = vpack.c.bf16 %v3828, %v3827
      %v3845 = vld [vmem:[#allocation4] sm:$0xff]
      %v3846 = vld [vmem:[#allocation4 + $0x8] sm:$0xff]
      %v3847 = vld [vmem:[#allocation4 + $0x10] sm:$0xff]
      %v3848 = vld [vmem:[#allocation4 + $0x18] sm:$0xff]
      %v3849 = vld [vmem:[#allocation4 + $0x20] sm:$0xff]
      %v3850 = vld [vmem:[#allocation4 + $0x28] sm:$0xff]
      %v3851 = vld [vmem:[#allocation4 + $0x30] sm:$0xff]
      %v3852 = vld [vmem:[#allocation4 + $0x38] sm:$0xff]
      %v3853 = vld [vmem:[#allocation4 + $0x40] sm:$0xff]
      %v3854 = vld [vmem:[#allocation4 + $0x48] sm:$0xff]
      %v3855 = vld [vmem:[#allocation4 + $0x50] sm:$0xff]
      %v3856 = vld [vmem:[#allocation4 + $0x58] sm:$0xff]
      %v3857 = vld [vmem:[#allocation4 + $0x60] sm:$0xff]
      %v3858 = vld [vmem:[#allocation4 + $0x68] sm:$0xff]
      %v3859 = vld [vmem:[#allocation4 + $0x70] sm:$0xff]
      %v3860 = vld [vmem:[#allocation4 + $0x78] sm:$0xff]
      %v3861 = vld [vmem:[#allocation4 + $0x80] sm:$0xff]
      %v3862 = vld [vmem:[#allocation4 + $0x88] sm:$0xff]
      %v3863 = vld [vmem:[#allocation4 + $0x90] sm:$0xff]
      %v3864 = vld [vmem:[#allocation4 + $0x98] sm:$0xff]
      %v3865 = vld [vmem:[#allocation4 + $0xa0] sm:$0xff]
      %v3866 = vld [vmem:[#allocation4 + $0xa8] sm:$0xff]
      %v3867 = vld [vmem:[#allocation4 + $0xb0] sm:$0xff]
      %v3868 = vld [vmem:[#allocation4 + $0xb8] sm:$0xff]
      %v3869 = vld [vmem:[#allocation4 + $0xc0] sm:$0xff]
      %v3870 = vld [vmem:[#allocation4 + $0xc8] sm:$0xff]
      %v3871 = vld [vmem:[#allocation4 + $0xd0] sm:$0xff]
      %v3872 = vld [vmem:[#allocation4 + $0xd8] sm:$0xff]
      %v3873 = vld [vmem:[#allocation4 + $0xe0] sm:$0xff]
      %v3874 = vld [vmem:[#allocation4 + $0xe8] sm:$0xff]
      %v3875 = vld [vmem:[#allocation4 + $0xf0] sm:$0xff]
      %v3876 = vld [vmem:[#allocation4 + $0xf8] sm:$0xff]
      %s3877 = scalar_lea.vmem %s3, 512
      %v3878 = vld [vmem:[%s3877] sm:$0xf]
      %v3879 = vld [vmem:[%s3877 + $0x4] sm:$0xf]
      %v3880 = vld [vmem:[%s3877 + $0x8] sm:$0xf]
      %v3881 = vld [vmem:[%s3877 + $0xc] sm:$0xf]
      %v3882 = vld [vmem:[%s3877 + $0x10] sm:$0xf]
      %v3883 = vld [vmem:[%s3877 + $0x14] sm:$0xf]
      %v3884 = vld [vmem:[%s3877 + $0x18] sm:$0xf]
      %v3885 = vld [vmem:[%s3877 + $0x1c] sm:$0xf]
      %v3886 = vld [vmem:[%s3877 + $0x20] sm:$0xf]
      %v3887 = vld [vmem:[%s3877 + $0x24] sm:$0xf]
      %v3888 = vld [vmem:[%s3877 + $0x28] sm:$0xf]
      %v3889 = vld [vmem:[%s3877 + $0x2c] sm:$0xf]
      %v3890 = vld [vmem:[%s3877 + $0x30] sm:$0xf]
      %v3891 = vld [vmem:[%s3877 + $0x34] sm:$0xf]
      %v3892 = vld [vmem:[%s3877 + $0x38] sm:$0xf]
      %v3893 = vld [vmem:[%s3877 + $0x3c] sm:$0xf]
      %v3910 = vunpack.c.l.b16 %v3878
      %v3911 = vunpack.c.l.b16 %v3879
      %v3912 = vunpack.c.l.b16 %v3880
      %v3913 = vunpack.c.l.b16 %v3881
      %v3914 = vunpack.c.l.b16 %v3882
      %v3915 = vunpack.c.l.b16 %v3883
      %v3916 = vunpack.c.l.b16 %v3884
      %v3917 = vunpack.c.l.b16 %v3885
      %v3918 = vunpack.c.l.b16 %v3886
      %v3919 = vunpack.c.l.b16 %v3887
      %v3920 = vunpack.c.l.b16 %v3888
      %v3921 = vunpack.c.l.b16 %v3889
      %v3922 = vunpack.c.l.b16 %v3890
      %v3923 = vunpack.c.l.b16 %v3891
      %v3924 = vunpack.c.l.b16 %v3892
      %v3925 = vunpack.c.l.b16 %v3893
      %v3926 = vpack.c.b16 %v3911, %v3910
      %v3927 = vpack.c.b16 %v3913, %v3912
      %v3928 = vpack.c.b16 %v3915, %v3914
      %v3929 = vpack.c.b16 %v3917, %v3916
      %v3930 = vpack.c.b16 %v3919, %v3918
      %v3931 = vpack.c.b16 %v3921, %v3920
      %v3932 = vpack.c.b16 %v3923, %v3922
      %v3933 = vpack.c.b16 %v3925, %v3924
      %3942 = vmatprep.subr.bf16.mxu0 0
      %3943 = vmatpush1.bf16.msra.mxu0 %v3926
      %3944 = vmatprep.subr.bf16.mxu0 0
      %3945 = vmatpush1.bf16.msra.mxu0 %v3927
      %3946 = vmatprep.subr.bf16.mxu0 0
      %3947 = vmatpush1.bf16.msra.mxu0 %v3928
      %3948 = vmatprep.subr.bf16.mxu0 0
      %3949 = vmatpush1.bf16.msra.mxu0 %v3929
      %3950 = vmatprep.subr.bf16.mxu0 0
      %3951 = vmatpush1.bf16.msra.mxu0 %v3930
      %3952 = vmatprep.subr.bf16.mxu0 0
      %3953 = vmatpush1.bf16.msra.mxu0 %v3931
      %3954 = vmatprep.subr.bf16.mxu0 0
      %3955 = vmatpush1.bf16.msra.mxu0 %v3932
      %3956 = vmatprep.subr.bf16.mxu0 0
      %3957 = vmatpush1.bf16.msra.mxu0 %v3933
      %3958 = vmatprep.subr.bf16.mxu0 0
      %3959 = vmatpush1.bf16.msra.mxu0 0
      %3960 = vmatprep.subr.bf16.mxu0 0
      %3961 = vmatpush1.bf16.msra.mxu0 0
      %3962 = vmatprep.subr.bf16.mxu0 0
      %3963 = vmatpush1.bf16.msra.mxu0 0
      %3964 = vmatprep.subr.bf16.mxu0 0
      %3965 = vmatpush1.bf16.msra.mxu0 0
      %3966 = vmatprep.subr.bf16.mxu0 0
      %3967 = vmatpush1.bf16.msra.mxu0 0
      %3968 = vmatprep.subr.bf16.mxu0 0
      %3969 = vmatpush1.bf16.msra.mxu0 0
      %3970 = vmatprep.subr.bf16.mxu0 0
      %3971 = vmatpush1.bf16.msra.mxu0 0
      %3972 = vmatprep.subr.bf16.mxu0 0
      %3973 = vmatpush1.bf16.msra.mxu0 0
      %3974 = vmatprep.mubr.bf16.mxu0 0
      %3975 = vmatmul.mubr.bf16.gmra.mrb[0].mxu0 %v3829
      %v3976 = vpop.f32.mrb[0].mxu0
      %v3977 = vadd.f32 0.0, %v3976
      %v3978 = vpop.f32.mrb[0].mxu0
      %v3979 = vpop.f32.mrb[0].mxu0
      %v3980 = vadd.f32 0.0, %v3979
      %v3981 = vpop.f32.mrb[0].mxu0
      %3982 = vmatprep.mubr.bf16.mxu0 0
      %3983 = vmatmul.mubr.bf16.gmra.mrb[0].mxu0 %v3830
      %v3984 = vpop.f32.mrb[0].mxu0
      %v3985 = vadd.f32 0.0, %v3984
      %v3986 = vpop.f32.mrb[0].mxu0
      %v3987 = vpop.f32.mrb[0].mxu0
      %v3988 = vadd.f32 0.0, %v3987
      %v3989 = vpop.f32.mrb[0].mxu0
      %3990 = vmatprep.mubr.bf16.mxu0 0
      %3991 = vmatmul.mubr.bf16.gmra.mrb[0].mxu0 %v3831
      %v3992 = vpop.f32.mrb[0].mxu0
      %v3993 = vadd.f32 0.0, %v3992
      %v3994 = vpop.f32.mrb[0].mxu0
      %v3995 = vpop.f32.mrb[0].mxu0
      %v3996 = vadd.f32 0.0, %v3995
      %v3997 = vpop.f32.mrb[0].mxu0
      %3998 = vmatprep.mubr.bf16.mxu0 0
      %3999 = vmatmul.mubr.bf16.gmra.mrb[0].mxu0 %v3832
      %v4000 = vpop.f32.mrb[0].mxu0
      %v4001 = vadd.f32 0.0, %v4000
      %v4002 = vpop.f32.mrb[0].mxu0
      %v4003 = vpop.f32.mrb[0].mxu0
      %v4004 = vadd.f32 0.0, %v4003
      %v4005 = vpop.f32.mrb[0].mxu0
      %4006 = vmatprep.mubr.bf16.mxu0 0
      %4007 = vmatmul.mubr.bf16.gmra.mrb[0].mxu0 %v3833
      %v4008 = vpop.f32.mrb[0].mxu0
      %v4009 = vadd.f32 0.0, %v4008
      %v4010 = vpop.f32.mrb[0].mxu0
      %v4011 = vpop.f32.mrb[0].mxu0
      %v4012 = vadd.f32 0.0, %v4011
      %v4013 = vpop.f32.mrb[0].mxu0
      %4014 = vmatprep.mubr.bf16.mxu0 0
      %4015 = vmatmul.mubr.bf16.gmra.mrb[0].mxu0 %v3834
      %v4016 = vpop.f32.mrb[0].mxu0
      %v4017 = vadd.f32 0.0, %v4016
      %v4018 = vpop.f32.mrb[0].mxu0
      %v4019 = vpop.f32.mrb[0].mxu0
      %v4020 = vadd.f32 0.0, %v4019
      %v4021 = vpop.f32.mrb[0].mxu0
      %4022 = vmatprep.mubr.bf16.mxu0 0
      %4023 = vmatmul.mubr.bf16.gmra.mrb[0].mxu0 %v3835
      %v4024 = vpop.f32.mrb[0].mxu0
      %v4025 = vadd.f32 0.0, %v4024
      %v4026 = vpop.f32.mrb[0].mxu0
      %v4027 = vpop.f32.mrb[0].mxu0
      %v4028 = vadd.f32 0.0, %v4027
      %v4029 = vpop.f32.mrb[0].mxu0
      %4030 = vmatprep.mubr.bf16.mxu0 0
      %4031 = vmatmul.mubr.bf16.gmra.mrb[0].mxu0 %v3836
      %v4032 = vpop.f32.mrb[0].mxu0
      %v4033 = vadd.f32 0.0, %v4032
      %v4034 = vpop.f32.mrb[0].mxu0
      %v4035 = vpop.f32.mrb[0].mxu0
      %v4036 = vadd.f32 0.0, %v4035
      %v4037 = vpop.f32.mrb[0].mxu0
      %4038 = vmatprep.mubr.bf16.mxu0 0
      %4039 = vmatmul.mubr.bf16.gmra.mrb[0].mxu0 %v3837
      %v4040 = vpop.f32.mrb[0].mxu0
      %v4041 = vadd.f32 0.0, %v4040
      %v4042 = vpop.f32.mrb[0].mxu0
      %v4043 = vpop.f32.mrb[0].mxu0
      %v4044 = vadd.f32 0.0, %v4043
      %v4045 = vpop.f32.mrb[0].mxu0
      %4046 = vmatprep.mubr.bf16.mxu0 0
      %4047 = vmatmul.mubr.bf16.gmra.mrb[0].mxu0 %v3838
      %v4048 = vpop.f32.mrb[0].mxu0
      %v4049 = vadd.f32 0.0, %v4048
      %v4050 = vpop.f32.mrb[0].mxu0
      %v4051 = vpop.f32.mrb[0].mxu0
      %v4052 = vadd.f32 0.0, %v4051
      %v4053 = vpop.f32.mrb[0].mxu0
      %4054 = vmatprep.mubr.bf16.mxu0 0
      %4055 = vmatmul.mubr.bf16.gmra.mrb[0].mxu0 %v3839
      %v4056 = vpop.f32.mrb[0].mxu0
      %v4057 = vadd.f32 0.0, %v4056
      %v4058 = vpop.f32.mrb[0].mxu0
      %v4059 = vpop.f32.mrb[0].mxu0
      %v4060 = vadd.f32 0.0, %v4059
      %v4061 = vpop.f32.mrb[0].mxu0
      %4062 = vmatprep.mubr.bf16.mxu0 0
      %4063 = vmatmul.mubr.bf16.gmra.mrb[0].mxu0 %v3840
      %v4064 = vpop.f32.mrb[0].mxu0
      %v4065 = vadd.f32 0.0, %v4064
      %v4066 = vpop.f32.mrb[0].mxu0
      %v4067 = vpop.f32.mrb[0].mxu0
      %v4068 = vadd.f32 0.0, %v4067
      %v4069 = vpop.f32.mrb[0].mxu0
      %4070 = vmatprep.mubr.bf16.mxu0 0
      %4071 = vmatmul.mubr.bf16.gmra.mrb[0].mxu0 %v3841
      %v4072 = vpop.f32.mrb[0].mxu0
      %v4073 = vadd.f32 0.0, %v4072
      %v4074 = vpop.f32.mrb[0].mxu0
      %v4075 = vpop.f32.mrb[0].mxu0
      %v4076 = vadd.f32 0.0, %v4075
      %v4077 = vpop.f32.mrb[0].mxu0
      %4078 = vmatprep.mubr.bf16.mxu0 0
      %4079 = vmatmul.mubr.bf16.gmra.mrb[0].mxu0 %v3842
      %v4080 = vpop.f32.mrb[0].mxu0
      %v4081 = vadd.f32 0.0, %v4080
      %v4082 = vpop.f32.mrb[0].mxu0
      %v4083 = vpop.f32.mrb[0].mxu0
      %v4084 = vadd.f32 0.0, %v4083
      %v4085 = vpop.f32.mrb[0].mxu0
      %4086 = vmatprep.mubr.bf16.mxu0 0
      %4087 = vmatmul.mubr.bf16.gmra.mrb[0].mxu0 %v3843
      %v4088 = vpop.f32.mrb[0].mxu0
      %v4089 = vadd.f32 0.0, %v4088
      %v4090 = vpop.f32.mrb[0].mxu0
      %v4091 = vpop.f32.mrb[0].mxu0
      %v4092 = vadd.f32 0.0, %v4091
      %v4093 = vpop.f32.mrb[0].mxu0
      %4094 = vmatprep.mubr.bf16.mxu0 0
      %4095 = vmatmul.mubr.bf16.gmra.mrb[0].mxu0 %v3844
      %v4096 = vpop.f32.mrb[0].mxu0
      %v4097 = vadd.f32 0.0, %v4096
      %v4098 = vpop.f32.mrb[0].mxu0
      %v4099 = vpop.f32.mrb[0].mxu0
      %v4100 = vadd.f32 0.0, %v4099
      %v4101 = vpop.f32.mrb[0].mxu0
      %4102 = vdwg.mxu0
      %v4103 = vadd.f32 %v3845, %v3977
      %v4104 = vadd.f32 %v3846, %v3980
      %v4105 = vadd.f32 %v3847, %v3985
      %v4106 = vadd.f32 %v3848, %v3988
      %v4107 = vadd.f32 %v3849, %v3993
      %v4108 = vadd.f32 %v3850, %v3996
      %v4109 = vadd.f32 %v3851, %v4001
      %v4110 = vadd.f32 %v3852, %v4004
      %v4111 = vadd.f32 %v3853, %v4009
      %v4112 = vadd.f32 %v3854, %v4012
      %v4113 = vadd.f32 %v3855, %v4017
      %v4114 = vadd.f32 %v3856, %v4020
      %v4115 = vadd.f32 %v3857, %v4025
      %v4116 = vadd.f32 %v3858, %v4028
      %v4117 = vadd.f32 %v3859, %v4033
      %v4118 = vadd.f32 %v3860, %v4036
      %v4119 = vadd.f32 %v3861, %v4041
      %v4120 = vadd.f32 %v3862, %v4044
      %v4121 = vadd.f32 %v3863, %v4049
      %v4122 = vadd.f32 %v3864, %v4052
      %v4123 = vadd.f32 %v3865, %v4057
      %v4124 = vadd.f32 %v3866, %v4060
      %v4125 = vadd.f32 %v3867, %v4065
      %v4126 = vadd.f32 %v3868, %v4068
      %v4127 = vadd.f32 %v3869, %v4073
      %v4128 = vadd.f32 %v3870, %v4076
      %v4129 = vadd.f32 %v3871, %v4081
      %v4130 = vadd.f32 %v3872, %v4084
      %v4131 = vadd.f32 %v3873, %v4089
      %v4132 = vadd.f32 %v3874, %v4092
      %v4133 = vadd.f32 %v3875, %v4097
      %v4134 = vadd.f32 %v3876, %v4100
      %4135 = vst [vmem:[#allocation4] sm:$0xff] %v4103
      %4136 = vst [vmem:[#allocation4 + $0x8] sm:$0xff] %v4104
      %4137 = vst [vmem:[#allocation4 + $0x10] sm:$0xff] %v4105
      %4138 = vst [vmem:[#allocation4 + $0x18] sm:$0xff] %v4106
      %4139 = vst [vmem:[#allocation4 + $0x20] sm:$0xff] %v4107
      %4140 = vst [vmem:[#allocation4 + $0x28] sm:$0xff] %v4108
      %4141 = vst [vmem:[#allocation4 + $0x30] sm:$0xff] %v4109
      %4142 = vst [vmem:[#allocation4 + $0x38] sm:$0xff] %v4110
      %4143 = vst [vmem:[#allocation4 + $0x40] sm:$0xff] %v4111
      %4144 = vst [vmem:[#allocation4 + $0x48] sm:$0xff] %v4112
      %4145 = vst [vmem:[#allocation4 + $0x50] sm:$0xff] %v4113
      %4146 = vst [vmem:[#allocation4 + $0x58] sm:$0xff] %v4114
      %4147 = vst [vmem:[#allocation4 + $0x60] sm:$0xff] %v4115
      %4148 = vst [vmem:[#allocation4 + $0x68] sm:$0xff] %v4116
      %4149 = vst [vmem:[#allocation4 + $0x70] sm:$0xff] %v4117
      %4150 = vst [vmem:[#allocation4 + $0x78] sm:$0xff] %v4118
      %4151 = vst [vmem:[#allocation4 + $0x80] sm:$0xff] %v4119
      %4152 = vst [vmem:[#allocation4 + $0x88] sm:$0xff] %v4120
      %4153 = vst [vmem:[#allocation4 + $0x90] sm:$0xff] %v4121
      %4154 = vst [vmem:[#allocation4 + $0x98] sm:$0xff] %v4122
      %4155 = vst [vmem:[#allocation4 + $0xa0] sm:$0xff] %v4123
      %4156 = vst [vmem:[#allocation4 + $0xa8] sm:$0xff] %v4124
      %4157 = vst [vmem:[#allocation4 + $0xb0] sm:$0xff] %v4125
      %4158 = vst [vmem:[#allocation4 + $0xb8] sm:$0xff] %v4126
      %4159 = vst [vmem:[#allocation4 + $0xc0] sm:$0xff] %v4127
      %4160 = vst [vmem:[#allocation4 + $0xc8] sm:$0xff] %v4128
      %4161 = vst [vmem:[#allocation4 + $0xd0] sm:$0xff] %v4129
      %4162 = vst [vmem:[#allocation4 + $0xd8] sm:$0xff] %v4130
      %4163 = vst [vmem:[#allocation4 + $0xe0] sm:$0xff] %v4131
      %4164 = vst [vmem:[#allocation4 + $0xe8] sm:$0xff] %v4132
      %4165 = vst [vmem:[#allocation4 + $0xf0] sm:$0xff] %v4133
      %4166 = vst [vmem:[#allocation4 + $0xf8] sm:$0xff] %v4134
      %v4167 = vld [vmem:[#allocation4] sm:$0xff]
      %v4168 = vld [vmem:[#allocation4 + $0x8] sm:$0xff]
      %v4169 = vld [vmem:[#allocation4 + $0x10] sm:$0xff]
      %v4170 = vld [vmem:[#allocation4 + $0x18] sm:$0xff]
      %v4171 = vld [vmem:[#allocation4 + $0x20] sm:$0xff]
      %v4172 = vld [vmem:[#allocation4 + $0x28] sm:$0xff]
      %v4173 = vld [vmem:[#allocation4 + $0x30] sm:$0xff]
      %v4174 = vld [vmem:[#allocation4 + $0x38] sm:$0xff]
      %v4175 = vld [vmem:[#allocation4 + $0x40] sm:$0xff]
      %v4176 = vld [vmem:[#allocation4 + $0x48] sm:$0xff]
      %v4177 = vld [vmem:[#allocation4 + $0x50] sm:$0xff]
      %v4178 = vld [vmem:[#allocation4 + $0x58] sm:$0xff]
      %v4179 = vld [vmem:[#allocation4 + $0x60] sm:$0xff]
      %v4180 = vld [vmem:[#allocation4 + $0x68] sm:$0xff]
      %v4181 = vld [vmem:[#allocation4 + $0x70] sm:$0xff]
      %v4182 = vld [vmem:[#allocation4 + $0x78] sm:$0xff]
      %v4183 = vld [vmem:[#allocation4 + $0x80] sm:$0xff]
      %v4184 = vld [vmem:[#allocation4 + $0x88] sm:$0xff]
      %v4185 = vld [vmem:[#allocation4 + $0x90] sm:$0xff]
      %v4186 = vld [vmem:[#allocation4 + $0x98] sm:$0xff]
      %v4187 = vld [vmem:[#allocation4 + $0xa0] sm:$0xff]
      %v4188 = vld [vmem:[#allocation4 + $0xa8] sm:$0xff]
      %v4189 = vld [vmem:[#allocation4 + $0xb0] sm:$0xff]
      %v4190 = vld [vmem:[#allocation4 + $0xb8] sm:$0xff]
      %v4191 = vld [vmem:[#allocation4 + $0xc0] sm:$0xff]
      %v4192 = vld [vmem:[#allocation4 + $0xc8] sm:$0xff]
      %v4193 = vld [vmem:[#allocation4 + $0xd0] sm:$0xff]
      %v4194 = vld [vmem:[#allocation4 + $0xd8] sm:$0xff]
      %v4195 = vld [vmem:[#allocation4 + $0xe0] sm:$0xff]
      %v4196 = vld [vmem:[#allocation4 + $0xe8] sm:$0xff]
      %v4197 = vld [vmem:[#allocation4 + $0xf0] sm:$0xff]
      %v4198 = vld [vmem:[#allocation4 + $0xf8] sm:$0xff]
      %v4199 = vld [vmem:[%s4] sm:$0x1]
      %v4201 = vlaneseq
      %v4202 = vshrl.u32 %v4201, 7
      %v4203 = vsub.s32 0, %v4202
      %v4204 = vrot.slane %v4199, %v4203
      %v4206 = vadd.f32 %v4167, %v4204
      %v4207 = vadd.f32 %v4168, %v4204
      %v4208 = vadd.f32 %v4169, %v4204
      %v4209 = vadd.f32 %v4170, %v4204
      %v4210 = vadd.f32 %v4171, %v4204
      %v4211 = vadd.f32 %v4172, %v4204
      %v4212 = vadd.f32 %v4173, %v4204
      %v4213 = vadd.f32 %v4174, %v4204
      %v4214 = vadd.f32 %v4175, %v4204
      %v4215 = vadd.f32 %v4176, %v4204
      %v4216 = vadd.f32 %v4177, %v4204
      %v4217 = vadd.f32 %v4178, %v4204
      %v4218 = vadd.f32 %v4179, %v4204
      %v4219 = vadd.f32 %v4180, %v4204
      %v4220 = vadd.f32 %v4181, %v4204
      %v4221 = vadd.f32 %v4182, %v4204
      %v4222 = vadd.f32 %v4183, %v4204
      %v4223 = vadd.f32 %v4184, %v4204
      %v4224 = vadd.f32 %v4185, %v4204
      %v4225 = vadd.f32 %v4186, %v4204
      %v4226 = vadd.f32 %v4187, %v4204
      %v4227 = vadd.f32 %v4188, %v4204
      %v4228 = vadd.f32 %v4189, %v4204
      %v4229 = vadd.f32 %v4190, %v4204
      %v4230 = vadd.f32 %v4191, %v4204
      %v4231 = vadd.f32 %v4192, %v4204
      %v4232 = vadd.f32 %v4193, %v4204
      %v4233 = vadd.f32 %v4194, %v4204
      %v4234 = vadd.f32 %v4195, %v4204
      %v4235 = vadd.f32 %v4196, %v4204
      %v4236 = vadd.f32 %v4197, %v4204
      %v4237 = vadd.f32 %v4198, %v4204
      %v4238 = vmax.f32 %v4206, 0.0
      %v4239 = vmax.f32 %v4207, 0.0
      %v4240 = vmax.f32 %v4208, 0.0
      %v4241 = vmax.f32 %v4209, 0.0
      %v4242 = vmax.f32 %v4210, 0.0
      %v4243 = vmax.f32 %v4211, 0.0
      %v4244 = vmax.f32 %v4212, 0.0
      %v4245 = vmax.f32 %v4213, 0.0
      %v4246 = vmax.f32 %v4214, 0.0
      %v4247 = vmax.f32 %v4215, 0.0
      %v4248 = vmax.f32 %v4216, 0.0
      %v4249 = vmax.f32 %v4217, 0.0
      %v4250 = vmax.f32 %v4218, 0.0
      %v4251 = vmax.f32 %v4219, 0.0
      %v4252 = vmax.f32 %v4220, 0.0
      %v4253 = vmax.f32 %v4221, 0.0
      %v4254 = vmax.f32 %v4222, 0.0
      %v4255 = vmax.f32 %v4223, 0.0
      %v4256 = vmax.f32 %v4224, 0.0
      %v4257 = vmax.f32 %v4225, 0.0
      %v4258 = vmax.f32 %v4226, 0.0
      %v4259 = vmax.f32 %v4227, 0.0
      %v4260 = vmax.f32 %v4228, 0.0
      %v4261 = vmax.f32 %v4229, 0.0
      %v4262 = vmax.f32 %v4230, 0.0
      %v4263 = vmax.f32 %v4231, 0.0
      %v4264 = vmax.f32 %v4232, 0.0
      %v4265 = vmax.f32 %v4233, 0.0
      %v4266 = vmax.f32 %v4234, 0.0
      %v4267 = vmax.f32 %v4235, 0.0
      %v4268 = vmax.f32 %v4236, 0.0
      %v4269 = vmax.f32 %v4237, 0.0
      %4270 = vst [vmem:[%s772 + $0x8] sm:$0xff] %v4238
      %4271 = vst [vmem:[%s772 + $0x10] sm:$0xff] %v4239
      %4272 = vst [vmem:[%s772 + $0x28] sm:$0xff] %v4240
      %4273 = vst [vmem:[%s772 + $0x30] sm:$0xff] %v4241
      %4274 = vst [vmem:[%s772 + $0x48] sm:$0xff] %v4242
      %4275 = vst [vmem:[%s772 + $0x50] sm:$0xff] %v4243
      %4276 = vst [vmem:[%s772 + $0x68] sm:$0xff] %v4244
      %4277 = vst [vmem:[%s772 + $0x70] sm:$0xff] %v4245
      %4278 = vst [vmem:[%s772 + $0x88] sm:$0xff] %v4246
      %4279 = vst [vmem:[%s772 + $0x90] sm:$0xff] %v4247
      %4280 = vst [vmem:[%s772 + $0xa8] sm:$0xff] %v4248
      %4281 = vst [vmem:[%s772 + $0xb0] sm:$0xff] %v4249
      %4282 = vst [vmem:[%s772 + $0xc8] sm:$0xff] %v4250
      %4283 = vst [vmem:[%s772 + $0xd0] sm:$0xff] %v4251
      %4284 = vst [vmem:[%s772 + $0xe8] sm:$0xff] %v4252
      %4285 = vst [vmem:[%s772 + $0xf0] sm:$0xff] %v4253
      %4286 = vst [vmem:[%s772 + $0x108] sm:$0xff] %v4254
      %4287 = vst [vmem:[%s772 + $0x110] sm:$0xff] %v4255
      %4288 = vst [vmem:[%s772 + $0x128] sm:$0xff] %v4256
      %4289 = vst [vmem:[%s772 + $0x130] sm:$0xff] %v4257
      %4290 = vst [vmem:[%s772 + $0x148] sm:$0xff] %v4258
      %4291 = vst [vmem:[%s772 + $0x150] sm:$0xff] %v4259
      %4292 = vst [vmem:[%s772 + $0x168] sm:$0xff] %v4260
      %4293 = vst [vmem:[%s772 + $0x170] sm:$0xff] %v4261
      %4294 = vst [vmem:[%s772 + $0x188] sm:$0xff] %v4262
      %4295 = vst [vmem:[%s772 + $0x190] sm:$0xff] %v4263
      %4296 = vst [vmem:[%s772 + $0x1a8] sm:$0xff] %v4264
      %4297 = vst [vmem:[%s772 + $0x1b0] sm:$0xff] %v4265
      %4298 = vst [vmem:[%s772 + $0x1c8] sm:$0xff] %v4266
      %4299 = vst [vmem:[%s772 + $0x1d0] sm:$0xff] %v4267
      %4300 = vst [vmem:[%s772 + $0x1e8] sm:$0xff] %v4268
      %4301 = vst [vmem:[%s772 + $0x1f0] sm:$0xff] %v4269
      %4302 = vst [vmem:[#allocation4] sm:$0xff] 0.0
      %4303 = vst [vmem:[#allocation4 + $0x8] sm:$0xff] 0.0
      %4304 = vst [vmem:[#allocation4 + $0x10] sm:$0xff] 0.0
      %4305 = vst [vmem:[#allocation4 + $0x18] sm:$0xff] 0.0
      %4306 = vst [vmem:[#allocation4 + $0x20] sm:$0xff] 0.0
      %4307 = vst [vmem:[#allocation4 + $0x28] sm:$0xff] 0.0
      %4308 = vst [vmem:[#allocation4 + $0x30] sm:$0xff] 0.0
      %4309 = vst [vmem:[#allocation4 + $0x38] sm:$0xff] 0.0
      %4310 = vst [vmem:[#allocation4 + $0x40] sm:$0xff] 0.0
      %4311 = vst [vmem:[#allocation4 + $0x48] sm:$0xff] 0.0
      %4312 = vst [vmem:[#allocation4 + $0x50] sm:$0xff] 0.0
      %4313 = vst [vmem:[#allocation4 + $0x58] sm:$0xff] 0.0
      %4314 = vst [vmem:[#allocation4 + $0x60] sm:$0xff] 0.0
      %4315 = vst [vmem:[#allocation4 + $0x68] sm:$0xff] 0.0
      %4316 = vst [vmem:[#allocation4 + $0x70] sm:$0xff] 0.0
      %4317 = vst [vmem:[#allocation4 + $0x78] sm:$0xff] 0.0
      %4318 = vst [vmem:[#allocation4 + $0x80] sm:$0xff] 0.0
      %4319 = vst [vmem:[#allocation4 + $0x88] sm:$0xff] 0.0
      %4320 = vst [vmem:[#allocation4 + $0x90] sm:$0xff] 0.0
      %4321 = vst [vmem:[#allocation4 + $0x98] sm:$0xff] 0.0
      %4322 = vst [vmem:[#allocation4 + $0xa0] sm:$0xff] 0.0
      %4323 = vst [vmem:[#allocation4 + $0xa8] sm:$0xff] 0.0
      %4324 = vst [vmem:[#allocation4 + $0xb0] sm:$0xff] 0.0
      %4325 = vst [vmem:[#allocation4 + $0xb8] sm:$0xff] 0.0
      %4326 = vst [vmem:[#allocation4 + $0xc0] sm:$0xff] 0.0
      %4327 = vst [vmem:[#allocation4 + $0xc8] sm:$0xff] 0.0
      %4328 = vst [vmem:[#allocation4 + $0xd0] sm:$0xff] 0.0
      %4329 = vst [vmem:[#allocation4 + $0xd8] sm:$0xff] 0.0
      %4330 = vst [vmem:[#allocation4 + $0xe0] sm:$0xff] 0.0
      %4331 = vst [vmem:[#allocation4 + $0xe8] sm:$0xff] 0.0
      %4332 = vst [vmem:[#allocation4 + $0xf0] sm:$0xff] 0.0
      %4333 = vst [vmem:[#allocation4 + $0xf8] sm:$0xff] 0.0
      %v4334 = vld [vmem:[#allocation2 + $0x7] sm:$0xff]
      %v4335 = vld [vmem:[#allocation2 + $0xf] sm:$0xff]
      %v4336 = vld [vmem:[#allocation2 + $0x27] sm:$0xff]
      %v4337 = vld [vmem:[#allocation2 + $0x2f] sm:$0xff]
      %v4338 = vld [vmem:[#allocation2 + $0x47] sm:$0xff]
      %v4339 = vld [vmem:[#allocation2 + $0x4f] sm:$0xff]
      %v4340 = vld [vmem:[#allocation2 + $0x67] sm:$0xff]
      %v4341 = vld [vmem:[#allocation2 + $0x6f] sm:$0xff]
      %v4342 = vld [vmem:[#allocation2 + $0x87] sm:$0xff]
      %v4343 = vld [vmem:[#allocation2 + $0x8f] sm:$0xff]
      %v4344 = vld [vmem:[#allocation2 + $0xa7] sm:$0xff]
      %v4345 = vld [vmem:[#allocation2 + $0xaf] sm:$0xff]
      %v4346 = vld [vmem:[#allocation2 + $0xc7] sm:$0xff]
      %v4347 = vld [vmem:[#allocation2 + $0xcf] sm:$0xff]
      %v4348 = vld [vmem:[#allocation2 + $0xe7] sm:$0xff]
      %v4349 = vld [vmem:[#allocation2 + $0xef] sm:$0xff]
      %v4350 = vld [vmem:[#allocation2 + $0x107] sm:$0xff]
      %v4351 = vld [vmem:[#allocation2 + $0x10f] sm:$0xff]
      %v4352 = vld [vmem:[#allocation2 + $0x127] sm:$0xff]
      %v4353 = vld [vmem:[#allocation2 + $0x12f] sm:$0xff]
      %v4354 = vld [vmem:[#allocation2 + $0x147] sm:$0xff]
      %v4355 = vld [vmem:[#allocation2 + $0x14f] sm:$0xff]
      %v4356 = vld [vmem:[#allocation2 + $0x167] sm:$0xff]
      %v4357 = vld [vmem:[#allocation2 + $0x16f] sm:$0xff]
      %v4358 = vld [vmem:[#allocation2 + $0x187] sm:$0xff]
      %v4359 = vld [vmem:[#allocation2 + $0x18f] sm:$0xff]
      %v4360 = vld [vmem:[#allocation2 + $0x1a7] sm:$0xff]
      %v4361 = vld [vmem:[#allocation2 + $0x1af] sm:$0xff]
      %v4362 = vld [vmem:[#allocation2 + $0x1c7] sm:$0xff]
      %v4363 = vld [vmem:[#allocation2 + $0x1cf] sm:$0xff]
      %v4364 = vld [vmem:[#allocation2 + $0x1e7] sm:$0xff]
      %v4365 = vld [vmem:[#allocation2 + $0x1ef] sm:$0xff]
      %v4366 = vpack.c.bf16 %v4335, %v4334
      %v4367 = vpack.c.bf16 %v4337, %v4336
      %v4368 = vpack.c.bf16 %v4339, %v4338
      %v4369 = vpack.c.bf16 %v4341, %v4340
      %v4370 = vpack.c.bf16 %v4343, %v4342
      %v4371 = vpack.c.bf16 %v4345, %v4344
      %v4372 = vpack.c.bf16 %v4347, %v4346
      %v4373 = vpack.c.bf16 %v4349, %v4348
      %v4374 = vpack.c.bf16 %v4351, %v4350
      %v4375 = vpack.c.bf16 %v4353, %v4352
      %v4376 = vpack.c.bf16 %v4355, %v4354
      %v4377 = vpack.c.bf16 %v4357, %v4356
      %v4378 = vpack.c.bf16 %v4359, %v4358
      %v4379 = vpack.c.bf16 %v4361, %v4360
      %v4380 = vpack.c.bf16 %v4363, %v4362
      %v4381 = vpack.c.bf16 %v4365, %v4364
      %v4382 = vld [vmem:[#allocation4] sm:$0xff]
      %v4383 = vld [vmem:[#allocation4 + $0x8] sm:$0xff]
      %v4384 = vld [vmem:[#allocation4 + $0x10] sm:$0xff]
      %v4385 = vld [vmem:[#allocation4 + $0x18] sm:$0xff]
      %v4386 = vld [vmem:[#allocation4 + $0x20] sm:$0xff]
      %v4387 = vld [vmem:[#allocation4 + $0x28] sm:$0xff]
      %v4388 = vld [vmem:[#allocation4 + $0x30] sm:$0xff]
      %v4389 = vld [vmem:[#allocation4 + $0x38] sm:$0xff]
      %v4390 = vld [vmem:[#allocation4 + $0x40] sm:$0xff]
      %v4391 = vld [vmem:[#allocation4 + $0x48] sm:$0xff]
      %v4392 = vld [vmem:[#allocation4 + $0x50] sm:$0xff]
      %v4393 = vld [vmem:[#allocation4 + $0x58] sm:$0xff]
      %v4394 = vld [vmem:[#allocation4 + $0x60] sm:$0xff]
      %v4395 = vld [vmem:[#allocation4 + $0x68] sm:$0xff]
      %v4396 = vld [vmem:[#allocation4 + $0x70] sm:$0xff]
      %v4397 = vld [vmem:[#allocation4 + $0x78] sm:$0xff]
      %v4398 = vld [vmem:[#allocation4 + $0x80] sm:$0xff]
      %v4399 = vld [vmem:[#allocation4 + $0x88] sm:$0xff]
      %v4400 = vld [vmem:[#allocation4 + $0x90] sm:$0xff]
      %v4401 = vld [vmem:[#allocation4 + $0x98] sm:$0xff]
      %v4402 = vld [vmem:[#allocation4 + $0xa0] sm:$0xff]
      %v4403 = vld [vmem:[#allocation4 + $0xa8] sm:$0xff]
      %v4404 = vld [vmem:[#allocation4 + $0xb0] sm:$0xff]
      %v4405 = vld [vmem:[#allocation4 + $0xb8] sm:$0xff]
      %v4406 = vld [vmem:[#allocation4 + $0xc0] sm:$0xff]
      %v4407 = vld [vmem:[#allocation4 + $0xc8] sm:$0xff]
      %v4408 = vld [vmem:[#allocation4 + $0xd0] sm:$0xff]
      %v4409 = vld [vmem:[#allocation4 + $0xd8] sm:$0xff]
      %v4410 = vld [vmem:[#allocation4 + $0xe0] sm:$0xff]
      %v4411 = vld [vmem:[#allocation4 + $0xe8] sm:$0xff]
      %v4412 = vld [vmem:[#allocation4 + $0xf0] sm:$0xff]
      %v4413 = vld [vmem:[#allocation4 + $0xf8] sm:$0xff]
      %v4414 = vld [vmem:[%s5] sm:$0xf]
      %v4415 = vld [vmem:[%s5 + $0x4] sm:$0xf]
      %v4416 = vld [vmem:[%s5 + $0x8] sm:$0xf]
      %v4417 = vld [vmem:[%s5 + $0xc] sm:$0xf]
      %v4418 = vld [vmem:[%s5 + $0x10] sm:$0xf]
      %v4419 = vld [vmem:[%s5 + $0x14] sm:$0xf]
      %v4420 = vld [vmem:[%s5 + $0x18] sm:$0xf]
      %v4421 = vld [vmem:[%s5 + $0x1c] sm:$0xf]
      %v4422 = vld [vmem:[%s5 + $0x20] sm:$0xf]
      %v4423 = vld [vmem:[%s5 + $0x24] sm:$0xf]
      %v4424 = vld [vmem:[%s5 + $0x28] sm:$0xf]
      %v4425 = vld [vmem:[%s5 + $0x2c] sm:$0xf]
      %v4426 = vld [vmem:[%s5 + $0x30] sm:$0xf]
      %v4427 = vld [vmem:[%s5 + $0x34] sm:$0xf]
      %v4428 = vld [vmem:[%s5 + $0x38] sm:$0xf]
      %v4429 = vld [vmem:[%s5 + $0x3c] sm:$0xf]
      %v4446 = vunpack.c.l.b16 %v4414
      %v4447 = vunpack.c.l.b16 %v4415
      %v4448 = vunpack.c.l.b16 %v4416
      %v4449 = vunpack.c.l.b16 %v4417
      %v4450 = vunpack.c.l.b16 %v4418
      %v4451 = vunpack.c.l.b16 %v4419
      %v4452 = vunpack.c.l.b16 %v4420
      %v4453 = vunpack.c.l.b16 %v4421
      %v4454 = vunpack.c.l.b16 %v4422
      %v4455 = vunpack.c.l.b16 %v4423
      %v4456 = vunpack.c.l.b16 %v4424
      %v4457 = vunpack.c.l.b16 %v4425
      %v4458 = vunpack.c.l.b16 %v4426
      %v4459 = vunpack.c.l.b16 %v4427
      %v4460 = vunpack.c.l.b16 %v4428
      %v4461 = vunpack.c.l.b16 %v4429
      %v4462 = vpack.c.b16 %v4447, %v4446
      %v4463 = vpack.c.b16 %v4449, %v4448
      %v4464 = vpack.c.b16 %v4451, %v4450
      %v4465 = vpack.c.b16 %v4453, %v4452
      %v4466 = vpack.c.b16 %v4455, %v4454
      %v4467 = vpack.c.b16 %v4457, %v4456
      %v4468 = vpack.c.b16 %v4459, %v4458
      %v4469 = vpack.c.b16 %v4461, %v4460
      %4478 = vmatprep.subr.bf16.mxu0 0
      %4479 = vmatpush1.bf16.msra.mxu0 %v4462
      %4480 = vmatprep.subr.bf16.mxu0 0
      %4481 = vmatpush1.bf16.msra.mxu0 %v4463
      %4482 = vmatprep.subr.bf16.mxu0 0
      %4483 = vmatpush1.bf16.msra.mxu0 %v4464
      %4484 = vmatprep.subr.bf16.mxu0 0
      %4485 = vmatpush1.bf16.msra.mxu0 %v4465
      %4486 = vmatprep.subr.bf16.mxu0 0
      %4487 = vmatpush1.bf16.msra.mxu0 %v4466
      %4488 = vmatprep.subr.bf16.mxu0 0
      %4489 = vmatpush1.bf16.msra.mxu0 %v4467
      %4490 = vmatprep.subr.bf16.mxu0 0
      %4491 = vmatpush1.bf16.msra.mxu0 %v4468
      %4492 = vmatprep.subr.bf16.mxu0 0
      %4493 = vmatpush1.bf16.msra.mxu0 %v4469
      %4494 = vmatprep.subr.bf16.mxu0 0
      %4495 = vmatpush1.bf16.msra.mxu0 0
      %4496 = vmatprep.subr.bf16.mxu0 0
      %4497 = vmatpush1.bf16.msra.mxu0 0
      %4498 = vmatprep.subr.bf16.mxu0 0
      %4499 = vmatpush1.bf16.msra.mxu0 0
      %4500 = vmatprep.subr.bf16.mxu0 0
      %4501 = vmatpush1.bf16.msra.mxu0 0
      %4502 = vmatprep.subr.bf16.mxu0 0
      %4503 = vmatpush1.bf16.msra.mxu0 0
      %4504 = vmatprep.subr.bf16.mxu0 0
      %4505 = vmatpush1.bf16.msra.mxu0 0
      %4506 = vmatprep.subr.bf16.mxu0 0
      %4507 = vmatpush1.bf16.msra.mxu0 0
      %4508 = vmatprep.subr.bf16.mxu0 0
      %4509 = vmatpush1.bf16.msra.mxu0 0
      %4510 = vmatprep.mubr.bf16.mxu0 0
      %4511 = vmatmul.mubr.bf16.gmra.mrb[0].mxu0 %v4366
      %v4512 = vpop.f32.mrb[0].mxu0
      %v4513 = vadd.f32 0.0, %v4512
      %v4514 = vpop.f32.mrb[0].mxu0
      %v4515 = vpop.f32.mrb[0].mxu0
      %v4516 = vadd.f32 0.0, %v4515
      %v4517 = vpop.f32.mrb[0].mxu0
      %4518 = vmatprep.mubr.bf16.mxu0 0
      %4519 = vmatmul.mubr.bf16.gmra.mrb[0].mxu0 %v4367
      %v4520 = vpop.f32.mrb[0].mxu0
      %v4521 = vadd.f32 0.0, %v4520
      %v4522 = vpop.f32.mrb[0].mxu0
      %v4523 = vpop.f32.mrb[0].mxu0
      %v4524 = vadd.f32 0.0, %v4523
      %v4525 = vpop.f32.mrb[0].mxu0
      %4526 = vmatprep.mubr.bf16.mxu0 0
      %4527 = vmatmul.mubr.bf16.gmra.mrb[0].mxu0 %v4368
      %v4528 = vpop.f32.mrb[0].mxu0
      %v4529 = vadd.f32 0.0, %v4528
      %v4530 = vpop.f32.mrb[0].mxu0
      %v4531 = vpop.f32.mrb[0].mxu0
      %v4532 = vadd.f32 0.0, %v4531
      %v4533 = vpop.f32.mrb[0].mxu0
      %4534 = vmatprep.mubr.bf16.mxu0 0
      %4535 = vmatmul.mubr.bf16.gmra.mrb[0].mxu0 %v4369
      %v4536 = vpop.f32.mrb[0].mxu0
      %v4537 = vadd.f32 0.0, %v4536
      %v4538 = vpop.f32.mrb[0].mxu0
      %v4539 = vpop.f32.mrb[0].mxu0
      %v4540 = vadd.f32 0.0, %v4539
      %v4541 = vpop.f32.mrb[0].mxu0
      %4542 = vmatprep.mubr.bf16.mxu0 0
      %4543 = vmatmul.mubr.bf16.gmra.mrb[0].mxu0 %v4370
      %v4544 = vpop.f32.mrb[0].mxu0
      %v4545 = vadd.f32 0.0, %v4544
      %v4546 = vpop.f32.mrb[0].mxu0
      %v4547 = vpop.f32.mrb[0].mxu0
      %v4548 = vadd.f32 0.0, %v4547
      %v4549 = vpop.f32.mrb[0].mxu0
      %4550 = vmatprep.mubr.bf16.mxu0 0
      %4551 = vmatmul.mubr.bf16.gmra.mrb[0].mxu0 %v4371
      %v4552 = vpop.f32.mrb[0].mxu0
      %v4553 = vadd.f32 0.0, %v4552
      %v4554 = vpop.f32.mrb[0].mxu0
      %v4555 = vpop.f32.mrb[0].mxu0
      %v4556 = vadd.f32 0.0, %v4555
      %v4557 = vpop.f32.mrb[0].mxu0
      %4558 = vmatprep.mubr.bf16.mxu0 0
      %4559 = vmatmul.mubr.bf16.gmra.mrb[0].mxu0 %v4372
      %v4560 = vpop.f32.mrb[0].mxu0
      %v4561 = vadd.f32 0.0, %v4560
      %v4562 = vpop.f32.mrb[0].mxu0
      %v4563 = vpop.f32.mrb[0].mxu0
      %v4564 = vadd.f32 0.0, %v4563
      %v4565 = vpop.f32.mrb[0].mxu0
      %4566 = vmatprep.mubr.bf16.mxu0 0
      %4567 = vmatmul.mubr.bf16.gmra.mrb[0].mxu0 %v4373
      %v4568 = vpop.f32.mrb[0].mxu0
      %v4569 = vadd.f32 0.0, %v4568
      %v4570 = vpop.f32.mrb[0].mxu0
      %v4571 = vpop.f32.mrb[0].mxu0
      %v4572 = vadd.f32 0.0, %v4571
      %v4573 = vpop.f32.mrb[0].mxu0
      %4574 = vmatprep.mubr.bf16.mxu0 0
      %4575 = vmatmul.mubr.bf16.gmra.mrb[0].mxu0 %v4374
      %v4576 = vpop.f32.mrb[0].mxu0
      %v4577 = vadd.f32 0.0, %v4576
      %v4578 = vpop.f32.mrb[0].mxu0
      %v4579 = vpop.f32.mrb[0].mxu0
      %v4580 = vadd.f32 0.0, %v4579
      %v4581 = vpop.f32.mrb[0].mxu0
      %4582 = vmatprep.mubr.bf16.mxu0 0
      %4583 = vmatmul.mubr.bf16.gmra.mrb[0].mxu0 %v4375
      %v4584 = vpop.f32.mrb[0].mxu0
      %v4585 = vadd.f32 0.0, %v4584
      %v4586 = vpop.f32.mrb[0].mxu0
      %v4587 = vpop.f32.mrb[0].mxu0
      %v4588 = vadd.f32 0.0, %v4587
      %v4589 = vpop.f32.mrb[0].mxu0
      %4590 = vmatprep.mubr.bf16.mxu0 0
      %4591 = vmatmul.mubr.bf16.gmra.mrb[0].mxu0 %v4376
      %v4592 = vpop.f32.mrb[0].mxu0
      %v4593 = vadd.f32 0.0, %v4592
      %v4594 = vpop.f32.mrb[0].mxu0
      %v4595 = vpop.f32.mrb[0].mxu0
      %v4596 = vadd.f32 0.0, %v4595
      %v4597 = vpop.f32.mrb[0].mxu0
      %4598 = vmatprep.mubr.bf16.mxu0 0
      %4599 = vmatmul.mubr.bf16.gmra.mrb[0].mxu0 %v4377
      %v4600 = vpop.f32.mrb[0].mxu0
      %v4601 = vadd.f32 0.0, %v4600
      %v4602 = vpop.f32.mrb[0].mxu0
      %v4603 = vpop.f32.mrb[0].mxu0
      %v4604 = vadd.f32 0.0, %v4603
      %v4605 = vpop.f32.mrb[0].mxu0
      %4606 = vmatprep.mubr.bf16.mxu0 0
      %4607 = vmatmul.mubr.bf16.gmra.mrb[0].mxu0 %v4378
      %v4608 = vpop.f32.mrb[0].mxu0
      %v4609 = vadd.f32 0.0, %v4608
      %v4610 = vpop.f32.mrb[0].mxu0
      %v4611 = vpop.f32.mrb[0].mxu0
      %v4612 = vadd.f32 0.0, %v4611
      %v4613 = vpop.f32.mrb[0].mxu0
      %4614 = vmatprep.mubr.bf16.mxu0 0
      %4615 = vmatmul.mubr.bf16.gmra.mrb[0].mxu0 %v4379
      %v4616 = vpop.f32.mrb[0].mxu0
      %v4617 = vadd.f32 0.0, %v4616
      %v4618 = vpop.f32.mrb[0].mxu0
      %v4619 = vpop.f32.mrb[0].mxu0
      %v4620 = vadd.f32 0.0, %v4619
      %v4621 = vpop.f32.mrb[0].mxu0
      %4622 = vmatprep.mubr.bf16.mxu0 0
      %4623 = vmatmul.mubr.bf16.gmra.mrb[0].mxu0 %v4380
      %v4624 = vpop.f32.mrb[0].mxu0
      %v4625 = vadd.f32 0.0, %v4624
      %v4626 = vpop.f32.mrb[0].mxu0
      %v4627 = vpop.f32.mrb[0].mxu0
      %v4628 = vadd.f32 0.0, %v4627
      %v4629 = vpop.f32.mrb[0].mxu0
      %4630 = vmatprep.mubr.bf16.mxu0 0
      %4631 = vmatmul.mubr.bf16.gmra.mrb[0].mxu0 %v4381
      %v4632 = vpop.f32.mrb[0].mxu0
      %v4633 = vadd.f32 0.0, %v4632
      %v4634 = vpop.f32.mrb[0].mxu0
      %v4635 = vpop.f32.mrb[0].mxu0
      %v4636 = vadd.f32 0.0, %v4635
      %v4637 = vpop.f32.mrb[0].mxu0
      %4638 = vdwg.mxu0
      %v4639 = vadd.f32 %v4382, %v4513
      %v4640 = vadd.f32 %v4383, %v4516
      %v4641 = vadd.f32 %v4384, %v4521
      %v4642 = vadd.f32 %v4385, %v4524
      %v4643 = vadd.f32 %v4386, %v4529
      %v4644 = vadd.f32 %v4387, %v4532
      %v4645 = vadd.f32 %v4388, %v4537
      %v4646 = vadd.f32 %v4389, %v4540
      %v4647 = vadd.f32 %v4390, %v4545
      %v4648 = vadd.f32 %v4391, %v4548
      %v4649 = vadd.f32 %v4392, %v4553
      %v4650 = vadd.f32 %v4393, %v4556
      %v4651 = vadd.f32 %v4394, %v4561
      %v4652 = vadd.f32 %v4395, %v4564
      %v4653 = vadd.f32 %v4396, %v4569
      %v4654 = vadd.f32 %v4397, %v4572
      %v4655 = vadd.f32 %v4398, %v4577
      %v4656 = vadd.f32 %v4399, %v4580
      %v4657 = vadd.f32 %v4400, %v4585
      %v4658 = vadd.f32 %v4401, %v4588
      %v4659 = vadd.f32 %v4402, %v4593
      %v4660 = vadd.f32 %v4403, %v4596
      %v4661 = vadd.f32 %v4404, %v4601
      %v4662 = vadd.f32 %v4405, %v4604
      %v4663 = vadd.f32 %v4406, %v4609
      %v4664 = vadd.f32 %v4407, %v4612
      %v4665 = vadd.f32 %v4408, %v4617
      %v4666 = vadd.f32 %v4409, %v4620
      %v4667 = vadd.f32 %v4410, %v4625
      %v4668 = vadd.f32 %v4411, %v4628
      %v4669 = vadd.f32 %v4412, %v4633
      %v4670 = vadd.f32 %v4413, %v4636
      %4671 = vst [vmem:[#allocation4] sm:$0xff] %v4639
      %4672 = vst [vmem:[#allocation4 + $0x8] sm:$0xff] %v4640
      %4673 = vst [vmem:[#allocation4 + $0x10] sm:$0xff] %v4641
      %4674 = vst [vmem:[#allocation4 + $0x18] sm:$0xff] %v4642
      %4675 = vst [vmem:[#allocation4 + $0x20] sm:$0xff] %v4643
      %4676 = vst [vmem:[#allocation4 + $0x28] sm:$0xff] %v4644
      %4677 = vst [vmem:[#allocation4 + $0x30] sm:$0xff] %v4645
      %4678 = vst [vmem:[#allocation4 + $0x38] sm:$0xff] %v4646
      %4679 = vst [vmem:[#allocation4 + $0x40] sm:$0xff] %v4647
      %4680 = vst [vmem:[#allocation4 + $0x48] sm:$0xff] %v4648
      %4681 = vst [vmem:[#allocation4 + $0x50] sm:$0xff] %v4649
      %4682 = vst [vmem:[#allocation4 + $0x58] sm:$0xff] %v4650
      %4683 = vst [vmem:[#allocation4 + $0x60] sm:$0xff] %v4651
      %4684 = vst [vmem:[#allocation4 + $0x68] sm:$0xff] %v4652
      %4685 = vst [vmem:[#allocation4 + $0x70] sm:$0xff] %v4653
      %4686 = vst [vmem:[#allocation4 + $0x78] sm:$0xff] %v4654
      %4687 = vst [vmem:[#allocation4 + $0x80] sm:$0xff] %v4655
      %4688 = vst [vmem:[#allocation4 + $0x88] sm:$0xff] %v4656
      %4689 = vst [vmem:[#allocation4 + $0x90] sm:$0xff] %v4657
      %4690 = vst [vmem:[#allocation4 + $0x98] sm:$0xff] %v4658
      %4691 = vst [vmem:[#allocation4 + $0xa0] sm:$0xff] %v4659
      %4692 = vst [vmem:[#allocation4 + $0xa8] sm:$0xff] %v4660
      %4693 = vst [vmem:[#allocation4 + $0xb0] sm:$0xff] %v4661
      %4694 = vst [vmem:[#allocation4 + $0xb8] sm:$0xff] %v4662
      %4695 = vst [vmem:[#allocation4 + $0xc0] sm:$0xff] %v4663
      %4696 = vst [vmem:[#allocation4 + $0xc8] sm:$0xff] %v4664
      %4697 = vst [vmem:[#allocation4 + $0xd0] sm:$0xff] %v4665
      %4698 = vst [vmem:[#allocation4 + $0xd8] sm:$0xff] %v4666
      %4699 = vst [vmem:[#allocation4 + $0xe0] sm:$0xff] %v4667
      %4700 = vst [vmem:[#allocation4 + $0xe8] sm:$0xff] %v4668
      %4701 = vst [vmem:[#allocation4 + $0xf0] sm:$0xff] %v4669
      %4702 = vst [vmem:[#allocation4 + $0xf8] sm:$0xff] %v4670
      %v4703 = vld [vmem:[#allocation2 + $0x8] sm:$0xff]
      %v4704 = vld [vmem:[#allocation2 + $0x10] sm:$0xff]
      %v4705 = vld [vmem:[#allocation2 + $0x28] sm:$0xff]
      %v4706 = vld [vmem:[#allocation2 + $0x30] sm:$0xff]
      %v4707 = vld [vmem:[#allocation2 + $0x48] sm:$0xff]
      %v4708 = vld [vmem:[#allocation2 + $0x50] sm:$0xff]
      %v4709 = vld [vmem:[#allocation2 + $0x68] sm:$0xff]
      %v4710 = vld [vmem:[#allocation2 + $0x70] sm:$0xff]
      %v4711 = vld [vmem:[#allocation2 + $0x88] sm:$0xff]
      %v4712 = vld [vmem:[#allocation2 + $0x90] sm:$0xff]
      %v4713 = vld [vmem:[#allocation2 + $0xa8] sm:$0xff]
      %v4714 = vld [vmem:[#allocation2 + $0xb0] sm:$0xff]
      %v4715 = vld [vmem:[#allocation2 + $0xc8] sm:$0xff]
      %v4716 = vld [vmem:[#allocation2 + $0xd0] sm:$0xff]
      %v4717 = vld [vmem:[#allocation2 + $0xe8] sm:$0xff]
      %v4718 = vld [vmem:[#allocation2 + $0xf0] sm:$0xff]
      %v4719 = vld [vmem:[#allocation2 + $0x108] sm:$0xff]
      %v4720 = vld [vmem:[#allocation2 + $0x110] sm:$0xff]
      %v4721 = vld [vmem:[#allocation2 + $0x128] sm:$0xff]
      %v4722 = vld [vmem:[#allocation2 + $0x130] sm:$0xff]
      %v4723 = vld [vmem:[#allocation2 + $0x148] sm:$0xff]
      %v4724 = vld [vmem:[#allocation2 + $0x150] sm:$0xff]
      %v4725 = vld [vmem:[#allocation2 + $0x168] sm:$0xff]
      %v4726 = vld [vmem:[#allocation2 + $0x170] sm:$0xff]
      %v4727 = vld [vmem:[#allocation2 + $0x188] sm:$0xff]
      %v4728 = vld [vmem:[#allocation2 + $0x190] sm:$0xff]
      %v4729 = vld [vmem:[#allocation2 + $0x1a8] sm:$0xff]
      %v4730 = vld [vmem:[#allocation2 + $0x1b0] sm:$0xff]
      %v4731 = vld [vmem:[#allocation2 + $0x1c8] sm:$0xff]
      %v4732 = vld [vmem:[#allocation2 + $0x1d0] sm:$0xff]
      %v4733 = vld [vmem:[#allocation2 + $0x1e8] sm:$0xff]
      %v4734 = vld [vmem:[#allocation2 + $0x1f0] sm:$0xff]
      %v4735 = vpack.c.bf16 %v4704, %v4703
      %v4736 = vpack.c.bf16 %v4706, %v4705
      %v4737 = vpack.c.bf16 %v4708, %v4707
      %v4738 = vpack.c.bf16 %v4710, %v4709
      %v4739 = vpack.c.bf16 %v4712, %v4711
      %v4740 = vpack.c.bf16 %v4714, %v4713
      %v4741 = vpack.c.bf16 %v4716, %v4715
      %v4742 = vpack.c.bf16 %v4718, %v4717
      %v4743 = vpack.c.bf16 %v4720, %v4719
      %v4744 = vpack.c.bf16 %v4722, %v4721
      %v4745 = vpack.c.bf16 %v4724, %v4723
      %v4746 = vpack.c.bf16 %v4726, %v4725
      %v4747 = vpack.c.bf16 %v4728, %v4727
      %v4748 = vpack.c.bf16 %v4730, %v4729
      %v4749 = vpack.c.bf16 %v4732, %v4731
      %v4750 = vpack.c.bf16 %v4734, %v4733
      %v4751 = vld [vmem:[#allocation4] sm:$0xff]
      %v4752 = vld [vmem:[#allocation4 + $0x8] sm:$0xff]
      %v4753 = vld [vmem:[#allocation4 + $0x10] sm:$0xff]
      %v4754 = vld [vmem:[#allocation4 + $0x18] sm:$0xff]
      %v4755 = vld [vmem:[#allocation4 + $0x20] sm:$0xff]
      %v4756 = vld [vmem:[#allocation4 + $0x28] sm:$0xff]
      %v4757 = vld [vmem:[#allocation4 + $0x30] sm:$0xff]
      %v4758 = vld [vmem:[#allocation4 + $0x38] sm:$0xff]
      %v4759 = vld [vmem:[#allocation4 + $0x40] sm:$0xff]
      %v4760 = vld [vmem:[#allocation4 + $0x48] sm:$0xff]
      %v4761 = vld [vmem:[#allocation4 + $0x50] sm:$0xff]
      %v4762 = vld [vmem:[#allocation4 + $0x58] sm:$0xff]
      %v4763 = vld [vmem:[#allocation4 + $0x60] sm:$0xff]
      %v4764 = vld [vmem:[#allocation4 + $0x68] sm:$0xff]
      %v4765 = vld [vmem:[#allocation4 + $0x70] sm:$0xff]
      %v4766 = vld [vmem:[#allocation4 + $0x78] sm:$0xff]
      %v4767 = vld [vmem:[#allocation4 + $0x80] sm:$0xff]
      %v4768 = vld [vmem:[#allocation4 + $0x88] sm:$0xff]
      %v4769 = vld [vmem:[#allocation4 + $0x90] sm:$0xff]
      %v4770 = vld [vmem:[#allocation4 + $0x98] sm:$0xff]
      %v4771 = vld [vmem:[#allocation4 + $0xa0] sm:$0xff]
      %v4772 = vld [vmem:[#allocation4 + $0xa8] sm:$0xff]
      %v4773 = vld [vmem:[#allocation4 + $0xb0] sm:$0xff]
      %v4774 = vld [vmem:[#allocation4 + $0xb8] sm:$0xff]
      %v4775 = vld [vmem:[#allocation4 + $0xc0] sm:$0xff]
      %v4776 = vld [vmem:[#allocation4 + $0xc8] sm:$0xff]
      %v4777 = vld [vmem:[#allocation4 + $0xd0] sm:$0xff]
      %v4778 = vld [vmem:[#allocation4 + $0xd8] sm:$0xff]
      %v4779 = vld [vmem:[#allocation4 + $0xe0] sm:$0xff]
      %v4780 = vld [vmem:[#allocation4 + $0xe8] sm:$0xff]
      %v4781 = vld [vmem:[#allocation4 + $0xf0] sm:$0xff]
      %v4782 = vld [vmem:[#allocation4 + $0xf8] sm:$0xff]
      %s4783 = scalar_lea.vmem %s5, 64
      %v4784 = vld [vmem:[%s4783] sm:$0xf]
      %v4785 = vld [vmem:[%s4783 + $0x4] sm:$0xf]
      %v4786 = vld [vmem:[%s4783 + $0x8] sm:$0xf]
      %v4787 = vld [vmem:[%s4783 + $0xc] sm:$0xf]
      %v4788 = vld [vmem:[%s4783 + $0x10] sm:$0xf]
      %v4789 = vld [vmem:[%s4783 + $0x14] sm:$0xf]
      %v4790 = vld [vmem:[%s4783 + $0x18] sm:$0xf]
      %v4791 = vld [vmem:[%s4783 + $0x1c] sm:$0xf]
      %v4792 = vld [vmem:[%s4783 + $0x20] sm:$0xf]
      %v4793 = vld [vmem:[%s4783 + $0x24] sm:$0xf]
      %v4794 = vld [vmem:[%s4783 + $0x28] sm:$0xf]
      %v4795 = vld [vmem:[%s4783 + $0x2c] sm:$0xf]
      %v4796 = vld [vmem:[%s4783 + $0x30] sm:$0xf]
      %v4797 = vld [vmem:[%s4783 + $0x34] sm:$0xf]
      %v4798 = vld [vmem:[%s4783 + $0x38] sm:$0xf]
      %v4799 = vld [vmem:[%s4783 + $0x3c] sm:$0xf]
      %v4816 = vunpack.c.l.b16 %v4784
      %v4817 = vunpack.c.l.b16 %v4785
      %v4818 = vunpack.c.l.b16 %v4786
      %v4819 = vunpack.c.l.b16 %v4787
      %v4820 = vunpack.c.l.b16 %v4788
      %v4821 = vunpack.c.l.b16 %v4789
      %v4822 = vunpack.c.l.b16 %v4790
      %v4823 = vunpack.c.l.b16 %v4791
      %v4824 = vunpack.c.l.b16 %v4792
      %v4825 = vunpack.c.l.b16 %v4793
      %v4826 = vunpack.c.l.b16 %v4794
      %v4827 = vunpack.c.l.b16 %v4795
      %v4828 = vunpack.c.l.b16 %v4796
      %v4829 = vunpack.c.l.b16 %v4797
      %v4830 = vunpack.c.l.b16 %v4798
      %v4831 = vunpack.c.l.b16 %v4799
      %v4832 = vpack.c.b16 %v4817, %v4816
      %v4833 = vpack.c.b16 %v4819, %v4818
      %v4834 = vpack.c.b16 %v4821, %v4820
      %v4835 = vpack.c.b16 %v4823, %v4822
      %v4836 = vpack.c.b16 %v4825, %v4824
      %v4837 = vpack.c.b16 %v4827, %v4826
      %v4838 = vpack.c.b16 %v4829, %v4828
      %v4839 = vpack.c.b16 %v4831, %v4830
      %4848 = vmatprep.subr.bf16.mxu0 0
      %4849 = vmatpush1.bf16.msra.mxu0 %v4832
      %4850 = vmatprep.subr.bf16.mxu0 0
      %4851 = vmatpush1.bf16.msra.mxu0 %v4833
      %4852 = vmatprep.subr.bf16.mxu0 0
      %4853 = vmatpush1.bf16.msra.mxu0 %v4834
      %4854 = vmatprep.subr.bf16.mxu0 0
      %4855 = vmatpush1.bf16.msra.mxu0 %v4835
      %4856 = vmatprep.subr.bf16.mxu0 0
      %4857 = vmatpush1.bf16.msra.mxu0 %v4836
      %4858 = vmatprep.subr.bf16.mxu0 0
      %4859 = vmatpush1.bf16.msra.mxu0 %v4837
      %4860 = vmatprep.subr.bf16.mxu0 0
      %4861 = vmatpush1.bf16.msra.mxu0 %v4838
      %4862 = vmatprep.subr.bf16.mxu0 0
      %4863 = vmatpush1.bf16.msra.mxu0 %v4839
      %4864 = vmatprep.subr.bf16.mxu0 0
      %4865 = vmatpush1.bf16.msra.mxu0 0
      %4866 = vmatprep.subr.bf16.mxu0 0
      %4867 = vmatpush1.bf16.msra.mxu0 0
      %4868 = vmatprep.subr.bf16.mxu0 0
      %4869 = vmatpush1.bf16.msra.mxu0 0
      %4870 = vmatprep.subr.bf16.mxu0 0
      %4871 = vmatpush1.bf16.msra.mxu0 0
      %4872 = vmatprep.subr.bf16.mxu0 0
      %4873 = vmatpush1.bf16.msra.mxu0 0
      %4874 = vmatprep.subr.bf16.mxu0 0
      %4875 = vmatpush1.bf16.msra.mxu0 0
      %4876 = vmatprep.subr.bf16.mxu0 0
      %4877 = vmatpush1.bf16.msra.mxu0 0
      %4878 = vmatprep.subr.bf16.mxu0 0
      %4879 = vmatpush1.bf16.msra.mxu0 0
      %4880 = vmatprep.mubr.bf16.mxu0 0
      %4881 = vmatmul.mubr.bf16.gmra.mrb[0].mxu0 %v4735
      %v4882 = vpop.f32.mrb[0].mxu0
      %v4883 = vadd.f32 0.0, %v4882
      %v4884 = vpop.f32.mrb[0].mxu0
      %v4885 = vpop.f32.mrb[0].mxu0
      %v4886 = vadd.f32 0.0, %v4885
      %v4887 = vpop.f32.mrb[0].mxu0
      %4888 = vmatprep.mubr.bf16.mxu0 0
      %4889 = vmatmul.mubr.bf16.gmra.mrb[0].mxu0 %v4736
      %v4890 = vpop.f32.mrb[0].mxu0
      %v4891 = vadd.f32 0.0, %v4890
      %v4892 = vpop.f32.mrb[0].mxu0
      %v4893 = vpop.f32.mrb[0].mxu0
      %v4894 = vadd.f32 0.0, %v4893
      %v4895 = vpop.f32.mrb[0].mxu0
      %4896 = vmatprep.mubr.bf16.mxu0 0
      %4897 = vmatmul.mubr.bf16.gmra.mrb[0].mxu0 %v4737
      %v4898 = vpop.f32.mrb[0].mxu0
      %v4899 = vadd.f32 0.0, %v4898
      %v4900 = vpop.f32.mrb[0].mxu0
      %v4901 = vpop.f32.mrb[0].mxu0
      %v4902 = vadd.f32 0.0, %v4901
      %v4903 = vpop.f32.mrb[0].mxu0
      %4904 = vmatprep.mubr.bf16.mxu0 0
      %4905 = vmatmul.mubr.bf16.gmra.mrb[0].mxu0 %v4738
      %v4906 = vpop.f32.mrb[0].mxu0
      %v4907 = vadd.f32 0.0, %v4906
      %v4908 = vpop.f32.mrb[0].mxu0
      %v4909 = vpop.f32.mrb[0].mxu0
      %v4910 = vadd.f32 0.0, %v4909
      %v4911 = vpop.f32.mrb[0].mxu0
      %4912 = vmatprep.mubr.bf16.mxu0 0
      %4913 = vmatmul.mubr.bf16.gmra.mrb[0].mxu0 %v4739
      %v4914 = vpop.f32.mrb[0].mxu0
      %v4915 = vadd.f32 0.0, %v4914
      %v4916 = vpop.f32.mrb[0].mxu0
      %v4917 = vpop.f32.mrb[0].mxu0
      %v4918 = vadd.f32 0.0, %v4917
      %v4919 = vpop.f32.mrb[0].mxu0
      %4920 = vmatprep.mubr.bf16.mxu0 0
      %4921 = vmatmul.mubr.bf16.gmra.mrb[0].mxu0 %v4740
      %v4922 = vpop.f32.mrb[0].mxu0
      %v4923 = vadd.f32 0.0, %v4922
      %v4924 = vpop.f32.mrb[0].mxu0
      %v4925 = vpop.f32.mrb[0].mxu0
      %v4926 = vadd.f32 0.0, %v4925
      %v4927 = vpop.f32.mrb[0].mxu0
      %4928 = vmatprep.mubr.bf16.mxu0 0
      %4929 = vmatmul.mubr.bf16.gmra.mrb[0].mxu0 %v4741
      %v4930 = vpop.f32.mrb[0].mxu0
      %v4931 = vadd.f32 0.0, %v4930
      %v4932 = vpop.f32.mrb[0].mxu0
      %v4933 = vpop.f32.mrb[0].mxu0
      %v4934 = vadd.f32 0.0, %v4933
      %v4935 = vpop.f32.mrb[0].mxu0
      %4936 = vmatprep.mubr.bf16.mxu0 0
      %4937 = vmatmul.mubr.bf16.gmra.mrb[0].mxu0 %v4742
      %v4938 = vpop.f32.mrb[0].mxu0
      %v4939 = vadd.f32 0.0, %v4938
      %v4940 = vpop.f32.mrb[0].mxu0
      %v4941 = vpop.f32.mrb[0].mxu0
      %v4942 = vadd.f32 0.0, %v4941
      %v4943 = vpop.f32.mrb[0].mxu0
      %4944 = vmatprep.mubr.bf16.mxu0 0
      %4945 = vmatmul.mubr.bf16.gmra.mrb[0].mxu0 %v4743
      %v4946 = vpop.f32.mrb[0].mxu0
      %v4947 = vadd.f32 0.0, %v4946
      %v4948 = vpop.f32.mrb[0].mxu0
      %v4949 = vpop.f32.mrb[0].mxu0
      %v4950 = vadd.f32 0.0, %v4949
      %v4951 = vpop.f32.mrb[0].mxu0
      %4952 = vmatprep.mubr.bf16.mxu0 0
      %4953 = vmatmul.mubr.bf16.gmra.mrb[0].mxu0 %v4744
      %v4954 = vpop.f32.mrb[0].mxu0
      %v4955 = vadd.f32 0.0, %v4954
      %v4956 = vpop.f32.mrb[0].mxu0
      %v4957 = vpop.f32.mrb[0].mxu0
      %v4958 = vadd.f32 0.0, %v4957
      %v4959 = vpop.f32.mrb[0].mxu0
      %4960 = vmatprep.mubr.bf16.mxu0 0
      %4961 = vmatmul.mubr.bf16.gmra.mrb[0].mxu0 %v4745
      %v4962 = vpop.f32.mrb[0].mxu0
      %v4963 = vadd.f32 0.0, %v4962
      %v4964 = vpop.f32.mrb[0].mxu0
      %v4965 = vpop.f32.mrb[0].mxu0
      %v4966 = vadd.f32 0.0, %v4965
      %v4967 = vpop.f32.mrb[0].mxu0
      %4968 = vmatprep.mubr.bf16.mxu0 0
      %4969 = vmatmul.mubr.bf16.gmra.mrb[0].mxu0 %v4746
      %v4970 = vpop.f32.mrb[0].mxu0
      %v4971 = vadd.f32 0.0, %v4970
      %v4972 = vpop.f32.mrb[0].mxu0
      %v4973 = vpop.f32.mrb[0].mxu0
      %v4974 = vadd.f32 0.0, %v4973
      %v4975 = vpop.f32.mrb[0].mxu0
      %4976 = vmatprep.mubr.bf16.mxu0 0
      %4977 = vmatmul.mubr.bf16.gmra.mrb[0].mxu0 %v4747
      %v4978 = vpop.f32.mrb[0].mxu0
      %v4979 = vadd.f32 0.0, %v4978
      %v4980 = vpop.f32.mrb[0].mxu0
      %v4981 = vpop.f32.mrb[0].mxu0
      %v4982 = vadd.f32 0.0, %v4981
      %v4983 = vpop.f32.mrb[0].mxu0
      %4984 = vmatprep.mubr.bf16.mxu0 0
      %4985 = vmatmul.mubr.bf16.gmra.mrb[0].mxu0 %v4748
      %v4986 = vpop.f32.mrb[0].mxu0
      %v4987 = vadd.f32 0.0, %v4986
      %v4988 = vpop.f32.mrb[0].mxu0
      %v4989 = vpop.f32.mrb[0].mxu0
      %v4990 = vadd.f32 0.0, %v4989
      %v4991 = vpop.f32.mrb[0].mxu0
      %4992 = vmatprep.mubr.bf16.mxu0 0
      %4993 = vmatmul.mubr.bf16.gmra.mrb[0].mxu0 %v4749
      %v4994 = vpop.f32.mrb[0].mxu0
      %v4995 = vadd.f32 0.0, %v4994
      %v4996 = vpop.f32.mrb[0].mxu0
      %v4997 = vpop.f32.mrb[0].mxu0
      %v4998 = vadd.f32 0.0, %v4997
      %v4999 = vpop.f32.mrb[0].mxu0
      %5000 = vmatprep.mubr.bf16.mxu0 0
      %5001 = vmatmul.mubr.bf16.gmra.mrb[0].mxu0 %v4750
      %v5002 = vpop.f32.mrb[0].mxu0
      %v5003 = vadd.f32 0.0, %v5002
      %v5004 = vpop.f32.mrb[0].mxu0
      %v5005 = vpop.f32.mrb[0].mxu0
      %v5006 = vadd.f32 0.0, %v5005
      %v5007 = vpop.f32.mrb[0].mxu0
      %5008 = vdwg.mxu0
      %v5009 = vadd.f32 %v4751, %v4883
      %v5010 = vadd.f32 %v4752, %v4886
      %v5011 = vadd.f32 %v4753, %v4891
      %v5012 = vadd.f32 %v4754, %v4894
      %v5013 = vadd.f32 %v4755, %v4899
      %v5014 = vadd.f32 %v4756, %v4902
      %v5015 = vadd.f32 %v4757, %v4907
      %v5016 = vadd.f32 %v4758, %v4910
      %v5017 = vadd.f32 %v4759, %v4915
      %v5018 = vadd.f32 %v4760, %v4918
      %v5019 = vadd.f32 %v4761, %v4923
      %v5020 = vadd.f32 %v4762, %v4926
      %v5021 = vadd.f32 %v4763, %v4931
      %v5022 = vadd.f32 %v4764, %v4934
      %v5023 = vadd.f32 %v4765, %v4939
      %v5024 = vadd.f32 %v4766, %v4942
      %v5025 = vadd.f32 %v4767, %v4947
      %v5026 = vadd.f32 %v4768, %v4950
      %v5027 = vadd.f32 %v4769, %v4955
      %v5028 = vadd.f32 %v4770, %v4958
      %v5029 = vadd.f32 %v4771, %v4963
      %v5030 = vadd.f32 %v4772, %v4966
      %v5031 = vadd.f32 %v4773, %v4971
      %v5032 = vadd.f32 %v4774, %v4974
      %v5033 = vadd.f32 %v4775, %v4979
      %v5034 = vadd.f32 %v4776, %v4982
      %v5035 = vadd.f32 %v4777, %v4987
      %v5036 = vadd.f32 %v4778, %v4990
      %v5037 = vadd.f32 %v4779, %v4995
      %v5038 = vadd.f32 %v4780, %v4998
      %v5039 = vadd.f32 %v4781, %v5003
      %v5040 = vadd.f32 %v4782, %v5006
      %5041 = vst [vmem:[#allocation4] sm:$0xff] %v5009
      %5042 = vst [vmem:[#allocation4 + $0x8] sm:$0xff] %v5010
      %5043 = vst [vmem:[#allocation4 + $0x10] sm:$0xff] %v5011
      %5044 = vst [vmem:[#allocation4 + $0x18] sm:$0xff] %v5012
      %5045 = vst [vmem:[#allocation4 + $0x20] sm:$0xff] %v5013
      %5046 = vst [vmem:[#allocation4 + $0x28] sm:$0xff] %v5014
      %5047 = vst [vmem:[#allocation4 + $0x30] sm:$0xff] %v5015
      %5048 = vst [vmem:[#allocation4 + $0x38] sm:$0xff] %v5016
      %5049 = vst [vmem:[#allocation4 + $0x40] sm:$0xff] %v5017
      %5050 = vst [vmem:[#allocation4 + $0x48] sm:$0xff] %v5018
      %5051 = vst [vmem:[#allocation4 + $0x50] sm:$0xff] %v5019
      %5052 = vst [vmem:[#allocation4 + $0x58] sm:$0xff] %v5020
      %5053 = vst [vmem:[#allocation4 + $0x60] sm:$0xff] %v5021
      %5054 = vst [vmem:[#allocation4 + $0x68] sm:$0xff] %v5022
      %5055 = vst [vmem:[#allocation4 + $0x70] sm:$0xff] %v5023
      %5056 = vst [vmem:[#allocation4 + $0x78] sm:$0xff] %v5024
      %5057 = vst [vmem:[#allocation4 + $0x80] sm:$0xff] %v5025
      %5058 = vst [vmem:[#allocation4 + $0x88] sm:$0xff] %v5026
      %5059 = vst [vmem:[#allocation4 + $0x90] sm:$0xff] %v5027
      %5060 = vst [vmem:[#allocation4 + $0x98] sm:$0xff] %v5028
      %5061 = vst [vmem:[#allocation4 + $0xa0] sm:$0xff] %v5029
      %5062 = vst [vmem:[#allocation4 + $0xa8] sm:$0xff] %v5030
      %5063 = vst [vmem:[#allocation4 + $0xb0] sm:$0xff] %v5031
      %5064 = vst [vmem:[#allocation4 + $0xb8] sm:$0xff] %v5032
      %5065 = vst [vmem:[#allocation4 + $0xc0] sm:$0xff] %v5033
      %5066 = vst [vmem:[#allocation4 + $0xc8] sm:$0xff] %v5034
      %5067 = vst [vmem:[#allocation4 + $0xd0] sm:$0xff] %v5035
      %5068 = vst [vmem:[#allocation4 + $0xd8] sm:$0xff] %v5036
      %5069 = vst [vmem:[#allocation4 + $0xe0] sm:$0xff] %v5037
      %5070 = vst [vmem:[#allocation4 + $0xe8] sm:$0xff] %v5038
      %5071 = vst [vmem:[#allocation4 + $0xf0] sm:$0xff] %v5039
      %5072 = vst [vmem:[#allocation4 + $0xf8] sm:$0xff] %v5040
      %v5073 = vld [vmem:[#allocation2 + $0x9] sm:$0xff]
      %v5074 = vld [vmem:[#allocation2 + $0x11] sm:$0xff]
      %v5075 = vld [vmem:[#allocation2 + $0x29] sm:$0xff]
      %v5076 = vld [vmem:[#allocation2 + $0x31] sm:$0xff]
      %v5077 = vld [vmem:[#allocation2 + $0x49] sm:$0xff]
      %v5078 = vld [vmem:[#allocation2 + $0x51] sm:$0xff]
      %v5079 = vld [vmem:[#allocation2 + $0x69] sm:$0xff]
      %v5080 = vld [vmem:[#allocation2 + $0x71] sm:$0xff]
      %v5081 = vld [vmem:[#allocation2 + $0x89] sm:$0xff]
      %v5082 = vld [vmem:[#allocation2 + $0x91] sm:$0xff]
      %v5083 = vld [vmem:[#allocation2 + $0xa9] sm:$0xff]
      %v5084 = vld [vmem:[#allocation2 + $0xb1] sm:$0xff]
      %v5085 = vld [vmem:[#allocation2 + $0xc9] sm:$0xff]
      %v5086 = vld [vmem:[#allocation2 + $0xd1] sm:$0xff]
      %v5087 = vld [vmem:[#allocation2 + $0xe9] sm:$0xff]
      %v5088 = vld [vmem:[#allocation2 + $0xf1] sm:$0xff]
      %v5089 = vld [vmem:[#allocation2 + $0x109] sm:$0xff]
      %v5090 = vld [vmem:[#allocation2 + $0x111] sm:$0xff]
      %v5091 = vld [vmem:[#allocation2 + $0x129] sm:$0xff]
      %v5092 = vld [vmem:[#allocation2 + $0x131] sm:$0xff]
      %v5093 = vld [vmem:[#allocation2 + $0x149] sm:$0xff]
      %v5094 = vld [vmem:[#allocation2 + $0x151] sm:$0xff]
      %v5095 = vld [vmem:[#allocation2 + $0x169] sm:$0xff]
      %v5096 = vld [vmem:[#allocation2 + $0x171] sm:$0xff]
      %v5097 = vld [vmem:[#allocation2 + $0x189] sm:$0xff]
      %v5098 = vld [vmem:[#allocation2 + $0x191] sm:$0xff]
      %v5099 = vld [vmem:[#allocation2 + $0x1a9] sm:$0xff]
      %v5100 = vld [vmem:[#allocation2 + $0x1b1] sm:$0xff]
      %v5101 = vld [vmem:[#allocation2 + $0x1c9] sm:$0xff]
      %v5102 = vld [vmem:[#allocation2 + $0x1d1] sm:$0xff]
      %v5103 = vld [vmem:[#allocation2 + $0x1e9] sm:$0xff]
      %v5104 = vld [vmem:[#allocation2 + $0x1f1] sm:$0xff]
      %v5105 = vpack.c.bf16 %v5074, %v5073
      %v5106 = vpack.c.bf16 %v5076, %v5075
      %v5107 = vpack.c.bf16 %v5078, %v5077
      %v5108 = vpack.c.bf16 %v5080, %v5079
      %v5109 = vpack.c.bf16 %v5082, %v5081
      %v5110 = vpack.c.bf16 %v5084, %v5083
      %v5111 = vpack.c.bf16 %v5086, %v5085
      %v5112 = vpack.c.bf16 %v5088, %v5087
      %v5113 = vpack.c.bf16 %v5090, %v5089
      %v5114 = vpack.c.bf16 %v5092, %v5091
      %v5115 = vpack.c.bf16 %v5094, %v5093
      %v5116 = vpack.c.bf16 %v5096, %v5095
      %v5117 = vpack.c.bf16 %v5098, %v5097
      %v5118 = vpack.c.bf16 %v5100, %v5099
      %v5119 = vpack.c.bf16 %v5102, %v5101
      %v5120 = vpack.c.bf16 %v5104, %v5103
      %v5121 = vld [vmem:[#allocation4] sm:$0xff]
      %v5122 = vld [vmem:[#allocation4 + $0x8] sm:$0xff]
      %v5123 = vld [vmem:[#allocation4 + $0x10] sm:$0xff]
      %v5124 = vld [vmem:[#allocation4 + $0x18] sm:$0xff]
      %v5125 = vld [vmem:[#allocation4 + $0x20] sm:$0xff]
      %v5126 = vld [vmem:[#allocation4 + $0x28] sm:$0xff]
      %v5127 = vld [vmem:[#allocation4 + $0x30] sm:$0xff]
      %v5128 = vld [vmem:[#allocation4 + $0x38] sm:$0xff]
      %v5129 = vld [vmem:[#allocation4 + $0x40] sm:$0xff]
      %v5130 = vld [vmem:[#allocation4 + $0x48] sm:$0xff]
      %v5131 = vld [vmem:[#allocation4 + $0x50] sm:$0xff]
      %v5132 = vld [vmem:[#allocation4 + $0x58] sm:$0xff]
      %v5133 = vld [vmem:[#allocation4 + $0x60] sm:$0xff]
      %v5134 = vld [vmem:[#allocation4 + $0x68] sm:$0xff]
      %v5135 = vld [vmem:[#allocation4 + $0x70] sm:$0xff]
      %v5136 = vld [vmem:[#allocation4 + $0x78] sm:$0xff]
      %v5137 = vld [vmem:[#allocation4 + $0x80] sm:$0xff]
      %v5138 = vld [vmem:[#allocation4 + $0x88] sm:$0xff]
      %v5139 = vld [vmem:[#allocation4 + $0x90] sm:$0xff]
      %v5140 = vld [vmem:[#allocation4 + $0x98] sm:$0xff]
      %v5141 = vld [vmem:[#allocation4 + $0xa0] sm:$0xff]
      %v5142 = vld [vmem:[#allocation4 + $0xa8] sm:$0xff]
      %v5143 = vld [vmem:[#allocation4 + $0xb0] sm:$0xff]
      %v5144 = vld [vmem:[#allocation4 + $0xb8] sm:$0xff]
      %v5145 = vld [vmem:[#allocation4 + $0xc0] sm:$0xff]
      %v5146 = vld [vmem:[#allocation4 + $0xc8] sm:$0xff]
      %v5147 = vld [vmem:[#allocation4 + $0xd0] sm:$0xff]
      %v5148 = vld [vmem:[#allocation4 + $0xd8] sm:$0xff]
      %v5149 = vld [vmem:[#allocation4 + $0xe0] sm:$0xff]
      %v5150 = vld [vmem:[#allocation4 + $0xe8] sm:$0xff]
      %v5151 = vld [vmem:[#allocation4 + $0xf0] sm:$0xff]
      %v5152 = vld [vmem:[#allocation4 + $0xf8] sm:$0xff]
      %s5153 = scalar_lea.vmem %s5, 128
      %v5154 = vld [vmem:[%s5153] sm:$0xf]
      %v5155 = vld [vmem:[%s5153 + $0x4] sm:$0xf]
      %v5156 = vld [vmem:[%s5153 + $0x8] sm:$0xf]
      %v5157 = vld [vmem:[%s5153 + $0xc] sm:$0xf]
      %v5158 = vld [vmem:[%s5153 + $0x10] sm:$0xf]
      %v5159 = vld [vmem:[%s5153 + $0x14] sm:$0xf]
      %v5160 = vld [vmem:[%s5153 + $0x18] sm:$0xf]
      %v5161 = vld [vmem:[%s5153 + $0x1c] sm:$0xf]
      %v5162 = vld [vmem:[%s5153 + $0x20] sm:$0xf]
      %v5163 = vld [vmem:[%s5153 + $0x24] sm:$0xf]
      %v5164 = vld [vmem:[%s5153 + $0x28] sm:$0xf]
      %v5165 = vld [vmem:[%s5153 + $0x2c] sm:$0xf]
      %v5166 = vld [vmem:[%s5153 + $0x30] sm:$0xf]
      %v5167 = vld [vmem:[%s5153 + $0x34] sm:$0xf]
      %v5168 = vld [vmem:[%s5153 + $0x38] sm:$0xf]
      %v5169 = vld [vmem:[%s5153 + $0x3c] sm:$0xf]
      %v5186 = vunpack.c.l.b16 %v5154
      %v5187 = vunpack.c.l.b16 %v5155
      %v5188 = vunpack.c.l.b16 %v5156
      %v5189 = vunpack.c.l.b16 %v5157
      %v5190 = vunpack.c.l.b16 %v5158
      %v5191 = vunpack.c.l.b16 %v5159
      %v5192 = vunpack.c.l.b16 %v5160
      %v5193 = vunpack.c.l.b16 %v5161
      %v5194 = vunpack.c.l.b16 %v5162
      %v5195 = vunpack.c.l.b16 %v5163
      %v5196 = vunpack.c.l.b16 %v5164
      %v5197 = vunpack.c.l.b16 %v5165
      %v5198 = vunpack.c.l.b16 %v5166
      %v5199 = vunpack.c.l.b16 %v5167
      %v5200 = vunpack.c.l.b16 %v5168
      %v5201 = vunpack.c.l.b16 %v5169
      %v5202 = vpack.c.b16 %v5187, %v5186
      %v5203 = vpack.c.b16 %v5189, %v5188
      %v5204 = vpack.c.b16 %v5191, %v5190
      %v5205 = vpack.c.b16 %v5193, %v5192
      %v5206 = vpack.c.b16 %v5195, %v5194
      %v5207 = vpack.c.b16 %v5197, %v5196
      %v5208 = vpack.c.b16 %v5199, %v5198
      %v5209 = vpack.c.b16 %v5201, %v5200
      %5218 = vmatprep.subr.bf16.mxu0 0
      %5219 = vmatpush1.bf16.msra.mxu0 %v5202
      %5220 = vmatprep.subr.bf16.mxu0 0
      %5221 = vmatpush1.bf16.msra.mxu0 %v5203
      %5222 = vmatprep.subr.bf16.mxu0 0
      %5223 = vmatpush1.bf16.msra.mxu0 %v5204
      %5224 = vmatprep.subr.bf16.mxu0 0
      %5225 = vmatpush1.bf16.msra.mxu0 %v5205
      %5226 = vmatprep.subr.bf16.mxu0 0
      %5227 = vmatpush1.bf16.msra.mxu0 %v5206
      %5228 = vmatprep.subr.bf16.mxu0 0
      %5229 = vmatpush1.bf16.msra.mxu0 %v5207
      %5230 = vmatprep.subr.bf16.mxu0 0
      %5231 = vmatpush1.bf16.msra.mxu0 %v5208
      %5232 = vmatprep.subr.bf16.mxu0 0
      %5233 = vmatpush1.bf16.msra.mxu0 %v5209
      %5234 = vmatprep.subr.bf16.mxu0 0
      %5235 = vmatpush1.bf16.msra.mxu0 0
      %5236 = vmatprep.subr.bf16.mxu0 0
      %5237 = vmatpush1.bf16.msra.mxu0 0
      %5238 = vmatprep.subr.bf16.mxu0 0
      %5239 = vmatpush1.bf16.msra.mxu0 0
      %5240 = vmatprep.subr.bf16.mxu0 0
      %5241 = vmatpush1.bf16.msra.mxu0 0
      %5242 = vmatprep.subr.bf16.mxu0 0
      %5243 = vmatpush1.bf16.msra.mxu0 0
      %5244 = vmatprep.subr.bf16.mxu0 0
      %5245 = vmatpush1.bf16.msra.mxu0 0
      %5246 = vmatprep.subr.bf16.mxu0 0
      %5247 = vmatpush1.bf16.msra.mxu0 0
      %5248 = vmatprep.subr.bf16.mxu0 0
      %5249 = vmatpush1.bf16.msra.mxu0 0
      %5250 = vmatprep.mubr.bf16.mxu0 0
      %5251 = vmatmul.mubr.bf16.gmra.mrb[0].mxu0 %v5105
      %v5252 = vpop.f32.mrb[0].mxu0
      %v5253 = vadd.f32 0.0, %v5252
      %v5254 = vpop.f32.mrb[0].mxu0
      %v5255 = vpop.f32.mrb[0].mxu0
      %v5256 = vadd.f32 0.0, %v5255
      %v5257 = vpop.f32.mrb[0].mxu0
      %5258 = vmatprep.mubr.bf16.mxu0 0
      %5259 = vmatmul.mubr.bf16.gmra.mrb[0].mxu0 %v5106
      %v5260 = vpop.f32.mrb[0].mxu0
      %v5261 = vadd.f32 0.0, %v5260
      %v5262 = vpop.f32.mrb[0].mxu0
      %v5263 = vpop.f32.mrb[0].mxu0
      %v5264 = vadd.f32 0.0, %v5263
      %v5265 = vpop.f32.mrb[0].mxu0
      %5266 = vmatprep.mubr.bf16.mxu0 0
      %5267 = vmatmul.mubr.bf16.gmra.mrb[0].mxu0 %v5107
      %v5268 = vpop.f32.mrb[0].mxu0
      %v5269 = vadd.f32 0.0, %v5268
      %v5270 = vpop.f32.mrb[0].mxu0
      %v5271 = vpop.f32.mrb[0].mxu0
      %v5272 = vadd.f32 0.0, %v5271
      %v5273 = vpop.f32.mrb[0].mxu0
      %5274 = vmatprep.mubr.bf16.mxu0 0
      %5275 = vmatmul.mubr.bf16.gmra.mrb[0].mxu0 %v5108
      %v5276 = vpop.f32.mrb[0].mxu0
      %v5277 = vadd.f32 0.0, %v5276
      %v5278 = vpop.f32.mrb[0].mxu0
      %v5279 = vpop.f32.mrb[0].mxu0
      %v5280 = vadd.f32 0.0, %v5279
      %v5281 = vpop.f32.mrb[0].mxu0
      %5282 = vmatprep.mubr.bf16.mxu0 0
      %5283 = vmatmul.mubr.bf16.gmra.mrb[0].mxu0 %v5109
      %v5284 = vpop.f32.mrb[0].mxu0
      %v5285 = vadd.f32 0.0, %v5284
      %v5286 = vpop.f32.mrb[0].mxu0
      %v5287 = vpop.f32.mrb[0].mxu0
      %v5288 = vadd.f32 0.0, %v5287
      %v5289 = vpop.f32.mrb[0].mxu0
      %5290 = vmatprep.mubr.bf16.mxu0 0
      %5291 = vmatmul.mubr.bf16.gmra.mrb[0].mxu0 %v5110
      %v5292 = vpop.f32.mrb[0].mxu0
      %v5293 = vadd.f32 0.0, %v5292
      %v5294 = vpop.f32.mrb[0].mxu0
      %v5295 = vpop.f32.mrb[0].mxu0
      %v5296 = vadd.f32 0.0, %v5295
      %v5297 = vpop.f32.mrb[0].mxu0
      %5298 = vmatprep.mubr.bf16.mxu0 0
      %5299 = vmatmul.mubr.bf16.gmra.mrb[0].mxu0 %v5111
      %v5300 = vpop.f32.mrb[0].mxu0
      %v5301 = vadd.f32 0.0, %v5300
      %v5302 = vpop.f32.mrb[0].mxu0
      %v5303 = vpop.f32.mrb[0].mxu0
      %v5304 = vadd.f32 0.0, %v5303
      %v5305 = vpop.f32.mrb[0].mxu0
      %5306 = vmatprep.mubr.bf16.mxu0 0
      %5307 = vmatmul.mubr.bf16.gmra.mrb[0].mxu0 %v5112
      %v5308 = vpop.f32.mrb[0].mxu0
      %v5309 = vadd.f32 0.0, %v5308
      %v5310 = vpop.f32.mrb[0].mxu0
      %v5311 = vpop.f32.mrb[0].mxu0
      %v5312 = vadd.f32 0.0, %v5311
      %v5313 = vpop.f32.mrb[0].mxu0
      %5314 = vmatprep.mubr.bf16.mxu0 0
      %5315 = vmatmul.mubr.bf16.gmra.mrb[0].mxu0 %v5113
      %v5316 = vpop.f32.mrb[0].mxu0
      %v5317 = vadd.f32 0.0, %v5316
      %v5318 = vpop.f32.mrb[0].mxu0
      %v5319 = vpop.f32.mrb[0].mxu0
      %v5320 = vadd.f32 0.0, %v5319
      %v5321 = vpop.f32.mrb[0].mxu0
      %5322 = vmatprep.mubr.bf16.mxu0 0
      %5323 = vmatmul.mubr.bf16.gmra.mrb[0].mxu0 %v5114
      %v5324 = vpop.f32.mrb[0].mxu0
      %v5325 = vadd.f32 0.0, %v5324
      %v5326 = vpop.f32.mrb[0].mxu0
      %v5327 = vpop.f32.mrb[0].mxu0
      %v5328 = vadd.f32 0.0, %v5327
      %v5329 = vpop.f32.mrb[0].mxu0
      %5330 = vmatprep.mubr.bf16.mxu0 0
      %5331 = vmatmul.mubr.bf16.gmra.mrb[0].mxu0 %v5115
      %v5332 = vpop.f32.mrb[0].mxu0
      %v5333 = vadd.f32 0.0, %v5332
      %v5334 = vpop.f32.mrb[0].mxu0
      %v5335 = vpop.f32.mrb[0].mxu0
      %v5336 = vadd.f32 0.0, %v5335
      %v5337 = vpop.f32.mrb[0].mxu0
      %5338 = vmatprep.mubr.bf16.mxu0 0
      %5339 = vmatmul.mubr.bf16.gmra.mrb[0].mxu0 %v5116
      %v5340 = vpop.f32.mrb[0].mxu0
      %v5341 = vadd.f32 0.0, %v5340
      %v5342 = vpop.f32.mrb[0].mxu0
      %v5343 = vpop.f32.mrb[0].mxu0
      %v5344 = vadd.f32 0.0, %v5343
      %v5345 = vpop.f32.mrb[0].mxu0
      %5346 = vmatprep.mubr.bf16.mxu0 0
      %5347 = vmatmul.mubr.bf16.gmra.mrb[0].mxu0 %v5117
      %v5348 = vpop.f32.mrb[0].mxu0
      %v5349 = vadd.f32 0.0, %v5348
      %v5350 = vpop.f32.mrb[0].mxu0
      %v5351 = vpop.f32.mrb[0].mxu0
      %v5352 = vadd.f32 0.0, %v5351
      %v5353 = vpop.f32.mrb[0].mxu0
      %5354 = vmatprep.mubr.bf16.mxu0 0
      %5355 = vmatmul.mubr.bf16.gmra.mrb[0].mxu0 %v5118
      %v5356 = vpop.f32.mrb[0].mxu0
      %v5357 = vadd.f32 0.0, %v5356
      %v5358 = vpop.f32.mrb[0].mxu0
      %v5359 = vpop.f32.mrb[0].mxu0
      %v5360 = vadd.f32 0.0, %v5359
      %v5361 = vpop.f32.mrb[0].mxu0
      %5362 = vmatprep.mubr.bf16.mxu0 0
      %5363 = vmatmul.mubr.bf16.gmra.mrb[0].mxu0 %v5119
      %v5364 = vpop.f32.mrb[0].mxu0
      %v5365 = vadd.f32 0.0, %v5364
      %v5366 = vpop.f32.mrb[0].mxu0
      %v5367 = vpop.f32.mrb[0].mxu0
      %v5368 = vadd.f32 0.0, %v5367
      %v5369 = vpop.f32.mrb[0].mxu0
      %5370 = vmatprep.mubr.bf16.mxu0 0
      %5371 = vmatmul.mubr.bf16.gmra.mrb[0].mxu0 %v5120
      %v5372 = vpop.f32.mrb[0].mxu0
      %v5373 = vadd.f32 0.0, %v5372
      %v5374 = vpop.f32.mrb[0].mxu0
      %v5375 = vpop.f32.mrb[0].mxu0
      %v5376 = vadd.f32 0.0, %v5375
      %v5377 = vpop.f32.mrb[0].mxu0
      %5378 = vdwg.mxu0
      %v5379 = vadd.f32 %v5121, %v5253
      %v5380 = vadd.f32 %v5122, %v5256
      %v5381 = vadd.f32 %v5123, %v5261
      %v5382 = vadd.f32 %v5124, %v5264
      %v5383 = vadd.f32 %v5125, %v5269
      %v5384 = vadd.f32 %v5126, %v5272
      %v5385 = vadd.f32 %v5127, %v5277
      %v5386 = vadd.f32 %v5128, %v5280
      %v5387 = vadd.f32 %v5129, %v5285
      %v5388 = vadd.f32 %v5130, %v5288
      %v5389 = vadd.f32 %v5131, %v5293
      %v5390 = vadd.f32 %v5132, %v5296
      %v5391 = vadd.f32 %v5133, %v5301
      %v5392 = vadd.f32 %v5134, %v5304
      %v5393 = vadd.f32 %v5135, %v5309
      %v5394 = vadd.f32 %v5136, %v5312
      %v5395 = vadd.f32 %v5137, %v5317
      %v5396 = vadd.f32 %v5138, %v5320
      %v5397 = vadd.f32 %v5139, %v5325
      %v5398 = vadd.f32 %v5140, %v5328
      %v5399 = vadd.f32 %v5141, %v5333
      %v5400 = vadd.f32 %v5142, %v5336
      %v5401 = vadd.f32 %v5143, %v5341
      %v5402 = vadd.f32 %v5144, %v5344
      %v5403 = vadd.f32 %v5145, %v5349
      %v5404 = vadd.f32 %v5146, %v5352
      %v5405 = vadd.f32 %v5147, %v5357
      %v5406 = vadd.f32 %v5148, %v5360
      %v5407 = vadd.f32 %v5149, %v5365
      %v5408 = vadd.f32 %v5150, %v5368
      %v5409 = vadd.f32 %v5151, %v5373
      %v5410 = vadd.f32 %v5152, %v5376
      %5411 = vst [vmem:[#allocation4] sm:$0xff] %v5379
      %5412 = vst [vmem:[#allocation4 + $0x8] sm:$0xff] %v5380
      %5413 = vst [vmem:[#allocation4 + $0x10] sm:$0xff] %v5381
      %5414 = vst [vmem:[#allocation4 + $0x18] sm:$0xff] %v5382
      %5415 = vst [vmem:[#allocation4 + $0x20] sm:$0xff] %v5383
      %5416 = vst [vmem:[#allocation4 + $0x28] sm:$0xff] %v5384
      %5417 = vst [vmem:[#allocation4 + $0x30] sm:$0xff] %v5385
      %5418 = vst [vmem:[#allocation4 + $0x38] sm:$0xff] %v5386
      %5419 = vst [vmem:[#allocation4 + $0x40] sm:$0xff] %v5387
      %5420 = vst [vmem:[#allocation4 + $0x48] sm:$0xff] %v5388
      %5421 = vst [vmem:[#allocation4 + $0x50] sm:$0xff] %v5389
      %5422 = vst [vmem:[#allocation4 + $0x58] sm:$0xff] %v5390
      %5423 = vst [vmem:[#allocation4 + $0x60] sm:$0xff] %v5391
      %5424 = vst [vmem:[#allocation4 + $0x68] sm:$0xff] %v5392
      %5425 = vst [vmem:[#allocation4 + $0x70] sm:$0xff] %v5393
      %5426 = vst [vmem:[#allocation4 + $0x78] sm:$0xff] %v5394
      %5427 = vst [vmem:[#allocation4 + $0x80] sm:$0xff] %v5395
      %5428 = vst [vmem:[#allocation4 + $0x88] sm:$0xff] %v5396
      %5429 = vst [vmem:[#allocation4 + $0x90] sm:$0xff] %v5397
      %5430 = vst [vmem:[#allocation4 + $0x98] sm:$0xff] %v5398
      %5431 = vst [vmem:[#allocation4 + $0xa0] sm:$0xff] %v5399
      %5432 = vst [vmem:[#allocation4 + $0xa8] sm:$0xff] %v5400
      %5433 = vst [vmem:[#allocation4 + $0xb0] sm:$0xff] %v5401
      %5434 = vst [vmem:[#allocation4 + $0xb8] sm:$0xff] %v5402
      %5435 = vst [vmem:[#allocation4 + $0xc0] sm:$0xff] %v5403
      %5436 = vst [vmem:[#allocation4 + $0xc8] sm:$0xff] %v5404
      %5437 = vst [vmem:[#allocation4 + $0xd0] sm:$0xff] %v5405
      %5438 = vst [vmem:[#allocation4 + $0xd8] sm:$0xff] %v5406
      %5439 = vst [vmem:[#allocation4 + $0xe0] sm:$0xff] %v5407
      %5440 = vst [vmem:[#allocation4 + $0xe8] sm:$0xff] %v5408
      %5441 = vst [vmem:[#allocation4 + $0xf0] sm:$0xff] %v5409
      %5442 = vst [vmem:[#allocation4 + $0xf8] sm:$0xff] %v5410
      %v5443 = vld [vmem:[%s772 + $0x7] sm:$0xff]
      %v5444 = vld [vmem:[%s772 + $0xf] sm:$0xff]
      %v5445 = vld [vmem:[%s772 + $0x27] sm:$0xff]
      %v5446 = vld [vmem:[%s772 + $0x2f] sm:$0xff]
      %v5447 = vld [vmem:[%s772 + $0x47] sm:$0xff]
      %v5448 = vld [vmem:[%s772 + $0x4f] sm:$0xff]
      %v5449 = vld [vmem:[%s772 + $0x67] sm:$0xff]
      %v5450 = vld [vmem:[%s772 + $0x6f] sm:$0xff]
      %v5451 = vld [vmem:[%s772 + $0x87] sm:$0xff]
      %v5452 = vld [vmem:[%s772 + $0x8f] sm:$0xff]
      %v5453 = vld [vmem:[%s772 + $0xa7] sm:$0xff]
      %v5454 = vld [vmem:[%s772 + $0xaf] sm:$0xff]
      %v5455 = vld [vmem:[%s772 + $0xc7] sm:$0xff]
      %v5456 = vld [vmem:[%s772 + $0xcf] sm:$0xff]
      %v5457 = vld [vmem:[%s772 + $0xe7] sm:$0xff]
      %v5458 = vld [vmem:[%s772 + $0xef] sm:$0xff]
      %v5459 = vld [vmem:[%s772 + $0x107] sm:$0xff]
      %v5460 = vld [vmem:[%s772 + $0x10f] sm:$0xff]
      %v5461 = vld [vmem:[%s772 + $0x127] sm:$0xff]
      %v5462 = vld [vmem:[%s772 + $0x12f] sm:$0xff]
      %v5463 = vld [vmem:[%s772 + $0x147] sm:$0xff]
      %v5464 = vld [vmem:[%s772 + $0x14f] sm:$0xff]
      %v5465 = vld [vmem:[%s772 + $0x167] sm:$0xff]
      %v5466 = vld [vmem:[%s772 + $0x16f] sm:$0xff]
      %v5467 = vld [vmem:[%s772 + $0x187] sm:$0xff]
      %v5468 = vld [vmem:[%s772 + $0x18f] sm:$0xff]
      %v5469 = vld [vmem:[%s772 + $0x1a7] sm:$0xff]
      %v5470 = vld [vmem:[%s772 + $0x1af] sm:$0xff]
      %v5471 = vld [vmem:[%s772 + $0x1c7] sm:$0xff]
      %v5472 = vld [vmem:[%s772 + $0x1cf] sm:$0xff]
      %v5473 = vld [vmem:[%s772 + $0x1e7] sm:$0xff]
      %v5474 = vld [vmem:[%s772 + $0x1ef] sm:$0xff]
      %v5475 = vpack.c.bf16 %v5444, %v5443
      %v5476 = vpack.c.bf16 %v5446, %v5445
      %v5477 = vpack.c.bf16 %v5448, %v5447
      %v5478 = vpack.c.bf16 %v5450, %v5449
      %v5479 = vpack.c.bf16 %v5452, %v5451
      %v5480 = vpack.c.bf16 %v5454, %v5453
      %v5481 = vpack.c.bf16 %v5456, %v5455
      %v5482 = vpack.c.bf16 %v5458, %v5457
      %v5483 = vpack.c.bf16 %v5460, %v5459
      %v5484 = vpack.c.bf16 %v5462, %v5461
      %v5485 = vpack.c.bf16 %v5464, %v5463
      %v5486 = vpack.c.bf16 %v5466, %v5465
      %v5487 = vpack.c.bf16 %v5468, %v5467
      %v5488 = vpack.c.bf16 %v5470, %v5469
      %v5489 = vpack.c.bf16 %v5472, %v5471
      %v5490 = vpack.c.bf16 %v5474, %v5473
      %v5491 = vld [vmem:[#allocation4] sm:$0xff]
      %v5492 = vld [vmem:[#allocation4 + $0x8] sm:$0xff]
      %v5493 = vld [vmem:[#allocation4 + $0x10] sm:$0xff]
      %v5494 = vld [vmem:[#allocation4 + $0x18] sm:$0xff]
      %v5495 = vld [vmem:[#allocation4 + $0x20] sm:$0xff]
      %v5496 = vld [vmem:[#allocation4 + $0x28] sm:$0xff]
      %v5497 = vld [vmem:[#allocation4 + $0x30] sm:$0xff]
      %v5498 = vld [vmem:[#allocation4 + $0x38] sm:$0xff]
      %v5499 = vld [vmem:[#allocation4 + $0x40] sm:$0xff]
      %v5500 = vld [vmem:[#allocation4 + $0x48] sm:$0xff]
      %v5501 = vld [vmem:[#allocation4 + $0x50] sm:$0xff]
      %v5502 = vld [vmem:[#allocation4 + $0x58] sm:$0xff]
      %v5503 = vld [vmem:[#allocation4 + $0x60] sm:$0xff]
      %v5504 = vld [vmem:[#allocation4 + $0x68] sm:$0xff]
      %v5505 = vld [vmem:[#allocation4 + $0x70] sm:$0xff]
      %v5506 = vld [vmem:[#allocation4 + $0x78] sm:$0xff]
      %v5507 = vld [vmem:[#allocation4 + $0x80] sm:$0xff]
      %v5508 = vld [vmem:[#allocation4 + $0x88] sm:$0xff]
      %v5509 = vld [vmem:[#allocation4 + $0x90] sm:$0xff]
      %v5510 = vld [vmem:[#allocation4 + $0x98] sm:$0xff]
      %v5511 = vld [vmem:[#allocation4 + $0xa0] sm:$0xff]
      %v5512 = vld [vmem:[#allocation4 + $0xa8] sm:$0xff]
      %v5513 = vld [vmem:[#allocation4 + $0xb0] sm:$0xff]
      %v5514 = vld [vmem:[#allocation4 + $0xb8] sm:$0xff]
      %v5515 = vld [vmem:[#allocation4 + $0xc0] sm:$0xff]
      %v5516 = vld [vmem:[#allocation4 + $0xc8] sm:$0xff]
      %v5517 = vld [vmem:[#allocation4 + $0xd0] sm:$0xff]
      %v5518 = vld [vmem:[#allocation4 + $0xd8] sm:$0xff]
      %v5519 = vld [vmem:[#allocation4 + $0xe0] sm:$0xff]
      %v5520 = vld [vmem:[#allocation4 + $0xe8] sm:$0xff]
      %v5521 = vld [vmem:[#allocation4 + $0xf0] sm:$0xff]
      %v5522 = vld [vmem:[#allocation4 + $0xf8] sm:$0xff]
      %s5523 = scalar_lea.vmem %s5, 192
      %v5524 = vld [vmem:[%s5523] sm:$0xf]
      %v5525 = vld [vmem:[%s5523 + $0x4] sm:$0xf]
      %v5526 = vld [vmem:[%s5523 + $0x8] sm:$0xf]
      %v5527 = vld [vmem:[%s5523 + $0xc] sm:$0xf]
      %v5528 = vld [vmem:[%s5523 + $0x10] sm:$0xf]
      %v5529 = vld [vmem:[%s5523 + $0x14] sm:$0xf]
      %v5530 = vld [vmem:[%s5523 + $0x18] sm:$0xf]
      %v5531 = vld [vmem:[%s5523 + $0x1c] sm:$0xf]
      %v5532 = vld [vmem:[%s5523 + $0x20] sm:$0xf]
      %v5533 = vld [vmem:[%s5523 + $0x24] sm:$0xf]
      %v5534 = vld [vmem:[%s5523 + $0x28] sm:$0xf]
      %v5535 = vld [vmem:[%s5523 + $0x2c] sm:$0xf]
      %v5536 = vld [vmem:[%s5523 + $0x30] sm:$0xf]
      %v5537 = vld [vmem:[%s5523 + $0x34] sm:$0xf]
      %v5538 = vld [vmem:[%s5523 + $0x38] sm:$0xf]
      %v5539 = vld [vmem:[%s5523 + $0x3c] sm:$0xf]
      %v5556 = vunpack.c.l.b16 %v5524
      %v5557 = vunpack.c.l.b16 %v5525
      %v5558 = vunpack.c.l.b16 %v5526
      %v5559 = vunpack.c.l.b16 %v5527
      %v5560 = vunpack.c.l.b16 %v5528
      %v5561 = vunpack.c.l.b16 %v5529
      %v5562 = vunpack.c.l.b16 %v5530
      %v5563 = vunpack.c.l.b16 %v5531
      %v5564 = vunpack.c.l.b16 %v5532
      %v5565 = vunpack.c.l.b16 %v5533
      %v5566 = vunpack.c.l.b16 %v5534
      %v5567 = vunpack.c.l.b16 %v5535
      %v5568 = vunpack.c.l.b16 %v5536
      %v5569 = vunpack.c.l.b16 %v5537
      %v5570 = vunpack.c.l.b16 %v5538
      %v5571 = vunpack.c.l.b16 %v5539
      %v5572 = vpack.c.b16 %v5557, %v5556
      %v5573 = vpack.c.b16 %v5559, %v5558
      %v5574 = vpack.c.b16 %v5561, %v5560
      %v5575 = vpack.c.b16 %v5563, %v5562
      %v5576 = vpack.c.b16 %v5565, %v5564
      %v5577 = vpack.c.b16 %v5567, %v5566
      %v5578 = vpack.c.b16 %v5569, %v5568
      %v5579 = vpack.c.b16 %v5571, %v5570
      %5588 = vmatprep.subr.bf16.mxu0 0
      %5589 = vmatpush1.bf16.msra.mxu0 %v5572
      %5590 = vmatprep.subr.bf16.mxu0 0
      %5591 = vmatpush1.bf16.msra.mxu0 %v5573
      %5592 = vmatprep.subr.bf16.mxu0 0
      %5593 = vmatpush1.bf16.msra.mxu0 %v5574
      %5594 = vmatprep.subr.bf16.mxu0 0
      %5595 = vmatpush1.bf16.msra.mxu0 %v5575
      %5596 = vmatprep.subr.bf16.mxu0 0
      %5597 = vmatpush1.bf16.msra.mxu0 %v5576
      %5598 = vmatprep.subr.bf16.mxu0 0
      %5599 = vmatpush1.bf16.msra.mxu0 %v5577
      %5600 = vmatprep.subr.bf16.mxu0 0
      %5601 = vmatpush1.bf16.msra.mxu0 %v5578
      %5602 = vmatprep.subr.bf16.mxu0 0
      %5603 = vmatpush1.bf16.msra.mxu0 %v5579
      %5604 = vmatprep.subr.bf16.mxu0 0
      %5605 = vmatpush1.bf16.msra.mxu0 0
      %5606 = vmatprep.subr.bf16.mxu0 0
      %5607 = vmatpush1.bf16.msra.mxu0 0
      %5608 = vmatprep.subr.bf16.mxu0 0
      %5609 = vmatpush1.bf16.msra.mxu0 0
      %5610 = vmatprep.subr.bf16.mxu0 0
      %5611 = vmatpush1.bf16.msra.mxu0 0
      %5612 = vmatprep.subr.bf16.mxu0 0
      %5613 = vmatpush1.bf16.msra.mxu0 0
      %5614 = vmatprep.subr.bf16.mxu0 0
      %5615 = vmatpush1.bf16.msra.mxu0 0
      %5616 = vmatprep.subr.bf16.mxu0 0
      %5617 = vmatpush1.bf16.msra.mxu0 0
      %5618 = vmatprep.subr.bf16.mxu0 0
      %5619 = vmatpush1.bf16.msra.mxu0 0
      %5620 = vmatprep.mubr.bf16.mxu0 0
      %5621 = vmatmul.mubr.bf16.gmra.mrb[0].mxu0 %v5475
      %v5622 = vpop.f32.mrb[0].mxu0
      %v5623 = vadd.f32 0.0, %v5622
      %v5624 = vpop.f32.mrb[0].mxu0
      %v5625 = vpop.f32.mrb[0].mxu0
      %v5626 = vadd.f32 0.0, %v5625
      %v5627 = vpop.f32.mrb[0].mxu0
      %5628 = vmatprep.mubr.bf16.mxu0 0
      %5629 = vmatmul.mubr.bf16.gmra.mrb[0].mxu0 %v5476
      %v5630 = vpop.f32.mrb[0].mxu0
      %v5631 = vadd.f32 0.0, %v5630
      %v5632 = vpop.f32.mrb[0].mxu0
      %v5633 = vpop.f32.mrb[0].mxu0
      %v5634 = vadd.f32 0.0, %v5633
      %v5635 = vpop.f32.mrb[0].mxu0
      %5636 = vmatprep.mubr.bf16.mxu0 0
      %5637 = vmatmul.mubr.bf16.gmra.mrb[0].mxu0 %v5477
      %v5638 = vpop.f32.mrb[0].mxu0
      %v5639 = vadd.f32 0.0, %v5638
      %v5640 = vpop.f32.mrb[0].mxu0
      %v5641 = vpop.f32.mrb[0].mxu0
      %v5642 = vadd.f32 0.0, %v5641
      %v5643 = vpop.f32.mrb[0].mxu0
      %5644 = vmatprep.mubr.bf16.mxu0 0
      %5645 = vmatmul.mubr.bf16.gmra.mrb[0].mxu0 %v5478
      %v5646 = vpop.f32.mrb[0].mxu0
      %v5647 = vadd.f32 0.0, %v5646
      %v5648 = vpop.f32.mrb[0].mxu0
      %v5649 = vpop.f32.mrb[0].mxu0
      %v5650 = vadd.f32 0.0, %v5649
      %v5651 = vpop.f32.mrb[0].mxu0
      %5652 = vmatprep.mubr.bf16.mxu0 0
      %5653 = vmatmul.mubr.bf16.gmra.mrb[0].mxu0 %v5479
      %v5654 = vpop.f32.mrb[0].mxu0
      %v5655 = vadd.f32 0.0, %v5654
      %v5656 = vpop.f32.mrb[0].mxu0
      %v5657 = vpop.f32.mrb[0].mxu0
      %v5658 = vadd.f32 0.0, %v5657
      %v5659 = vpop.f32.mrb[0].mxu0
      %5660 = vmatprep.mubr.bf16.mxu0 0
      %5661 = vmatmul.mubr.bf16.gmra.mrb[0].mxu0 %v5480
      %v5662 = vpop.f32.mrb[0].mxu0
      %v5663 = vadd.f32 0.0, %v5662
      %v5664 = vpop.f32.mrb[0].mxu0
      %v5665 = vpop.f32.mrb[0].mxu0
      %v5666 = vadd.f32 0.0, %v5665
      %v5667 = vpop.f32.mrb[0].mxu0
      %5668 = vmatprep.mubr.bf16.mxu0 0
      %5669 = vmatmul.mubr.bf16.gmra.mrb[0].mxu0 %v5481
      %v5670 = vpop.f32.mrb[0].mxu0
      %v5671 = vadd.f32 0.0, %v5670
      %v5672 = vpop.f32.mrb[0].mxu0
      %v5673 = vpop.f32.mrb[0].mxu0
      %v5674 = vadd.f32 0.0, %v5673
      %v5675 = vpop.f32.mrb[0].mxu0
      %5676 = vmatprep.mubr.bf16.mxu0 0
      %5677 = vmatmul.mubr.bf16.gmra.mrb[0].mxu0 %v5482
      %v5678 = vpop.f32.mrb[0].mxu0
      %v5679 = vadd.f32 0.0, %v5678
      %v5680 = vpop.f32.mrb[0].mxu0
      %v5681 = vpop.f32.mrb[0].mxu0
      %v5682 = vadd.f32 0.0, %v5681
      %v5683 = vpop.f32.mrb[0].mxu0
      %5684 = vmatprep.mubr.bf16.mxu0 0
      %5685 = vmatmul.mubr.bf16.gmra.mrb[0].mxu0 %v5483
      %v5686 = vpop.f32.mrb[0].mxu0
      %v5687 = vadd.f32 0.0, %v5686
      %v5688 = vpop.f32.mrb[0].mxu0
      %v5689 = vpop.f32.mrb[0].mxu0
      %v5690 = vadd.f32 0.0, %v5689
      %v5691 = vpop.f32.mrb[0].mxu0
      %5692 = vmatprep.mubr.bf16.mxu0 0
      %5693 = vmatmul.mubr.bf16.gmra.mrb[0].mxu0 %v5484
      %v5694 = vpop.f32.mrb[0].mxu0
      %v5695 = vadd.f32 0.0, %v5694
      %v5696 = vpop.f32.mrb[0].mxu0
      %v5697 = vpop.f32.mrb[0].mxu0
      %v5698 = vadd.f32 0.0, %v5697
      %v5699 = vpop.f32.mrb[0].mxu0
      %5700 = vmatprep.mubr.bf16.mxu0 0
      %5701 = vmatmul.mubr.bf16.gmra.mrb[0].mxu0 %v5485
      %v5702 = vpop.f32.mrb[0].mxu0
      %v5703 = vadd.f32 0.0, %v5702
      %v5704 = vpop.f32.mrb[0].mxu0
      %v5705 = vpop.f32.mrb[0].mxu0
      %v5706 = vadd.f32 0.0, %v5705
      %v5707 = vpop.f32.mrb[0].mxu0
      %5708 = vmatprep.mubr.bf16.mxu0 0
      %5709 = vmatmul.mubr.bf16.gmra.mrb[0].mxu0 %v5486
      %v5710 = vpop.f32.mrb[0].mxu0
      %v5711 = vadd.f32 0.0, %v5710
      %v5712 = vpop.f32.mrb[0].mxu0
      %v5713 = vpop.f32.mrb[0].mxu0
      %v5714 = vadd.f32 0.0, %v5713
      %v5715 = vpop.f32.mrb[0].mxu0
      %5716 = vmatprep.mubr.bf16.mxu0 0
      %5717 = vmatmul.mubr.bf16.gmra.mrb[0].mxu0 %v5487
      %v5718 = vpop.f32.mrb[0].mxu0
      %v5719 = vadd.f32 0.0, %v5718
      %v5720 = vpop.f32.mrb[0].mxu0
      %v5721 = vpop.f32.mrb[0].mxu0
      %v5722 = vadd.f32 0.0, %v5721
      %v5723 = vpop.f32.mrb[0].mxu0
      %5724 = vmatprep.mubr.bf16.mxu0 0
      %5725 = vmatmul.mubr.bf16.gmra.mrb[0].mxu0 %v5488
      %v5726 = vpop.f32.mrb[0].mxu0
      %v5727 = vadd.f32 0.0, %v5726
      %v5728 = vpop.f32.mrb[0].mxu0
      %v5729 = vpop.f32.mrb[0].mxu0
      %v5730 = vadd.f32 0.0, %v5729
      %v5731 = vpop.f32.mrb[0].mxu0
      %5732 = vmatprep.mubr.bf16.mxu0 0
      %5733 = vmatmul.mubr.bf16.gmra.mrb[0].mxu0 %v5489
      %v5734 = vpop.f32.mrb[0].mxu0
      %v5735 = vadd.f32 0.0, %v5734
      %v5736 = vpop.f32.mrb[0].mxu0
      %v5737 = vpop.f32.mrb[0].mxu0
      %v5738 = vadd.f32 0.0, %v5737
      %v5739 = vpop.f32.mrb[0].mxu0
      %5740 = vmatprep.mubr.bf16.mxu0 0
      %5741 = vmatmul.mubr.bf16.gmra.mrb[0].mxu0 %v5490
      %v5742 = vpop.f32.mrb[0].mxu0
      %v5743 = vadd.f32 0.0, %v5742
      %v5744 = vpop.f32.mrb[0].mxu0
      %v5745 = vpop.f32.mrb[0].mxu0
      %v5746 = vadd.f32 0.0, %v5745
      %v5747 = vpop.f32.mrb[0].mxu0
      %5748 = vdwg.mxu0
      %v5749 = vadd.f32 %v5491, %v5623
      %v5750 = vadd.f32 %v5492, %v5626
      %v5751 = vadd.f32 %v5493, %v5631
      %v5752 = vadd.f32 %v5494, %v5634
      %v5753 = vadd.f32 %v5495, %v5639
      %v5754 = vadd.f32 %v5496, %v5642
      %v5755 = vadd.f32 %v5497, %v5647
      %v5756 = vadd.f32 %v5498, %v5650
      %v5757 = vadd.f32 %v5499, %v5655
      %v5758 = vadd.f32 %v5500, %v5658
      %v5759 = vadd.f32 %v5501, %v5663
      %v5760 = vadd.f32 %v5502, %v5666
      %v5761 = vadd.f32 %v5503, %v5671
      %v5762 = vadd.f32 %v5504, %v5674
      %v5763 = vadd.f32 %v5505, %v5679
      %v5764 = vadd.f32 %v5506, %v5682
      %v5765 = vadd.f32 %v5507, %v5687
      %v5766 = vadd.f32 %v5508, %v5690
      %v5767 = vadd.f32 %v5509, %v5695
      %v5768 = vadd.f32 %v5510, %v5698
      %v5769 = vadd.f32 %v5511, %v5703
      %v5770 = vadd.f32 %v5512, %v5706
      %v5771 = vadd.f32 %v5513, %v5711
      %v5772 = vadd.f32 %v5514, %v5714
      %v5773 = vadd.f32 %v5515, %v5719
      %v5774 = vadd.f32 %v5516, %v5722
      %v5775 = vadd.f32 %v5517, %v5727
      %v5776 = vadd.f32 %v5518, %v5730
      %v5777 = vadd.f32 %v5519, %v5735
      %v5778 = vadd.f32 %v5520, %v5738
      %v5779 = vadd.f32 %v5521, %v5743
      %v5780 = vadd.f32 %v5522, %v5746
      %5781 = vst [vmem:[#allocation4] sm:$0xff] %v5749
      %5782 = vst [vmem:[#allocation4 + $0x8] sm:$0xff] %v5750
      %5783 = vst [vmem:[#allocation4 + $0x10] sm:$0xff] %v5751
      %5784 = vst [vmem:[#allocation4 + $0x18] sm:$0xff] %v5752
      %5785 = vst [vmem:[#allocation4 + $0x20] sm:$0xff] %v5753
      %5786 = vst [vmem:[#allocation4 + $0x28] sm:$0xff] %v5754
      %5787 = vst [vmem:[#allocation4 + $0x30] sm:$0xff] %v5755
      %5788 = vst [vmem:[#allocation4 + $0x38] sm:$0xff] %v5756
      %5789 = vst [vmem:[#allocation4 + $0x40] sm:$0xff] %v5757
      %5790 = vst [vmem:[#allocation4 + $0x48] sm:$0xff] %v5758
      %5791 = vst [vmem:[#allocation4 + $0x50] sm:$0xff] %v5759
      %5792 = vst [vmem:[#allocation4 + $0x58] sm:$0xff] %v5760
      %5793 = vst [vmem:[#allocation4 + $0x60] sm:$0xff] %v5761
      %5794 = vst [vmem:[#allocation4 + $0x68] sm:$0xff] %v5762
      %5795 = vst [vmem:[#allocation4 + $0x70] sm:$0xff] %v5763
      %5796 = vst [vmem:[#allocation4 + $0x78] sm:$0xff] %v5764
      %5797 = vst [vmem:[#allocation4 + $0x80] sm:$0xff] %v5765
      %5798 = vst [vmem:[#allocation4 + $0x88] sm:$0xff] %v5766
      %5799 = vst [vmem:[#allocation4 + $0x90] sm:$0xff] %v5767
      %5800 = vst [vmem:[#allocation4 + $0x98] sm:$0xff] %v5768
      %5801 = vst [vmem:[#allocation4 + $0xa0] sm:$0xff] %v5769
      %5802 = vst [vmem:[#allocation4 + $0xa8] sm:$0xff] %v5770
      %5803 = vst [vmem:[#allocation4 + $0xb0] sm:$0xff] %v5771
      %5804 = vst [vmem:[#allocation4 + $0xb8] sm:$0xff] %v5772
      %5805 = vst [vmem:[#allocation4 + $0xc0] sm:$0xff] %v5773
      %5806 = vst [vmem:[#allocation4 + $0xc8] sm:$0xff] %v5774
      %5807 = vst [vmem:[#allocation4 + $0xd0] sm:$0xff] %v5775
      %5808 = vst [vmem:[#allocation4 + $0xd8] sm:$0xff] %v5776
      %5809 = vst [vmem:[#allocation4 + $0xe0] sm:$0xff] %v5777
      %5810 = vst [vmem:[#allocation4 + $0xe8] sm:$0xff] %v5778
      %5811 = vst [vmem:[#allocation4 + $0xf0] sm:$0xff] %v5779
      %5812 = vst [vmem:[#allocation4 + $0xf8] sm:$0xff] %v5780
      %v5813 = vld [vmem:[%s772 + $0x8] sm:$0xff]
      %v5814 = vld [vmem:[%s772 + $0x10] sm:$0xff]
      %v5815 = vld [vmem:[%s772 + $0x28] sm:$0xff]
      %v5816 = vld [vmem:[%s772 + $0x30] sm:$0xff]
      %v5817 = vld [vmem:[%s772 + $0x48] sm:$0xff]
      %v5818 = vld [vmem:[%s772 + $0x50] sm:$0xff]
      %v5819 = vld [vmem:[%s772 + $0x68] sm:$0xff]
      %v5820 = vld [vmem:[%s772 + $0x70] sm:$0xff]
      %v5821 = vld [vmem:[%s772 + $0x88] sm:$0xff]
      %v5822 = vld [vmem:[%s772 + $0x90] sm:$0xff]
      %v5823 = vld [vmem:[%s772 + $0xa8] sm:$0xff]
      %v5824 = vld [vmem:[%s772 + $0xb0] sm:$0xff]
      %v5825 = vld [vmem:[%s772 + $0xc8] sm:$0xff]
      %v5826 = vld [vmem:[%s772 + $0xd0] sm:$0xff]
      %v5827 = vld [vmem:[%s772 + $0xe8] sm:$0xff]
      %v5828 = vld [vmem:[%s772 + $0xf0] sm:$0xff]
      %v5829 = vld [vmem:[%s772 + $0x108] sm:$0xff]
      %v5830 = vld [vmem:[%s772 + $0x110] sm:$0xff]
      %v5831 = vld [vmem:[%s772 + $0x128] sm:$0xff]
      %v5832 = vld [vmem:[%s772 + $0x130] sm:$0xff]
      %v5833 = vld [vmem:[%s772 + $0x148] sm:$0xff]
      %v5834 = vld [vmem:[%s772 + $0x150] sm:$0xff]
      %v5835 = vld [vmem:[%s772 + $0x168] sm:$0xff]
      %v5836 = vld [vmem:[%s772 + $0x170] sm:$0xff]
      %v5837 = vld [vmem:[%s772 + $0x188] sm:$0xff]
      %v5838 = vld [vmem:[%s772 + $0x190] sm:$0xff]
      %v5839 = vld [vmem:[%s772 + $0x1a8] sm:$0xff]
      %v5840 = vld [vmem:[%s772 + $0x1b0] sm:$0xff]
      %v5841 = vld [vmem:[%s772 + $0x1c8] sm:$0xff]
      %v5842 = vld [vmem:[%s772 + $0x1d0] sm:$0xff]
      %v5843 = vld [vmem:[%s772 + $0x1e8] sm:$0xff]
      %v5844 = vld [vmem:[%s772 + $0x1f0] sm:$0xff]
      %v5845 = vpack.c.bf16 %v5814, %v5813
      %v5846 = vpack.c.bf16 %v5816, %v5815
      %v5847 = vpack.c.bf16 %v5818, %v5817
      %v5848 = vpack.c.bf16 %v5820, %v5819
      %v5849 = vpack.c.bf16 %v5822, %v5821
      %v5850 = vpack.c.bf16 %v5824, %v5823
      %v5851 = vpack.c.bf16 %v5826, %v5825
      %v5852 = vpack.c.bf16 %v5828, %v5827
      %v5853 = vpack.c.bf16 %v5830, %v5829
      %v5854 = vpack.c.bf16 %v5832, %v5831
      %v5855 = vpack.c.bf16 %v5834, %v5833
      %v5856 = vpack.c.bf16 %v5836, %v5835
      %v5857 = vpack.c.bf16 %v5838, %v5837
      %v5858 = vpack.c.bf16 %v5840, %v5839
      %v5859 = vpack.c.bf16 %v5842, %v5841
      %v5860 = vpack.c.bf16 %v5844, %v5843
      %v5861 = vld [vmem:[#allocation4] sm:$0xff]
      %v5862 = vld [vmem:[#allocation4 + $0x8] sm:$0xff]
      %v5863 = vld [vmem:[#allocation4 + $0x10] sm:$0xff]
      %v5864 = vld [vmem:[#allocation4 + $0x18] sm:$0xff]
      %v5865 = vld [vmem:[#allocation4 + $0x20] sm:$0xff]
      %v5866 = vld [vmem:[#allocation4 + $0x28] sm:$0xff]
      %v5867 = vld [vmem:[#allocation4 + $0x30] sm:$0xff]
      %v5868 = vld [vmem:[#allocation4 + $0x38] sm:$0xff]
      %v5869 = vld [vmem:[#allocation4 + $0x40] sm:$0xff]
      %v5870 = vld [vmem:[#allocation4 + $0x48] sm:$0xff]
      %v5871 = vld [vmem:[#allocation4 + $0x50] sm:$0xff]
      %v5872 = vld [vmem:[#allocation4 + $0x58] sm:$0xff]
      %v5873 = vld [vmem:[#allocation4 + $0x60] sm:$0xff]
      %v5874 = vld [vmem:[#allocation4 + $0x68] sm:$0xff]
      %v5875 = vld [vmem:[#allocation4 + $0x70] sm:$0xff]
      %v5876 = vld [vmem:[#allocation4 + $0x78] sm:$0xff]
      %v5877 = vld [vmem:[#allocation4 + $0x80] sm:$0xff]
      %v5878 = vld [vmem:[#allocation4 + $0x88] sm:$0xff]
      %v5879 = vld [vmem:[#allocation4 + $0x90] sm:$0xff]
      %v5880 = vld [vmem:[#allocation4 + $0x98] sm:$0xff]
      %v5881 = vld [vmem:[#allocation4 + $0xa0] sm:$0xff]
      %v5882 = vld [vmem:[#allocation4 + $0xa8] sm:$0xff]
      %v5883 = vld [vmem:[#allocation4 + $0xb0] sm:$0xff]
      %v5884 = vld [vmem:[#allocation4 + $0xb8] sm:$0xff]
      %v5885 = vld [vmem:[#allocation4 + $0xc0] sm:$0xff]
      %v5886 = vld [vmem:[#allocation4 + $0xc8] sm:$0xff]
      %v5887 = vld [vmem:[#allocation4 + $0xd0] sm:$0xff]
      %v5888 = vld [vmem:[#allocation4 + $0xd8] sm:$0xff]
      %v5889 = vld [vmem:[#allocation4 + $0xe0] sm:$0xff]
      %v5890 = vld [vmem:[#allocation4 + $0xe8] sm:$0xff]
      %v5891 = vld [vmem:[#allocation4 + $0xf0] sm:$0xff]
      %v5892 = vld [vmem:[#allocation4 + $0xf8] sm:$0xff]
      %s5893 = scalar_lea.vmem %s5, 256
      %v5894 = vld [vmem:[%s5893] sm:$0xf]
      %v5895 = vld [vmem:[%s5893 + $0x4] sm:$0xf]
      %v5896 = vld [vmem:[%s5893 + $0x8] sm:$0xf]
      %v5897 = vld [vmem:[%s5893 + $0xc] sm:$0xf]
      %v5898 = vld [vmem:[%s5893 + $0x10] sm:$0xf]
      %v5899 = vld [vmem:[%s5893 + $0x14] sm:$0xf]
      %v5900 = vld [vmem:[%s5893 + $0x18] sm:$0xf]
      %v5901 = vld [vmem:[%s5893 + $0x1c] sm:$0xf]
      %v5902 = vld [vmem:[%s5893 + $0x20] sm:$0xf]
      %v5903 = vld [vmem:[%s5893 + $0x24] sm:$0xf]
      %v5904 = vld [vmem:[%s5893 + $0x28] sm:$0xf]
      %v5905 = vld [vmem:[%s5893 + $0x2c] sm:$0xf]
      %v5906 = vld [vmem:[%s5893 + $0x30] sm:$0xf]
      %v5907 = vld [vmem:[%s5893 + $0x34] sm:$0xf]
      %v5908 = vld [vmem:[%s5893 + $0x38] sm:$0xf]
      %v5909 = vld [vmem:[%s5893 + $0x3c] sm:$0xf]
      %v5926 = vunpack.c.l.b16 %v5894
      %v5927 = vunpack.c.l.b16 %v5895
      %v5928 = vunpack.c.l.b16 %v5896
      %v5929 = vunpack.c.l.b16 %v5897
      %v5930 = vunpack.c.l.b16 %v5898
      %v5931 = vunpack.c.l.b16 %v5899
      %v5932 = vunpack.c.l.b16 %v5900
      %v5933 = vunpack.c.l.b16 %v5901
      %v5934 = vunpack.c.l.b16 %v5902
      %v5935 = vunpack.c.l.b16 %v5903
      %v5936 = vunpack.c.l.b16 %v5904
      %v5937 = vunpack.c.l.b16 %v5905
      %v5938 = vunpack.c.l.b16 %v5906
      %v5939 = vunpack.c.l.b16 %v5907
      %v5940 = vunpack.c.l.b16 %v5908
      %v5941 = vunpack.c.l.b16 %v5909
      %v5942 = vpack.c.b16 %v5927, %v5926
      %v5943 = vpack.c.b16 %v5929, %v5928
      %v5944 = vpack.c.b16 %v5931, %v5930
      %v5945 = vpack.c.b16 %v5933, %v5932
      %v5946 = vpack.c.b16 %v5935, %v5934
      %v5947 = vpack.c.b16 %v5937, %v5936
      %v5948 = vpack.c.b16 %v5939, %v5938
      %v5949 = vpack.c.b16 %v5941, %v5940
      %5958 = vmatprep.subr.bf16.mxu0 0
      %5959 = vmatpush1.bf16.msra.mxu0 %v5942
      %5960 = vmatprep.subr.bf16.mxu0 0
      %5961 = vmatpush1.bf16.msra.mxu0 %v5943
      %5962 = vmatprep.subr.bf16.mxu0 0
      %5963 = vmatpush1.bf16.msra.mxu0 %v5944
      %5964 = vmatprep.subr.bf16.mxu0 0
      %5965 = vmatpush1.bf16.msra.mxu0 %v5945
      %5966 = vmatprep.subr.bf16.mxu0 0
      %5967 = vmatpush1.bf16.msra.mxu0 %v5946
      %5968 = vmatprep.subr.bf16.mxu0 0
      %5969 = vmatpush1.bf16.msra.mxu0 %v5947
      %5970 = vmatprep.subr.bf16.mxu0 0
      %5971 = vmatpush1.bf16.msra.mxu0 %v5948
      %5972 = vmatprep.subr.bf16.mxu0 0
      %5973 = vmatpush1.bf16.msra.mxu0 %v5949
      %5974 = vmatprep.subr.bf16.mxu0 0
      %5975 = vmatpush1.bf16.msra.mxu0 0
      %5976 = vmatprep.subr.bf16.mxu0 0
      %5977 = vmatpush1.bf16.msra.mxu0 0
      %5978 = vmatprep.subr.bf16.mxu0 0
      %5979 = vmatpush1.bf16.msra.mxu0 0
      %5980 = vmatprep.subr.bf16.mxu0 0
      %5981 = vmatpush1.bf16.msra.mxu0 0
      %5982 = vmatprep.subr.bf16.mxu0 0
      %5983 = vmatpush1.bf16.msra.mxu0 0
      %5984 = vmatprep.subr.bf16.mxu0 0
      %5985 = vmatpush1.bf16.msra.mxu0 0
      %5986 = vmatprep.subr.bf16.mxu0 0
      %5987 = vmatpush1.bf16.msra.mxu0 0
      %5988 = vmatprep.subr.bf16.mxu0 0
      %5989 = vmatpush1.bf16.msra.mxu0 0
      %5990 = vmatprep.mubr.bf16.mxu0 0
      %5991 = vmatmul.mubr.bf16.gmra.mrb[0].mxu0 %v5845
      %v5992 = vpop.f32.mrb[0].mxu0
      %v5993 = vadd.f32 0.0, %v5992
      %v5994 = vpop.f32.mrb[0].mxu0
      %v5995 = vpop.f32.mrb[0].mxu0
      %v5996 = vadd.f32 0.0, %v5995
      %v5997 = vpop.f32.mrb[0].mxu0
      %5998 = vmatprep.mubr.bf16.mxu0 0
      %5999 = vmatmul.mubr.bf16.gmra.mrb[0].mxu0 %v5846
      %v6000 = vpop.f32.mrb[0].mxu0
      %v6001 = vadd.f32 0.0, %v6000
      %v6002 = vpop.f32.mrb[0].mxu0
      %v6003 = vpop.f32.mrb[0].mxu0
      %v6004 = vadd.f32 0.0, %v6003
      %v6005 = vpop.f32.mrb[0].mxu0
      %6006 = vmatprep.mubr.bf16.mxu0 0
      %6007 = vmatmul.mubr.bf16.gmra.mrb[0].mxu0 %v5847
      %v6008 = vpop.f32.mrb[0].mxu0
      %v6009 = vadd.f32 0.0, %v6008
      %v6010 = vpop.f32.mrb[0].mxu0
      %v6011 = vpop.f32.mrb[0].mxu0
      %v6012 = vadd.f32 0.0, %v6011
      %v6013 = vpop.f32.mrb[0].mxu0
      %6014 = vmatprep.mubr.bf16.mxu0 0
      %6015 = vmatmul.mubr.bf16.gmra.mrb[0].mxu0 %v5848
      %v6016 = vpop.f32.mrb[0].mxu0
      %v6017 = vadd.f32 0.0, %v6016
      %v6018 = vpop.f32.mrb[0].mxu0
      %v6019 = vpop.f32.mrb[0].mxu0
      %v6020 = vadd.f32 0.0, %v6019
      %v6021 = vpop.f32.mrb[0].mxu0
      %6022 = vmatprep.mubr.bf16.mxu0 0
      %6023 = vmatmul.mubr.bf16.gmra.mrb[0].mxu0 %v5849
      %v6024 = vpop.f32.mrb[0].mxu0
      %v6025 = vadd.f32 0.0, %v6024
      %v6026 = vpop.f32.mrb[0].mxu0
      %v6027 = vpop.f32.mrb[0].mxu0
      %v6028 = vadd.f32 0.0, %v6027
      %v6029 = vpop.f32.mrb[0].mxu0
      %6030 = vmatprep.mubr.bf16.mxu0 0
      %6031 = vmatmul.mubr.bf16.gmra.mrb[0].mxu0 %v5850
      %v6032 = vpop.f32.mrb[0].mxu0
      %v6033 = vadd.f32 0.0, %v6032
      %v6034 = vpop.f32.mrb[0].mxu0
      %v6035 = vpop.f32.mrb[0].mxu0
      %v6036 = vadd.f32 0.0, %v6035
      %v6037 = vpop.f32.mrb[0].mxu0
      %6038 = vmatprep.mubr.bf16.mxu0 0
      %6039 = vmatmul.mubr.bf16.gmra.mrb[0].mxu0 %v5851
      %v6040 = vpop.f32.mrb[0].mxu0
      %v6041 = vadd.f32 0.0, %v6040
      %v6042 = vpop.f32.mrb[0].mxu0
      %v6043 = vpop.f32.mrb[0].mxu0
      %v6044 = vadd.f32 0.0, %v6043
      %v6045 = vpop.f32.mrb[0].mxu0
      %6046 = vmatprep.mubr.bf16.mxu0 0
      %6047 = vmatmul.mubr.bf16.gmra.mrb[0].mxu0 %v5852
      %v6048 = vpop.f32.mrb[0].mxu0
      %v6049 = vadd.f32 0.0, %v6048
      %v6050 = vpop.f32.mrb[0].mxu0
      %v6051 = vpop.f32.mrb[0].mxu0
      %v6052 = vadd.f32 0.0, %v6051
      %v6053 = vpop.f32.mrb[0].mxu0
      %6054 = vmatprep.mubr.bf16.mxu0 0
      %6055 = vmatmul.mubr.bf16.gmra.mrb[0].mxu0 %v5853
      %v6056 = vpop.f32.mrb[0].mxu0
      %v6057 = vadd.f32 0.0, %v6056
      %v6058 = vpop.f32.mrb[0].mxu0
      %v6059 = vpop.f32.mrb[0].mxu0
      %v6060 = vadd.f32 0.0, %v6059
      %v6061 = vpop.f32.mrb[0].mxu0
      %6062 = vmatprep.mubr.bf16.mxu0 0
      %6063 = vmatmul.mubr.bf16.gmra.mrb[0].mxu0 %v5854
      %v6064 = vpop.f32.mrb[0].mxu0
      %v6065 = vadd.f32 0.0, %v6064
      %v6066 = vpop.f32.mrb[0].mxu0
      %v6067 = vpop.f32.mrb[0].mxu0
      %v6068 = vadd.f32 0.0, %v6067
      %v6069 = vpop.f32.mrb[0].mxu0
      %6070 = vmatprep.mubr.bf16.mxu0 0
      %6071 = vmatmul.mubr.bf16.gmra.mrb[0].mxu0 %v5855
      %v6072 = vpop.f32.mrb[0].mxu0
      %v6073 = vadd.f32 0.0, %v6072
      %v6074 = vpop.f32.mrb[0].mxu0
      %v6075 = vpop.f32.mrb[0].mxu0
      %v6076 = vadd.f32 0.0, %v6075
      %v6077 = vpop.f32.mrb[0].mxu0
      %6078 = vmatprep.mubr.bf16.mxu0 0
      %6079 = vmatmul.mubr.bf16.gmra.mrb[0].mxu0 %v5856
      %v6080 = vpop.f32.mrb[0].mxu0
      %v6081 = vadd.f32 0.0, %v6080
      %v6082 = vpop.f32.mrb[0].mxu0
      %v6083 = vpop.f32.mrb[0].mxu0
      %v6084 = vadd.f32 0.0, %v6083
      %v6085 = vpop.f32.mrb[0].mxu0
      %6086 = vmatprep.mubr.bf16.mxu0 0
      %6087 = vmatmul.mubr.bf16.gmra.mrb[0].mxu0 %v5857
      %v6088 = vpop.f32.mrb[0].mxu0
      %v6089 = vadd.f32 0.0, %v6088
      %v6090 = vpop.f32.mrb[0].mxu0
      %v6091 = vpop.f32.mrb[0].mxu0
      %v6092 = vadd.f32 0.0, %v6091
      %v6093 = vpop.f32.mrb[0].mxu0
      %6094 = vmatprep.mubr.bf16.mxu0 0
      %6095 = vmatmul.mubr.bf16.gmra.mrb[0].mxu0 %v5858
      %v6096 = vpop.f32.mrb[0].mxu0
      %v6097 = vadd.f32 0.0, %v6096
      %v6098 = vpop.f32.mrb[0].mxu0
      %v6099 = vpop.f32.mrb[0].mxu0
      %v6100 = vadd.f32 0.0, %v6099
      %v6101 = vpop.f32.mrb[0].mxu0
      %6102 = vmatprep.mubr.bf16.mxu0 0
      %6103 = vmatmul.mubr.bf16.gmra.mrb[0].mxu0 %v5859
      %v6104 = vpop.f32.mrb[0].mxu0
      %v6105 = vadd.f32 0.0, %v6104
      %v6106 = vpop.f32.mrb[0].mxu0
      %v6107 = vpop.f32.mrb[0].mxu0
      %v6108 = vadd.f32 0.0, %v6107
      %v6109 = vpop.f32.mrb[0].mxu0
      %6110 = vmatprep.mubr.bf16.mxu0 0
      %6111 = vmatmul.mubr.bf16.gmra.mrb[0].mxu0 %v5860
      %v6112 = vpop.f32.mrb[0].mxu0
      %v6113 = vadd.f32 0.0, %v6112
      %v6114 = vpop.f32.mrb[0].mxu0
      %v6115 = vpop.f32.mrb[0].mxu0
      %v6116 = vadd.f32 0.0, %v6115
      %v6117 = vpop.f32.mrb[0].mxu0
      %6118 = vdwg.mxu0
      %v6119 = vadd.f32 %v5861, %v5993
      %v6120 = vadd.f32 %v5862, %v5996
      %v6121 = vadd.f32 %v5863, %v6001
      %v6122 = vadd.f32 %v5864, %v6004
      %v6123 = vadd.f32 %v5865, %v6009
      %v6124 = vadd.f32 %v5866, %v6012
      %v6125 = vadd.f32 %v5867, %v6017
      %v6126 = vadd.f32 %v5868, %v6020
      %v6127 = vadd.f32 %v5869, %v6025
      %v6128 = vadd.f32 %v5870, %v6028
      %v6129 = vadd.f32 %v5871, %v6033
      %v6130 = vadd.f32 %v5872, %v6036
      %v6131 = vadd.f32 %v5873, %v6041
      %v6132 = vadd.f32 %v5874, %v6044
      %v6133 = vadd.f32 %v5875, %v6049
      %v6134 = vadd.f32 %v5876, %v6052
      %v6135 = vadd.f32 %v5877, %v6057
      %v6136 = vadd.f32 %v5878, %v6060
      %v6137 = vadd.f32 %v5879, %v6065
      %v6138 = vadd.f32 %v5880, %v6068
      %v6139 = vadd.f32 %v5881, %v6073
      %v6140 = vadd.f32 %v5882, %v6076
      %v6141 = vadd.f32 %v5883, %v6081
      %v6142 = vadd.f32 %v5884, %v6084
      %v6143 = vadd.f32 %v5885, %v6089
      %v6144 = vadd.f32 %v5886, %v6092
      %v6145 = vadd.f32 %v5887, %v6097
      %v6146 = vadd.f32 %v5888, %v6100
      %v6147 = vadd.f32 %v5889, %v6105
      %v6148 = vadd.f32 %v5890, %v6108
      %v6149 = vadd.f32 %v5891, %v6113
      %v6150 = vadd.f32 %v5892, %v6116
      %6151 = vst [vmem:[#allocation4] sm:$0xff] %v6119
      %6152 = vst [vmem:[#allocation4 + $0x8] sm:$0xff] %v6120
      %6153 = vst [vmem:[#allocation4 + $0x10] sm:$0xff] %v6121
      %6154 = vst [vmem:[#allocation4 + $0x18] sm:$0xff] %v6122
      %6155 = vst [vmem:[#allocation4 + $0x20] sm:$0xff] %v6123
      %6156 = vst [vmem:[#allocation4 + $0x28] sm:$0xff] %v6124
      %6157 = vst [vmem:[#allocation4 + $0x30] sm:$0xff] %v6125
      %6158 = vst [vmem:[#allocation4 + $0x38] sm:$0xff] %v6126
      %6159 = vst [vmem:[#allocation4 + $0x40] sm:$0xff] %v6127
      %6160 = vst [vmem:[#allocation4 + $0x48] sm:$0xff] %v6128
      %6161 = vst [vmem:[#allocation4 + $0x50] sm:$0xff] %v6129
      %6162 = vst [vmem:[#allocation4 + $0x58] sm:$0xff] %v6130
      %6163 = vst [vmem:[#allocation4 + $0x60] sm:$0xff] %v6131
      %6164 = vst [vmem:[#allocation4 + $0x68] sm:$0xff] %v6132
      %6165 = vst [vmem:[#allocation4 + $0x70] sm:$0xff] %v6133
      %6166 = vst [vmem:[#allocation4 + $0x78] sm:$0xff] %v6134
      %6167 = vst [vmem:[#allocation4 + $0x80] sm:$0xff] %v6135
      %6168 = vst [vmem:[#allocation4 + $0x88] sm:$0xff] %v6136
      %6169 = vst [vmem:[#allocation4 + $0x90] sm:$0xff] %v6137
      %6170 = vst [vmem:[#allocation4 + $0x98] sm:$0xff] %v6138
      %6171 = vst [vmem:[#allocation4 + $0xa0] sm:$0xff] %v6139
      %6172 = vst [vmem:[#allocation4 + $0xa8] sm:$0xff] %v6140
      %6173 = vst [vmem:[#allocation4 + $0xb0] sm:$0xff] %v6141
      %6174 = vst [vmem:[#allocation4 + $0xb8] sm:$0xff] %v6142
      %6175 = vst [vmem:[#allocation4 + $0xc0] sm:$0xff] %v6143
      %6176 = vst [vmem:[#allocation4 + $0xc8] sm:$0xff] %v6144
      %6177 = vst [vmem:[#allocation4 + $0xd0] sm:$0xff] %v6145
      %6178 = vst [vmem:[#allocation4 + $0xd8] sm:$0xff] %v6146
      %6179 = vst [vmem:[#allocation4 + $0xe0] sm:$0xff] %v6147
      %6180 = vst [vmem:[#allocation4 + $0xe8] sm:$0xff] %v6148
      %6181 = vst [vmem:[#allocation4 + $0xf0] sm:$0xff] %v6149
      %6182 = vst [vmem:[#allocation4 + $0xf8] sm:$0xff] %v6150
      %v6183 = vld [vmem:[%s772 + $0x9] sm:$0xff]
      %v6184 = vld [vmem:[%s772 + $0x11] sm:$0xff]
      %v6185 = vld [vmem:[%s772 + $0x29] sm:$0xff]
      %v6186 = vld [vmem:[%s772 + $0x31] sm:$0xff]
      %v6187 = vld [vmem:[%s772 + $0x49] sm:$0xff]
      %v6188 = vld [vmem:[%s772 + $0x51] sm:$0xff]
      %v6189 = vld [vmem:[%s772 + $0x69] sm:$0xff]
      %v6190 = vld [vmem:[%s772 + $0x71] sm:$0xff]
      %v6191 = vld [vmem:[%s772 + $0x89] sm:$0xff]
      %v6192 = vld [vmem:[%s772 + $0x91] sm:$0xff]
      %v6193 = vld [vmem:[%s772 + $0xa9] sm:$0xff]
      %v6194 = vld [vmem:[%s772 + $0xb1] sm:$0xff]
      %v6195 = vld [vmem:[%s772 + $0xc9] sm:$0xff]
      %v6196 = vld [vmem:[%s772 + $0xd1] sm:$0xff]
      %v6197 = vld [vmem:[%s772 + $0xe9] sm:$0xff]
      %v6198 = vld [vmem:[%s772 + $0xf1] sm:$0xff]
      %v6199 = vld [vmem:[%s772 + $0x109] sm:$0xff]
      %v6200 = vld [vmem:[%s772 + $0x111] sm:$0xff]
      %v6201 = vld [vmem:[%s772 + $0x129] sm:$0xff]
      %v6202 = vld [vmem:[%s772 + $0x131] sm:$0xff]
      %v6203 = vld [vmem:[%s772 + $0x149] sm:$0xff]
      %v6204 = vld [vmem:[%s772 + $0x151] sm:$0xff]
      %v6205 = vld [vmem:[%s772 + $0x169] sm:$0xff]
      %v6206 = vld [vmem:[%s772 + $0x171] sm:$0xff]
      %v6207 = vld [vmem:[%s772 + $0x189] sm:$0xff]
      %v6208 = vld [vmem:[%s772 + $0x191] sm:$0xff]
      %v6209 = vld [vmem:[%s772 + $0x1a9] sm:$0xff]
      %v6210 = vld [vmem:[%s772 + $0x1b1] sm:$0xff]
      %v6211 = vld [vmem:[%s772 + $0x1c9] sm:$0xff]
      %v6212 = vld [vmem:[%s772 + $0x1d1] sm:$0xff]
      %v6213 = vld [vmem:[%s772 + $0x1e9] sm:$0xff]
      %v6214 = vld [vmem:[%s772 + $0x1f1] sm:$0xff]
      %v6215 = vpack.c.bf16 %v6184, %v6183
      %v6216 = vpack.c.bf16 %v6186, %v6185
      %v6217 = vpack.c.bf16 %v6188, %v6187
      %v6218 = vpack.c.bf16 %v6190, %v6189
      %v6219 = vpack.c.bf16 %v6192, %v6191
      %v6220 = vpack.c.bf16 %v6194, %v6193
      %v6221 = vpack.c.bf16 %v6196, %v6195
      %v6222 = vpack.c.bf16 %v6198, %v6197
      %v6223 = vpack.c.bf16 %v6200, %v6199
      %v6224 = vpack.c.bf16 %v6202, %v6201
      %v6225 = vpack.c.bf16 %v6204, %v6203
      %v6226 = vpack.c.bf16 %v6206, %v6205
      %v6227 = vpack.c.bf16 %v6208, %v6207
      %v6228 = vpack.c.bf16 %v6210, %v6209
      %v6229 = vpack.c.bf16 %v6212, %v6211
      %v6230 = vpack.c.bf16 %v6214, %v6213
      %v6231 = vld [vmem:[#allocation4] sm:$0xff]
      %v6232 = vld [vmem:[#allocation4 + $0x8] sm:$0xff]
      %v6233 = vld [vmem:[#allocation4 + $0x10] sm:$0xff]
      %v6234 = vld [vmem:[#allocation4 + $0x18] sm:$0xff]
      %v6235 = vld [vmem:[#allocation4 + $0x20] sm:$0xff]
      %v6236 = vld [vmem:[#allocation4 + $0x28] sm:$0xff]
      %v6237 = vld [vmem:[#allocation4 + $0x30] sm:$0xff]
      %v6238 = vld [vmem:[#allocation4 + $0x38] sm:$0xff]
      %v6239 = vld [vmem:[#allocation4 + $0x40] sm:$0xff]
      %v6240 = vld [vmem:[#allocation4 + $0x48] sm:$0xff]
      %v6241 = vld [vmem:[#allocation4 + $0x50] sm:$0xff]
      %v6242 = vld [vmem:[#allocation4 + $0x58] sm:$0xff]
      %v6243 = vld [vmem:[#allocation4 + $0x60] sm:$0xff]
      %v6244 = vld [vmem:[#allocation4 + $0x68] sm:$0xff]
      %v6245 = vld [vmem:[#allocation4 + $0x70] sm:$0xff]
      %v6246 = vld [vmem:[#allocation4 + $0x78] sm:$0xff]
      %v6247 = vld [vmem:[#allocation4 + $0x80] sm:$0xff]
      %v6248 = vld [vmem:[#allocation4 + $0x88] sm:$0xff]
      %v6249 = vld [vmem:[#allocation4 + $0x90] sm:$0xff]
      %v6250 = vld [vmem:[#allocation4 + $0x98] sm:$0xff]
      %v6251 = vld [vmem:[#allocation4 + $0xa0] sm:$0xff]
      %v6252 = vld [vmem:[#allocation4 + $0xa8] sm:$0xff]
      %v6253 = vld [vmem:[#allocation4 + $0xb0] sm:$0xff]
      %v6254 = vld [vmem:[#allocation4 + $0xb8] sm:$0xff]
      %v6255 = vld [vmem:[#allocation4 + $0xc0] sm:$0xff]
      %v6256 = vld [vmem:[#allocation4 + $0xc8] sm:$0xff]
      %v6257 = vld [vmem:[#allocation4 + $0xd0] sm:$0xff]
      %v6258 = vld [vmem:[#allocation4 + $0xd8] sm:$0xff]
      %v6259 = vld [vmem:[#allocation4 + $0xe0] sm:$0xff]
      %v6260 = vld [vmem:[#allocation4 + $0xe8] sm:$0xff]
      %v6261 = vld [vmem:[#allocation4 + $0xf0] sm:$0xff]
      %v6262 = vld [vmem:[#allocation4 + $0xf8] sm:$0xff]
      %s6263 = scalar_lea.vmem %s5, 320
      %v6264 = vld [vmem:[%s6263] sm:$0xf]
      %v6265 = vld [vmem:[%s6263 + $0x4] sm:$0xf]
      %v6266 = vld [vmem:[%s6263 + $0x8] sm:$0xf]
      %v6267 = vld [vmem:[%s6263 + $0xc] sm:$0xf]
      %v6268 = vld [vmem:[%s6263 + $0x10] sm:$0xf]
      %v6269 = vld [vmem:[%s6263 + $0x14] sm:$0xf]
      %v6270 = vld [vmem:[%s6263 + $0x18] sm:$0xf]
      %v6271 = vld [vmem:[%s6263 + $0x1c] sm:$0xf]
      %v6272 = vld [vmem:[%s6263 + $0x20] sm:$0xf]
      %v6273 = vld [vmem:[%s6263 + $0x24] sm:$0xf]
      %v6274 = vld [vmem:[%s6263 + $0x28] sm:$0xf]
      %v6275 = vld [vmem:[%s6263 + $0x2c] sm:$0xf]
      %v6276 = vld [vmem:[%s6263 + $0x30] sm:$0xf]
      %v6277 = vld [vmem:[%s6263 + $0x34] sm:$0xf]
      %v6278 = vld [vmem:[%s6263 + $0x38] sm:$0xf]
      %v6279 = vld [vmem:[%s6263 + $0x3c] sm:$0xf]
      %v6296 = vunpack.c.l.b16 %v6264
      %v6297 = vunpack.c.l.b16 %v6265
      %v6298 = vunpack.c.l.b16 %v6266
      %v6299 = vunpack.c.l.b16 %v6267
      %v6300 = vunpack.c.l.b16 %v6268
      %v6301 = vunpack.c.l.b16 %v6269
      %v6302 = vunpack.c.l.b16 %v6270
      %v6303 = vunpack.c.l.b16 %v6271
      %v6304 = vunpack.c.l.b16 %v6272
      %v6305 = vunpack.c.l.b16 %v6273
      %v6306 = vunpack.c.l.b16 %v6274
      %v6307 = vunpack.c.l.b16 %v6275
      %v6308 = vunpack.c.l.b16 %v6276
      %v6309 = vunpack.c.l.b16 %v6277
      %v6310 = vunpack.c.l.b16 %v6278
      %v6311 = vunpack.c.l.b16 %v6279
      %v6312 = vpack.c.b16 %v6297, %v6296
      %v6313 = vpack.c.b16 %v6299, %v6298
      %v6314 = vpack.c.b16 %v6301, %v6300
      %v6315 = vpack.c.b16 %v6303, %v6302
      %v6316 = vpack.c.b16 %v6305, %v6304
      %v6317 = vpack.c.b16 %v6307, %v6306
      %v6318 = vpack.c.b16 %v6309, %v6308
      %v6319 = vpack.c.b16 %v6311, %v6310
      %6328 = vmatprep.subr.bf16.mxu0 0
      %6329 = vmatpush1.bf16.msra.mxu0 %v6312
      %6330 = vmatprep.subr.bf16.mxu0 0
      %6331 = vmatpush1.bf16.msra.mxu0 %v6313
      %6332 = vmatprep.subr.bf16.mxu0 0
      %6333 = vmatpush1.bf16.msra.mxu0 %v6314
      %6334 = vmatprep.subr.bf16.mxu0 0
      %6335 = vmatpush1.bf16.msra.mxu0 %v6315
      %6336 = vmatprep.subr.bf16.mxu0 0
      %6337 = vmatpush1.bf16.msra.mxu0 %v6316
      %6338 = vmatprep.subr.bf16.mxu0 0
      %6339 = vmatpush1.bf16.msra.mxu0 %v6317
      %6340 = vmatprep.subr.bf16.mxu0 0
      %6341 = vmatpush1.bf16.msra.mxu0 %v6318
      %6342 = vmatprep.subr.bf16.mxu0 0
      %6343 = vmatpush1.bf16.msra.mxu0 %v6319
      %6344 = vmatprep.subr.bf16.mxu0 0
      %6345 = vmatpush1.bf16.msra.mxu0 0
      %6346 = vmatprep.subr.bf16.mxu0 0
      %6347 = vmatpush1.bf16.msra.mxu0 0
      %6348 = vmatprep.subr.bf16.mxu0 0
      %6349 = vmatpush1.bf16.msra.mxu0 0
      %6350 = vmatprep.subr.bf16.mxu0 0
      %6351 = vmatpush1.bf16.msra.mxu0 0
      %6352 = vmatprep.subr.bf16.mxu0 0
      %6353 = vmatpush1.bf16.msra.mxu0 0
      %6354 = vmatprep.subr.bf16.mxu0 0
      %6355 = vmatpush1.bf16.msra.mxu0 0
      %6356 = vmatprep.subr.bf16.mxu0 0
      %6357 = vmatpush1.bf16.msra.mxu0 0
      %6358 = vmatprep.subr.bf16.mxu0 0
      %6359 = vmatpush1.bf16.msra.mxu0 0
      %6360 = vmatprep.mubr.bf16.mxu0 0
      %6361 = vmatmul.mubr.bf16.gmra.mrb[0].mxu0 %v6215
      %v6362 = vpop.f32.mrb[0].mxu0
      %v6363 = vadd.f32 0.0, %v6362
      %v6364 = vpop.f32.mrb[0].mxu0
      %v6365 = vpop.f32.mrb[0].mxu0
      %v6366 = vadd.f32 0.0, %v6365
      %v6367 = vpop.f32.mrb[0].mxu0
      %6368 = vmatprep.mubr.bf16.mxu0 0
      %6369 = vmatmul.mubr.bf16.gmra.mrb[0].mxu0 %v6216
      %v6370 = vpop.f32.mrb[0].mxu0
      %v6371 = vadd.f32 0.0, %v6370
      %v6372 = vpop.f32.mrb[0].mxu0
      %v6373 = vpop.f32.mrb[0].mxu0
      %v6374 = vadd.f32 0.0, %v6373
      %v6375 = vpop.f32.mrb[0].mxu0
      %6376 = vmatprep.mubr.bf16.mxu0 0
      %6377 = vmatmul.mubr.bf16.gmra.mrb[0].mxu0 %v6217
      %v6378 = vpop.f32.mrb[0].mxu0
      %v6379 = vadd.f32 0.0, %v6378
      %v6380 = vpop.f32.mrb[0].mxu0
      %v6381 = vpop.f32.mrb[0].mxu0
      %v6382 = vadd.f32 0.0, %v6381
      %v6383 = vpop.f32.mrb[0].mxu0
      %6384 = vmatprep.mubr.bf16.mxu0 0
      %6385 = vmatmul.mubr.bf16.gmra.mrb[0].mxu0 %v6218
      %v6386 = vpop.f32.mrb[0].mxu0
      %v6387 = vadd.f32 0.0, %v6386
      %v6388 = vpop.f32.mrb[0].mxu0
      %v6389 = vpop.f32.mrb[0].mxu0
      %v6390 = vadd.f32 0.0, %v6389
      %v6391 = vpop.f32.mrb[0].mxu0
      %6392 = vmatprep.mubr.bf16.mxu0 0
      %6393 = vmatmul.mubr.bf16.gmra.mrb[0].mxu0 %v6219
      %v6394 = vpop.f32.mrb[0].mxu0
      %v6395 = vadd.f32 0.0, %v6394
      %v6396 = vpop.f32.mrb[0].mxu0
      %v6397 = vpop.f32.mrb[0].mxu0
      %v6398 = vadd.f32 0.0, %v6397
      %v6399 = vpop.f32.mrb[0].mxu0
      %6400 = vmatprep.mubr.bf16.mxu0 0
      %6401 = vmatmul.mubr.bf16.gmra.mrb[0].mxu0 %v6220
      %v6402 = vpop.f32.mrb[0].mxu0
      %v6403 = vadd.f32 0.0, %v6402
      %v6404 = vpop.f32.mrb[0].mxu0
      %v6405 = vpop.f32.mrb[0].mxu0
      %v6406 = vadd.f32 0.0, %v6405
      %v6407 = vpop.f32.mrb[0].mxu0
      %6408 = vmatprep.mubr.bf16.mxu0 0
      %6409 = vmatmul.mubr.bf16.gmra.mrb[0].mxu0 %v6221
      %v6410 = vpop.f32.mrb[0].mxu0
      %v6411 = vadd.f32 0.0, %v6410
      %v6412 = vpop.f32.mrb[0].mxu0
      %v6413 = vpop.f32.mrb[0].mxu0
      %v6414 = vadd.f32 0.0, %v6413
      %v6415 = vpop.f32.mrb[0].mxu0
      %6416 = vmatprep.mubr.bf16.mxu0 0
      %6417 = vmatmul.mubr.bf16.gmra.mrb[0].mxu0 %v6222
      %v6418 = vpop.f32.mrb[0].mxu0
      %v6419 = vadd.f32 0.0, %v6418
      %v6420 = vpop.f32.mrb[0].mxu0
      %v6421 = vpop.f32.mrb[0].mxu0
      %v6422 = vadd.f32 0.0, %v6421
      %v6423 = vpop.f32.mrb[0].mxu0
      %6424 = vmatprep.mubr.bf16.mxu0 0
      %6425 = vmatmul.mubr.bf16.gmra.mrb[0].mxu0 %v6223
      %v6426 = vpop.f32.mrb[0].mxu0
      %v6427 = vadd.f32 0.0, %v6426
      %v6428 = vpop.f32.mrb[0].mxu0
      %v6429 = vpop.f32.mrb[0].mxu0
      %v6430 = vadd.f32 0.0, %v6429
      %v6431 = vpop.f32.mrb[0].mxu0
      %6432 = vmatprep.mubr.bf16.mxu0 0
      %6433 = vmatmul.mubr.bf16.gmra.mrb[0].mxu0 %v6224
      %v6434 = vpop.f32.mrb[0].mxu0
      %v6435 = vadd.f32 0.0, %v6434
      %v6436 = vpop.f32.mrb[0].mxu0
      %v6437 = vpop.f32.mrb[0].mxu0
      %v6438 = vadd.f32 0.0, %v6437
      %v6439 = vpop.f32.mrb[0].mxu0
      %6440 = vmatprep.mubr.bf16.mxu0 0
      %6441 = vmatmul.mubr.bf16.gmra.mrb[0].mxu0 %v6225
      %v6442 = vpop.f32.mrb[0].mxu0
      %v6443 = vadd.f32 0.0, %v6442
      %v6444 = vpop.f32.mrb[0].mxu0
      %v6445 = vpop.f32.mrb[0].mxu0
      %v6446 = vadd.f32 0.0, %v6445
      %v6447 = vpop.f32.mrb[0].mxu0
      %6448 = vmatprep.mubr.bf16.mxu0 0
      %6449 = vmatmul.mubr.bf16.gmra.mrb[0].mxu0 %v6226
      %v6450 = vpop.f32.mrb[0].mxu0
      %v6451 = vadd.f32 0.0, %v6450
      %v6452 = vpop.f32.mrb[0].mxu0
      %v6453 = vpop.f32.mrb[0].mxu0
      %v6454 = vadd.f32 0.0, %v6453
      %v6455 = vpop.f32.mrb[0].mxu0
      %6456 = vmatprep.mubr.bf16.mxu0 0
      %6457 = vmatmul.mubr.bf16.gmra.mrb[0].mxu0 %v6227
      %v6458 = vpop.f32.mrb[0].mxu0
      %v6459 = vadd.f32 0.0, %v6458
      %v6460 = vpop.f32.mrb[0].mxu0
      %v6461 = vpop.f32.mrb[0].mxu0
      %v6462 = vadd.f32 0.0, %v6461
      %v6463 = vpop.f32.mrb[0].mxu0
      %6464 = vmatprep.mubr.bf16.mxu0 0
      %6465 = vmatmul.mubr.bf16.gmra.mrb[0].mxu0 %v6228
      %v6466 = vpop.f32.mrb[0].mxu0
      %v6467 = vadd.f32 0.0, %v6466
      %v6468 = vpop.f32.mrb[0].mxu0
      %v6469 = vpop.f32.mrb[0].mxu0
      %v6470 = vadd.f32 0.0, %v6469
      %v6471 = vpop.f32.mrb[0].mxu0
      %6472 = vmatprep.mubr.bf16.mxu0 0
      %6473 = vmatmul.mubr.bf16.gmra.mrb[0].mxu0 %v6229
      %v6474 = vpop.f32.mrb[0].mxu0
      %v6475 = vadd.f32 0.0, %v6474
      %v6476 = vpop.f32.mrb[0].mxu0
      %v6477 = vpop.f32.mrb[0].mxu0
      %v6478 = vadd.f32 0.0, %v6477
      %v6479 = vpop.f32.mrb[0].mxu0
      %6480 = vmatprep.mubr.bf16.mxu0 0
      %6481 = vmatmul.mubr.bf16.gmra.mrb[0].mxu0 %v6230
      %v6482 = vpop.f32.mrb[0].mxu0
      %v6483 = vadd.f32 0.0, %v6482
      %v6484 = vpop.f32.mrb[0].mxu0
      %v6485 = vpop.f32.mrb[0].mxu0
      %v6486 = vadd.f32 0.0, %v6485
      %v6487 = vpop.f32.mrb[0].mxu0
      %6488 = vdwg.mxu0
      %v6489 = vadd.f32 %v6231, %v6363
      %v6490 = vadd.f32 %v6232, %v6366
      %v6491 = vadd.f32 %v6233, %v6371
      %v6492 = vadd.f32 %v6234, %v6374
      %v6493 = vadd.f32 %v6235, %v6379
      %v6494 = vadd.f32 %v6236, %v6382
      %v6495 = vadd.f32 %v6237, %v6387
      %v6496 = vadd.f32 %v6238, %v6390
      %v6497 = vadd.f32 %v6239, %v6395
      %v6498 = vadd.f32 %v6240, %v6398
      %v6499 = vadd.f32 %v6241, %v6403
      %v6500 = vadd.f32 %v6242, %v6406
      %v6501 = vadd.f32 %v6243, %v6411
      %v6502 = vadd.f32 %v6244, %v6414
      %v6503 = vadd.f32 %v6245, %v6419
      %v6504 = vadd.f32 %v6246, %v6422
      %v6505 = vadd.f32 %v6247, %v6427
      %v6506 = vadd.f32 %v6248, %v6430
      %v6507 = vadd.f32 %v6249, %v6435
      %v6508 = vadd.f32 %v6250, %v6438
      %v6509 = vadd.f32 %v6251, %v6443
      %v6510 = vadd.f32 %v6252, %v6446
      %v6511 = vadd.f32 %v6253, %v6451
      %v6512 = vadd.f32 %v6254, %v6454
      %v6513 = vadd.f32 %v6255, %v6459
      %v6514 = vadd.f32 %v6256, %v6462
      %v6515 = vadd.f32 %v6257, %v6467
      %v6516 = vadd.f32 %v6258, %v6470
      %v6517 = vadd.f32 %v6259, %v6475
      %v6518 = vadd.f32 %v6260, %v6478
      %v6519 = vadd.f32 %v6261, %v6483
      %v6520 = vadd.f32 %v6262, %v6486
      %6521 = vst [vmem:[#allocation4] sm:$0xff] %v6489
      %6522 = vst [vmem:[#allocation4 + $0x8] sm:$0xff] %v6490
      %6523 = vst [vmem:[#allocation4 + $0x10] sm:$0xff] %v6491
      %6524 = vst [vmem:[#allocation4 + $0x18] sm:$0xff] %v6492
      %6525 = vst [vmem:[#allocation4 + $0x20] sm:$0xff] %v6493
      %6526 = vst [vmem:[#allocation4 + $0x28] sm:$0xff] %v6494
      %6527 = vst [vmem:[#allocation4 + $0x30] sm:$0xff] %v6495
      %6528 = vst [vmem:[#allocation4 + $0x38] sm:$0xff] %v6496
      %6529 = vst [vmem:[#allocation4 + $0x40] sm:$0xff] %v6497
      %6530 = vst [vmem:[#allocation4 + $0x48] sm:$0xff] %v6498
      %6531 = vst [vmem:[#allocation4 + $0x50] sm:$0xff] %v6499
      %6532 = vst [vmem:[#allocation4 + $0x58] sm:$0xff] %v6500
      %6533 = vst [vmem:[#allocation4 + $0x60] sm:$0xff] %v6501
      %6534 = vst [vmem:[#allocation4 + $0x68] sm:$0xff] %v6502
      %6535 = vst [vmem:[#allocation4 + $0x70] sm:$0xff] %v6503
      %6536 = vst [vmem:[#allocation4 + $0x78] sm:$0xff] %v6504
      %6537 = vst [vmem:[#allocation4 + $0x80] sm:$0xff] %v6505
      %6538 = vst [vmem:[#allocation4 + $0x88] sm:$0xff] %v6506
      %6539 = vst [vmem:[#allocation4 + $0x90] sm:$0xff] %v6507
      %6540 = vst [vmem:[#allocation4 + $0x98] sm:$0xff] %v6508
      %6541 = vst [vmem:[#allocation4 + $0xa0] sm:$0xff] %v6509
      %6542 = vst [vmem:[#allocation4 + $0xa8] sm:$0xff] %v6510
      %6543 = vst [vmem:[#allocation4 + $0xb0] sm:$0xff] %v6511
      %6544 = vst [vmem:[#allocation4 + $0xb8] sm:$0xff] %v6512
      %6545 = vst [vmem:[#allocation4 + $0xc0] sm:$0xff] %v6513
      %6546 = vst [vmem:[#allocation4 + $0xc8] sm:$0xff] %v6514
      %6547 = vst [vmem:[#allocation4 + $0xd0] sm:$0xff] %v6515
      %6548 = vst [vmem:[#allocation4 + $0xd8] sm:$0xff] %v6516
      %6549 = vst [vmem:[#allocation4 + $0xe0] sm:$0xff] %v6517
      %6550 = vst [vmem:[#allocation4 + $0xe8] sm:$0xff] %v6518
      %6551 = vst [vmem:[#allocation4 + $0xf0] sm:$0xff] %v6519
      %6552 = vst [vmem:[#allocation4 + $0xf8] sm:$0xff] %v6520
      %v6553 = vld [vmem:[%s3056 + $0x7] sm:$0xff]
      %v6554 = vld [vmem:[%s3056 + $0xf] sm:$0xff]
      %v6555 = vld [vmem:[%s3056 + $0x27] sm:$0xff]
      %v6556 = vld [vmem:[%s3056 + $0x2f] sm:$0xff]
      %v6557 = vld [vmem:[%s3056 + $0x47] sm:$0xff]
      %v6558 = vld [vmem:[%s3056 + $0x4f] sm:$0xff]
      %v6559 = vld [vmem:[%s3056 + $0x67] sm:$0xff]
      %v6560 = vld [vmem:[%s3056 + $0x6f] sm:$0xff]
      %v6561 = vld [vmem:[%s3056 + $0x87] sm:$0xff]
      %v6562 = vld [vmem:[%s3056 + $0x8f] sm:$0xff]
      %v6563 = vld [vmem:[%s3056 + $0xa7] sm:$0xff]
      %v6564 = vld [vmem:[%s3056 + $0xaf] sm:$0xff]
      %v6565 = vld [vmem:[%s3056 + $0xc7] sm:$0xff]
      %v6566 = vld [vmem:[%s3056 + $0xcf] sm:$0xff]
      %v6567 = vld [vmem:[%s3056 + $0xe7] sm:$0xff]
      %v6568 = vld [vmem:[%s3056 + $0xef] sm:$0xff]
      %v6569 = vld [vmem:[%s3056 + $0x107] sm:$0xff]
      %v6570 = vld [vmem:[%s3056 + $0x10f] sm:$0xff]
      %v6571 = vld [vmem:[%s3056 + $0x127] sm:$0xff]
      %v6572 = vld [vmem:[%s3056 + $0x12f] sm:$0xff]
      %v6573 = vld [vmem:[%s3056 + $0x147] sm:$0xff]
      %v6574 = vld [vmem:[%s3056 + $0x14f] sm:$0xff]
      %v6575 = vld [vmem:[%s3056 + $0x167] sm:$0xff]
      %v6576 = vld [vmem:[%s3056 + $0x16f] sm:$0xff]
      %v6577 = vld [vmem:[%s3056 + $0x187] sm:$0xff]
      %v6578 = vld [vmem:[%s3056 + $0x18f] sm:$0xff]
      %v6579 = vld [vmem:[%s3056 + $0x1a7] sm:$0xff]
      %v6580 = vld [vmem:[%s3056 + $0x1af] sm:$0xff]
      %v6581 = vld [vmem:[%s3056 + $0x1c7] sm:$0xff]
      %v6582 = vld [vmem:[%s3056 + $0x1cf] sm:$0xff]
      %v6583 = vld [vmem:[%s3056 + $0x1e7] sm:$0xff]
      %v6584 = vld [vmem:[%s3056 + $0x1ef] sm:$0xff]
      %v6585 = vpack.c.bf16 %v6554, %v6553
      %v6586 = vpack.c.bf16 %v6556, %v6555
      %v6587 = vpack.c.bf16 %v6558, %v6557
      %v6588 = vpack.c.bf16 %v6560, %v6559
      %v6589 = vpack.c.bf16 %v6562, %v6561
      %v6590 = vpack.c.bf16 %v6564, %v6563
      %v6591 = vpack.c.bf16 %v6566, %v6565
      %v6592 = vpack.c.bf16 %v6568, %v6567
      %v6593 = vpack.c.bf16 %v6570, %v6569
      %v6594 = vpack.c.bf16 %v6572, %v6571
      %v6595 = vpack.c.bf16 %v6574, %v6573
      %v6596 = vpack.c.bf16 %v6576, %v6575
      %v6597 = vpack.c.bf16 %v6578, %v6577
      %v6598 = vpack.c.bf16 %v6580, %v6579
      %v6599 = vpack.c.bf16 %v6582, %v6581
      %v6600 = vpack.c.bf16 %v6584, %v6583
      %v6601 = vld [vmem:[#allocation4] sm:$0xff]
      %v6602 = vld [vmem:[#allocation4 + $0x8] sm:$0xff]
      %v6603 = vld [vmem:[#allocation4 + $0x10] sm:$0xff]
      %v6604 = vld [vmem:[#allocation4 + $0x18] sm:$0xff]
      %v6605 = vld [vmem:[#allocation4 + $0x20] sm:$0xff]
      %v6606 = vld [vmem:[#allocation4 + $0x28] sm:$0xff]
      %v6607 = vld [vmem:[#allocation4 + $0x30] sm:$0xff]
      %v6608 = vld [vmem:[#allocation4 + $0x38] sm:$0xff]
      %v6609 = vld [vmem:[#allocation4 + $0x40] sm:$0xff]
      %v6610 = vld [vmem:[#allocation4 + $0x48] sm:$0xff]
      %v6611 = vld [vmem:[#allocation4 + $0x50] sm:$0xff]
      %v6612 = vld [vmem:[#allocation4 + $0x58] sm:$0xff]
      %v6613 = vld [vmem:[#allocation4 + $0x60] sm:$0xff]
      %v6614 = vld [vmem:[#allocation4 + $0x68] sm:$0xff]
      %v6615 = vld [vmem:[#allocation4 + $0x70] sm:$0xff]
      %v6616 = vld [vmem:[#allocation4 + $0x78] sm:$0xff]
      %v6617 = vld [vmem:[#allocation4 + $0x80] sm:$0xff]
      %v6618 = vld [vmem:[#allocation4 + $0x88] sm:$0xff]
      %v6619 = vld [vmem:[#allocation4 + $0x90] sm:$0xff]
      %v6620 = vld [vmem:[#allocation4 + $0x98] sm:$0xff]
      %v6621 = vld [vmem:[#allocation4 + $0xa0] sm:$0xff]
      %v6622 = vld [vmem:[#allocation4 + $0xa8] sm:$0xff]
      %v6623 = vld [vmem:[#allocation4 + $0xb0] sm:$0xff]
      %v6624 = vld [vmem:[#allocation4 + $0xb8] sm:$0xff]
      %v6625 = vld [vmem:[#allocation4 + $0xc0] sm:$0xff]
      %v6626 = vld [vmem:[#allocation4 + $0xc8] sm:$0xff]
      %v6627 = vld [vmem:[#allocation4 + $0xd0] sm:$0xff]
      %v6628 = vld [vmem:[#allocation4 + $0xd8] sm:$0xff]
      %v6629 = vld [vmem:[#allocation4 + $0xe0] sm:$0xff]
      %v6630 = vld [vmem:[#allocation4 + $0xe8] sm:$0xff]
      %v6631 = vld [vmem:[#allocation4 + $0xf0] sm:$0xff]
      %v6632 = vld [vmem:[#allocation4 + $0xf8] sm:$0xff]
      %s6633 = scalar_lea.vmem %s5, 384
      %v6634 = vld [vmem:[%s6633] sm:$0xf]
      %v6635 = vld [vmem:[%s6633 + $0x4] sm:$0xf]
      %v6636 = vld [vmem:[%s6633 + $0x8] sm:$0xf]
      %v6637 = vld [vmem:[%s6633 + $0xc] sm:$0xf]
      %v6638 = vld [vmem:[%s6633 + $0x10] sm:$0xf]
      %v6639 = vld [vmem:[%s6633 + $0x14] sm:$0xf]
      %v6640 = vld [vmem:[%s6633 + $0x18] sm:$0xf]
      %v6641 = vld [vmem:[%s6633 + $0x1c] sm:$0xf]
      %v6642 = vld [vmem:[%s6633 + $0x20] sm:$0xf]
      %v6643 = vld [vmem:[%s6633 + $0x24] sm:$0xf]
      %v6644 = vld [vmem:[%s6633 + $0x28] sm:$0xf]
      %v6645 = vld [vmem:[%s6633 + $0x2c] sm:$0xf]
      %v6646 = vld [vmem:[%s6633 + $0x30] sm:$0xf]
      %v6647 = vld [vmem:[%s6633 + $0x34] sm:$0xf]
      %v6648 = vld [vmem:[%s6633 + $0x38] sm:$0xf]
      %v6649 = vld [vmem:[%s6633 + $0x3c] sm:$0xf]
      %v6666 = vunpack.c.l.b16 %v6634
      %v6667 = vunpack.c.l.b16 %v6635
      %v6668 = vunpack.c.l.b16 %v6636
      %v6669 = vunpack.c.l.b16 %v6637
      %v6670 = vunpack.c.l.b16 %v6638
      %v6671 = vunpack.c.l.b16 %v6639
      %v6672 = vunpack.c.l.b16 %v6640
      %v6673 = vunpack.c.l.b16 %v6641
      %v6674 = vunpack.c.l.b16 %v6642
      %v6675 = vunpack.c.l.b16 %v6643
      %v6676 = vunpack.c.l.b16 %v6644
      %v6677 = vunpack.c.l.b16 %v6645
      %v6678 = vunpack.c.l.b16 %v6646
      %v6679 = vunpack.c.l.b16 %v6647
      %v6680 = vunpack.c.l.b16 %v6648
      %v6681 = vunpack.c.l.b16 %v6649
      %v6682 = vpack.c.b16 %v6667, %v6666
      %v6683 = vpack.c.b16 %v6669, %v6668
      %v6684 = vpack.c.b16 %v6671, %v6670
      %v6685 = vpack.c.b16 %v6673, %v6672
      %v6686 = vpack.c.b16 %v6675, %v6674
      %v6687 = vpack.c.b16 %v6677, %v6676
      %v6688 = vpack.c.b16 %v6679, %v6678
      %v6689 = vpack.c.b16 %v6681, %v6680
      %6698 = vmatprep.subr.bf16.mxu0 0
      %6699 = vmatpush1.bf16.msra.mxu0 %v6682
      %6700 = vmatprep.subr.bf16.mxu0 0
      %6701 = vmatpush1.bf16.msra.mxu0 %v6683
      %6702 = vmatprep.subr.bf16.mxu0 0
      %6703 = vmatpush1.bf16.msra.mxu0 %v6684
      %6704 = vmatprep.subr.bf16.mxu0 0
      %6705 = vmatpush1.bf16.msra.mxu0 %v6685
      %6706 = vmatprep.subr.bf16.mxu0 0
      %6707 = vmatpush1.bf16.msra.mxu0 %v6686
      %6708 = vmatprep.subr.bf16.mxu0 0
      %6709 = vmatpush1.bf16.msra.mxu0 %v6687
      %6710 = vmatprep.subr.bf16.mxu0 0
      %6711 = vmatpush1.bf16.msra.mxu0 %v6688
      %6712 = vmatprep.subr.bf16.mxu0 0
      %6713 = vmatpush1.bf16.msra.mxu0 %v6689
      %6714 = vmatprep.subr.bf16.mxu0 0
      %6715 = vmatpush1.bf16.msra.mxu0 0
      %6716 = vmatprep.subr.bf16.mxu0 0
      %6717 = vmatpush1.bf16.msra.mxu0 0
      %6718 = vmatprep.subr.bf16.mxu0 0
      %6719 = vmatpush1.bf16.msra.mxu0 0
      %6720 = vmatprep.subr.bf16.mxu0 0
      %6721 = vmatpush1.bf16.msra.mxu0 0
      %6722 = vmatprep.subr.bf16.mxu0 0
      %6723 = vmatpush1.bf16.msra.mxu0 0
      %6724 = vmatprep.subr.bf16.mxu0 0
      %6725 = vmatpush1.bf16.msra.mxu0 0
      %6726 = vmatprep.subr.bf16.mxu0 0
      %6727 = vmatpush1.bf16.msra.mxu0 0
      %6728 = vmatprep.subr.bf16.mxu0 0
      %6729 = vmatpush1.bf16.msra.mxu0 0
      %6730 = vmatprep.mubr.bf16.mxu0 0
      %6731 = vmatmul.mubr.bf16.gmra.mrb[0].mxu0 %v6585
      %v6732 = vpop.f32.mrb[0].mxu0
      %v6733 = vadd.f32 0.0, %v6732
      %v6734 = vpop.f32.mrb[0].mxu0
      %v6735 = vpop.f32.mrb[0].mxu0
      %v6736 = vadd.f32 0.0, %v6735
      %v6737 = vpop.f32.mrb[0].mxu0
      %6738 = vmatprep.mubr.bf16.mxu0 0
      %6739 = vmatmul.mubr.bf16.gmra.mrb[0].mxu0 %v6586
      %v6740 = vpop.f32.mrb[0].mxu0
      %v6741 = vadd.f32 0.0, %v6740
      %v6742 = vpop.f32.mrb[0].mxu0
      %v6743 = vpop.f32.mrb[0].mxu0
      %v6744 = vadd.f32 0.0, %v6743
      %v6745 = vpop.f32.mrb[0].mxu0
      %6746 = vmatprep.mubr.bf16.mxu0 0
      %6747 = vmatmul.mubr.bf16.gmra.mrb[0].mxu0 %v6587
      %v6748 = vpop.f32.mrb[0].mxu0
      %v6749 = vadd.f32 0.0, %v6748
      %v6750 = vpop.f32.mrb[0].mxu0
      %v6751 = vpop.f32.mrb[0].mxu0
      %v6752 = vadd.f32 0.0, %v6751
      %v6753 = vpop.f32.mrb[0].mxu0
      %6754 = vmatprep.mubr.bf16.mxu0 0
      %6755 = vmatmul.mubr.bf16.gmra.mrb[0].mxu0 %v6588
      %v6756 = vpop.f32.mrb[0].mxu0
      %v6757 = vadd.f32 0.0, %v6756
      %v6758 = vpop.f32.mrb[0].mxu0
      %v6759 = vpop.f32.mrb[0].mxu0
      %v6760 = vadd.f32 0.0, %v6759
      %v6761 = vpop.f32.mrb[0].mxu0
      %6762 = vmatprep.mubr.bf16.mxu0 0
      %6763 = vmatmul.mubr.bf16.gmra.mrb[0].mxu0 %v6589
      %v6764 = vpop.f32.mrb[0].mxu0
      %v6765 = vadd.f32 0.0, %v6764
      %v6766 = vpop.f32.mrb[0].mxu0
      %v6767 = vpop.f32.mrb[0].mxu0
      %v6768 = vadd.f32 0.0, %v6767
      %v6769 = vpop.f32.mrb[0].mxu0
      %6770 = vmatprep.mubr.bf16.mxu0 0
      %6771 = vmatmul.mubr.bf16.gmra.mrb[0].mxu0 %v6590
      %v6772 = vpop.f32.mrb[0].mxu0
      %v6773 = vadd.f32 0.0, %v6772
      %v6774 = vpop.f32.mrb[0].mxu0
      %v6775 = vpop.f32.mrb[0].mxu0
      %v6776 = vadd.f32 0.0, %v6775
      %v6777 = vpop.f32.mrb[0].mxu0
      %6778 = vmatprep.mubr.bf16.mxu0 0
      %6779 = vmatmul.mubr.bf16.gmra.mrb[0].mxu0 %v6591
      %v6780 = vpop.f32.mrb[0].mxu0
      %v6781 = vadd.f32 0.0, %v6780
      %v6782 = vpop.f32.mrb[0].mxu0
      %v6783 = vpop.f32.mrb[0].mxu0
      %v6784 = vadd.f32 0.0, %v6783
      %v6785 = vpop.f32.mrb[0].mxu0
      %6786 = vmatprep.mubr.bf16.mxu0 0
      %6787 = vmatmul.mubr.bf16.gmra.mrb[0].mxu0 %v6592
      %v6788 = vpop.f32.mrb[0].mxu0
      %v6789 = vadd.f32 0.0, %v6788
      %v6790 = vpop.f32.mrb[0].mxu0
      %v6791 = vpop.f32.mrb[0].mxu0
      %v6792 = vadd.f32 0.0, %v6791
      %v6793 = vpop.f32.mrb[0].mxu0
      %6794 = vmatprep.mubr.bf16.mxu0 0
      %6795 = vmatmul.mubr.bf16.gmra.mrb[0].mxu0 %v6593
      %v6796 = vpop.f32.mrb[0].mxu0
      %v6797 = vadd.f32 0.0, %v6796
      %v6798 = vpop.f32.mrb[0].mxu0
      %v6799 = vpop.f32.mrb[0].mxu0
      %v6800 = vadd.f32 0.0, %v6799
      %v6801 = vpop.f32.mrb[0].mxu0
      %6802 = vmatprep.mubr.bf16.mxu0 0
      %6803 = vmatmul.mubr.bf16.gmra.mrb[0].mxu0 %v6594
      %v6804 = vpop.f32.mrb[0].mxu0
      %v6805 = vadd.f32 0.0, %v6804
      %v6806 = vpop.f32.mrb[0].mxu0
      %v6807 = vpop.f32.mrb[0].mxu0
      %v6808 = vadd.f32 0.0, %v6807
      %v6809 = vpop.f32.mrb[0].mxu0
      %6810 = vmatprep.mubr.bf16.mxu0 0
      %6811 = vmatmul.mubr.bf16.gmra.mrb[0].mxu0 %v6595
      %v6812 = vpop.f32.mrb[0].mxu0
      %v6813 = vadd.f32 0.0, %v6812
      %v6814 = vpop.f32.mrb[0].mxu0
      %v6815 = vpop.f32.mrb[0].mxu0
      %v6816 = vadd.f32 0.0, %v6815
      %v6817 = vpop.f32.mrb[0].mxu0
      %6818 = vmatprep.mubr.bf16.mxu0 0
      %6819 = vmatmul.mubr.bf16.gmra.mrb[0].mxu0 %v6596
      %v6820 = vpop.f32.mrb[0].mxu0
      %v6821 = vadd.f32 0.0, %v6820
      %v6822 = vpop.f32.mrb[0].mxu0
      %v6823 = vpop.f32.mrb[0].mxu0
      %v6824 = vadd.f32 0.0, %v6823
      %v6825 = vpop.f32.mrb[0].mxu0
      %6826 = vmatprep.mubr.bf16.mxu0 0
      %6827 = vmatmul.mubr.bf16.gmra.mrb[0].mxu0 %v6597
      %v6828 = vpop.f32.mrb[0].mxu0
      %v6829 = vadd.f32 0.0, %v6828
      %v6830 = vpop.f32.mrb[0].mxu0
      %v6831 = vpop.f32.mrb[0].mxu0
      %v6832 = vadd.f32 0.0, %v6831
      %v6833 = vpop.f32.mrb[0].mxu0
      %6834 = vmatprep.mubr.bf16.mxu0 0
      %6835 = vmatmul.mubr.bf16.gmra.mrb[0].mxu0 %v6598
      %v6836 = vpop.f32.mrb[0].mxu0
      %v6837 = vadd.f32 0.0, %v6836
      %v6838 = vpop.f32.mrb[0].mxu0
      %v6839 = vpop.f32.mrb[0].mxu0
      %v6840 = vadd.f32 0.0, %v6839
      %v6841 = vpop.f32.mrb[0].mxu0
      %6842 = vmatprep.mubr.bf16.mxu0 0
      %6843 = vmatmul.mubr.bf16.gmra.mrb[0].mxu0 %v6599
      %v6844 = vpop.f32.mrb[0].mxu0
      %v6845 = vadd.f32 0.0, %v6844
      %v6846 = vpop.f32.mrb[0].mxu0
      %v6847 = vpop.f32.mrb[0].mxu0
      %v6848 = vadd.f32 0.0, %v6847
      %v6849 = vpop.f32.mrb[0].mxu0
      %6850 = vmatprep.mubr.bf16.mxu0 0
      %6851 = vmatmul.mubr.bf16.gmra.mrb[0].mxu0 %v6600
      %v6852 = vpop.f32.mrb[0].mxu0
      %v6853 = vadd.f32 0.0, %v6852
      %v6854 = vpop.f32.mrb[0].mxu0
      %v6855 = vpop.f32.mrb[0].mxu0
      %v6856 = vadd.f32 0.0, %v6855
      %v6857 = vpop.f32.mrb[0].mxu0
      %6858 = vdwg.mxu0
      %v6859 = vadd.f32 %v6601, %v6733
      %v6860 = vadd.f32 %v6602, %v6736
      %v6861 = vadd.f32 %v6603, %v6741
      %v6862 = vadd.f32 %v6604, %v6744
      %v6863 = vadd.f32 %v6605, %v6749
      %v6864 = vadd.f32 %v6606, %v6752
      %v6865 = vadd.f32 %v6607, %v6757
      %v6866 = vadd.f32 %v6608, %v6760
      %v6867 = vadd.f32 %v6609, %v6765
      %v6868 = vadd.f32 %v6610, %v6768
      %v6869 = vadd.f32 %v6611, %v6773
      %v6870 = vadd.f32 %v6612, %v6776
      %v6871 = vadd.f32 %v6613, %v6781
      %v6872 = vadd.f32 %v6614, %v6784
      %v6873 = vadd.f32 %v6615, %v6789
      %v6874 = vadd.f32 %v6616, %v6792
      %v6875 = vadd.f32 %v6617, %v6797
      %v6876 = vadd.f32 %v6618, %v6800
      %v6877 = vadd.f32 %v6619, %v6805
      %v6878 = vadd.f32 %v6620, %v6808
      %v6879 = vadd.f32 %v6621, %v6813
      %v6880 = vadd.f32 %v6622, %v6816
      %v6881 = vadd.f32 %v6623, %v6821
      %v6882 = vadd.f32 %v6624, %v6824
      %v6883 = vadd.f32 %v6625, %v6829
      %v6884 = vadd.f32 %v6626, %v6832
      %v6885 = vadd.f32 %v6627, %v6837
      %v6886 = vadd.f32 %v6628, %v6840
      %v6887 = vadd.f32 %v6629, %v6845
      %v6888 = vadd.f32 %v6630, %v6848
      %v6889 = vadd.f32 %v6631, %v6853
      %v6890 = vadd.f32 %v6632, %v6856
      %6891 = vst [vmem:[#allocation4] sm:$0xff] %v6859
      %6892 = vst [vmem:[#allocation4 + $0x8] sm:$0xff] %v6860
      %6893 = vst [vmem:[#allocation4 + $0x10] sm:$0xff] %v6861
      %6894 = vst [vmem:[#allocation4 + $0x18] sm:$0xff] %v6862
      %6895 = vst [vmem:[#allocation4 + $0x20] sm:$0xff] %v6863
      %6896 = vst [vmem:[#allocation4 + $0x28] sm:$0xff] %v6864
      %6897 = vst [vmem:[#allocation4 + $0x30] sm:$0xff] %v6865
      %6898 = vst [vmem:[#allocation4 + $0x38] sm:$0xff] %v6866
      %6899 = vst [vmem:[#allocation4 + $0x40] sm:$0xff] %v6867
      %6900 = vst [vmem:[#allocation4 + $0x48] sm:$0xff] %v6868
      %6901 = vst [vmem:[#allocation4 + $0x50] sm:$0xff] %v6869
      %6902 = vst [vmem:[#allocation4 + $0x58] sm:$0xff] %v6870
      %6903 = vst [vmem:[#allocation4 + $0x60] sm:$0xff] %v6871
      %6904 = vst [vmem:[#allocation4 + $0x68] sm:$0xff] %v6872
      %6905 = vst [vmem:[#allocation4 + $0x70] sm:$0xff] %v6873
      %6906 = vst [vmem:[#allocation4 + $0x78] sm:$0xff] %v6874
      %6907 = vst [vmem:[#allocation4 + $0x80] sm:$0xff] %v6875
      %6908 = vst [vmem:[#allocation4 + $0x88] sm:$0xff] %v6876
      %6909 = vst [vmem:[#allocation4 + $0x90] sm:$0xff] %v6877
      %6910 = vst [vmem:[#allocation4 + $0x98] sm:$0xff] %v6878
      %6911 = vst [vmem:[#allocation4 + $0xa0] sm:$0xff] %v6879
      %6912 = vst [vmem:[#allocation4 + $0xa8] sm:$0xff] %v6880
      %6913 = vst [vmem:[#allocation4 + $0xb0] sm:$0xff] %v6881
      %6914 = vst [vmem:[#allocation4 + $0xb8] sm:$0xff] %v6882
      %6915 = vst [vmem:[#allocation4 + $0xc0] sm:$0xff] %v6883
      %6916 = vst [vmem:[#allocation4 + $0xc8] sm:$0xff] %v6884
      %6917 = vst [vmem:[#allocation4 + $0xd0] sm:$0xff] %v6885
      %6918 = vst [vmem:[#allocation4 + $0xd8] sm:$0xff] %v6886
      %6919 = vst [vmem:[#allocation4 + $0xe0] sm:$0xff] %v6887
      %6920 = vst [vmem:[#allocation4 + $0xe8] sm:$0xff] %v6888
      %6921 = vst [vmem:[#allocation4 + $0xf0] sm:$0xff] %v6889
      %6922 = vst [vmem:[#allocation4 + $0xf8] sm:$0xff] %v6890
      %v6923 = vld [vmem:[%s3056 + $0x8] sm:$0xff]
      %v6924 = vld [vmem:[%s3056 + $0x10] sm:$0xff]
      %v6925 = vld [vmem:[%s3056 + $0x28] sm:$0xff]
      %v6926 = vld [vmem:[%s3056 + $0x30] sm:$0xff]
      %v6927 = vld [vmem:[%s3056 + $0x48] sm:$0xff]
      %v6928 = vld [vmem:[%s3056 + $0x50] sm:$0xff]
      %v6929 = vld [vmem:[%s3056 + $0x68] sm:$0xff]
      %v6930 = vld [vmem:[%s3056 + $0x70] sm:$0xff]
      %v6931 = vld [vmem:[%s3056 + $0x88] sm:$0xff]
      %v6932 = vld [vmem:[%s3056 + $0x90] sm:$0xff]
      %v6933 = vld [vmem:[%s3056 + $0xa8] sm:$0xff]
      %v6934 = vld [vmem:[%s3056 + $0xb0] sm:$0xff]
      %v6935 = vld [vmem:[%s3056 + $0xc8] sm:$0xff]
      %v6936 = vld [vmem:[%s3056 + $0xd0] sm:$0xff]
      %v6937 = vld [vmem:[%s3056 + $0xe8] sm:$0xff]
      %v6938 = vld [vmem:[%s3056 + $0xf0] sm:$0xff]
      %v6939 = vld [vmem:[%s3056 + $0x108] sm:$0xff]
      %v6940 = vld [vmem:[%s3056 + $0x110] sm:$0xff]
      %v6941 = vld [vmem:[%s3056 + $0x128] sm:$0xff]
      %v6942 = vld [vmem:[%s3056 + $0x130] sm:$0xff]
      %v6943 = vld [vmem:[%s3056 + $0x148] sm:$0xff]
      %v6944 = vld [vmem:[%s3056 + $0x150] sm:$0xff]
      %v6945 = vld [vmem:[%s3056 + $0x168] sm:$0xff]
      %v6946 = vld [vmem:[%s3056 + $0x170] sm:$0xff]
      %v6947 = vld [vmem:[%s3056 + $0x188] sm:$0xff]
      %v6948 = vld [vmem:[%s3056 + $0x190] sm:$0xff]
      %v6949 = vld [vmem:[%s3056 + $0x1a8] sm:$0xff]
      %v6950 = vld [vmem:[%s3056 + $0x1b0] sm:$0xff]
      %v6951 = vld [vmem:[%s3056 + $0x1c8] sm:$0xff]
      %v6952 = vld [vmem:[%s3056 + $0x1d0] sm:$0xff]
      %v6953 = vld [vmem:[%s3056 + $0x1e8] sm:$0xff]
      %v6954 = vld [vmem:[%s3056 + $0x1f0] sm:$0xff]
      %v6955 = vpack.c.bf16 %v6924, %v6923
      %v6956 = vpack.c.bf16 %v6926, %v6925
      %v6957 = vpack.c.bf16 %v6928, %v6927
      %v6958 = vpack.c.bf16 %v6930, %v6929
      %v6959 = vpack.c.bf16 %v6932, %v6931
      %v6960 = vpack.c.bf16 %v6934, %v6933
      %v6961 = vpack.c.bf16 %v6936, %v6935
      %v6962 = vpack.c.bf16 %v6938, %v6937
      %v6963 = vpack.c.bf16 %v6940, %v6939
      %v6964 = vpack.c.bf16 %v6942, %v6941
      %v6965 = vpack.c.bf16 %v6944, %v6943
      %v6966 = vpack.c.bf16 %v6946, %v6945
      %v6967 = vpack.c.bf16 %v6948, %v6947
      %v6968 = vpack.c.bf16 %v6950, %v6949
      %v6969 = vpack.c.bf16 %v6952, %v6951
      %v6970 = vpack.c.bf16 %v6954, %v6953
      %v6971 = vld [vmem:[#allocation4] sm:$0xff]
      %v6972 = vld [vmem:[#allocation4 + $0x8] sm:$0xff]
      %v6973 = vld [vmem:[#allocation4 + $0x10] sm:$0xff]
      %v6974 = vld [vmem:[#allocation4 + $0x18] sm:$0xff]
      %v6975 = vld [vmem:[#allocation4 + $0x20] sm:$0xff]
      %v6976 = vld [vmem:[#allocation4 + $0x28] sm:$0xff]
      %v6977 = vld [vmem:[#allocation4 + $0x30] sm:$0xff]
      %v6978 = vld [vmem:[#allocation4 + $0x38] sm:$0xff]
      %v6979 = vld [vmem:[#allocation4 + $0x40] sm:$0xff]
      %v6980 = vld [vmem:[#allocation4 + $0x48] sm:$0xff]
      %v6981 = vld [vmem:[#allocation4 + $0x50] sm:$0xff]
      %v6982 = vld [vmem:[#allocation4 + $0x58] sm:$0xff]
      %v6983 = vld [vmem:[#allocation4 + $0x60] sm:$0xff]
      %v6984 = vld [vmem:[#allocation4 + $0x68] sm:$0xff]
      %v6985 = vld [vmem:[#allocation4 + $0x70] sm:$0xff]
      %v6986 = vld [vmem:[#allocation4 + $0x78] sm:$0xff]
      %v6987 = vld [vmem:[#allocation4 + $0x80] sm:$0xff]
      %v6988 = vld [vmem:[#allocation4 + $0x88] sm:$0xff]
      %v6989 = vld [vmem:[#allocation4 + $0x90] sm:$0xff]
      %v6990 = vld [vmem:[#allocation4 + $0x98] sm:$0xff]
      %v6991 = vld [vmem:[#allocation4 + $0xa0] sm:$0xff]
      %v6992 = vld [vmem:[#allocation4 + $0xa8] sm:$0xff]
      %v6993 = vld [vmem:[#allocation4 + $0xb0] sm:$0xff]
      %v6994 = vld [vmem:[#allocation4 + $0xb8] sm:$0xff]
      %v6995 = vld [vmem:[#allocation4 + $0xc0] sm:$0xff]
      %v6996 = vld [vmem:[#allocation4 + $0xc8] sm:$0xff]
      %v6997 = vld [vmem:[#allocation4 + $0xd0] sm:$0xff]
      %v6998 = vld [vmem:[#allocation4 + $0xd8] sm:$0xff]
      %v6999 = vld [vmem:[#allocation4 + $0xe0] sm:$0xff]
      %v7000 = vld [vmem:[#allocation4 + $0xe8] sm:$0xff]
      %v7001 = vld [vmem:[#allocation4 + $0xf0] sm:$0xff]
      %v7002 = vld [vmem:[#allocation4 + $0xf8] sm:$0xff]
      %s7003 = scalar_lea.vmem %s5, 448
      %v7004 = vld [vmem:[%s7003] sm:$0xf]
      %v7005 = vld [vmem:[%s7003 + $0x4] sm:$0xf]
      %v7006 = vld [vmem:[%s7003 + $0x8] sm:$0xf]
      %v7007 = vld [vmem:[%s7003 + $0xc] sm:$0xf]
      %v7008 = vld [vmem:[%s7003 + $0x10] sm:$0xf]
      %v7009 = vld [vmem:[%s7003 + $0x14] sm:$0xf]
      %v7010 = vld [vmem:[%s7003 + $0x18] sm:$0xf]
      %v7011 = vld [vmem:[%s7003 + $0x1c] sm:$0xf]
      %v7012 = vld [vmem:[%s7003 + $0x20] sm:$0xf]
      %v7013 = vld [vmem:[%s7003 + $0x24] sm:$0xf]
      %v7014 = vld [vmem:[%s7003 + $0x28] sm:$0xf]
      %v7015 = vld [vmem:[%s7003 + $0x2c] sm:$0xf]
      %v7016 = vld [vmem:[%s7003 + $0x30] sm:$0xf]
      %v7017 = vld [vmem:[%s7003 + $0x34] sm:$0xf]
      %v7018 = vld [vmem:[%s7003 + $0x38] sm:$0xf]
      %v7019 = vld [vmem:[%s7003 + $0x3c] sm:$0xf]
      %v7036 = vunpack.c.l.b16 %v7004
      %v7037 = vunpack.c.l.b16 %v7005
      %v7038 = vunpack.c.l.b16 %v7006
      %v7039 = vunpack.c.l.b16 %v7007
      %v7040 = vunpack.c.l.b16 %v7008
      %v7041 = vunpack.c.l.b16 %v7009
      %v7042 = vunpack.c.l.b16 %v7010
      %v7043 = vunpack.c.l.b16 %v7011
      %v7044 = vunpack.c.l.b16 %v7012
      %v7045 = vunpack.c.l.b16 %v7013
      %v7046 = vunpack.c.l.b16 %v7014
      %v7047 = vunpack.c.l.b16 %v7015
      %v7048 = vunpack.c.l.b16 %v7016
      %v7049 = vunpack.c.l.b16 %v7017
      %v7050 = vunpack.c.l.b16 %v7018
      %v7051 = vunpack.c.l.b16 %v7019
      %v7052 = vpack.c.b16 %v7037, %v7036
      %v7053 = vpack.c.b16 %v7039, %v7038
      %v7054 = vpack.c.b16 %v7041, %v7040
      %v7055 = vpack.c.b16 %v7043, %v7042
      %v7056 = vpack.c.b16 %v7045, %v7044
      %v7057 = vpack.c.b16 %v7047, %v7046
      %v7058 = vpack.c.b16 %v7049, %v7048
      %v7059 = vpack.c.b16 %v7051, %v7050
      %7068 = vmatprep.subr.bf16.mxu0 0
      %7069 = vmatpush1.bf16.msra.mxu0 %v7052
      %7070 = vmatprep.subr.bf16.mxu0 0
      %7071 = vmatpush1.bf16.msra.mxu0 %v7053
      %7072 = vmatprep.subr.bf16.mxu0 0
      %7073 = vmatpush1.bf16.msra.mxu0 %v7054
      %7074 = vmatprep.subr.bf16.mxu0 0
      %7075 = vmatpush1.bf16.msra.mxu0 %v7055
      %7076 = vmatprep.subr.bf16.mxu0 0
      %7077 = vmatpush1.bf16.msra.mxu0 %v7056
      %7078 = vmatprep.subr.bf16.mxu0 0
      %7079 = vmatpush1.bf16.msra.mxu0 %v7057
      %7080 = vmatprep.subr.bf16.mxu0 0
      %7081 = vmatpush1.bf16.msra.mxu0 %v7058
      %7082 = vmatprep.subr.bf16.mxu0 0
      %7083 = vmatpush1.bf16.msra.mxu0 %v7059
      %7084 = vmatprep.subr.bf16.mxu0 0
      %7085 = vmatpush1.bf16.msra.mxu0 0
      %7086 = vmatprep.subr.bf16.mxu0 0
      %7087 = vmatpush1.bf16.msra.mxu0 0
      %7088 = vmatprep.subr.bf16.mxu0 0
      %7089 = vmatpush1.bf16.msra.mxu0 0
      %7090 = vmatprep.subr.bf16.mxu0 0
      %7091 = vmatpush1.bf16.msra.mxu0 0
      %7092 = vmatprep.subr.bf16.mxu0 0
      %7093 = vmatpush1.bf16.msra.mxu0 0
      %7094 = vmatprep.subr.bf16.mxu0 0
      %7095 = vmatpush1.bf16.msra.mxu0 0
      %7096 = vmatprep.subr.bf16.mxu0 0
      %7097 = vmatpush1.bf16.msra.mxu0 0
      %7098 = vmatprep.subr.bf16.mxu0 0
      %7099 = vmatpush1.bf16.msra.mxu0 0
      %7100 = vmatprep.mubr.bf16.mxu0 0
      %7101 = vmatmul.mubr.bf16.gmra.mrb[0].mxu0 %v6955
      %v7102 = vpop.f32.mrb[0].mxu0
      %v7103 = vadd.f32 0.0, %v7102
      %v7104 = vpop.f32.mrb[0].mxu0
      %v7105 = vpop.f32.mrb[0].mxu0
      %v7106 = vadd.f32 0.0, %v7105
      %v7107 = vpop.f32.mrb[0].mxu0
      %7108 = vmatprep.mubr.bf16.mxu0 0
      %7109 = vmatmul.mubr.bf16.gmra.mrb[0].mxu0 %v6956
      %v7110 = vpop.f32.mrb[0].mxu0
      %v7111 = vadd.f32 0.0, %v7110
      %v7112 = vpop.f32.mrb[0].mxu0
      %v7113 = vpop.f32.mrb[0].mxu0
      %v7114 = vadd.f32 0.0, %v7113
      %v7115 = vpop.f32.mrb[0].mxu0
      %7116 = vmatprep.mubr.bf16.mxu0 0
      %7117 = vmatmul.mubr.bf16.gmra.mrb[0].mxu0 %v6957
      %v7118 = vpop.f32.mrb[0].mxu0
      %v7119 = vadd.f32 0.0, %v7118
      %v7120 = vpop.f32.mrb[0].mxu0
      %v7121 = vpop.f32.mrb[0].mxu0
      %v7122 = vadd.f32 0.0, %v7121
      %v7123 = vpop.f32.mrb[0].mxu0
      %7124 = vmatprep.mubr.bf16.mxu0 0
      %7125 = vmatmul.mubr.bf16.gmra.mrb[0].mxu0 %v6958
      %v7126 = vpop.f32.mrb[0].mxu0
      %v7127 = vadd.f32 0.0, %v7126
      %v7128 = vpop.f32.mrb[0].mxu0
      %v7129 = vpop.f32.mrb[0].mxu0
      %v7130 = vadd.f32 0.0, %v7129
      %v7131 = vpop.f32.mrb[0].mxu0
      %7132 = vmatprep.mubr.bf16.mxu0 0
      %7133 = vmatmul.mubr.bf16.gmra.mrb[0].mxu0 %v6959
      %v7134 = vpop.f32.mrb[0].mxu0
      %v7135 = vadd.f32 0.0, %v7134
      %v7136 = vpop.f32.mrb[0].mxu0
      %v7137 = vpop.f32.mrb[0].mxu0
      %v7138 = vadd.f32 0.0, %v7137
      %v7139 = vpop.f32.mrb[0].mxu0
      %7140 = vmatprep.mubr.bf16.mxu0 0
      %7141 = vmatmul.mubr.bf16.gmra.mrb[0].mxu0 %v6960
      %v7142 = vpop.f32.mrb[0].mxu0
      %v7143 = vadd.f32 0.0, %v7142
      %v7144 = vpop.f32.mrb[0].mxu0
      %v7145 = vpop.f32.mrb[0].mxu0
      %v7146 = vadd.f32 0.0, %v7145
      %v7147 = vpop.f32.mrb[0].mxu0
      %7148 = vmatprep.mubr.bf16.mxu0 0
      %7149 = vmatmul.mubr.bf16.gmra.mrb[0].mxu0 %v6961
      %v7150 = vpop.f32.mrb[0].mxu0
      %v7151 = vadd.f32 0.0, %v7150
      %v7152 = vpop.f32.mrb[0].mxu0
      %v7153 = vpop.f32.mrb[0].mxu0
      %v7154 = vadd.f32 0.0, %v7153
      %v7155 = vpop.f32.mrb[0].mxu0
      %7156 = vmatprep.mubr.bf16.mxu0 0
      %7157 = vmatmul.mubr.bf16.gmra.mrb[0].mxu0 %v6962
      %v7158 = vpop.f32.mrb[0].mxu0
      %v7159 = vadd.f32 0.0, %v7158
      %v7160 = vpop.f32.mrb[0].mxu0
      %v7161 = vpop.f32.mrb[0].mxu0
      %v7162 = vadd.f32 0.0, %v7161
      %v7163 = vpop.f32.mrb[0].mxu0
      %7164 = vmatprep.mubr.bf16.mxu0 0
      %7165 = vmatmul.mubr.bf16.gmra.mrb[0].mxu0 %v6963
      %v7166 = vpop.f32.mrb[0].mxu0
      %v7167 = vadd.f32 0.0, %v7166
      %v7168 = vpop.f32.mrb[0].mxu0
      %v7169 = vpop.f32.mrb[0].mxu0
      %v7170 = vadd.f32 0.0, %v7169
      %v7171 = vpop.f32.mrb[0].mxu0
      %7172 = vmatprep.mubr.bf16.mxu0 0
      %7173 = vmatmul.mubr.bf16.gmra.mrb[0].mxu0 %v6964
      %v7174 = vpop.f32.mrb[0].mxu0
      %v7175 = vadd.f32 0.0, %v7174
      %v7176 = vpop.f32.mrb[0].mxu0
      %v7177 = vpop.f32.mrb[0].mxu0
      %v7178 = vadd.f32 0.0, %v7177
      %v7179 = vpop.f32.mrb[0].mxu0
      %7180 = vmatprep.mubr.bf16.mxu0 0
      %7181 = vmatmul.mubr.bf16.gmra.mrb[0].mxu0 %v6965
      %v7182 = vpop.f32.mrb[0].mxu0
      %v7183 = vadd.f32 0.0, %v7182
      %v7184 = vpop.f32.mrb[0].mxu0
      %v7185 = vpop.f32.mrb[0].mxu0
      %v7186 = vadd.f32 0.0, %v7185
      %v7187 = vpop.f32.mrb[0].mxu0
      %7188 = vmatprep.mubr.bf16.mxu0 0
      %7189 = vmatmul.mubr.bf16.gmra.mrb[0].mxu0 %v6966
      %v7190 = vpop.f32.mrb[0].mxu0
      %v7191 = vadd.f32 0.0, %v7190
      %v7192 = vpop.f32.mrb[0].mxu0
      %v7193 = vpop.f32.mrb[0].mxu0
      %v7194 = vadd.f32 0.0, %v7193
      %v7195 = vpop.f32.mrb[0].mxu0
      %7196 = vmatprep.mubr.bf16.mxu0 0
      %7197 = vmatmul.mubr.bf16.gmra.mrb[0].mxu0 %v6967
      %v7198 = vpop.f32.mrb[0].mxu0
      %v7199 = vadd.f32 0.0, %v7198
      %v7200 = vpop.f32.mrb[0].mxu0
      %v7201 = vpop.f32.mrb[0].mxu0
      %v7202 = vadd.f32 0.0, %v7201
      %v7203 = vpop.f32.mrb[0].mxu0
      %7204 = vmatprep.mubr.bf16.mxu0 0
      %7205 = vmatmul.mubr.bf16.gmra.mrb[0].mxu0 %v6968
      %v7206 = vpop.f32.mrb[0].mxu0
      %v7207 = vadd.f32 0.0, %v7206
      %v7208 = vpop.f32.mrb[0].mxu0
      %v7209 = vpop.f32.mrb[0].mxu0
      %v7210 = vadd.f32 0.0, %v7209
      %v7211 = vpop.f32.mrb[0].mxu0
      %7212 = vmatprep.mubr.bf16.mxu0 0
      %7213 = vmatmul.mubr.bf16.gmra.mrb[0].mxu0 %v6969
      %v7214 = vpop.f32.mrb[0].mxu0
      %v7215 = vadd.f32 0.0, %v7214
      %v7216 = vpop.f32.mrb[0].mxu0
      %v7217 = vpop.f32.mrb[0].mxu0
      %v7218 = vadd.f32 0.0, %v7217
      %v7219 = vpop.f32.mrb[0].mxu0
      %7220 = vmatprep.mubr.bf16.mxu0 0
      %7221 = vmatmul.mubr.bf16.gmra.mrb[0].mxu0 %v6970
      %v7222 = vpop.f32.mrb[0].mxu0
      %v7223 = vadd.f32 0.0, %v7222
      %v7224 = vpop.f32.mrb[0].mxu0
      %v7225 = vpop.f32.mrb[0].mxu0
      %v7226 = vadd.f32 0.0, %v7225
      %v7227 = vpop.f32.mrb[0].mxu0
      %7228 = vdwg.mxu0
      %v7229 = vadd.f32 %v6971, %v7103
      %v7230 = vadd.f32 %v6972, %v7106
      %v7231 = vadd.f32 %v6973, %v7111
      %v7232 = vadd.f32 %v6974, %v7114
      %v7233 = vadd.f32 %v6975, %v7119
      %v7234 = vadd.f32 %v6976, %v7122
      %v7235 = vadd.f32 %v6977, %v7127
      %v7236 = vadd.f32 %v6978, %v7130
      %v7237 = vadd.f32 %v6979, %v7135
      %v7238 = vadd.f32 %v6980, %v7138
      %v7239 = vadd.f32 %v6981, %v7143
      %v7240 = vadd.f32 %v6982, %v7146
      %v7241 = vadd.f32 %v6983, %v7151
      %v7242 = vadd.f32 %v6984, %v7154
      %v7243 = vadd.f32 %v6985, %v7159
      %v7244 = vadd.f32 %v6986, %v7162
      %v7245 = vadd.f32 %v6987, %v7167
      %v7246 = vadd.f32 %v6988, %v7170
      %v7247 = vadd.f32 %v6989, %v7175
      %v7248 = vadd.f32 %v6990, %v7178
      %v7249 = vadd.f32 %v6991, %v7183
      %v7250 = vadd.f32 %v6992, %v7186
      %v7251 = vadd.f32 %v6993, %v7191
      %v7252 = vadd.f32 %v6994, %v7194
      %v7253 = vadd.f32 %v6995, %v7199
      %v7254 = vadd.f32 %v6996, %v7202
      %v7255 = vadd.f32 %v6997, %v7207
      %v7256 = vadd.f32 %v6998, %v7210
      %v7257 = vadd.f32 %v6999, %v7215
      %v7258 = vadd.f32 %v7000, %v7218
      %v7259 = vadd.f32 %v7001, %v7223
      %v7260 = vadd.f32 %v7002, %v7226
      %7261 = vst [vmem:[#allocation4] sm:$0xff] %v7229
      %7262 = vst [vmem:[#allocation4 + $0x8] sm:$0xff] %v7230
      %7263 = vst [vmem:[#allocation4 + $0x10] sm:$0xff] %v7231
      %7264 = vst [vmem:[#allocation4 + $0x18] sm:$0xff] %v7232
      %7265 = vst [vmem:[#allocation4 + $0x20] sm:$0xff] %v7233
      %7266 = vst [vmem:[#allocation4 + $0x28] sm:$0xff] %v7234
      %7267 = vst [vmem:[#allocation4 + $0x30] sm:$0xff] %v7235
      %7268 = vst [vmem:[#allocation4 + $0x38] sm:$0xff] %v7236
      %7269 = vst [vmem:[#allocation4 + $0x40] sm:$0xff] %v7237
      %7270 = vst [vmem:[#allocation4 + $0x48] sm:$0xff] %v7238
      %7271 = vst [vmem:[#allocation4 + $0x50] sm:$0xff] %v7239
      %7272 = vst [vmem:[#allocation4 + $0x58] sm:$0xff] %v7240
      %7273 = vst [vmem:[#allocation4 + $0x60] sm:$0xff] %v7241
      %7274 = vst [vmem:[#allocation4 + $0x68] sm:$0xff] %v7242
      %7275 = vst [vmem:[#allocation4 + $0x70] sm:$0xff] %v7243
      %7276 = vst [vmem:[#allocation4 + $0x78] sm:$0xff] %v7244
      %7277 = vst [vmem:[#allocation4 + $0x80] sm:$0xff] %v7245
      %7278 = vst [vmem:[#allocation4 + $0x88] sm:$0xff] %v7246
      %7279 = vst [vmem:[#allocation4 + $0x90] sm:$0xff] %v7247
      %7280 = vst [vmem:[#allocation4 + $0x98] sm:$0xff] %v7248
      %7281 = vst [vmem:[#allocation4 + $0xa0] sm:$0xff] %v7249
      %7282 = vst [vmem:[#allocation4 + $0xa8] sm:$0xff] %v7250
      %7283 = vst [vmem:[#allocation4 + $0xb0] sm:$0xff] %v7251
      %7284 = vst [vmem:[#allocation4 + $0xb8] sm:$0xff] %v7252
      %7285 = vst [vmem:[#allocation4 + $0xc0] sm:$0xff] %v7253
      %7286 = vst [vmem:[#allocation4 + $0xc8] sm:$0xff] %v7254
      %7287 = vst [vmem:[#allocation4 + $0xd0] sm:$0xff] %v7255
      %7288 = vst [vmem:[#allocation4 + $0xd8] sm:$0xff] %v7256
      %7289 = vst [vmem:[#allocation4 + $0xe0] sm:$0xff] %v7257
      %7290 = vst [vmem:[#allocation4 + $0xe8] sm:$0xff] %v7258
      %7291 = vst [vmem:[#allocation4 + $0xf0] sm:$0xff] %v7259
      %7292 = vst [vmem:[#allocation4 + $0xf8] sm:$0xff] %v7260
      %v7293 = vld [vmem:[%s3056 + $0x9] sm:$0xff]
      %v7294 = vld [vmem:[%s3056 + $0x11] sm:$0xff]
      %v7295 = vld [vmem:[%s3056 + $0x29] sm:$0xff]
      %v7296 = vld [vmem:[%s3056 + $0x31] sm:$0xff]
      %v7297 = vld [vmem:[%s3056 + $0x49] sm:$0xff]
      %v7298 = vld [vmem:[%s3056 + $0x51] sm:$0xff]
      %v7299 = vld [vmem:[%s3056 + $0x69] sm:$0xff]
      %v7300 = vld [vmem:[%s3056 + $0x71] sm:$0xff]
      %v7301 = vld [vmem:[%s3056 + $0x89] sm:$0xff]
      %v7302 = vld [vmem:[%s3056 + $0x91] sm:$0xff]
      %v7303 = vld [vmem:[%s3056 + $0xa9] sm:$0xff]
      %v7304 = vld [vmem:[%s3056 + $0xb1] sm:$0xff]
      %v7305 = vld [vmem:[%s3056 + $0xc9] sm:$0xff]
      %v7306 = vld [vmem:[%s3056 + $0xd1] sm:$0xff]
      %v7307 = vld [vmem:[%s3056 + $0xe9] sm:$0xff]
      %v7308 = vld [vmem:[%s3056 + $0xf1] sm:$0xff]
      %v7309 = vld [vmem:[%s3056 + $0x109] sm:$0xff]
      %v7310 = vld [vmem:[%s3056 + $0x111] sm:$0xff]
      %v7311 = vld [vmem:[%s3056 + $0x129] sm:$0xff]
      %v7312 = vld [vmem:[%s3056 + $0x131] sm:$0xff]
      %v7313 = vld [vmem:[%s3056 + $0x149] sm:$0xff]
      %v7314 = vld [vmem:[%s3056 + $0x151] sm:$0xff]
      %v7315 = vld [vmem:[%s3056 + $0x169] sm:$0xff]
      %v7316 = vld [vmem:[%s3056 + $0x171] sm:$0xff]
      %v7317 = vld [vmem:[%s3056 + $0x189] sm:$0xff]
      %v7318 = vld [vmem:[%s3056 + $0x191] sm:$0xff]
      %v7319 = vld [vmem:[%s3056 + $0x1a9] sm:$0xff]
      %v7320 = vld [vmem:[%s3056 + $0x1b1] sm:$0xff]
      %v7321 = vld [vmem:[%s3056 + $0x1c9] sm:$0xff]
      %v7322 = vld [vmem:[%s3056 + $0x1d1] sm:$0xff]
      %v7323 = vld [vmem:[%s3056 + $0x1e9] sm:$0xff]
      %v7324 = vld [vmem:[%s3056 + $0x1f1] sm:$0xff]
      %v7325 = vpack.c.bf16 %v7294, %v7293
      %v7326 = vpack.c.bf16 %v7296, %v7295
      %v7327 = vpack.c.bf16 %v7298, %v7297
      %v7328 = vpack.c.bf16 %v7300, %v7299
      %v7329 = vpack.c.bf16 %v7302, %v7301
      %v7330 = vpack.c.bf16 %v7304, %v7303
      %v7331 = vpack.c.bf16 %v7306, %v7305
      %v7332 = vpack.c.bf16 %v7308, %v7307
      %v7333 = vpack.c.bf16 %v7310, %v7309
      %v7334 = vpack.c.bf16 %v7312, %v7311
      %v7335 = vpack.c.bf16 %v7314, %v7313
      %v7336 = vpack.c.bf16 %v7316, %v7315
      %v7337 = vpack.c.bf16 %v7318, %v7317
      %v7338 = vpack.c.bf16 %v7320, %v7319
      %v7339 = vpack.c.bf16 %v7322, %v7321
      %v7340 = vpack.c.bf16 %v7324, %v7323
      %v7341 = vld [vmem:[#allocation4] sm:$0xff]
      %v7342 = vld [vmem:[#allocation4 + $0x8] sm:$0xff]
      %v7343 = vld [vmem:[#allocation4 + $0x10] sm:$0xff]
      %v7344 = vld [vmem:[#allocation4 + $0x18] sm:$0xff]
      %v7345 = vld [vmem:[#allocation4 + $0x20] sm:$0xff]
      %v7346 = vld [vmem:[#allocation4 + $0x28] sm:$0xff]
      %v7347 = vld [vmem:[#allocation4 + $0x30] sm:$0xff]
      %v7348 = vld [vmem:[#allocation4 + $0x38] sm:$0xff]
      %v7349 = vld [vmem:[#allocation4 + $0x40] sm:$0xff]
      %v7350 = vld [vmem:[#allocation4 + $0x48] sm:$0xff]
      %v7351 = vld [vmem:[#allocation4 + $0x50] sm:$0xff]
      %v7352 = vld [vmem:[#allocation4 + $0x58] sm:$0xff]
      %v7353 = vld [vmem:[#allocation4 + $0x60] sm:$0xff]
      %v7354 = vld [vmem:[#allocation4 + $0x68] sm:$0xff]
      %v7355 = vld [vmem:[#allocation4 + $0x70] sm:$0xff]
      %v7356 = vld [vmem:[#allocation4 + $0x78] sm:$0xff]
      %v7357 = vld [vmem:[#allocation4 + $0x80] sm:$0xff]
      %v7358 = vld [vmem:[#allocation4 + $0x88] sm:$0xff]
      %v7359 = vld [vmem:[#allocation4 + $0x90] sm:$0xff]
      %v7360 = vld [vmem:[#allocation4 + $0x98] sm:$0xff]
      %v7361 = vld [vmem:[#allocation4 + $0xa0] sm:$0xff]
      %v7362 = vld [vmem:[#allocation4 + $0xa8] sm:$0xff]
      %v7363 = vld [vmem:[#allocation4 + $0xb0] sm:$0xff]
      %v7364 = vld [vmem:[#allocation4 + $0xb8] sm:$0xff]
      %v7365 = vld [vmem:[#allocation4 + $0xc0] sm:$0xff]
      %v7366 = vld [vmem:[#allocation4 + $0xc8] sm:$0xff]
      %v7367 = vld [vmem:[#allocation4 + $0xd0] sm:$0xff]
      %v7368 = vld [vmem:[#allocation4 + $0xd8] sm:$0xff]
      %v7369 = vld [vmem:[#allocation4 + $0xe0] sm:$0xff]
      %v7370 = vld [vmem:[#allocation4 + $0xe8] sm:$0xff]
      %v7371 = vld [vmem:[#allocation4 + $0xf0] sm:$0xff]
      %v7372 = vld [vmem:[#allocation4 + $0xf8] sm:$0xff]
      %s7373 = scalar_lea.vmem %s5, 512
      %v7374 = vld [vmem:[%s7373] sm:$0xf]
      %v7375 = vld [vmem:[%s7373 + $0x4] sm:$0xf]
      %v7376 = vld [vmem:[%s7373 + $0x8] sm:$0xf]
      %v7377 = vld [vmem:[%s7373 + $0xc] sm:$0xf]
      %v7378 = vld [vmem:[%s7373 + $0x10] sm:$0xf]
      %v7379 = vld [vmem:[%s7373 + $0x14] sm:$0xf]
      %v7380 = vld [vmem:[%s7373 + $0x18] sm:$0xf]
      %v7381 = vld [vmem:[%s7373 + $0x1c] sm:$0xf]
      %v7382 = vld [vmem:[%s7373 + $0x20] sm:$0xf]
      %v7383 = vld [vmem:[%s7373 + $0x24] sm:$0xf]
      %v7384 = vld [vmem:[%s7373 + $0x28] sm:$0xf]
      %v7385 = vld [vmem:[%s7373 + $0x2c] sm:$0xf]
      %v7386 = vld [vmem:[%s7373 + $0x30] sm:$0xf]
      %v7387 = vld [vmem:[%s7373 + $0x34] sm:$0xf]
      %v7388 = vld [vmem:[%s7373 + $0x38] sm:$0xf]
      %v7389 = vld [vmem:[%s7373 + $0x3c] sm:$0xf]
      %v7406 = vunpack.c.l.b16 %v7374
      %v7407 = vunpack.c.l.b16 %v7375
      %v7408 = vunpack.c.l.b16 %v7376
      %v7409 = vunpack.c.l.b16 %v7377
      %v7410 = vunpack.c.l.b16 %v7378
      %v7411 = vunpack.c.l.b16 %v7379
      %v7412 = vunpack.c.l.b16 %v7380
      %v7413 = vunpack.c.l.b16 %v7381
      %v7414 = vunpack.c.l.b16 %v7382
      %v7415 = vunpack.c.l.b16 %v7383
      %v7416 = vunpack.c.l.b16 %v7384
      %v7417 = vunpack.c.l.b16 %v7385
      %v7418 = vunpack.c.l.b16 %v7386
      %v7419 = vunpack.c.l.b16 %v7387
      %v7420 = vunpack.c.l.b16 %v7388
      %v7421 = vunpack.c.l.b16 %v7389
      %v7422 = vpack.c.b16 %v7407, %v7406
      %v7423 = vpack.c.b16 %v7409, %v7408
      %v7424 = vpack.c.b16 %v7411, %v7410
      %v7425 = vpack.c.b16 %v7413, %v7412
      %v7426 = vpack.c.b16 %v7415, %v7414
      %v7427 = vpack.c.b16 %v7417, %v7416
      %v7428 = vpack.c.b16 %v7419, %v7418
      %v7429 = vpack.c.b16 %v7421, %v7420
      %7438 = vmatprep.subr.bf16.mxu0 0
      %7439 = vmatpush1.bf16.msra.mxu0 %v7422
      %7440 = vmatprep.subr.bf16.mxu0 0
      %7441 = vmatpush1.bf16.msra.mxu0 %v7423
      %7442 = vmatprep.subr.bf16.mxu0 0
      %7443 = vmatpush1.bf16.msra.mxu0 %v7424
      %7444 = vmatprep.subr.bf16.mxu0 0
      %7445 = vmatpush1.bf16.msra.mxu0 %v7425
      %7446 = vmatprep.subr.bf16.mxu0 0
      %7447 = vmatpush1.bf16.msra.mxu0 %v7426
      %7448 = vmatprep.subr.bf16.mxu0 0
      %7449 = vmatpush1.bf16.msra.mxu0 %v7427
      %7450 = vmatprep.subr.bf16.mxu0 0
      %7451 = vmatpush1.bf16.msra.mxu0 %v7428
      %7452 = vmatprep.subr.bf16.mxu0 0
      %7453 = vmatpush1.bf16.msra.mxu0 %v7429
      %7454 = vmatprep.subr.bf16.mxu0 0
      %7455 = vmatpush1.bf16.msra.mxu0 0
      %7456 = vmatprep.subr.bf16.mxu0 0
      %7457 = vmatpush1.bf16.msra.mxu0 0
      %7458 = vmatprep.subr.bf16.mxu0 0
      %7459 = vmatpush1.bf16.msra.mxu0 0
      %7460 = vmatprep.subr.bf16.mxu0 0
      %7461 = vmatpush1.bf16.msra.mxu0 0
      %7462 = vmatprep.subr.bf16.mxu0 0
      %7463 = vmatpush1.bf16.msra.mxu0 0
      %7464 = vmatprep.subr.bf16.mxu0 0
      %7465 = vmatpush1.bf16.msra.mxu0 0
      %7466 = vmatprep.subr.bf16.mxu0 0
      %7467 = vmatpush1.bf16.msra.mxu0 0
      %7468 = vmatprep.subr.bf16.mxu0 0
      %7469 = vmatpush1.bf16.msra.mxu0 0
      %7470 = vmatprep.mubr.bf16.mxu0 0
      %7471 = vmatmul.mubr.bf16.gmra.mrb[0].mxu0 %v7325
      %v7472 = vpop.f32.mrb[0].mxu0
      %v7473 = vadd.f32 0.0, %v7472
      %v7474 = vpop.f32.mrb[0].mxu0
      %v7475 = vpop.f32.mrb[0].mxu0
      %v7476 = vadd.f32 0.0, %v7475
      %v7477 = vpop.f32.mrb[0].mxu0
      %7478 = vmatprep.mubr.bf16.mxu0 0
      %7479 = vmatmul.mubr.bf16.gmra.mrb[0].mxu0 %v7326
      %v7480 = vpop.f32.mrb[0].mxu0
      %v7481 = vadd.f32 0.0, %v7480
      %v7482 = vpop.f32.mrb[0].mxu0
      %v7483 = vpop.f32.mrb[0].mxu0
      %v7484 = vadd.f32 0.0, %v7483
      %v7485 = vpop.f32.mrb[0].mxu0
      %7486 = vmatprep.mubr.bf16.mxu0 0
      %7487 = vmatmul.mubr.bf16.gmra.mrb[0].mxu0 %v7327
      %v7488 = vpop.f32.mrb[0].mxu0
      %v7489 = vadd.f32 0.0, %v7488
      %v7490 = vpop.f32.mrb[0].mxu0
      %v7491 = vpop.f32.mrb[0].mxu0
      %v7492 = vadd.f32 0.0, %v7491
      %v7493 = vpop.f32.mrb[0].mxu0
      %7494 = vmatprep.mubr.bf16.mxu0 0
      %7495 = vmatmul.mubr.bf16.gmra.mrb[0].mxu0 %v7328
      %v7496 = vpop.f32.mrb[0].mxu0
      %v7497 = vadd.f32 0.0, %v7496
      %v7498 = vpop.f32.mrb[0].mxu0
      %v7499 = vpop.f32.mrb[0].mxu0
      %v7500 = vadd.f32 0.0, %v7499
      %v7501 = vpop.f32.mrb[0].mxu0
      %7502 = vmatprep.mubr.bf16.mxu0 0
      %7503 = vmatmul.mubr.bf16.gmra.mrb[0].mxu0 %v7329
      %v7504 = vpop.f32.mrb[0].mxu0
      %v7505 = vadd.f32 0.0, %v7504
      %v7506 = vpop.f32.mrb[0].mxu0
      %v7507 = vpop.f32.mrb[0].mxu0
      %v7508 = vadd.f32 0.0, %v7507
      %v7509 = vpop.f32.mrb[0].mxu0
      %7510 = vmatprep.mubr.bf16.mxu0 0
      %7511 = vmatmul.mubr.bf16.gmra.mrb[0].mxu0 %v7330
      %v7512 = vpop.f32.mrb[0].mxu0
      %v7513 = vadd.f32 0.0, %v7512
      %v7514 = vpop.f32.mrb[0].mxu0
      %v7515 = vpop.f32.mrb[0].mxu0
      %v7516 = vadd.f32 0.0, %v7515
      %v7517 = vpop.f32.mrb[0].mxu0
      %7518 = vmatprep.mubr.bf16.mxu0 0
      %7519 = vmatmul.mubr.bf16.gmra.mrb[0].mxu0 %v7331
      %v7520 = vpop.f32.mrb[0].mxu0
      %v7521 = vadd.f32 0.0, %v7520
      %v7522 = vpop.f32.mrb[0].mxu0
      %v7523 = vpop.f32.mrb[0].mxu0
      %v7524 = vadd.f32 0.0, %v7523
      %v7525 = vpop.f32.mrb[0].mxu0
      %7526 = vmatprep.mubr.bf16.mxu0 0
      %7527 = vmatmul.mubr.bf16.gmra.mrb[0].mxu0 %v7332
      %v7528 = vpop.f32.mrb[0].mxu0
      %v7529 = vadd.f32 0.0, %v7528
      %v7530 = vpop.f32.mrb[0].mxu0
      %v7531 = vpop.f32.mrb[0].mxu0
      %v7532 = vadd.f32 0.0, %v7531
      %v7533 = vpop.f32.mrb[0].mxu0
      %7534 = vmatprep.mubr.bf16.mxu0 0
      %7535 = vmatmul.mubr.bf16.gmra.mrb[0].mxu0 %v7333
      %v7536 = vpop.f32.mrb[0].mxu0
      %v7537 = vadd.f32 0.0, %v7536
      %v7538 = vpop.f32.mrb[0].mxu0
      %v7539 = vpop.f32.mrb[0].mxu0
      %v7540 = vadd.f32 0.0, %v7539
      %v7541 = vpop.f32.mrb[0].mxu0
      %7542 = vmatprep.mubr.bf16.mxu0 0
      %7543 = vmatmul.mubr.bf16.gmra.mrb[0].mxu0 %v7334
      %v7544 = vpop.f32.mrb[0].mxu0
      %v7545 = vadd.f32 0.0, %v7544
      %v7546 = vpop.f32.mrb[0].mxu0
      %v7547 = vpop.f32.mrb[0].mxu0
      %v7548 = vadd.f32 0.0, %v7547
      %v7549 = vpop.f32.mrb[0].mxu0
      %7550 = vmatprep.mubr.bf16.mxu0 0
      %7551 = vmatmul.mubr.bf16.gmra.mrb[0].mxu0 %v7335
      %v7552 = vpop.f32.mrb[0].mxu0
      %v7553 = vadd.f32 0.0, %v7552
      %v7554 = vpop.f32.mrb[0].mxu0
      %v7555 = vpop.f32.mrb[0].mxu0
      %v7556 = vadd.f32 0.0, %v7555
      %v7557 = vpop.f32.mrb[0].mxu0
      %7558 = vmatprep.mubr.bf16.mxu0 0
      %7559 = vmatmul.mubr.bf16.gmra.mrb[0].mxu0 %v7336
      %v7560 = vpop.f32.mrb[0].mxu0
      %v7561 = vadd.f32 0.0, %v7560
      %v7562 = vpop.f32.mrb[0].mxu0
      %v7563 = vpop.f32.mrb[0].mxu0
      %v7564 = vadd.f32 0.0, %v7563
      %v7565 = vpop.f32.mrb[0].mxu0
      %7566 = vmatprep.mubr.bf16.mxu0 0
      %7567 = vmatmul.mubr.bf16.gmra.mrb[0].mxu0 %v7337
      %v7568 = vpop.f32.mrb[0].mxu0
      %v7569 = vadd.f32 0.0, %v7568
      %v7570 = vpop.f32.mrb[0].mxu0
      %v7571 = vpop.f32.mrb[0].mxu0
      %v7572 = vadd.f32 0.0, %v7571
      %v7573 = vpop.f32.mrb[0].mxu0
      %7574 = vmatprep.mubr.bf16.mxu0 0
      %7575 = vmatmul.mubr.bf16.gmra.mrb[0].mxu0 %v7338
      %v7576 = vpop.f32.mrb[0].mxu0
      %v7577 = vadd.f32 0.0, %v7576
      %v7578 = vpop.f32.mrb[0].mxu0
      %v7579 = vpop.f32.mrb[0].mxu0
      %v7580 = vadd.f32 0.0, %v7579
      %v7581 = vpop.f32.mrb[0].mxu0
      %7582 = vmatprep.mubr.bf16.mxu0 0
      %7583 = vmatmul.mubr.bf16.gmra.mrb[0].mxu0 %v7339
      %v7584 = vpop.f32.mrb[0].mxu0
      %v7585 = vadd.f32 0.0, %v7584
      %v7586 = vpop.f32.mrb[0].mxu0
      %v7587 = vpop.f32.mrb[0].mxu0
      %v7588 = vadd.f32 0.0, %v7587
      %v7589 = vpop.f32.mrb[0].mxu0
      %7590 = vmatprep.mubr.bf16.mxu0 0
      %7591 = vmatmul.mubr.bf16.gmra.mrb[0].mxu0 %v7340
      %v7592 = vpop.f32.mrb[0].mxu0
      %v7593 = vadd.f32 0.0, %v7592
      %v7594 = vpop.f32.mrb[0].mxu0
      %v7595 = vpop.f32.mrb[0].mxu0
      %v7596 = vadd.f32 0.0, %v7595
      %v7597 = vpop.f32.mrb[0].mxu0
      %7598 = vdwg.mxu0
      %v7599 = vadd.f32 %v7341, %v7473
      %v7600 = vadd.f32 %v7342, %v7476
      %v7601 = vadd.f32 %v7343, %v7481
      %v7602 = vadd.f32 %v7344, %v7484
      %v7603 = vadd.f32 %v7345, %v7489
      %v7604 = vadd.f32 %v7346, %v7492
      %v7605 = vadd.f32 %v7347, %v7497
      %v7606 = vadd.f32 %v7348, %v7500
      %v7607 = vadd.f32 %v7349, %v7505
      %v7608 = vadd.f32 %v7350, %v7508
      %v7609 = vadd.f32 %v7351, %v7513
      %v7610 = vadd.f32 %v7352, %v7516
      %v7611 = vadd.f32 %v7353, %v7521
      %v7612 = vadd.f32 %v7354, %v7524
      %v7613 = vadd.f32 %v7355, %v7529
      %v7614 = vadd.f32 %v7356, %v7532
      %v7615 = vadd.f32 %v7357, %v7537
      %v7616 = vadd.f32 %v7358, %v7540
      %v7617 = vadd.f32 %v7359, %v7545
      %v7618 = vadd.f32 %v7360, %v7548
      %v7619 = vadd.f32 %v7361, %v7553
      %v7620 = vadd.f32 %v7362, %v7556
      %v7621 = vadd.f32 %v7363, %v7561
      %v7622 = vadd.f32 %v7364, %v7564
      %v7623 = vadd.f32 %v7365, %v7569
      %v7624 = vadd.f32 %v7366, %v7572
      %v7625 = vadd.f32 %v7367, %v7577
      %v7626 = vadd.f32 %v7368, %v7580
      %v7627 = vadd.f32 %v7369, %v7585
      %v7628 = vadd.f32 %v7370, %v7588
      %v7629 = vadd.f32 %v7371, %v7593
      %v7630 = vadd.f32 %v7372, %v7596
      %7631 = vst [vmem:[#allocation4] sm:$0xff] %v7599
      %7632 = vst [vmem:[#allocation4 + $0x8] sm:$0xff] %v7600
      %7633 = vst [vmem:[#allocation4 + $0x10] sm:$0xff] %v7601
      %7634 = vst [vmem:[#allocation4 + $0x18] sm:$0xff] %v7602
      %7635 = vst [vmem:[#allocation4 + $0x20] sm:$0xff] %v7603
      %7636 = vst [vmem:[#allocation4 + $0x28] sm:$0xff] %v7604
      %7637 = vst [vmem:[#allocation4 + $0x30] sm:$0xff] %v7605
      %7638 = vst [vmem:[#allocation4 + $0x38] sm:$0xff] %v7606
      %7639 = vst [vmem:[#allocation4 + $0x40] sm:$0xff] %v7607
      %7640 = vst [vmem:[#allocation4 + $0x48] sm:$0xff] %v7608
      %7641 = vst [vmem:[#allocation4 + $0x50] sm:$0xff] %v7609
      %7642 = vst [vmem:[#allocation4 + $0x58] sm:$0xff] %v7610
      %7643 = vst [vmem:[#allocation4 + $0x60] sm:$0xff] %v7611
      %7644 = vst [vmem:[#allocation4 + $0x68] sm:$0xff] %v7612
      %7645 = vst [vmem:[#allocation4 + $0x70] sm:$0xff] %v7613
      %7646 = vst [vmem:[#allocation4 + $0x78] sm:$0xff] %v7614
      %7647 = vst [vmem:[#allocation4 + $0x80] sm:$0xff] %v7615
      %7648 = vst [vmem:[#allocation4 + $0x88] sm:$0xff] %v7616
      %7649 = vst [vmem:[#allocation4 + $0x90] sm:$0xff] %v7617
      %7650 = vst [vmem:[#allocation4 + $0x98] sm:$0xff] %v7618
      %7651 = vst [vmem:[#allocation4 + $0xa0] sm:$0xff] %v7619
      %7652 = vst [vmem:[#allocation4 + $0xa8] sm:$0xff] %v7620
      %7653 = vst [vmem:[#allocation4 + $0xb0] sm:$0xff] %v7621
      %7654 = vst [vmem:[#allocation4 + $0xb8] sm:$0xff] %v7622
      %7655 = vst [vmem:[#allocation4 + $0xc0] sm:$0xff] %v7623
      %7656 = vst [vmem:[#allocation4 + $0xc8] sm:$0xff] %v7624
      %7657 = vst [vmem:[#allocation4 + $0xd0] sm:$0xff] %v7625
      %7658 = vst [vmem:[#allocation4 + $0xd8] sm:$0xff] %v7626
      %7659 = vst [vmem:[#allocation4 + $0xe0] sm:$0xff] %v7627
      %7660 = vst [vmem:[#allocation4 + $0xe8] sm:$0xff] %v7628
      %7661 = vst [vmem:[#allocation4 + $0xf0] sm:$0xff] %v7629
      %7662 = vst [vmem:[#allocation4 + $0xf8] sm:$0xff] %v7630
      %v7663 = vld [vmem:[#allocation4] sm:$0xff]
      %v7664 = vld [vmem:[#allocation4 + $0x8] sm:$0xff]
      %v7665 = vld [vmem:[#allocation4 + $0x10] sm:$0xff]
      %v7666 = vld [vmem:[#allocation4 + $0x18] sm:$0xff]
      %v7667 = vld [vmem:[#allocation4 + $0x20] sm:$0xff]
      %v7668 = vld [vmem:[#allocation4 + $0x28] sm:$0xff]
      %v7669 = vld [vmem:[#allocation4 + $0x30] sm:$0xff]
      %v7670 = vld [vmem:[#allocation4 + $0x38] sm:$0xff]
      %v7671 = vld [vmem:[#allocation4 + $0x40] sm:$0xff]
      %v7672 = vld [vmem:[#allocation4 + $0x48] sm:$0xff]
      %v7673 = vld [vmem:[#allocation4 + $0x50] sm:$0xff]
      %v7674 = vld [vmem:[#allocation4 + $0x58] sm:$0xff]
      %v7675 = vld [vmem:[#allocation4 + $0x60] sm:$0xff]
      %v7676 = vld [vmem:[#allocation4 + $0x68] sm:$0xff]
      %v7677 = vld [vmem:[#allocation4 + $0x70] sm:$0xff]
      %v7678 = vld [vmem:[#allocation4 + $0x78] sm:$0xff]
      %v7679 = vld [vmem:[#allocation4 + $0x80] sm:$0xff]
      %v7680 = vld [vmem:[#allocation4 + $0x88] sm:$0xff]
      %v7681 = vld [vmem:[#allocation4 + $0x90] sm:$0xff]
      %v7682 = vld [vmem:[#allocation4 + $0x98] sm:$0xff]
      %v7683 = vld [vmem:[#allocation4 + $0xa0] sm:$0xff]
      %v7684 = vld [vmem:[#allocation4 + $0xa8] sm:$0xff]
      %v7685 = vld [vmem:[#allocation4 + $0xb0] sm:$0xff]
      %v7686 = vld [vmem:[#allocation4 + $0xb8] sm:$0xff]
      %v7687 = vld [vmem:[#allocation4 + $0xc0] sm:$0xff]
      %v7688 = vld [vmem:[#allocation4 + $0xc8] sm:$0xff]
      %v7689 = vld [vmem:[#allocation4 + $0xd0] sm:$0xff]
      %v7690 = vld [vmem:[#allocation4 + $0xd8] sm:$0xff]
      %v7691 = vld [vmem:[#allocation4 + $0xe0] sm:$0xff]
      %v7692 = vld [vmem:[#allocation4 + $0xe8] sm:$0xff]
      %v7693 = vld [vmem:[#allocation4 + $0xf0] sm:$0xff]
      %v7694 = vld [vmem:[#allocation4 + $0xf8] sm:$0xff]
      %v7695 = vld [vmem:[%s6] sm:$0x1]
      %v7697 = vlaneseq
      %v7698 = vshrl.u32 %v7697, 7
      %v7699 = vsub.s32 0, %v7698
      %v7700 = vrot.slane %v7695, %v7699
      %v7702 = vadd.f32 %v7663, %v7700
      %v7703 = vadd.f32 %v7664, %v7700
      %v7704 = vadd.f32 %v7665, %v7700
      %v7705 = vadd.f32 %v7666, %v7700
      %v7706 = vadd.f32 %v7667, %v7700
      %v7707 = vadd.f32 %v7668, %v7700
      %v7708 = vadd.f32 %v7669, %v7700
      %v7709 = vadd.f32 %v7670, %v7700
      %v7710 = vadd.f32 %v7671, %v7700
      %v7711 = vadd.f32 %v7672, %v7700
      %v7712 = vadd.f32 %v7673, %v7700
      %v7713 = vadd.f32 %v7674, %v7700
      %v7714 = vadd.f32 %v7675, %v7700
      %v7715 = vadd.f32 %v7676, %v7700
      %v7716 = vadd.f32 %v7677, %v7700
      %v7717 = vadd.f32 %v7678, %v7700
      %v7718 = vadd.f32 %v7679, %v7700
      %v7719 = vadd.f32 %v7680, %v7700
      %v7720 = vadd.f32 %v7681, %v7700
      %v7721 = vadd.f32 %v7682, %v7700
      %v7722 = vadd.f32 %v7683, %v7700
      %v7723 = vadd.f32 %v7684, %v7700
      %v7724 = vadd.f32 %v7685, %v7700
      %v7725 = vadd.f32 %v7686, %v7700
      %v7726 = vadd.f32 %v7687, %v7700
      %v7727 = vadd.f32 %v7688, %v7700
      %v7728 = vadd.f32 %v7689, %v7700
      %v7729 = vadd.f32 %v7690, %v7700
      %v7730 = vadd.f32 %v7691, %v7700
      %v7731 = vadd.f32 %v7692, %v7700
      %v7732 = vadd.f32 %v7693, %v7700
      %v7733 = vadd.f32 %v7694, %v7700
      %v7734 = vld [vmem:[#allocation3] sm:$0xff]
      %v7735 = vld [vmem:[#allocation3 + $0x8] sm:$0xff]
      %v7736 = vld [vmem:[#allocation3 + $0x10] sm:$0xff]
      %v7737 = vld [vmem:[#allocation3 + $0x18] sm:$0xff]
      %v7738 = vld [vmem:[#allocation3 + $0x20] sm:$0xff]
      %v7739 = vld [vmem:[#allocation3 + $0x28] sm:$0xff]
      %v7740 = vld [vmem:[#allocation3 + $0x30] sm:$0xff]
      %v7741 = vld [vmem:[#allocation3 + $0x38] sm:$0xff]
      %v7742 = vld [vmem:[#allocation3 + $0x40] sm:$0xff]
      %v7743 = vld [vmem:[#allocation3 + $0x48] sm:$0xff]
      %v7744 = vld [vmem:[#allocation3 + $0x50] sm:$0xff]
      %v7745 = vld [vmem:[#allocation3 + $0x58] sm:$0xff]
      %v7746 = vld [vmem:[#allocation3 + $0x60] sm:$0xff]
      %v7747 = vld [vmem:[#allocation3 + $0x68] sm:$0xff]
      %v7748 = vld [vmem:[#allocation3 + $0x70] sm:$0xff]
      %v7749 = vld [vmem:[#allocation3 + $0x78] sm:$0xff]
      %v7750 = vld [vmem:[#allocation3 + $0x80] sm:$0xff]
      %v7751 = vld [vmem:[#allocation3 + $0x88] sm:$0xff]
      %v7752 = vld [vmem:[#allocation3 + $0x90] sm:$0xff]
      %v7753 = vld [vmem:[#allocation3 + $0x98] sm:$0xff]
      %v7754 = vld [vmem:[#allocation3 + $0xa0] sm:$0xff]
      %v7755 = vld [vmem:[#allocation3 + $0xa8] sm:$0xff]
      %v7756 = vld [vmem:[#allocation3 + $0xb0] sm:$0xff]
      %v7757 = vld [vmem:[#allocation3 + $0xb8] sm:$0xff]
      %v7758 = vld [vmem:[#allocation3 + $0xc0] sm:$0xff]
      %v7759 = vld [vmem:[#allocation3 + $0xc8] sm:$0xff]
      %v7760 = vld [vmem:[#allocation3 + $0xd0] sm:$0xff]
      %v7761 = vld [vmem:[#allocation3 + $0xd8] sm:$0xff]
      %v7762 = vld [vmem:[#allocation3 + $0xe0] sm:$0xff]
      %v7763 = vld [vmem:[#allocation3 + $0xe8] sm:$0xff]
      %v7764 = vld [vmem:[#allocation3 + $0xf0] sm:$0xff]
      %v7765 = vld [vmem:[#allocation3 + $0xf8] sm:$0xff]
      %v7766 = vadd.f32 %v7702, %v7734
      %v7767 = vadd.f32 %v7703, %v7735
      %v7768 = vadd.f32 %v7704, %v7736
      %v7769 = vadd.f32 %v7705, %v7737
      %v7770 = vadd.f32 %v7706, %v7738
      %v7771 = vadd.f32 %v7707, %v7739
      %v7772 = vadd.f32 %v7708, %v7740
      %v7773 = vadd.f32 %v7709, %v7741
      %v7774 = vadd.f32 %v7710, %v7742
      %v7775 = vadd.f32 %v7711, %v7743
      %v7776 = vadd.f32 %v7712, %v7744
      %v7777 = vadd.f32 %v7713, %v7745
      %v7778 = vadd.f32 %v7714, %v7746
      %v7779 = vadd.f32 %v7715, %v7747
      %v7780 = vadd.f32 %v7716, %v7748
      %v7781 = vadd.f32 %v7717, %v7749
      %v7782 = vadd.f32 %v7718, %v7750
      %v7783 = vadd.f32 %v7719, %v7751
      %v7784 = vadd.f32 %v7720, %v7752
      %v7785 = vadd.f32 %v7721, %v7753
      %v7786 = vadd.f32 %v7722, %v7754
      %v7787 = vadd.f32 %v7723, %v7755
      %v7788 = vadd.f32 %v7724, %v7756
      %v7789 = vadd.f32 %v7725, %v7757
      %v7790 = vadd.f32 %v7726, %v7758
      %v7791 = vadd.f32 %v7727, %v7759
      %v7792 = vadd.f32 %v7728, %v7760
      %v7793 = vadd.f32 %v7729, %v7761
      %v7794 = vadd.f32 %v7730, %v7762
      %v7795 = vadd.f32 %v7731, %v7763
      %v7796 = vadd.f32 %v7732, %v7764
      %v7797 = vadd.f32 %v7733, %v7765
      %v7798 = vmax.f32 %v7766, 0.0
      %v7799 = vmax.f32 %v7767, 0.0
      %v7800 = vmax.f32 %v7768, 0.0
      %v7801 = vmax.f32 %v7769, 0.0
      %v7802 = vmax.f32 %v7770, 0.0
      %v7803 = vmax.f32 %v7771, 0.0
      %v7804 = vmax.f32 %v7772, 0.0
      %v7805 = vmax.f32 %v7773, 0.0
      %v7806 = vmax.f32 %v7774, 0.0
      %v7807 = vmax.f32 %v7775, 0.0
      %v7808 = vmax.f32 %v7776, 0.0
      %v7809 = vmax.f32 %v7777, 0.0
      %v7810 = vmax.f32 %v7778, 0.0
      %v7811 = vmax.f32 %v7779, 0.0
      %v7812 = vmax.f32 %v7780, 0.0
      %v7813 = vmax.f32 %v7781, 0.0
      %v7814 = vmax.f32 %v7782, 0.0
      %v7815 = vmax.f32 %v7783, 0.0
      %v7816 = vmax.f32 %v7784, 0.0
      %v7817 = vmax.f32 %v7785, 0.0
      %v7818 = vmax.f32 %v7786, 0.0
      %v7819 = vmax.f32 %v7787, 0.0
      %v7820 = vmax.f32 %v7788, 0.0
      %v7821 = vmax.f32 %v7789, 0.0
      %v7822 = vmax.f32 %v7790, 0.0
      %v7823 = vmax.f32 %v7791, 0.0
      %v7824 = vmax.f32 %v7792, 0.0
      %v7825 = vmax.f32 %v7793, 0.0
      %v7826 = vmax.f32 %v7794, 0.0
      %v7827 = vmax.f32 %v7795, 0.0
      %v7828 = vmax.f32 %v7796, 0.0
      %v7829 = vmax.f32 %v7797, 0.0
      %v7830 = vpack.c.bf16 %v7799, %v7798
      %v7831 = vpack.c.bf16 %v7801, %v7800
      %v7832 = vpack.c.bf16 %v7803, %v7802
      %v7833 = vpack.c.bf16 %v7805, %v7804
      %v7834 = vpack.c.bf16 %v7807, %v7806
      %v7835 = vpack.c.bf16 %v7809, %v7808
      %v7836 = vpack.c.bf16 %v7811, %v7810
      %v7837 = vpack.c.bf16 %v7813, %v7812
      %v7838 = vpack.c.bf16 %v7815, %v7814
      %v7839 = vpack.c.bf16 %v7817, %v7816
      %v7840 = vpack.c.bf16 %v7819, %v7818
      %v7841 = vpack.c.bf16 %v7821, %v7820
      %v7842 = vpack.c.bf16 %v7823, %v7822
      %v7843 = vpack.c.bf16 %v7825, %v7824
      %v7844 = vpack.c.bf16 %v7827, %v7826
      %v7845 = vpack.c.bf16 %v7829, %v7828
      %v7846 = vld [vmem:[%s7] sm:$0xf]
      %v7847 = vld [vmem:[%s7 + $0x4] sm:$0xf]
      %v7848 = vld [vmem:[%s7 + $0x8] sm:$0xf]
      %v7849 = vld [vmem:[%s7 + $0xc] sm:$0xf]
      %v7850 = vld [vmem:[%s7 + $0x10] sm:$0xf]
      %v7851 = vld [vmem:[%s7 + $0x14] sm:$0xf]
      %v7852 = vld [vmem:[%s7 + $0x18] sm:$0xf]
      %v7853 = vld [vmem:[%s7 + $0x1c] sm:$0xf]
      %v7854 = vld [vmem:[%s7 + $0x20] sm:$0xf]
      %v7855 = vld [vmem:[%s7 + $0x24] sm:$0xf]
      %v7856 = vld [vmem:[%s7 + $0x28] sm:$0xf]
      %v7857 = vld [vmem:[%s7 + $0x2c] sm:$0xf]
      %v7858 = vld [vmem:[%s7 + $0x30] sm:$0xf]
      %v7859 = vld [vmem:[%s7 + $0x34] sm:$0xf]
      %v7860 = vld [vmem:[%s7 + $0x38] sm:$0xf]
      %v7861 = vld [vmem:[%s7 + $0x3c] sm:$0xf]
      %v7862 = vld [vmem:[%s8] sm:$0x1]
      %v7864 = vlaneseq
      %v7865 = vshrl.u32 %v7864, 7
      %v7866 = vsub.s32 0, %v7865
      %v7867 = vrot.slane %v7862, %v7866
      %v7885 = vunpack.c.l.b16 %v7846
      %v7886 = vunpack.c.l.b16 %v7847
      %v7887 = vunpack.c.l.b16 %v7848
      %v7888 = vunpack.c.l.b16 %v7849
      %v7889 = vunpack.c.l.b16 %v7850
      %v7890 = vunpack.c.l.b16 %v7851
      %v7891 = vunpack.c.l.b16 %v7852
      %v7892 = vunpack.c.l.b16 %v7853
      %v7893 = vunpack.c.l.b16 %v7854
      %v7894 = vunpack.c.l.b16 %v7855
      %v7895 = vunpack.c.l.b16 %v7856
      %v7896 = vunpack.c.l.b16 %v7857
      %v7897 = vunpack.c.l.b16 %v7858
      %v7898 = vunpack.c.l.b16 %v7859
      %v7899 = vunpack.c.l.b16 %v7860
      %v7900 = vunpack.c.l.b16 %v7861
      %v7901 = vpack.c.b16 %v7886, %v7885
      %v7902 = vpack.c.b16 %v7888, %v7887
      %v7903 = vpack.c.b16 %v7890, %v7889
      %v7904 = vpack.c.b16 %v7892, %v7891
      %v7905 = vpack.c.b16 %v7894, %v7893
      %v7906 = vpack.c.b16 %v7896, %v7895
      %v7907 = vpack.c.b16 %v7898, %v7897
      %v7908 = vpack.c.b16 %v7900, %v7899
      %7917 = vmatprep.subr.bf16.mxu0 0
      %7918 = vmatpush1.bf16.msra.mxu0 %v7901
      %7919 = vmatprep.subr.bf16.mxu0 0
      %7920 = vmatpush1.bf16.msra.mxu0 %v7902
      %7921 = vmatprep.subr.bf16.mxu0 0
      %7922 = vmatpush1.bf16.msra.mxu0 %v7903
      %7923 = vmatprep.subr.bf16.mxu0 0
      %7924 = vmatpush1.bf16.msra.mxu0 %v7904
      %7925 = vmatprep.subr.bf16.mxu0 0
      %7926 = vmatpush1.bf16.msra.mxu0 %v7905
      %7927 = vmatprep.subr.bf16.mxu0 0
      %7928 = vmatpush1.bf16.msra.mxu0 %v7906
      %7929 = vmatprep.subr.bf16.mxu0 0
      %7930 = vmatpush1.bf16.msra.mxu0 %v7907
      %7931 = vmatprep.subr.bf16.mxu0 0
      %7932 = vmatpush1.bf16.msra.mxu0 %v7908
      %7933 = vmatprep.subr.bf16.mxu0 0
      %7934 = vmatpush1.bf16.msra.mxu0 0
      %7935 = vmatprep.subr.bf16.mxu0 0
      %7936 = vmatpush1.bf16.msra.mxu0 0
      %7937 = vmatprep.subr.bf16.mxu0 0
      %7938 = vmatpush1.bf16.msra.mxu0 0
      %7939 = vmatprep.subr.bf16.mxu0 0
      %7940 = vmatpush1.bf16.msra.mxu0 0
      %7941 = vmatprep.subr.bf16.mxu0 0
      %7942 = vmatpush1.bf16.msra.mxu0 0
      %7943 = vmatprep.subr.bf16.mxu0 0
      %7944 = vmatpush1.bf16.msra.mxu0 0
      %7945 = vmatprep.subr.bf16.mxu0 0
      %7946 = vmatpush1.bf16.msra.mxu0 0
      %7947 = vmatprep.subr.bf16.mxu0 0
      %7948 = vmatpush1.bf16.msra.mxu0 0
      %7949 = vmatprep.mubr.bf16.mxu0 0
      %7950 = vmatmul.mubr.bf16.gmra.mrb[0].mxu0 %v7830
      %v7951 = vpop.f32.mrb[0].mxu0
      %v7952 = vadd.f32 %v7867, %v7951
      %v7953 = vpop.f32.mrb[0].mxu0
      %v7954 = vpop.f32.mrb[0].mxu0
      %v7955 = vadd.f32 %v7867, %v7954
      %v7956 = vpop.f32.mrb[0].mxu0
      %7957 = vmatprep.mubr.bf16.mxu0 0
      %7958 = vmatmul.mubr.bf16.gmra.mrb[0].mxu0 %v7831
      %v7959 = vpop.f32.mrb[0].mxu0
      %v7960 = vadd.f32 %v7867, %v7959
      %v7961 = vpop.f32.mrb[0].mxu0
      %v7962 = vpop.f32.mrb[0].mxu0
      %v7963 = vadd.f32 %v7867, %v7962
      %v7964 = vpop.f32.mrb[0].mxu0
      %7965 = vmatprep.mubr.bf16.mxu0 0
      %7966 = vmatmul.mubr.bf16.gmra.mrb[0].mxu0 %v7832
      %v7967 = vpop.f32.mrb[0].mxu0
      %v7968 = vadd.f32 %v7867, %v7967
      %v7969 = vpop.f32.mrb[0].mxu0
      %v7970 = vpop.f32.mrb[0].mxu0
      %v7971 = vadd.f32 %v7867, %v7970
      %v7972 = vpop.f32.mrb[0].mxu0
      %7973 = vmatprep.mubr.bf16.mxu0 0
      %7974 = vmatmul.mubr.bf16.gmra.mrb[0].mxu0 %v7833
      %v7975 = vpop.f32.mrb[0].mxu0
      %v7976 = vadd.f32 %v7867, %v7975
      %v7977 = vpop.f32.mrb[0].mxu0
      %v7978 = vpop.f32.mrb[0].mxu0
      %v7979 = vadd.f32 %v7867, %v7978
      %v7980 = vpop.f32.mrb[0].mxu0
      %7981 = vmatprep.mubr.bf16.mxu0 0
      %7982 = vmatmul.mubr.bf16.gmra.mrb[0].mxu0 %v7834
      %v7983 = vpop.f32.mrb[0].mxu0
      %v7984 = vadd.f32 %v7867, %v7983
      %v7985 = vpop.f32.mrb[0].mxu0
      %v7986 = vpop.f32.mrb[0].mxu0
      %v7987 = vadd.f32 %v7867, %v7986
      %v7988 = vpop.f32.mrb[0].mxu0
      %7989 = vmatprep.mubr.bf16.mxu0 0
      %7990 = vmatmul.mubr.bf16.gmra.mrb[0].mxu0 %v7835
      %v7991 = vpop.f32.mrb[0].mxu0
      %v7992 = vadd.f32 %v7867, %v7991
      %v7993 = vpop.f32.mrb[0].mxu0
      %v7994 = vpop.f32.mrb[0].mxu0
      %v7995 = vadd.f32 %v7867, %v7994
      %v7996 = vpop.f32.mrb[0].mxu0
      %7997 = vmatprep.mubr.bf16.mxu0 0
      %7998 = vmatmul.mubr.bf16.gmra.mrb[0].mxu0 %v7836
      %v7999 = vpop.f32.mrb[0].mxu0
      %v8000 = vadd.f32 %v7867, %v7999
      %v8001 = vpop.f32.mrb[0].mxu0
      %v8002 = vpop.f32.mrb[0].mxu0
      %v8003 = vadd.f32 %v7867, %v8002
      %v8004 = vpop.f32.mrb[0].mxu0
      %8005 = vmatprep.mubr.bf16.mxu0 0
      %8006 = vmatmul.mubr.bf16.gmra.mrb[0].mxu0 %v7837
      %v8007 = vpop.f32.mrb[0].mxu0
      %v8008 = vadd.f32 %v7867, %v8007
      %v8009 = vpop.f32.mrb[0].mxu0
      %v8010 = vpop.f32.mrb[0].mxu0
      %v8011 = vadd.f32 %v7867, %v8010
      %v8012 = vpop.f32.mrb[0].mxu0
      %8013 = vmatprep.mubr.bf16.mxu0 0
      %8014 = vmatmul.mubr.bf16.gmra.mrb[0].mxu0 %v7838
      %v8015 = vpop.f32.mrb[0].mxu0
      %v8016 = vadd.f32 %v7867, %v8015
      %v8017 = vpop.f32.mrb[0].mxu0
      %v8018 = vpop.f32.mrb[0].mxu0
      %v8019 = vadd.f32 %v7867, %v8018
      %v8020 = vpop.f32.mrb[0].mxu0
      %8021 = vmatprep.mubr.bf16.mxu0 0
      %8022 = vmatmul.mubr.bf16.gmra.mrb[0].mxu0 %v7839
      %v8023 = vpop.f32.mrb[0].mxu0
      %v8024 = vadd.f32 %v7867, %v8023
      %v8025 = vpop.f32.mrb[0].mxu0
      %v8026 = vpop.f32.mrb[0].mxu0
      %v8027 = vadd.f32 %v7867, %v8026
      %v8028 = vpop.f32.mrb[0].mxu0
      %8029 = vmatprep.mubr.bf16.mxu0 0
      %8030 = vmatmul.mubr.bf16.gmra.mrb[0].mxu0 %v7840
      %v8031 = vpop.f32.mrb[0].mxu0
      %v8032 = vadd.f32 %v7867, %v8031
      %v8033 = vpop.f32.mrb[0].mxu0
      %v8034 = vpop.f32.mrb[0].mxu0
      %v8035 = vadd.f32 %v7867, %v8034
      %v8036 = vpop.f32.mrb[0].mxu0
      %8037 = vmatprep.mubr.bf16.mxu0 0
      %8038 = vmatmul.mubr.bf16.gmra.mrb[0].mxu0 %v7841
      %v8039 = vpop.f32.mrb[0].mxu0
      %v8040 = vadd.f32 %v7867, %v8039
      %v8041 = vpop.f32.mrb[0].mxu0
      %v8042 = vpop.f32.mrb[0].mxu0
      %v8043 = vadd.f32 %v7867, %v8042
      %v8044 = vpop.f32.mrb[0].mxu0
      %8045 = vmatprep.mubr.bf16.mxu0 0
      %8046 = vmatmul.mubr.bf16.gmra.mrb[0].mxu0 %v7842
      %v8047 = vpop.f32.mrb[0].mxu0
      %v8048 = vadd.f32 %v7867, %v8047
      %v8049 = vpop.f32.mrb[0].mxu0
      %v8050 = vpop.f32.mrb[0].mxu0
      %v8051 = vadd.f32 %v7867, %v8050
      %v8052 = vpop.f32.mrb[0].mxu0
      %8053 = vmatprep.mubr.bf16.mxu0 0
      %8054 = vmatmul.mubr.bf16.gmra.mrb[0].mxu0 %v7843
      %v8055 = vpop.f32.mrb[0].mxu0
      %v8056 = vadd.f32 %v7867, %v8055
      %v8057 = vpop.f32.mrb[0].mxu0
      %v8058 = vpop.f32.mrb[0].mxu0
      %v8059 = vadd.f32 %v7867, %v8058
      %v8060 = vpop.f32.mrb[0].mxu0
      %8061 = vmatprep.mubr.bf16.mxu0 0
      %8062 = vmatmul.mubr.bf16.gmra.mrb[0].mxu0 %v7844
      %v8063 = vpop.f32.mrb[0].mxu0
      %v8064 = vadd.f32 %v7867, %v8063
      %v8065 = vpop.f32.mrb[0].mxu0
      %v8066 = vpop.f32.mrb[0].mxu0
      %v8067 = vadd.f32 %v7867, %v8066
      %v8068 = vpop.f32.mrb[0].mxu0
      %8069 = vmatprep.mubr.bf16.mxu0 0
      %8070 = vmatmul.mubr.bf16.gmra.mrb[0].mxu0 %v7845
      %v8071 = vpop.f32.mrb[0].mxu0
      %v8072 = vadd.f32 %v7867, %v8071
      %v8073 = vpop.f32.mrb[0].mxu0
      %v8074 = vpop.f32.mrb[0].mxu0
      %v8075 = vadd.f32 %v7867, %v8074
      %v8076 = vpop.f32.mrb[0].mxu0
      %8077 = vdwg.mxu0
      %8078 = vst [vmem:[%s332] sm:$0xff] %v7952
      %8079 = vst [vmem:[%s332 + $0x8] sm:$0xff] %v7955
      %8080 = vst [vmem:[%s332 + $0x10] sm:$0xff] %v7960
      %8081 = vst [vmem:[%s332 + $0x18] sm:$0xff] %v7963
      %8082 = vst [vmem:[%s332 + $0x20] sm:$0xff] %v7968
      %8083 = vst [vmem:[%s332 + $0x28] sm:$0xff] %v7971
      %8084 = vst [vmem:[%s332 + $0x30] sm:$0xff] %v7976
      %8085 = vst [vmem:[%s332 + $0x38] sm:$0xff] %v7979
      %8086 = vst [vmem:[%s332 + $0x40] sm:$0xff] %v7984
      %8087 = vst [vmem:[%s332 + $0x48] sm:$0xff] %v7987
      %8088 = vst [vmem:[%s332 + $0x50] sm:$0xff] %v7992
      %8089 = vst [vmem:[%s332 + $0x58] sm:$0xff] %v7995
      %8090 = vst [vmem:[%s332 + $0x60] sm:$0xff] %v8000
      %8091 = vst [vmem:[%s332 + $0x68] sm:$0xff] %v8003
      %8092 = vst [vmem:[%s332 + $0x70] sm:$0xff] %v8008
      %8093 = vst [vmem:[%s332 + $0x78] sm:$0xff] %v8011
      %8094 = vst [vmem:[%s332 + $0x80] sm:$0xff] %v8016
      %8095 = vst [vmem:[%s332 + $0x88] sm:$0xff] %v8019
      %8096 = vst [vmem:[%s332 + $0x90] sm:$0xff] %v8024
      %8097 = vst [vmem:[%s332 + $0x98] sm:$0xff] %v8027
      %8098 = vst [vmem:[%s332 + $0xa0] sm:$0xff] %v8032
      %8099 = vst [vmem:[%s332 + $0xa8] sm:$0xff] %v8035
      %8100 = vst [vmem:[%s332 + $0xb0] sm:$0xff] %v8040
      %8101 = vst [vmem:[%s332 + $0xb8] sm:$0xff] %v8043
      %8102 = vst [vmem:[%s332 + $0xc0] sm:$0xff] %v8048
      %8103 = vst [vmem:[%s332 + $0xc8] sm:$0xff] %v8051
      %8104 = vst [vmem:[%s332 + $0xd0] sm:$0xff] %v8056
      %8105 = vst [vmem:[%s332 + $0xd8] sm:$0xff] %v8059
      %8106 = vst [vmem:[%s332 + $0xe0] sm:$0xff] %v8064
      %8107 = vst [vmem:[%s332 + $0xe8] sm:$0xff] %v8067
      %8108 = vst [vmem:[%s332 + $0xf0] sm:$0xff] %v8072
      %8109 = vst [vmem:[%s332 + $0xf8] sm:$0xff] %v8075
      %p8110 = scmp.lt.s32.totalorder %s20, 1
      %s8111 = scalar_select %p8110, %s20, 1
      %s8112 = smul.addr %s8111, 32
      %s8113 = smul.addr %s8112, 8
      %s8114 = scalar_lea.vmem %s9, %s8113
      // Predicated region
      $region57: #{fork_forward.1} parent=55 // pred_check
        %p8115 = pneg %p232
      $region58: #{fork_forward.1} parent=55 // pred_check_branch
        %8117 = sbr.rel (%p8115) target = $region60
      $region59: #{fork_forward.1} parent=55 // pred_region
        _
      $region60: #{fork_forward.1} parent=55 // pred_fallthru
        _
    $region56: #{fork_forward.1} parent=5 // pred_fallthru
      _
    %p8118 = scmp.le.s32.totalorder 2, %s15
    // Predicated region
    $region61: #{fork_forward.1} parent=5 // pred_check
      %p8119 = pneg %p8118
    $region62: #{fork_forward.1} parent=5 // pred_check_branch
      %8121 = sbr.rel (%p8119) target = $region64
    $region63: #{fork_forward.1} parent=5 // pred_region
      %s8122 = ssub.s32 %s15, 2
      // Predicated region
      $region65: #{fork_forward.1} parent=63 // pred_check
        %p8123 = pneg %p238
      $region66: #{fork_forward.1} parent=63 // pred_check_branch
        %8125 = sbr.rel (%p8123) target = $region68
      $region67: #{fork_forward.1} parent=63 // pred_region
        %p8126 = scmp.lt.s32.totalorder %s21, 1
        %s8127 = scalar_select %p8126, %s21, 1
        %s8128 = smul.addr %s8127, 32
        %s8129 = smul.addr %s8128, 8
        %s8130 = scalar_lea.vmem %s9, %s8129
      $region68: #{fork_forward.1} parent=63 // pred_fallthru
        _
    $region64: #{fork_forward.1} parent=5 // pred_fallthru
      _
  $region6: #{fork_forward.1} parent=0 // loop_footer
    %s19 = sadd.s32 1, %s15
  $region7: #{fork_forward.1} parent=0 // loop_footer_branch
    %14 = sbr.rel target = $region3
  $region8: #{fork_forward.1} parent=0 // loop_exit
    _

</llo_original>
